<compile_context>
chip_gen: v7x
topology: tpu7x:2x2x1
jax: 0.10.0
libtpu: 0.0.40
codegen_flags: <defaults>
</compile_context>

<pallas_src>
import functools

import jax
import jax.numpy as jnp
from jax import lax
from jax.experimental import pallas as pl
from jax.experimental.pallas import tpu as pltpu


def _softmax_rows(z):
    """Numerically-stable softmax over dim=1 (classes); exact reciprocal."""
    m = jnp.max(z, axis=1, keepdims=True)
    e = jnp.exp(z - m)
    return e * pl.reciprocal(jnp.sum(e, axis=1, keepdims=True))


def _linear(a, w, bias, matmul_dtype):
    """a: (TB, F) f32, w: (O, F) PyTorch layout, bias: (1, O) -> (TB, O) f32."""
    y = lax.dot_general(a.astype(matmul_dtype), w.astype(matmul_dtype),
                        (((1,), (1,)), ((), ())),
                        preferred_element_type=jnp.float32)
    return y + bias


def _probs_times_w(probs, w):
    """(TB, O) @ (O, F) -> (TB, F) with tiny O: VPU broadcast-MAC, not MXU."""
    O = w.shape[0]
    if O > 64:  # genuinely large class counts: let the MXU handle it
        return jnp.dot(probs, w, preferred_element_type=jnp.float32)
    acc = probs[:, 0:1] * w[0:1, :]
    for o in range(1, O):
        acc = acc + probs[:, o:o + 1] * w[o:o + 1, :]
    return acc


def asn_fused_kernel(x_ref, wc_ref, bc_ref,
                     ws_ref, bs_ref, wsub_ref, bsub_ref, wt_ref, bt_ref,
                     out_ref, feats_acc,
                     *, hw_true, hw_tile, needs_hw_mask, matmul_dtype):
    # x_ref:    (TB, C, HW_tile)   input tile, NCHW with spatial flattened
    # wc_ref:   (F, C)   bc_ref: (F, 1)    backbone-stub 1x1 conv
    # ws_ref:   (S, F)   bs_ref: (1, S)    fc_super  (PyTorch [out, in])
    # wsub_ref: (U, F)   bsub_ref: (1, U)  fc_sub
    # wt_ref:   (T, F)   bt_ref: (1, T)    fc_t
    # out_ref:  (TB, P)  P = round_up(T+U+S, 128): [target | sub | super | 0]
    # feats_acc:(TB, F)  f32 scratch accumulator across the HW grid axis
    k = pl.program_id(1)
    nk = pl.num_programs(1)
    TB, C, _ = x_ref.shape
    F = wc_ref.shape[0]
    S = ws_ref.shape[0]
    U = wsub_ref.shape[0]
    T = wt_ref.shape[0]
    P = out_ref.shape[1]

    @pl.when(k == 0)
    def _():
        feats_acc[...] = jnp.zeros_like(feats_acc)

    # ---- backbone stub: 1x1 conv (VPU MAC over C) + ReLU + partial pool -----
    x = x_ref[...]                                        # (TB, C, HW_tile)
    wc = wc_ref[...]                                      # (F, C)
    acc = x[:, 0:1, :] * wc[:, 0:1].reshape(1, F, 1)      # (TB, F, HW_tile)
    for c in range(1, C):                                 # C is tiny & static
        acc = acc + x[:, c:c + 1, :] * wc[:, c:c + 1].reshape(1, F, 1)
    h = jnp.maximum(acc + bc_ref[...].reshape(1, F, 1), 0.0)
    if needs_hw_mask:
        col = k * hw_tile + lax.broadcasted_iota(jnp.int32, (1, 1, hw_tile), 2)
        h = jnp.where(col < hw_true, h, 0.0)
    # Partial global-average pool: XLU lane reduction into the f32 accumulator.
    feats_acc[...] += jnp.sum(h, axis=-1)                 # (TB, F)

    # ---- ASN head: run once per batch tile, after the last HW tile ----------
    @pl.when(k == nk - 1)
    def _():
        feats = feats_acc[...] * (1.0 / hw_true)          # fold 1/HW
        w_sup = ws_ref[...]
        w_sub = wsub_ref[...]
        w_t = wt_ref[...]

        super_logits = _linear(feats, w_sup, bs_ref[...], matmul_dtype)
        super_probs = _softmax_rows(super_logits)
        fused_super = feats * _probs_times_w(super_probs, w_sup)

        sub_logits = _linear(fused_super, w_sub, bsub_ref[...], matmul_dtype)
        sub_probs = _softmax_rows(sub_logits)
        sub_fused = feats * _probs_times_w(sub_probs, w_sub)

        target_logits = _linear(sub_fused, w_t, bt_ref[...], matmul_dtype)

        # Single lane-dense 128-padded slab, one unmasked store.
        pieces = [target_logits, sub_logits, super_logits]
        pad = P - (T + U + S)
        if pad > 0:
            pieces.append(jnp.zeros((TB, pad), jnp.float32))
        out_ref[...] = jnp.concatenate(pieces, axis=1)


def _round_up(n, m):
    return ((n + m - 1) // m) * m


def _choose_hw_tile(hw, tb, f, budget_bytes=6 * 1024 * 1024):
    """Cap the (TB, F, HW_tile) f32 intermediate at ~budget_bytes of VMEM."""
    max_tile = max(128, (budget_bytes // (tb * f * 4)) // 128 * 128)
    if hw <= max_tile:
        return hw
    for t in range(max_tile, 127, -128):   # prefer a divisor (no tail mask)
        if hw % t == 0:
            return t
    return max_tile                        # padded tail, masked in-kernel


def asn_correct_forward(x, params, head_matmul_dtype=jnp.bfloat16):
    B, C, H, W = x.shape
    HW = H * W
    F = params["wc"].shape[0]
    w_super, b_super = params["w_super"], params["b_super"]
    w_sub, b_sub = params["w_sub"], params["b_sub"]
    w_t, b_t = params["w_t"], params["b_t"]
    S, U, T = w_super.shape[0], w_sub.shape[0], w_t.shape[0]
    P = _round_up(S + U + T, 128)

    TB = 8                                  # batch tile: full sublanes
    B_pad = _round_up(B, TB)
    HW_TILE = _choose_hw_tile(HW, TB, F)
    HW_pad = _round_up(HW, HW_TILE)

    x_r = x.reshape(B, C, HW)               # pure reshape: no HBM transpose
    if B_pad != B or HW_pad != HW:
        x_r = jnp.pad(x_r, ((0, B_pad - B), (0, 0), (0, HW_pad - HW)))

    grid = (B_pad // TB, HW_pad // HW_TILE)

    kernel = functools.partial(
        asn_fused_kernel,
        hw_true=HW, hw_tile=HW_TILE, needs_hw_mask=HW_pad != HW,
        matmul_dtype=head_matmul_dtype)

    slab = pl.pallas_call(
        kernel,
        out_shape=jax.ShapeDtypeStruct((B_pad, P), jnp.float32),
        grid_spec=pltpu.PrefetchScalarGridSpec(
            num_scalar_prefetch=0,
            grid=grid,
            in_specs=[
                pl.BlockSpec((TB, C, HW_TILE), lambda i, k: (i, 0, k)),
                pl.BlockSpec((F, C), lambda i, k: (0, 0)),   # resident weights
                pl.BlockSpec((F, 1), lambda i, k: (0, 0)),
                pl.BlockSpec((S, F), lambda i, k: (0, 0)),
                pl.BlockSpec((1, S), lambda i, k: (0, 0)),
                pl.BlockSpec((U, F), lambda i, k: (0, 0)),
                pl.BlockSpec((1, U), lambda i, k: (0, 0)),
                pl.BlockSpec((T, F), lambda i, k: (0, 0)),
                pl.BlockSpec((1, T), lambda i, k: (0, 0)),
            ],
            out_specs=pl.BlockSpec((TB, P), lambda i, k: (i, 0)),
            scratch_shapes=[pltpu.VMEM((TB, F), jnp.float32)],
        ),
        compiler_params=pltpu.CompilerParams(
            dimension_semantics=("parallel", "arbitrary"),
            vmem_limit_bytes=32 * 1024 * 1024),
    )(x_r, params["wc"], params["bc"],
      w_super, b_super.reshape(1, S),
      w_sub, b_sub.reshape(1, U),
      w_t, b_t.reshape(1, T))

    target_logits = slab[:B, :T]
    sub_logits = slab[:B, T:T + U]
    super_logits = slab[:B, T + U:T + U + S]
    return target_logits, sub_logits, super_logits


def init_params(key, in_channels, num_features,
                num_superclasses, num_subclasses, num_targetclasses):
    ks = jax.random.split(key, 8)
    scale = 0.05
    return {
        # backbone stub 1x1 conv, conv-style [out_ch, in_ch] layout
        "wc": scale * jax.random.normal(ks[0], (num_features, in_channels), jnp.float32),
        "bc": scale * jax.random.normal(ks[1], (num_features, 1), jnp.float32),
        # fc_super / fc_sub / fc_t, PyTorch weight layout [out, in]
        "w_super": scale * jax.random.normal(ks[2], (num_superclasses, num_features), jnp.float32),
        "b_super": scale * jax.random.normal(ks[3], (num_superclasses,), jnp.float32),
        "w_sub": scale * jax.random.normal(ks[4], (num_subclasses, num_features), jnp.float32),
        "b_sub": scale * jax.random.normal(ks[5], (num_subclasses,), jnp.float32),
        "w_t": scale * jax.random.normal(ks[6], (num_targetclasses, num_features), jnp.float32),
        "b_t": scale * jax.random.normal(ks[7], (num_targetclasses,), jnp.float32),
    }


def reference_forward(x, params):
    """Pure-JAX f32 reference of the same forward (stub backbone + exact head)."""
    B, C, H, W = x.shape
    xr = x.reshape(B, C, H * W)
    h = jnp.einsum("bci,fc->bif", xr, params["wc"]) + params["bc"].reshape(1, 1, -1)
    feats = jnp.mean(jnp.maximum(h, 0.0), axis=1)          # (B, F)

    def lin(a, w, b):
        return a @ w.T + b

    sl = lin(feats, params["w_super"], params["b_super"])
    sp = jax.nn.softmax(sl, axis=1)
    fs = feats * (sp @ params["w_super"])
    ul = lin(fs, params["w_sub"], params["b_sub"])
    up = jax.nn.softmax(ul, axis=1)
    sf = feats * (up @ params["w_sub"])
    tl = lin(sf, params["w_t"], params["b_t"])
    return tl, ul, sl


if __name__ == "__main__":
    key = jax.random.PRNGKey(0)
    kx, kp = jax.random.split(key)

    # Small shapes consistent with the module's forward
    B, C, H, W = 2, 4, 16, 16
    num_features = 256            # (real ResNet-50 would be 2048)
    num_superclasses = 8
    num_subclasses = 16
    num_targetclasses = 10

    x = jax.random.normal(kx, (B, C, H, W), jnp.float32)
    params = init_params(kp, C, num_features,
                         num_superclasses, num_subclasses, num_targetclasses)

    ref_t, ref_u, ref_s = reference_forward(x, params)

    # Default (perf) path: bf16 MXU operands for the head projections,
    # f32 accumulation -> compare with a mixed-precision tolerance.
    fwd_bf16 = jax.jit(asn_correct_forward)
    t_bf16, u_bf16, s_bf16 = jax.block_until_ready(fwd_bf16(x, params))
    assert t_bf16.shape == (B, num_targetclasses)
    assert u_bf16.shape == (B, num_subclasses)
    assert s_bf16.shape == (B, num_superclasses)
    assert jnp.all(jnp.isfinite(t_bf16))
    assert jnp.allclose(t_bf16, ref_t, rtol=1e-2, atol=1e-2)
    assert jnp.allclose(u_bf16, ref_u, rtol=1e-2, atol=1e-2)
    assert jnp.allclose(s_bf16, ref_s, rtol=1e-2, atol=1e-2)

    # Full-f32 head matmuls: tight tolerance against the pure-JAX reference.
    fwd_f32 = jax.jit(functools.partial(asn_correct_forward,
                                        head_matmul_dtype=jnp.float32))
    t_f32, u_f32, s_f32 = jax.block_until_ready(fwd_f32(x, params))
    assert jnp.allclose(t_f32, ref_t, rtol=2e-3, atol=2e-3)
    assert jnp.allclose(u_f32, ref_u, rtol=2e-3, atol=2e-3)
    assert jnp.allclose(s_f32, ref_s, rtol=2e-3, atol=2e-3)

    print("KERNEL_OK")
</pallas_src>

<mosaic_0001>
module attributes {stable_mosaic.version = 11 : i64} {
  func.func @asn_fused_kernel(%arg0: i32, %arg1: i32, %arg2: memref<8x4x256xf32, #tpu.memory_space<vmem>>, %arg3: memref<256x4xf32, #tpu.memory_space<vmem>>, %arg4: memref<256x1xf32, #tpu.memory_space<vmem>>, %arg5: memref<8x256xf32, #tpu.memory_space<vmem>>, %arg6: memref<1x8xf32, #tpu.memory_space<vmem>>, %arg7: memref<16x256xf32, #tpu.memory_space<vmem>>, %arg8: memref<1x16xf32, #tpu.memory_space<vmem>>, %arg9: memref<10x256xf32, #tpu.memory_space<vmem>>, %arg10: memref<1x10xf32, #tpu.memory_space<vmem>>, %arg11: memref<8x128xf32, #tpu.memory_space<vmem>>, %arg12: memref<8x256xf32, #tpu.memory_space<vmem>>) attributes {dimension_semantics = [#tpu.dimension_semantics<parallel>, #tpu.dimension_semantics<arbitrary>], iteration_bounds = array<i64: 1, 1>, scalar_prefetch = 0 : i64, scratch_operands = 1 : i64, tpu.core_type = #tpu.core_type<tc>, window_params = [{transform_indices = @transform_0, window_bounds = array<i64: 8, 4, 256>}, {pipeline_mode = #tpu.pipeline_mode<synchronous>, transform_indices = @transform_1, window_bounds = array<i64: 256, 4>}, {pipeline_mode = #tpu.pipeline_mode<synchronous>, transform_indices = @transform_2, window_bounds = array<i64: 256, 1>}, {pipeline_mode = #tpu.pipeline_mode<synchronous>, transform_indices = @transform_3, window_bounds = array<i64: 8, 256>}, {pipeline_mode = #tpu.pipeline_mode<synchronous>, transform_indices = @transform_4, window_bounds = array<i64: 1, 8>}, {pipeline_mode = #tpu.pipeline_mode<synchronous>, transform_indices = @transform_5, window_bounds = array<i64: 16, 256>}, {pipeline_mode = #tpu.pipeline_mode<synchronous>, transform_indices = @transform_6, window_bounds = array<i64: 1, 16>}, {pipeline_mode = #tpu.pipeline_mode<synchronous>, transform_indices = @transform_7, window_bounds = array<i64: 10, 256>}, {pipeline_mode = #tpu.pipeline_mode<synchronous>, transform_indices = @transform_8, window_bounds = array<i64: 1, 10>}, {transform_indices = @transform_9, window_bounds = array<i64: 8, 128>}]} {
    %c0_i32 = arith.constant 0 : i32
    %0 = arith.cmpi eq, %arg1, %c0_i32 : i32
    %1 = arith.extui %0 : i1 to i32
    %c0_i32_0 = arith.constant 0 : i32
    %2 = arith.cmpi ne, %1, %c0_i32_0 : i32
    scf.if %2 {
      %cst_14 = arith.constant 0.000000e+00 : f32
      %45 = vector.broadcast %cst_14 : f32 to vector<8x256xf32>
      %c0_15 = arith.constant 0 : index
      %c0_16 = arith.constant 0 : index
      %46 = vector.load %arg12[%c0_15, %c0_16] : memref<8x256xf32, #tpu.memory_space<vmem>>, vector<8x256xf32>
      tpu.vector_store %arg12[%c0_15, %c0_16], %45 {strides = array<i32>} : memref<8x256xf32, #tpu.memory_space<vmem>>, vector<8x256xf32>,
    } else {
    }
    %c0 = arith.constant 0 : index
    %c0_1 = arith.constant 0 : index
    %c0_2 = arith.constant 0 : index
    %3 = vector.load %arg2[%c0, %c0_1, %c0_2] : memref<8x4x256xf32, #tpu.memory_space<vmem>>, vector<8x4x256xf32>
    %c0_3 = arith.constant 0 : index
    %c0_4 = arith.constant 0 : index
    %4 = vector.load %arg3[%c0_3, %c0_4] : memref<256x4xf32, #tpu.memory_space<vmem>>, vector<256x4xf32>
    %5 = vector.extract_strided_slice %3 {offsets = [0, 0, 0], sizes = [8, 1, 256], strides = [1, 1, 1]} : vector<8x4x256xf32> to vector<8x1x256xf32>
    %6 = vector.extract_strided_slice %4 {offsets = [0, 0], sizes = [256, 1], strides = [1, 1]} : vector<256x4xf32> to vector<256x1xf32>
    %7 = vector.shape_cast %6 : vector<256x1xf32> to vector<1x256x1xf32>
    %8 = vector.broadcast %5 : vector<8x1x256xf32> to vector<8x256x256xf32>
    %9 = vector.broadcast %7 : vector<1x256x1xf32> to vector<8x256x256xf32>
    %10 = arith.mulf %8, %9 : vector<8x256x256xf32>
    %11 = vector.extract_strided_slice %3 {offsets = [0, 1, 0], sizes = [8, 1, 256], strides = [1, 1, 1]} : vector<8x4x256xf32> to vector<8x1x256xf32>
    %12 = vector.extract_strided_slice %4 {offsets = [0, 1], sizes = [256, 1], strides = [1, 1]} : vector<256x4xf32> to vector<256x1xf32>
    %13 = vector.shape_cast %12 : vector<256x1xf32> to vector<1x256x1xf32>
    %14 = vector.broadcast %11 : vector<8x1x256xf32> to vector<8x256x256xf32>
    %15 = vector.broadcast %13 : vector<1x256x1xf32> to vector<8x256x256xf32>
    %16 = arith.mulf %14, %15 : vector<8x256x256xf32>
    %17 = arith.addf %10, %16 : vector<8x256x256xf32>
    %18 = vector.extract_strided_slice %3 {offsets = [0, 2, 0], sizes = [8, 1, 256], strides = [1, 1, 1]} : vector<8x4x256xf32> to vector<8x1x256xf32>
    %19 = vector.extract_strided_slice %4 {offsets = [0, 2], sizes = [256, 1], strides = [1, 1]} : vector<256x4xf32> to vector<256x1xf32>
    %20 = vector.shape_cast %19 : vector<256x1xf32> to vector<1x256x1xf32>
    %21 = vector.broadcast %18 : vector<8x1x256xf32> to vector<8x256x256xf32>
    %22 = vector.broadcast %20 : vector<1x256x1xf32> to vector<8x256x256xf32>
    %23 = arith.mulf %21, %22 : vector<8x256x256xf32>
    %24 = arith.addf %17, %23 : vector<8x256x256xf32>
    %25 = vector.extract_strided_slice %3 {offsets = [0, 3, 0], sizes = [8, 1, 256], strides = [1, 1, 1]} : vector<8x4x256xf32> to vector<8x1x256xf32>
    %26 = vector.extract_strided_slice %4 {offsets = [0, 3], sizes = [256, 1], strides = [1, 1]} : vector<256x4xf32> to vector<256x1xf32>
    %27 = vector.shape_cast %26 : vector<256x1xf32> to vector<1x256x1xf32>
    %28 = vector.broadcast %25 : vector<8x1x256xf32> to vector<8x256x256xf32>
    %29 = vector.broadcast %27 : vector<1x256x1xf32> to vector<8x256x256xf32>
    %30 = arith.mulf %28, %29 : vector<8x256x256xf32>
    %31 = arith.addf %24, %30 : vector<8x256x256xf32>
    %c0_5 = arith.constant 0 : index
    %c0_6 = arith.constant 0 : index
    %32 = vector.load %arg4[%c0_5, %c0_6] : memref<256x1xf32, #tpu.memory_space<vmem>>, vector<256x1xf32>
    %33 = vector.shape_cast %32 : vector<256x1xf32> to vector<1x256x1xf32>
    %34 = vector.broadcast %33 : vector<1x256x1xf32> to vector<8x256x256xf32>
    %35 = arith.addf %31, %34 : vector<8x256x256xf32>
    %cst = arith.constant 0.000000e+00 : f32
    %36 = vector.broadcast %cst : f32 to vector<8x256x256xf32>
    %37 = arith.maximumf %35, %36 : vector<8x256x256xf32>
    %c0_7 = arith.constant 0 : index
    %c0_8 = arith.constant 0 : index
    %38 = vector.load %arg12[%c0_7, %c0_8] : memref<8x256xf32, #tpu.memory_space<vmem>>, vector<8x256xf32>
    %cst_9 = arith.constant dense<0.000000e+00> : vector<8x256xf32>
    %39 = vector.multi_reduction <add>, %37, %cst_9 [2] : vector<8x256x256xf32> to vector<8x256xf32>
    %40 = arith.addf %38, %39 : vector<8x256xf32>
    %c0_10 = arith.constant 0 : index
    %c0_11 = arith.constant 0 : index
    %41 = vector.load %arg12[%c0_10, %c0_11] : memref<8x256xf32, #tpu.memory_space<vmem>>, vector<8x256xf32>
    tpu.vector_store %arg12[%c0_10, %c0_11], %40 {strides = array<i32>} : memref<8x256xf32, #tpu.memory_space<vmem>>, vector<8x256xf32>,
    %c0_i32_12 = arith.constant 0 : i32
    %42 = arith.cmpi eq, %arg1, %c0_i32_12 : i32
    %43 = arith.extui %42 : i1 to i32
    %c0_i32_13 = arith.constant 0 : i32
    %44 = arith.cmpi ne, %43, %c0_i32_13 : i32
    scf.if %44 {
      %c0_14 = arith.constant 0 : index
      %c0_15 = arith.constant 0 : index
      %45 = vector.load %arg12[%c0_14, %c0_15] : memref<8x256xf32, #tpu.memory_space<vmem>>, vector<8x256xf32>
      %cst_16 = arith.constant 3.906250e-03 : f32
      %46 = vector.broadcast %cst_16 : f32 to vector<8x256xf32>
      %47 = arith.mulf %45, %46 : vector<8x256xf32>
      %c0_17 = arith.constant 0 : index
      %c0_18 = arith.constant 0 : index
      %48 = vector.load %arg5[%c0_17, %c0_18] : memref<8x256xf32, #tpu.memory_space<vmem>>, vector<8x256xf32>
      %c0_19 = arith.constant 0 : index
      %c0_20 = arith.constant 0 : index
      %49 = vector.load %arg7[%c0_19, %c0_20] : memref<16x256xf32, #tpu.memory_space<vmem>>, vector<16x256xf32>
      %c0_21 = arith.constant 0 : index
      %c0_22 = arith.constant 0 : index
      %50 = vector.load %arg9[%c0_21, %c0_22] : memref<10x256xf32, #tpu.memory_space<vmem>>, vector<10x256xf32>
      %c0_23 = arith.constant 0 : index
      %c0_24 = arith.constant 0 : index
      %51 = vector.load %arg6[%c0_23, %c0_24] : memref<1x8xf32, #tpu.memory_space<vmem>>, vector<1x8xf32>
      %52 = arith.truncf %47 : vector<8x256xf32> to vector<8x256xbf16>
      %53 = arith.truncf %48 : vector<8x256xf32> to vector<8x256xbf16>
      %cst_25 = arith.constant dense<0.000000e+00> : vector<8x8xf32>
      %54 = tpu.matmul %52, %53, %cst_25 {dimension_numbers = #tpu.dot_dimension_numbers<[1], [1], [0], [0], [0, 0, 1, 0], [], []>} : vector<8x256xbf16>, vector<8x256xbf16>, vector<8x8xf32> -> vector<8x8xf32>
      %55 = vector.broadcast %51 : vector<1x8xf32> to vector<8x8xf32>
      %56 = arith.addf %54, %55 : vector<8x8xf32>
      %cst_26 = arith.constant dense<0xFF800000> : vector<8xf32>
      %57 = vector.multi_reduction <maximumf>, %56, %cst_26 [1] : vector<8x8xf32> to vector<8xf32>
      %58 = vector.shape_cast %57 : vector<8xf32> to vector<8x1xf32>
      %59 = vector.broadcast %58 : vector<8x1xf32> to vector<8x8xf32>
      %60 = arith.subf %56, %59 : vector<8x8xf32>
      %61 = math.exp %60 : vector<8x8xf32>
      %cst_27 = arith.constant dense<0.000000e+00> : vector<8xf32>
      %62 = vector.multi_reduction <add>, %61, %cst_27 [1] : vector<8x8xf32> to vector<8xf32>
      %63 = vector.shape_cast %62 : vector<8xf32> to vector<8x1xf32>
      %64 = tpu.reciprocal %63 : vector<8x1xf32> -> vector<8x1xf32>
      %65 = vector.broadcast %64 : vector<8x1xf32> to vector<8x8xf32>
      %66 = arith.mulf %61, %65 : vector<8x8xf32>
      %67 = vector.extract_strided_slice %66 {offsets = [0, 0], sizes = [8, 1], strides = [1, 1]} : vector<8x8xf32> to vector<8x1xf32>
      %68 = vector.extract_strided_slice %48 {offsets = [0, 0], sizes = [1, 256], strides = [1, 1]} : vector<8x256xf32> to vector<1x256xf32>
      %69 = vector.broadcast %67 : vector<8x1xf32> to vector<8x256xf32>
      %70 = vector.broadcast %68 : vector<1x256xf32> to vector<8x256xf32>
      %71 = arith.mulf %69, %70 : vector<8x256xf32>
      %72 = vector.extract_strided_slice %66 {offsets = [0, 1], sizes = [8, 1], strides = [1, 1]} : vector<8x8xf32> to vector<8x1xf32>
      %73 = vector.extract_strided_slice %48 {offsets = [1, 0], sizes = [1, 256], strides = [1, 1]} : vector<8x256xf32> to vector<1x256xf32>
      %74 = vector.broadcast %72 : vector<8x1xf32> to vector<8x256xf32>
      %75 = vector.broadcast %73 : vector<1x256xf32> to vector<8x256xf32>
      %76 = arith.mulf %74, %75 : vector<8x256xf32>
      %77 = arith.addf %71, %76 : vector<8x256xf32>
      %78 = vector.extract_strided_slice %66 {offsets = [0, 2], sizes = [8, 1], strides = [1, 1]} : vector<8x8xf32> to vector<8x1xf32>
      %79 = vector.extract_strided_slice %48 {offsets = [2, 0], sizes = [1, 256], strides = [1, 1]} : vector<8x256xf32> to vector<1x256xf32>
      %80 = vector.broadcast %78 : vector<8x1xf32> to vector<8x256xf32>
      %81 = vector.broadcast %79 : vector<1x256xf32> to vector<8x256xf32>
      %82 = arith.mulf %80, %81 : vector<8x256xf32>
      %83 = arith.addf %77, %82 : vector<8x256xf32>
      %84 = vector.extract_strided_slice %66 {offsets = [0, 3], sizes = [8, 1], strides = [1, 1]} : vector<8x8xf32> to vector<8x1xf32>
      %85 = vector.extract_strided_slice %48 {offsets = [3, 0], sizes = [1, 256], strides = [1, 1]} : vector<8x256xf32> to vector<1x256xf32>
      %86 = vector.broadcast %84 : vector<8x1xf32> to vector<8x256xf32>
      %87 = vector.broadcast %85 : vector<1x256xf32> to vector<8x256xf32>
      %88 = arith.mulf %86, %87 : vector<8x256xf32>
      %89 = arith.addf %83, %88 : vector<8x256xf32>
      %90 = vector.extract_strided_slice %66 {offsets = [0, 4], sizes = [8, 1], strides = [1, 1]} : vector<8x8xf32> to vector<8x1xf32>
      %91 = vector.extract_strided_slice %48 {offsets = [4, 0], sizes = [1, 256], strides = [1, 1]} : vector<8x256xf32> to vector<1x256xf32>
      %92 = vector.broadcast %90 : vector<8x1xf32> to vector<8x256xf32>
      %93 = vector.broadcast %91 : vector<1x256xf32> to vector<8x256xf32>
      %94 = arith.mulf %92, %93 : vector<8x256xf32>
      %95 = arith.addf %89, %94 : vector<8x256xf32>
      %96 = vector.extract_strided_slice %66 {offsets = [0, 5], sizes = [8, 1], strides = [1, 1]} : vector<8x8xf32> to vector<8x1xf32>
      %97 = vector.extract_strided_slice %48 {offsets = [5, 0], sizes = [1, 256], strides = [1, 1]} : vector<8x256xf32> to vector<1x256xf32>
      %98 = vector.broadcast %96 : vector<8x1xf32> to vector<8x256xf32>
      %99 = vector.broadcast %97 : vector<1x256xf32> to vector<8x256xf32>
      %100 = arith.mulf %98, %99 : vector<8x256xf32>
      %101 = arith.addf %95, %100 : vector<8x256xf32>
      %102 = vector.extract_strided_slice %66 {offsets = [0, 6], sizes = [8, 1], strides = [1, 1]} : vector<8x8xf32> to vector<8x1xf32>
      %103 = vector.extract_strided_slice %48 {offsets = [6, 0], sizes = [1, 256], strides = [1, 1]} : vector<8x256xf32> to vector<1x256xf32>
      %104 = vector.broadcast %102 : vector<8x1xf32> to vector<8x256xf32>
      %105 = vector.broadcast %103 : vector<1x256xf32> to vector<8x256xf32>
      %106 = arith.mulf %104, %105 : vector<8x256xf32>
      %107 = arith.addf %101, %106 : vector<8x256xf32>
      %108 = vector.extract_strided_slice %66 {offsets = [0, 7], sizes = [8, 1], strides = [1, 1]} : vector<8x8xf32> to vector<8x1xf32>
      %109 = vector.extract_strided_slice %48 {offsets = [7, 0], sizes = [1, 256], strides = [1, 1]} : vector<8x256xf32> to vector<1x256xf32>
      %110 = vector.broadcast %108 : vector<8x1xf32> to vector<8x256xf32>
      %111 = vector.broadcast %109 : vector<1x256xf32> to vector<8x256xf32>
      %112 = arith.mulf %110, %111 : vector<8x256xf32>
      %113 = arith.addf %107, %112 : vector<8x256xf32>
      %114 = arith.mulf %47, %113 : vector<8x256xf32>
      %c0_28 = arith.constant 0 : index
      %c0_29 = arith.constant 0 : index
      %115 = vector.load %arg8[%c0_28, %c0_29] : memref<1x16xf32, #tpu.memory_space<vmem>>, vector<1x16xf32>
      %116 = arith.truncf %114 : vector<8x256xf32> to vector<8x256xbf16>
      %117 = arith.truncf %49 : vector<16x256xf32> to vector<16x256xbf16>
      %cst_30 = arith.constant dense<0.000000e+00> : vector<8x16xf32>
      %118 = tpu.matmul %116, %117, %cst_30 {dimension_numbers = #tpu.dot_dimension_numbers<[1], [1], [0], [0], [0, 0, 1, 0], [], []>} : vector<8x256xbf16>, vector<16x256xbf16>, vector<8x16xf32> -> vector<8x16xf32>
      %119 = vector.broadcast %115 : vector<1x16xf32> to vector<8x16xf32>
      %120 = arith.addf %118, %119 : vector<8x16xf32>
      %cst_31 = arith.constant dense<0xFF800000> : vector<8xf32>
      %121 = vector.multi_reduction <maximumf>, %120, %cst_31 [1] : vector<8x16xf32> to vector<8xf32>
      %122 = vector.shape_cast %121 : vector<8xf32> to vector<8x1xf32>
      %123 = vector.broadcast %122 : vector<8x1xf32> to vector<8x16xf32>
      %124 = arith.subf %120, %123 : vector<8x16xf32>
      %125 = math.exp %124 : vector<8x16xf32>
      %cst_32 = arith.constant dense<0.000000e+00> : vector<8xf32>
      %126 = vector.multi_reduction <add>, %125, %cst_32 [1] : vector<8x16xf32> to vector<8xf32>
      %127 = vector.shape_cast %126 : vector<8xf32> to vector<8x1xf32>
      %128 = tpu.reciprocal %127 : vector<8x1xf32> -> vector<8x1xf32>
      %129 = vector.broadcast %128 : vector<8x1xf32> to vector<8x16xf32>
      %130 = arith.mulf %125, %129 : vector<8x16xf32>
      %131 = vector.extract_strided_slice %130 {offsets = [0, 0], sizes = [8, 1], strides = [1, 1]} : vector<8x16xf32> to vector<8x1xf32>
      %132 = vector.extract_strided_slice %49 {offsets = [0, 0], sizes = [1, 256], strides = [1, 1]} : vector<16x256xf32> to vector<1x256xf32>
      %133 = vector.broadcast %131 : vector<8x1xf32> to vector<8x256xf32>
      %134 = vector.broadcast %132 : vector<1x256xf32> to vector<8x256xf32>
      %135 = arith.mulf %133, %134 : vector<8x256xf32>
      %136 = vector.extract_strided_slice %130 {offsets = [0, 1], sizes = [8, 1], strides = [1, 1]} : vector<8x16xf32> to vector<8x1xf32>
      %137 = vector.extract_strided_slice %49 {offsets = [1, 0], sizes = [1, 256], strides = [1, 1]} : vector<16x256xf32> to vector<1x256xf32>
      %138 = vector.broadcast %136 : vector<8x1xf32> to vector<8x256xf32>
      %139 = vector.broadcast %137 : vector<1x256xf32> to vector<8x256xf32>
      %140 = arith.mulf %138, %139 : vector<8x256xf32>
      %141 = arith.addf %135, %140 : vector<8x256xf32>
      %142 = vector.extract_strided_slice %130 {offsets = [0, 2], sizes = [8, 1], strides = [1, 1]} : vector<8x16xf32> to vector<8x1xf32>
      %143 = vector.extract_strided_slice %49 {offsets = [2, 0], sizes = [1, 256], strides = [1, 1]} : vector<16x256xf32> to vector<1x256xf32>
      %144 = vector.broadcast %142 : vector<8x1xf32> to vector<8x256xf32>
      %145 = vector.broadcast %143 : vector<1x256xf32> to vector<8x256xf32>
      %146 = arith.mulf %144, %145 : vector<8x256xf32>
      %147 = arith.addf %141, %146 : vector<8x256xf32>
      %148 = vector.extract_strided_slice %130 {offsets = [0, 3], sizes = [8, 1], strides = [1, 1]} : vector<8x16xf32> to vector<8x1xf32>
      %149 = vector.extract_strided_slice %49 {offsets = [3, 0], sizes = [1, 256], strides = [1, 1]} : vector<16x256xf32> to vector<1x256xf32>
      %150 = vector.broadcast %148 : vector<8x1xf32> to vector<8x256xf32>
      %151 = vector.broadcast %149 : vector<1x256xf32> to vector<8x256xf32>
      %152 = arith.mulf %150, %151 : vector<8x256xf32>
      %153 = arith.addf %147, %152 : vector<8x256xf32>
      %154 = vector.extract_strided_slice %130 {offsets = [0, 4], sizes = [8, 1], strides = [1, 1]} : vector<8x16xf32> to vector<8x1xf32>
      %155 = vector.extract_strided_slice %49 {offsets = [4, 0], sizes = [1, 256], strides = [1, 1]} : vector<16x256xf32> to vector<1x256xf32>
      %156 = vector.broadcast %154 : vector<8x1xf32> to vector<8x256xf32>
      %157 = vector.broadcast %155 : vector<1x256xf32> to vector<8x256xf32>
      %158 = arith.mulf %156, %157 : vector<8x256xf32>
      %159 = arith.addf %153, %158 : vector<8x256xf32>
      %160 = vector.extract_strided_slice %130 {offsets = [0, 5], sizes = [8, 1], strides = [1, 1]} : vector<8x16xf32> to vector<8x1xf32>
      %161 = vector.extract_strided_slice %49 {offsets = [5, 0], sizes = [1, 256], strides = [1, 1]} : vector<16x256xf32> to vector<1x256xf32>
      %162 = vector.broadcast %160 : vector<8x1xf32> to vector<8x256xf32>
      %163 = vector.broadcast %161 : vector<1x256xf32> to vector<8x256xf32>
      %164 = arith.mulf %162, %163 : vector<8x256xf32>
      %165 = arith.addf %159, %164 : vector<8x256xf32>
      %166 = vector.extract_strided_slice %130 {offsets = [0, 6], sizes = [8, 1], strides = [1, 1]} : vector<8x16xf32> to vector<8x1xf32>
      %167 = vector.extract_strided_slice %49 {offsets = [6, 0], sizes = [1, 256], strides = [1, 1]} : vector<16x256xf32> to vector<1x256xf32>
      %168 = vector.broadcast %166 : vector<8x1xf32> to vector<8x256xf32>
      %169 = vector.broadcast %167 : vector<1x256xf32> to vector<8x256xf32>
      %170 = arith.mulf %168, %169 : vector<8x256xf32>
      %171 = arith.addf %165, %170 : vector<8x256xf32>
      %172 = vector.extract_strided_slice %130 {offsets = [0, 7], sizes = [8, 1], strides = [1, 1]} : vector<8x16xf32> to vector<8x1xf32>
      %173 = vector.extract_strided_slice %49 {offsets = [7, 0], sizes = [1, 256], strides = [1, 1]} : vector<16x256xf32> to vector<1x256xf32>
      %174 = vector.broadcast %172 : vector<8x1xf32> to vector<8x256xf32>
      %175 = vector.broadcast %173 : vector<1x256xf32> to vector<8x256xf32>
      %176 = arith.mulf %174, %175 : vector<8x256xf32>
      %177 = arith.addf %171, %176 : vector<8x256xf32>
      %178 = vector.extract_strided_slice %130 {offsets = [0, 8], sizes = [8, 1], strides = [1, 1]} : vector<8x16xf32> to vector<8x1xf32>
      %179 = vector.extract_strided_slice %49 {offsets = [8, 0], sizes = [1, 256], strides = [1, 1]} : vector<16x256xf32> to vector<1x256xf32>
      %180 = vector.broadcast %178 : vector<8x1xf32> to vector<8x256xf32>
      %181 = vector.broadcast %179 : vector<1x256xf32> to vector<8x256xf32>
      %182 = arith.mulf %180, %181 : vector<8x256xf32>
      %183 = arith.addf %177, %182 : vector<8x256xf32>
      %184 = vector.extract_strided_slice %130 {offsets = [0, 9], sizes = [8, 1], strides = [1, 1]} : vector<8x16xf32> to vector<8x1xf32>
      %185 = vector.extract_strided_slice %49 {offsets = [9, 0], sizes = [1, 256], strides = [1, 1]} : vector<16x256xf32> to vector<1x256xf32>
      %186 = vector.broadcast %184 : vector<8x1xf32> to vector<8x256xf32>
      %187 = vector.broadcast %185 : vector<1x256xf32> to vector<8x256xf32>
      %188 = arith.mulf %186, %187 : vector<8x256xf32>
      %189 = arith.addf %183, %188 : vector<8x256xf32>
      %190 = vector.extract_strided_slice %130 {offsets = [0, 10], sizes = [8, 1], strides = [1, 1]} : vector<8x16xf32> to vector<8x1xf32>
      %191 = vector.extract_strided_slice %49 {offsets = [10, 0], sizes = [1, 256], strides = [1, 1]} : vector<16x256xf32> to vector<1x256xf32>
      %192 = vector.broadcast %190 : vector<8x1xf32> to vector<8x256xf32>
      %193 = vector.broadcast %191 : vector<1x256xf32> to vector<8x256xf32>
      %194 = arith.mulf %192, %193 : vector<8x256xf32>
      %195 = arith.addf %189, %194 : vector<8x256xf32>
      %196 = vector.extract_strided_slice %130 {offsets = [0, 11], sizes = [8, 1], strides = [1, 1]} : vector<8x16xf32> to vector<8x1xf32>
      %197 = vector.extract_strided_slice %49 {offsets = [11, 0], sizes = [1, 256], strides = [1, 1]} : vector<16x256xf32> to vector<1x256xf32>
      %198 = vector.broadcast %196 : vector<8x1xf32> to vector<8x256xf32>
      %199 = vector.broadcast %197 : vector<1x256xf32> to vector<8x256xf32>
      %200 = arith.mulf %198, %199 : vector<8x256xf32>
      %201 = arith.addf %195, %200 : vector<8x256xf32>
      %202 = vector.extract_strided_slice %130 {offsets = [0, 12], sizes = [8, 1], strides = [1, 1]} : vector<8x16xf32> to vector<8x1xf32>
      %203 = vector.extract_strided_slice %49 {offsets = [12, 0], sizes = [1, 256], strides = [1, 1]} : vector<16x256xf32> to vector<1x256xf32>
      %204 = vector.broadcast %202 : vector<8x1xf32> to vector<8x256xf32>
      %205 = vector.broadcast %203 : vector<1x256xf32> to vector<8x256xf32>
      %206 = arith.mulf %204, %205 : vector<8x256xf32>
      %207 = arith.addf %201, %206 : vector<8x256xf32>
      %208 = vector.extract_strided_slice %130 {offsets = [0, 13], sizes = [8, 1], strides = [1, 1]} : vector<8x16xf32> to vector<8x1xf32>
      %209 = vector.extract_strided_slice %49 {offsets = [13, 0], sizes = [1, 256], strides = [1, 1]} : vector<16x256xf32> to vector<1x256xf32>
      %210 = vector.broadcast %208 : vector<8x1xf32> to vector<8x256xf32>
      %211 = vector.broadcast %209 : vector<1x256xf32> to vector<8x256xf32>
      %212 = arith.mulf %210, %211 : vector<8x256xf32>
      %213 = arith.addf %207, %212 : vector<8x256xf32>
      %214 = vector.extract_strided_slice %130 {offsets = [0, 14], sizes = [8, 1], strides = [1, 1]} : vector<8x16xf32> to vector<8x1xf32>
      %215 = vector.extract_strided_slice %49 {offsets = [14, 0], sizes = [1, 256], strides = [1, 1]} : vector<16x256xf32> to vector<1x256xf32>
      %216 = vector.broadcast %214 : vector<8x1xf32> to vector<8x256xf32>
      %217 = vector.broadcast %215 : vector<1x256xf32> to vector<8x256xf32>
      %218 = arith.mulf %216, %217 : vector<8x256xf32>
      %219 = arith.addf %213, %218 : vector<8x256xf32>
      %220 = vector.extract_strided_slice %130 {offsets = [0, 15], sizes = [8, 1], strides = [1, 1]} : vector<8x16xf32> to vector<8x1xf32>
      %221 = vector.extract_strided_slice %49 {offsets = [15, 0], sizes = [1, 256], strides = [1, 1]} : vector<16x256xf32> to vector<1x256xf32>
      %222 = vector.broadcast %220 : vector<8x1xf32> to vector<8x256xf32>
      %223 = vector.broadcast %221 : vector<1x256xf32> to vector<8x256xf32>
      %224 = arith.mulf %222, %223 : vector<8x256xf32>
      %225 = arith.addf %219, %224 : vector<8x256xf32>
      %226 = arith.mulf %47, %225 : vector<8x256xf32>
      %c0_33 = arith.constant 0 : index
      %c0_34 = arith.constant 0 : index
      %227 = vector.load %arg10[%c0_33, %c0_34] : memref<1x10xf32, #tpu.memory_space<vmem>>, vector<1x10xf32>
      %228 = arith.truncf %226 : vector<8x256xf32> to vector<8x256xbf16>
      %229 = arith.truncf %50 : vector<10x256xf32> to vector<10x256xbf16>
      %cst_35 = arith.constant dense<0.000000e+00> : vector<8x10xf32>
      %230 = tpu.matmul %228, %229, %cst_35 {dimension_numbers = #tpu.dot_dimension_numbers<[1], [1], [0], [0], [0, 0, 1, 0], [], []>} : vector<8x256xbf16>, vector<10x256xbf16>, vector<8x10xf32> -> vector<8x10xf32>
      %231 = vector.broadcast %227 : vector<1x10xf32> to vector<8x10xf32>
      %232 = arith.addf %230, %231 : vector<8x10xf32>
      %cst_36 = arith.constant 0.000000e+00 : f32
      %233 = vector.broadcast %cst_36 : f32 to vector<8x94xf32>
      %234 = tpu.concatenate %232, %120, %56, %233 in 1 : vector<8x10xf32>, vector<8x16xf32>, vector<8x8xf32>, vector<8x94xf32> -> vector<8x128xf32>
      %c0_37 = arith.constant 0 : index
      %c0_38 = arith.constant 0 : index
      %235 = vector.load %arg11[%c0_37, %c0_38] : memref<8x128xf32, #tpu.memory_space<vmem>>, vector<8x128xf32>
      tpu.vector_store %arg11[%c0_37, %c0_38], %234 {strides = array<i32>} : memref<8x128xf32, #tpu.memory_space<vmem>>, vector<8x128xf32>,
    } else {
    }
    return
  }
  func.func @transform_0(%arg0: i32, %arg1: i32) -> (i32, i32, i32) {
    %c0_i32 = arith.constant 0 : i32
    %c0_i32_0 = arith.constant 0 : i32
    return %arg0, %c0_i32, %arg1 : i32, i32, i32
  }
  func.func @transform_1(%arg0: i32, %arg1: i32) -> (i32, i32) {
    %c0_i32 = arith.constant 0 : i32
    %c0_i32_0 = arith.constant 0 : i32
    %c0_i32_1 = arith.constant 0 : i32
    return %c0_i32, %c0_i32_0 : i32, i32
  }
  func.func @transform_2(%arg0: i32, %arg1: i32) -> (i32, i32) {
    %c0_i32 = arith.constant 0 : i32
    %c0_i32_0 = arith.constant 0 : i32
    %c0_i32_1 = arith.constant 0 : i32
    return %c0_i32, %c0_i32_0 : i32, i32
  }
  func.func @transform_3(%arg0: i32, %arg1: i32) -> (i32, i32) {
    %c0_i32 = arith.constant 0 : i32
    %c0_i32_0 = arith.constant 0 : i32
    %c0_i32_1 = arith.constant 0 : i32
    return %c0_i32, %c0_i32_0 : i32, i32
  }
  func.func @transform_4(%arg0: i32, %arg1: i32) -> (i32, i32) {
    %c0_i32 = arith.constant 0 : i32
    %c0_i32_0 = arith.constant 0 : i32
    %c0_i32_1 = arith.constant 0 : i32
    return %c0_i32, %c0_i32_0 : i32, i32
  }
  func.func @transform_5(%arg0: i32, %arg1: i32) -> (i32, i32) {
    %c0_i32 = arith.constant 0 : i32
    %c0_i32_0 = arith.constant 0 : i32
    %c0_i32_1 = arith.constant 0 : i32
    return %c0_i32, %c0_i32_0 : i32, i32
  }
  func.func @transform_6(%arg0: i32, %arg1: i32) -> (i32, i32) {
    %c0_i32 = arith.constant 0 : i32
    %c0_i32_0 = arith.constant 0 : i32
    %c0_i32_1 = arith.constant 0 : i32
    return %c0_i32, %c0_i32_0 : i32, i32
  }
  func.func @transform_7(%arg0: i32, %arg1: i32) -> (i32, i32) {
    %c0_i32 = arith.constant 0 : i32
    %c0_i32_0 = arith.constant 0 : i32
    %c0_i32_1 = arith.constant 0 : i32
    return %c0_i32, %c0_i32_0 : i32, i32
  }
  func.func @transform_8(%arg0: i32, %arg1: i32) -> (i32, i32) {
    %c0_i32 = arith.constant 0 : i32
    %c0_i32_0 = arith.constant 0 : i32
    %c0_i32_1 = arith.constant 0 : i32
    return %c0_i32, %c0_i32_0 : i32, i32
  }
  func.func @transform_9(%arg0: i32, %arg1: i32) -> (i32, i32) {
    %c0_i32 = arith.constant 0 : i32
    %c0_i32_0 = arith.constant 0 : i32
    return %arg0, %c0_i32 : i32, i32
  }
}

</mosaic_0001>

<llo_original>
// kernel: asn_correct_forward.1
$region0: #{asn_correct_forward.1}
  #allocation0 [shape = 'u32[]', space=smem, size = 0x4, offset = 0x4, fixed_abs, tag = 'smem constant byte address 0x4 - core index']
  #allocation1 [shape = 'u32[144,128]{1,0:T(1,128)}', space=vmem, size = 0x12000, scoped, tag = 'internal scratch']
  #allocation2 [shape = 'f32[8,256]{1,0:T(8,128)}', space=vmem, size = 0x2000, scoped, tag = 'scratch operand']
  %s0 = inlined_call_operand.vmem [shape: f32[8,4,256], index: 0, kind: input, shape index: {}]
  %s1 = inlined_call_operand.vmem [shape: f32[256,4], index: 1, kind: input, shape index: {}]
  %s2 = inlined_call_operand.vmem [shape: f32[256,1], index: 2, kind: input, shape index: {}]
  %s3 = inlined_call_operand.vmem [shape: f32[8,256], index: 3, kind: input, shape index: {}]
  %s4 = inlined_call_operand.vmem [shape: f32[1,8], index: 4, kind: input, shape index: {}]
  %s5 = inlined_call_operand.vmem [shape: f32[16,256], index: 5, kind: input, shape index: {}]
  %s6 = inlined_call_operand.vmem [shape: f32[1,16], index: 6, kind: input, shape index: {}]
  %s7 = inlined_call_operand.vmem [shape: f32[10,256], index: 7, kind: input, shape index: {}]
  %s8 = inlined_call_operand.vmem [shape: f32[1,10], index: 8, kind: input, shape index: {}]
  %s9 = inlined_call_operand.vmem [shape: f32[8,128], index: 9, kind: output, shape index: {}]
  %s10 = sld [smem:[#allocation0]]
  $region54: #{asn_correct_forward.1} parent=0
    _
  %s12 = ssub.s32 1, %s10
  %s13 = scalar_select 0, %s12, %s10
  // Predicated region
  $region2: #{asn_correct_forward.1} parent=0 // pred_check
    _
  $region3: #{asn_correct_forward.1} parent=0 // pred_check_branch
    %15 = sbr.rel (0) target = $region5
  $region4: #{asn_correct_forward.1} parent=0 // pred_region
    _
  $region5: #{asn_correct_forward.1} parent=0 // pred_fallthru
    _
  // Predicated region
  $region6: #{asn_correct_forward.1} parent=0 // pred_check
    _
  $region7: #{asn_correct_forward.1} parent=0 // pred_check_branch
    %17 = sbr.rel (0) target = $region9
  $region8: #{asn_correct_forward.1} parent=0 // pred_region
    _
  $region9: #{asn_correct_forward.1} parent=0 // pred_fallthru
    _
  // Predicated region
  $region10: #{asn_correct_forward.1} parent=0 // pred_check
    _
  $region11: #{asn_correct_forward.1} parent=0 // pred_check_branch
    %19 = sbr.rel (0) target = $region13
  $region12: #{asn_correct_forward.1} parent=0 // pred_region
    _
  $region13: #{asn_correct_forward.1} parent=0 // pred_fallthru
    _
  // Predicated region
  $region14: #{asn_correct_forward.1} parent=0 // pred_check
    _
  $region15: #{asn_correct_forward.1} parent=0 // pred_check_branch
    %21 = sbr.rel (0) target = $region17
  $region16: #{asn_correct_forward.1} parent=0 // pred_region
    _
  $region17: #{asn_correct_forward.1} parent=0 // pred_fallthru
    _
  // Predicated region
  $region18: #{asn_correct_forward.1} parent=0 // pred_check
    _
  $region19: #{asn_correct_forward.1} parent=0 // pred_check_branch
    %23 = sbr.rel (0) target = $region21
  $region20: #{asn_correct_forward.1} parent=0 // pred_region
    _
  $region21: #{asn_correct_forward.1} parent=0 // pred_fallthru
    _
  // Predicated region
  $region22: #{asn_correct_forward.1} parent=0 // pred_check
    _
  $region23: #{asn_correct_forward.1} parent=0 // pred_check_branch
    %25 = sbr.rel (0) target = $region25
  $region24: #{asn_correct_forward.1} parent=0 // pred_region
    _
  $region25: #{asn_correct_forward.1} parent=0 // pred_fallthru
    _
  // Predicated region
  $region26: #{asn_correct_forward.1} parent=0 // pred_check
    _
  $region27: #{asn_correct_forward.1} parent=0 // pred_check_branch
    %27 = sbr.rel (0) target = $region29
  $region28: #{asn_correct_forward.1} parent=0 // pred_region
    _
  $region29: #{asn_correct_forward.1} parent=0 // pred_fallthru
    _
  // Predicated region
  $region30: #{asn_correct_forward.1} parent=0 // pred_check
    _
  $region31: #{asn_correct_forward.1} parent=0 // pred_check_branch
    %29 = sbr.rel (0) target = $region33
  $region32: #{asn_correct_forward.1} parent=0 // pred_region
    _
  $region33: #{asn_correct_forward.1} parent=0 // pred_fallthru
    _
  // Predicated region
  $region34: #{asn_correct_forward.1} parent=0 // pred_check
    _
  $region35: #{asn_correct_forward.1} parent=0 // pred_check_branch
    %31 = sbr.rel (0) target = $region37
  $region36: #{asn_correct_forward.1} parent=0 // pred_region
    _
  $region37: #{asn_correct_forward.1} parent=0 // pred_fallthru
    _
  %p33 = scmp.eq.s32.totalorder 0, 0
  // Predicated region
  $region38: #{asn_correct_forward.1} parent=0 // pred_check
    %p34 = pneg %p33
  $region39: #{asn_correct_forward.1} parent=0 // pred_check_branch
    %36 = sbr.rel (%p34) target = $region41
  $region40: #{asn_correct_forward.1} parent=0 // pred_region
    %37 = vst [vmem:[#allocation2] sm:$0xff] 0.0
    %38 = vst [vmem:[#allocation2 + $0x8] sm:$0xff] 0.0
  $region41: #{asn_correct_forward.1} parent=0 // pred_fallthru
    _
  %v39 = vld [vmem:[%s0] sm:$0xff]
  %v40 = vld [vmem:[%s0 + $0x8] sm:$0xff]
  %v41 = vld [vmem:[%s0 + $0x10] sm:$0xff]
  %v42 = vld [vmem:[%s0 + $0x18] sm:$0xff]
  %v43 = vld [vmem:[%s0 + $0x20] sm:$0xff]
  %v44 = vld [vmem:[%s0 + $0x28] sm:$0xff]
  %v45 = vld [vmem:[%s0 + $0x30] sm:$0xff]
  %v46 = vld [vmem:[%s0 + $0x38] sm:$0xff]
  %v47 = vld [vmem:[%s1] sm:$0xff]
  %v48 = vld [vmem:[%s1 + $0x8] sm:$0xff]
  %v49 = vld [vmem:[%s1 + $0x10] sm:$0xff]
  %v50 = vld [vmem:[%s1 + $0x18] sm:$0xff]
  %v51 = vld [vmem:[%s1 + $0x20] sm:$0xff]
  %v52 = vld [vmem:[%s1 + $0x28] sm:$0xff]
  %v53 = vld [vmem:[%s1 + $0x30] sm:$0xff]
  %v54 = vld [vmem:[%s1 + $0x38] sm:$0xff]
  %v55 = vld [vmem:[%s1 + $0x40] sm:$0xff]
  %v56 = vld [vmem:[%s1 + $0x48] sm:$0xff]
  %v57 = vld [vmem:[%s1 + $0x50] sm:$0xff]
  %v58 = vld [vmem:[%s1 + $0x58] sm:$0xff]
  %v59 = vld [vmem:[%s1 + $0x60] sm:$0xff]
  %v60 = vld [vmem:[%s1 + $0x68] sm:$0xff]
  %v61 = vld [vmem:[%s1 + $0x70] sm:$0xff]
  %v62 = vld [vmem:[%s1 + $0x78] sm:$0xff]
  %v63 = vld [vmem:[%s1 + $0x80] sm:$0xff]
  %v64 = vld [vmem:[%s1 + $0x88] sm:$0xff]
  %v65 = vld [vmem:[%s1 + $0x90] sm:$0xff]
  %v66 = vld [vmem:[%s1 + $0x98] sm:$0xff]
  %v67 = vld [vmem:[%s1 + $0xa0] sm:$0xff]
  %v68 = vld [vmem:[%s1 + $0xa8] sm:$0xff]
  %v69 = vld [vmem:[%s1 + $0xb0] sm:$0xff]
  %v70 = vld [vmem:[%s1 + $0xb8] sm:$0xff]
  %v71 = vld [vmem:[%s1 + $0xc0] sm:$0xff]
  %v72 = vld [vmem:[%s1 + $0xc8] sm:$0xff]
  %v73 = vld [vmem:[%s1 + $0xd0] sm:$0xff]
  %v74 = vld [vmem:[%s1 + $0xd8] sm:$0xff]
  %v75 = vld [vmem:[%s1 + $0xe0] sm:$0xff]
  %v76 = vld [vmem:[%s1 + $0xe8] sm:$0xff]
  %v77 = vld [vmem:[%s1 + $0xf0] sm:$0xff]
  %v78 = vld [vmem:[%s1 + $0xf8] sm:$0xff]
  %v87 = vlaneseq
  %v88 = vshrl.u32 %v87, 7
  %v89 = vsub.s32 0, %v88
  %v90 = vrot.slane %v39, %v89
  %v91 = vlaneseq
  %v92 = vshrl.u32 %v91, 7
  %v93 = vsub.s32 4, %v92
  %v94 = vrot.slane %v39, %v93
  %v95 = vlaneseq
  %v96 = vshrl.u32 %v95, 7
  %v97 = vsub.s32 0, %v96
  %v98 = vrot.slane %v40, %v97
  %v99 = vlaneseq
  %v100 = vshrl.u32 %v99, 7
  %v101 = vsub.s32 4, %v100
  %v102 = vrot.slane %v40, %v101
  %v103 = vlaneseq
  %v104 = vshrl.u32 %v103, 7
  %v105 = vsub.s32 0, %v104
  %v106 = vrot.slane %v41, %v105
  %v107 = vlaneseq
  %v108 = vshrl.u32 %v107, 7
  %v109 = vsub.s32 4, %v108
  %v110 = vrot.slane %v41, %v109
  %v111 = vlaneseq
  %v112 = vshrl.u32 %v111, 7
  %v113 = vsub.s32 0, %v112
  %v114 = vrot.slane %v42, %v113
  %v115 = vlaneseq
  %v116 = vshrl.u32 %v115, 7
  %v117 = vsub.s32 4, %v116
  %v118 = vrot.slane %v42, %v117
  %v119 = vlaneseq
  %v120 = vshrl.u32 %v119, 7
  %v121 = vsub.s32 0, %v120
  %v122 = vrot.slane %v43, %v121
  %v123 = vlaneseq
  %v124 = vshrl.u32 %v123, 7
  %v125 = vsub.s32 4, %v124
  %v126 = vrot.slane %v43, %v125
  %v127 = vlaneseq
  %v128 = vshrl.u32 %v127, 7
  %v129 = vsub.s32 0, %v128
  %v130 = vrot.slane %v44, %v129
  %v131 = vlaneseq
  %v132 = vshrl.u32 %v131, 7
  %v133 = vsub.s32 4, %v132
  %v134 = vrot.slane %v44, %v133
  %v135 = vlaneseq
  %v136 = vshrl.u32 %v135, 7
  %v137 = vsub.s32 0, %v136
  %v138 = vrot.slane %v45, %v137
  %v139 = vlaneseq
  %v140 = vshrl.u32 %v139, 7
  %v141 = vsub.s32 4, %v140
  %v142 = vrot.slane %v45, %v141
  %v143 = vlaneseq
  %v144 = vshrl.u32 %v143, 7
  %v145 = vsub.s32 0, %v144
  %v146 = vrot.slane %v46, %v145
  %v147 = vlaneseq
  %v148 = vshrl.u32 %v147, 7
  %v149 = vsub.s32 4, %v148
  %v150 = vrot.slane %v46, %v149
  %v167 = vlaneseq
  %v168 = vshrl.u32 %v167, 7
  %v169 = vsub.s32 0, %v168
  %v170 = vrot.slane %v90, %v169
  %v171 = vlaneseq
  %v172 = vshrl.u32 %v171, 7
  %v173 = vsub.s32 0, %v172
  %v174 = vrot.slane %v94, %v173
  %v175 = vlaneseq
  %v176 = vshrl.u32 %v175, 7
  %v177 = vsub.s32 0, %v176
  %v178 = vrot.slane %v98, %v177
  %v179 = vlaneseq
  %v180 = vshrl.u32 %v179, 7
  %v181 = vsub.s32 0, %v180
  %v182 = vrot.slane %v102, %v181
  %v183 = vlaneseq
  %v184 = vshrl.u32 %v183, 7
  %v185 = vsub.s32 0, %v184
  %v186 = vrot.slane %v106, %v185
  %v187 = vlaneseq
  %v188 = vshrl.u32 %v187, 7
  %v189 = vsub.s32 0, %v188
  %v190 = vrot.slane %v110, %v189
  %v191 = vlaneseq
  %v192 = vshrl.u32 %v191, 7
  %v193 = vsub.s32 0, %v192
  %v194 = vrot.slane %v114, %v193
  %v195 = vlaneseq
  %v196 = vshrl.u32 %v195, 7
  %v197 = vsub.s32 0, %v196
  %v198 = vrot.slane %v118, %v197
  %v199 = vlaneseq
  %v200 = vshrl.u32 %v199, 7
  %v201 = vsub.s32 0, %v200
  %v202 = vrot.slane %v122, %v201
  %v203 = vlaneseq
  %v204 = vshrl.u32 %v203, 7
  %v205 = vsub.s32 0, %v204
  %v206 = vrot.slane %v126, %v205
  %v207 = vlaneseq
  %v208 = vshrl.u32 %v207, 7
  %v209 = vsub.s32 0, %v208
  %v210 = vrot.slane %v130, %v209
  %v211 = vlaneseq
  %v212 = vshrl.u32 %v211, 7
  %v213 = vsub.s32 0, %v212
  %v214 = vrot.slane %v134, %v213
  %v215 = vlaneseq
  %v216 = vshrl.u32 %v215, 7
  %v217 = vsub.s32 0, %v216
  %v218 = vrot.slane %v138, %v217
  %v219 = vlaneseq
  %v220 = vshrl.u32 %v219, 7
  %v221 = vsub.s32 0, %v220
  %v222 = vrot.slane %v142, %v221
  %v223 = vlaneseq
  %v224 = vshrl.u32 %v223, 7
  %v225 = vsub.s32 0, %v224
  %v226 = vrot.slane %v146, %v225
  %v227 = vlaneseq
  %v228 = vshrl.u32 %v227, 7
  %v229 = vsub.s32 0, %v228
  %v230 = vrot.slane %v150, %v229
  %232 = vset.pattern.permute.xlu0 0
  %233 = vperm.xlu0 %232, %v47
  %v234 = vpop.permute.xlu0 %233
  %237 = vset.pattern.permute.xlu0 0
  %238 = vperm.xlu0 %237, %v48
  %v239 = vpop.permute.xlu0 %238
  %242 = vset.pattern.permute.xlu0 0
  %243 = vperm.xlu0 %242, %v49
  %v244 = vpop.permute.xlu0 %243
  %247 = vset.pattern.permute.xlu0 0
  %248 = vperm.xlu0 %247, %v50
  %v249 = vpop.permute.xlu0 %248
  %252 = vset.pattern.permute.xlu0 0
  %253 = vperm.xlu0 %252, %v51
  %v254 = vpop.permute.xlu0 %253
  %257 = vset.pattern.permute.xlu0 0
  %258 = vperm.xlu0 %257, %v52
  %v259 = vpop.permute.xlu0 %258
  %262 = vset.pattern.permute.xlu0 0
  %263 = vperm.xlu0 %262, %v53
  %v264 = vpop.permute.xlu0 %263
  %267 = vset.pattern.permute.xlu0 0
  %268 = vperm.xlu0 %267, %v54
  %v269 = vpop.permute.xlu0 %268
  %272 = vset.pattern.permute.xlu0 0
  %273 = vperm.xlu0 %272, %v55
  %v274 = vpop.permute.xlu0 %273
  %277 = vset.pattern.permute.xlu0 0
  %278 = vperm.xlu0 %277, %v56
  %v279 = vpop.permute.xlu0 %278
  %282 = vset.pattern.permute.xlu0 0
  %283 = vperm.xlu0 %282, %v57
  %v284 = vpop.permute.xlu0 %283
  %287 = vset.pattern.permute.xlu0 0
  %288 = vperm.xlu0 %287, %v58
  %v289 = vpop.permute.xlu0 %288
  %292 = vset.pattern.permute.xlu0 0
  %293 = vperm.xlu0 %292, %v59
  %v294 = vpop.permute.xlu0 %293
  %297 = vset.pattern.permute.xlu0 0
  %298 = vperm.xlu0 %297, %v60
  %v299 = vpop.permute.xlu0 %298
  %302 = vset.pattern.permute.xlu0 0
  %303 = vperm.xlu0 %302, %v61
  %v304 = vpop.permute.xlu0 %303
  %307 = vset.pattern.permute.xlu0 0
  %308 = vperm.xlu0 %307, %v62
  %v309 = vpop.permute.xlu0 %308
  %312 = vset.pattern.permute.xlu0 0
  %313 = vperm.xlu0 %312, %v63
  %v314 = vpop.permute.xlu0 %313
  %317 = vset.pattern.permute.xlu0 0
  %318 = vperm.xlu0 %317, %v64
  %v319 = vpop.permute.xlu0 %318
  %322 = vset.pattern.permute.xlu0 0
  %323 = vperm.xlu0 %322, %v65
  %v324 = vpop.permute.xlu0 %323
  %327 = vset.pattern.permute.xlu0 0
  %328 = vperm.xlu0 %327, %v66
  %v329 = vpop.permute.xlu0 %328
  %332 = vset.pattern.permute.xlu0 0
  %333 = vperm.xlu0 %332, %v67
  %v334 = vpop.permute.xlu0 %333
  %337 = vset.pattern.permute.xlu0 0
  %338 = vperm.xlu0 %337, %v68
  %v339 = vpop.permute.xlu0 %338
  %342 = vset.pattern.permute.xlu0 0
  %343 = vperm.xlu0 %342, %v69
  %v344 = vpop.permute.xlu0 %343
  %347 = vset.pattern.permute.xlu0 0
  %348 = vperm.xlu0 %347, %v70
  %v349 = vpop.permute.xlu0 %348
  %352 = vset.pattern.permute.xlu0 0
  %353 = vperm.xlu0 %352, %v71
  %v354 = vpop.permute.xlu0 %353
  %357 = vset.pattern.permute.xlu0 0
  %358 = vperm.xlu0 %357, %v72
  %v359 = vpop.permute.xlu0 %358
  %362 = vset.pattern.permute.xlu0 0
  %363 = vperm.xlu0 %362, %v73
  %v364 = vpop.permute.xlu0 %363
  %367 = vset.pattern.permute.xlu0 0
  %368 = vperm.xlu0 %367, %v74
  %v369 = vpop.permute.xlu0 %368
  %372 = vset.pattern.permute.xlu0 0
  %373 = vperm.xlu0 %372, %v75
  %v374 = vpop.permute.xlu0 %373
  %377 = vset.pattern.permute.xlu0 0
  %378 = vperm.xlu0 %377, %v76
  %v379 = vpop.permute.xlu0 %378
  %382 = vset.pattern.permute.xlu0 0
  %383 = vperm.xlu0 %382, %v77
  %v384 = vpop.permute.xlu0 %383
  %387 = vset.pattern.permute.xlu0 0
  %388 = vperm.xlu0 %387, %v78
  %v389 = vpop.permute.xlu0 %388
  %v391 = vmul.f32 %v170, %v234
  %v392 = vmul.f32 %v174, %v234
  %v393 = vmul.f32 %v170, %v239
  %v394 = vmul.f32 %v174, %v239
  %v395 = vmul.f32 %v170, %v244
  %v396 = vmul.f32 %v174, %v244
  %v397 = vmul.f32 %v170, %v249
  %v398 = vmul.f32 %v174, %v249
  %v399 = vmul.f32 %v170, %v254
  %v400 = vmul.f32 %v174, %v254
  %v401 = vmul.f32 %v170, %v259
  %v402 = vmul.f32 %v174, %v259
  %v403 = vmul.f32 %v170, %v264
  %v404 = vmul.f32 %v174, %v264
  %v405 = vmul.f32 %v170, %v269
  %v406 = vmul.f32 %v174, %v269
  %v407 = vmul.f32 %v170, %v274
  %v408 = vmul.f32 %v174, %v274
  %v409 = vmul.f32 %v170, %v279
  %v410 = vmul.f32 %v174, %v279
  %v411 = vmul.f32 %v170, %v284
  %v412 = vmul.f32 %v174, %v284
  %v413 = vmul.f32 %v170, %v289
  %v414 = vmul.f32 %v174, %v289
  %v415 = vmul.f32 %v170, %v294
  %v416 = vmul.f32 %v174, %v294
  %v417 = vmul.f32 %v170, %v299
  %v418 = vmul.f32 %v174, %v299
  %v419 = vmul.f32 %v170, %v304
  %v420 = vmul.f32 %v174, %v304
  %v421 = vmul.f32 %v170, %v309
  %v422 = vmul.f32 %v174, %v309
  %v423 = vmul.f32 %v170, %v314
  %v424 = vmul.f32 %v174, %v314
  %v425 = vmul.f32 %v170, %v319
  %v426 = vmul.f32 %v174, %v319
  %v427 = vmul.f32 %v170, %v324
  %v428 = vmul.f32 %v174, %v324
  %v429 = vmul.f32 %v170, %v329
  %v430 = vmul.f32 %v174, %v329
  %v431 = vmul.f32 %v170, %v334
  %v432 = vmul.f32 %v174, %v334
  %v433 = vmul.f32 %v170, %v339
  %v434 = vmul.f32 %v174, %v339
  %v435 = vmul.f32 %v170, %v344
  %v436 = vmul.f32 %v174, %v344
  %v437 = vmul.f32 %v170, %v349
  %v438 = vmul.f32 %v174, %v349
  %v439 = vmul.f32 %v170, %v354
  %v440 = vmul.f32 %v174, %v354
  %v441 = vmul.f32 %v170, %v359
  %v442 = vmul.f32 %v174, %v359
  %v443 = vmul.f32 %v170, %v364
  %v444 = vmul.f32 %v174, %v364
  %v445 = vmul.f32 %v170, %v369
  %v446 = vmul.f32 %v174, %v369
  %v447 = vmul.f32 %v170, %v374
  %v448 = vmul.f32 %v174, %v374
  %v449 = vmul.f32 %v170, %v379
  %v450 = vmul.f32 %v174, %v379
  %v451 = vmul.f32 %v170, %v384
  %v452 = vmul.f32 %v174, %v384
  %v453 = vmul.f32 %v170, %v389
  %v454 = vmul.f32 %v174, %v389
  %v455 = vmul.f32 %v178, %v234
  %v456 = vmul.f32 %v182, %v234
  %v457 = vmul.f32 %v178, %v239
  %v458 = vmul.f32 %v182, %v239
  %v459 = vmul.f32 %v178, %v244
  %v460 = vmul.f32 %v182, %v244
  %v461 = vmul.f32 %v178, %v249
  %v462 = vmul.f32 %v182, %v249
  %v463 = vmul.f32 %v178, %v254
  %v464 = vmul.f32 %v182, %v254
  %v465 = vmul.f32 %v178, %v259
  %v466 = vmul.f32 %v182, %v259
  %v467 = vmul.f32 %v178, %v264
  %v468 = vmul.f32 %v182, %v264
  %v469 = vmul.f32 %v178, %v269
  %v470 = vmul.f32 %v182, %v269
  %v471 = vmul.f32 %v178, %v274
  %v472 = vmul.f32 %v182, %v274
  %v473 = vmul.f32 %v178, %v279
  %v474 = vmul.f32 %v182, %v279
  %v475 = vmul.f32 %v178, %v284
  %v476 = vmul.f32 %v182, %v284
  %v477 = vmul.f32 %v178, %v289
  %v478 = vmul.f32 %v182, %v289
  %v479 = vmul.f32 %v178, %v294
  %v480 = vmul.f32 %v182, %v294
  %v481 = vmul.f32 %v178, %v299
  %v482 = vmul.f32 %v182, %v299
  %v483 = vmul.f32 %v178, %v304
  %v484 = vmul.f32 %v182, %v304
  %v485 = vmul.f32 %v178, %v309
  %v486 = vmul.f32 %v182, %v309
  %v487 = vmul.f32 %v178, %v314
  %v488 = vmul.f32 %v182, %v314
  %v489 = vmul.f32 %v178, %v319
  %v490 = vmul.f32 %v182, %v319
  %v491 = vmul.f32 %v178, %v324
  %v492 = vmul.f32 %v182, %v324
  %v493 = vmul.f32 %v178, %v329
  %v494 = vmul.f32 %v182, %v329
  %v495 = vmul.f32 %v178, %v334
  %v496 = vmul.f32 %v182, %v334
  %v497 = vmul.f32 %v178, %v339
  %v498 = vmul.f32 %v182, %v339
  %v499 = vmul.f32 %v178, %v344
  %v500 = vmul.f32 %v182, %v344
  %v501 = vmul.f32 %v178, %v349
  %v502 = vmul.f32 %v182, %v349
  %v503 = vmul.f32 %v178, %v354
  %v504 = vmul.f32 %v182, %v354
  %v505 = vmul.f32 %v178, %v359
  %v506 = vmul.f32 %v182, %v359
  %v507 = vmul.f32 %v178, %v364
  %v508 = vmul.f32 %v182, %v364
  %v509 = vmul.f32 %v178, %v369
  %v510 = vmul.f32 %v182, %v369
  %v511 = vmul.f32 %v178, %v374
  %v512 = vmul.f32 %v182, %v374
  %v513 = vmul.f32 %v178, %v379
  %v514 = vmul.f32 %v182, %v379
  %v515 = vmul.f32 %v178, %v384
  %v516 = vmul.f32 %v182, %v384
  %v517 = vmul.f32 %v178, %v389
  %v518 = vmul.f32 %v182, %v389
  %v519 = vmul.f32 %v186, %v234
  %v520 = vmul.f32 %v190, %v234
  %v521 = vmul.f32 %v186, %v239
  %v522 = vmul.f32 %v190, %v239
  %v523 = vmul.f32 %v186, %v244
  %v524 = vmul.f32 %v190, %v244
  %v525 = vmul.f32 %v186, %v249
  %v526 = vmul.f32 %v190, %v249
  %v527 = vmul.f32 %v186, %v254
  %v528 = vmul.f32 %v190, %v254
  %v529 = vmul.f32 %v186, %v259
  %v530 = vmul.f32 %v190, %v259
  %v531 = vmul.f32 %v186, %v264
  %v532 = vmul.f32 %v190, %v264
  %v533 = vmul.f32 %v186, %v269
  %v534 = vmul.f32 %v190, %v269
  %v535 = vmul.f32 %v186, %v274
  %v536 = vmul.f32 %v190, %v274
  %v537 = vmul.f32 %v186, %v279
  %v538 = vmul.f32 %v190, %v279
  %v539 = vmul.f32 %v186, %v284
  %v540 = vmul.f32 %v190, %v284
  %v541 = vmul.f32 %v186, %v289
  %v542 = vmul.f32 %v190, %v289
  %v543 = vmul.f32 %v186, %v294
  %v544 = vmul.f32 %v190, %v294
  %v545 = vmul.f32 %v186, %v299
  %v546 = vmul.f32 %v190, %v299
  %v547 = vmul.f32 %v186, %v304
  %v548 = vmul.f32 %v190, %v304
  %v549 = vmul.f32 %v186, %v309
  %v550 = vmul.f32 %v190, %v309
  %v551 = vmul.f32 %v186, %v314
  %v552 = vmul.f32 %v190, %v314
  %v553 = vmul.f32 %v186, %v319
  %v554 = vmul.f32 %v190, %v319
  %v555 = vmul.f32 %v186, %v324
  %v556 = vmul.f32 %v190, %v324
  %v557 = vmul.f32 %v186, %v329
  %v558 = vmul.f32 %v190, %v329
  %v559 = vmul.f32 %v186, %v334
  %v560 = vmul.f32 %v190, %v334
  %v561 = vmul.f32 %v186, %v339
  %v562 = vmul.f32 %v190, %v339
  %v563 = vmul.f32 %v186, %v344
  %v564 = vmul.f32 %v190, %v344
  %v565 = vmul.f32 %v186, %v349
  %v566 = vmul.f32 %v190, %v349
  %v567 = vmul.f32 %v186, %v354
  %v568 = vmul.f32 %v190, %v354
  %v569 = vmul.f32 %v186, %v359
  %v570 = vmul.f32 %v190, %v359
  %v571 = vmul.f32 %v186, %v364
  %v572 = vmul.f32 %v190, %v364
  %v573 = vmul.f32 %v186, %v369
  %v574 = vmul.f32 %v190, %v369
  %v575 = vmul.f32 %v186, %v374
  %v576 = vmul.f32 %v190, %v374
  %v577 = vmul.f32 %v186, %v379
  %v578 = vmul.f32 %v190, %v379
  %v579 = vmul.f32 %v186, %v384
  %v580 = vmul.f32 %v190, %v384
  %v581 = vmul.f32 %v186, %v389
  %v582 = vmul.f32 %v190, %v389
  %v583 = vmul.f32 %v194, %v234
  %v584 = vmul.f32 %v198, %v234
  %v585 = vmul.f32 %v194, %v239
  %v586 = vmul.f32 %v198, %v239
  %v587 = vmul.f32 %v194, %v244
  %v588 = vmul.f32 %v198, %v244
  %v589 = vmul.f32 %v194, %v249
  %v590 = vmul.f32 %v198, %v249
  %v591 = vmul.f32 %v194, %v254
  %v592 = vmul.f32 %v198, %v254
  %v593 = vmul.f32 %v194, %v259
  %v594 = vmul.f32 %v198, %v259
  %v595 = vmul.f32 %v194, %v264
  %v596 = vmul.f32 %v198, %v264
  %v597 = vmul.f32 %v194, %v269
  %v598 = vmul.f32 %v198, %v269
  %v599 = vmul.f32 %v194, %v274
  %v600 = vmul.f32 %v198, %v274
  %v601 = vmul.f32 %v194, %v279
  %v602 = vmul.f32 %v198, %v279
  %v603 = vmul.f32 %v194, %v284
  %v604 = vmul.f32 %v198, %v284
  %v605 = vmul.f32 %v194, %v289
  %v606 = vmul.f32 %v198, %v289
  %v607 = vmul.f32 %v194, %v294
  %v608 = vmul.f32 %v198, %v294
  %v609 = vmul.f32 %v194, %v299
  %v610 = vmul.f32 %v198, %v299
  %v611 = vmul.f32 %v194, %v304
  %v612 = vmul.f32 %v198, %v304
  %v613 = vmul.f32 %v194, %v309
  %v614 = vmul.f32 %v198, %v309
  %v615 = vmul.f32 %v194, %v314
  %v616 = vmul.f32 %v198, %v314
  %v617 = vmul.f32 %v194, %v319
  %v618 = vmul.f32 %v198, %v319
  %v619 = vmul.f32 %v194, %v324
  %v620 = vmul.f32 %v198, %v324
  %v621 = vmul.f32 %v194, %v329
  %v622 = vmul.f32 %v198, %v329
  %v623 = vmul.f32 %v194, %v334
  %v624 = vmul.f32 %v198, %v334
  %v625 = vmul.f32 %v194, %v339
  %v626 = vmul.f32 %v198, %v339
  %v627 = vmul.f32 %v194, %v344
  %v628 = vmul.f32 %v198, %v344
  %v629 = vmul.f32 %v194, %v349
  %v630 = vmul.f32 %v198, %v349
  %v631 = vmul.f32 %v194, %v354
  %v632 = vmul.f32 %v198, %v354
  %v633 = vmul.f32 %v194, %v359
  %v634 = vmul.f32 %v198, %v359
  %v635 = vmul.f32 %v194, %v364
  %v636 = vmul.f32 %v198, %v364
  %v637 = vmul.f32 %v194, %v369
  %v638 = vmul.f32 %v198, %v369
  %v639 = vmul.f32 %v194, %v374
  %v640 = vmul.f32 %v198, %v374
  %v641 = vmul.f32 %v194, %v379
  %v642 = vmul.f32 %v198, %v379
  %v643 = vmul.f32 %v194, %v384
  %v644 = vmul.f32 %v198, %v384
  %v645 = vmul.f32 %v194, %v389
  %v646 = vmul.f32 %v198, %v389
  %v647 = vmul.f32 %v202, %v234
  %v648 = vmul.f32 %v206, %v234
  %v649 = vmul.f32 %v202, %v239
  %v650 = vmul.f32 %v206, %v239
  %v651 = vmul.f32 %v202, %v244
  %v652 = vmul.f32 %v206, %v244
  %v653 = vmul.f32 %v202, %v249
  %v654 = vmul.f32 %v206, %v249
  %v655 = vmul.f32 %v202, %v254
  %v656 = vmul.f32 %v206, %v254
  %v657 = vmul.f32 %v202, %v259
  %v658 = vmul.f32 %v206, %v259
  %v659 = vmul.f32 %v202, %v264
  %v660 = vmul.f32 %v206, %v264
  %v661 = vmul.f32 %v202, %v269
  %v662 = vmul.f32 %v206, %v269
  %v663 = vmul.f32 %v202, %v274
  %v664 = vmul.f32 %v206, %v274
  %v665 = vmul.f32 %v202, %v279
  %v666 = vmul.f32 %v206, %v279
  %v667 = vmul.f32 %v202, %v284
  %v668 = vmul.f32 %v206, %v284
  %v669 = vmul.f32 %v202, %v289
  %v670 = vmul.f32 %v206, %v289
  %v671 = vmul.f32 %v202, %v294
  %v672 = vmul.f32 %v206, %v294
  %v673 = vmul.f32 %v202, %v299
  %v674 = vmul.f32 %v206, %v299
  %v675 = vmul.f32 %v202, %v304
  %v676 = vmul.f32 %v206, %v304
  %v677 = vmul.f32 %v202, %v309
  %v678 = vmul.f32 %v206, %v309
  %v679 = vmul.f32 %v202, %v314
  %v680 = vmul.f32 %v206, %v314
  %v681 = vmul.f32 %v202, %v319
  %v682 = vmul.f32 %v206, %v319
  %v683 = vmul.f32 %v202, %v324
  %v684 = vmul.f32 %v206, %v324
  %v685 = vmul.f32 %v202, %v329
  %v686 = vmul.f32 %v206, %v329
  %v687 = vmul.f32 %v202, %v334
  %v688 = vmul.f32 %v206, %v334
  %v689 = vmul.f32 %v202, %v339
  %v690 = vmul.f32 %v206, %v339
  %v691 = vmul.f32 %v202, %v344
  %v692 = vmul.f32 %v206, %v344
  %v693 = vmul.f32 %v202, %v349
  %v694 = vmul.f32 %v206, %v349
  %v695 = vmul.f32 %v202, %v354
  %v696 = vmul.f32 %v206, %v354
  %v697 = vmul.f32 %v202, %v359
  %v698 = vmul.f32 %v206, %v359
  %v699 = vmul.f32 %v202, %v364
  %v700 = vmul.f32 %v206, %v364
  %v701 = vmul.f32 %v202, %v369
  %v702 = vmul.f32 %v206, %v369
  %v703 = vmul.f32 %v202, %v374
  %v704 = vmul.f32 %v206, %v374
  %v705 = vmul.f32 %v202, %v379
  %v706 = vmul.f32 %v206, %v379
  %v707 = vmul.f32 %v202, %v384
  %v708 = vmul.f32 %v206, %v384
  %v709 = vmul.f32 %v202, %v389
  %v710 = vmul.f32 %v206, %v389
  %v711 = vmul.f32 %v210, %v234
  %v712 = vmul.f32 %v214, %v234
  %v713 = vmul.f32 %v210, %v239
  %v714 = vmul.f32 %v214, %v239
  %v715 = vmul.f32 %v210, %v244
  %v716 = vmul.f32 %v214, %v244
  %v717 = vmul.f32 %v210, %v249
  %v718 = vmul.f32 %v214, %v249
  %v719 = vmul.f32 %v210, %v254
  %v720 = vmul.f32 %v214, %v254
  %v721 = vmul.f32 %v210, %v259
  %v722 = vmul.f32 %v214, %v259
  %v723 = vmul.f32 %v210, %v264
  %v724 = vmul.f32 %v214, %v264
  %v725 = vmul.f32 %v210, %v269
  %v726 = vmul.f32 %v214, %v269
  %v727 = vmul.f32 %v210, %v274
  %v728 = vmul.f32 %v214, %v274
  %v729 = vmul.f32 %v210, %v279
  %v730 = vmul.f32 %v214, %v279
  %v731 = vmul.f32 %v210, %v284
  %v732 = vmul.f32 %v214, %v284
  %v733 = vmul.f32 %v210, %v289
  %v734 = vmul.f32 %v214, %v289
  %v735 = vmul.f32 %v210, %v294
  %v736 = vmul.f32 %v214, %v294
  %v737 = vmul.f32 %v210, %v299
  %v738 = vmul.f32 %v214, %v299
  %v739 = vmul.f32 %v210, %v304
  %v740 = vmul.f32 %v214, %v304
  %v741 = vmul.f32 %v210, %v309
  %v742 = vmul.f32 %v214, %v309
  %v743 = vmul.f32 %v210, %v314
  %v744 = vmul.f32 %v214, %v314
  %v745 = vmul.f32 %v210, %v319
  %v746 = vmul.f32 %v214, %v319
  %v747 = vmul.f32 %v210, %v324
  %v748 = vmul.f32 %v214, %v324
  %v749 = vmul.f32 %v210, %v329
  %v750 = vmul.f32 %v214, %v329
  %v751 = vmul.f32 %v210, %v334
  %v752 = vmul.f32 %v214, %v334
  %v753 = vmul.f32 %v210, %v339
  %v754 = vmul.f32 %v214, %v339
  %v755 = vmul.f32 %v210, %v344
  %v756 = vmul.f32 %v214, %v344
  %v757 = vmul.f32 %v210, %v349
  %v758 = vmul.f32 %v214, %v349
  %v759 = vmul.f32 %v210, %v354
  %v760 = vmul.f32 %v214, %v354
  %v761 = vmul.f32 %v210, %v359
  %v762 = vmul.f32 %v214, %v359
  %v763 = vmul.f32 %v210, %v364
  %v764 = vmul.f32 %v214, %v364
  %v765 = vmul.f32 %v210, %v369
  %v766 = vmul.f32 %v214, %v369
  %v767 = vmul.f32 %v210, %v374
  %v768 = vmul.f32 %v214, %v374
  %v769 = vmul.f32 %v210, %v379
  %v770 = vmul.f32 %v214, %v379
  %v771 = vmul.f32 %v210, %v384
  %v772 = vmul.f32 %v214, %v384
  %v773 = vmul.f32 %v210, %v389
  %v774 = vmul.f32 %v214, %v389
  %v775 = vmul.f32 %v218, %v234
  %v776 = vmul.f32 %v222, %v234
  %v777 = vmul.f32 %v218, %v239
  %v778 = vmul.f32 %v222, %v239
  %v779 = vmul.f32 %v218, %v244
  %v780 = vmul.f32 %v222, %v244
  %v781 = vmul.f32 %v218, %v249
  %v782 = vmul.f32 %v222, %v249
  %v783 = vmul.f32 %v218, %v254
  %v784 = vmul.f32 %v222, %v254
  %v785 = vmul.f32 %v218, %v259
  %v786 = vmul.f32 %v222, %v259
  %v787 = vmul.f32 %v218, %v264
  %v788 = vmul.f32 %v222, %v264
  %v789 = vmul.f32 %v218, %v269
  %v790 = vmul.f32 %v222, %v269
  %v791 = vmul.f32 %v218, %v274
  %v792 = vmul.f32 %v222, %v274
  %v793 = vmul.f32 %v218, %v279
  %v794 = vmul.f32 %v222, %v279
  %v795 = vmul.f32 %v218, %v284
  %v796 = vmul.f32 %v222, %v284
  %v797 = vmul.f32 %v218, %v289
  %v798 = vmul.f32 %v222, %v289
  %v799 = vmul.f32 %v218, %v294
  %v800 = vmul.f32 %v222, %v294
  %v801 = vmul.f32 %v218, %v299
  %v802 = vmul.f32 %v222, %v299
  %v803 = vmul.f32 %v218, %v304
  %v804 = vmul.f32 %v222, %v304
  %v805 = vmul.f32 %v218, %v309
  %v806 = vmul.f32 %v222, %v309
  %v807 = vmul.f32 %v218, %v314
  %v808 = vmul.f32 %v222, %v314
  %v809 = vmul.f32 %v218, %v319
  %v810 = vmul.f32 %v222, %v319
  %v811 = vmul.f32 %v218, %v324
  %v812 = vmul.f32 %v222, %v324
  %v813 = vmul.f32 %v218, %v329
  %v814 = vmul.f32 %v222, %v329
  %v815 = vmul.f32 %v218, %v334
  %v816 = vmul.f32 %v222, %v334
  %v817 = vmul.f32 %v218, %v339
  %v818 = vmul.f32 %v222, %v339
  %v819 = vmul.f32 %v218, %v344
  %v820 = vmul.f32 %v222, %v344
  %v821 = vmul.f32 %v218, %v349
  %v822 = vmul.f32 %v222, %v349
  %v823 = vmul.f32 %v218, %v354
  %v824 = vmul.f32 %v222, %v354
  %v825 = vmul.f32 %v218, %v359
  %v826 = vmul.f32 %v222, %v359
  %v827 = vmul.f32 %v218, %v364
  %v828 = vmul.f32 %v222, %v364
  %v829 = vmul.f32 %v218, %v369
  %v830 = vmul.f32 %v222, %v369
  %v831 = vmul.f32 %v218, %v374
  %v832 = vmul.f32 %v222, %v374
  %v833 = vmul.f32 %v218, %v379
  %v834 = vmul.f32 %v222, %v379
  %v835 = vmul.f32 %v218, %v384
  %v836 = vmul.f32 %v222, %v384
  %v837 = vmul.f32 %v218, %v389
  %v838 = vmul.f32 %v222, %v389
  %v839 = vmul.f32 %v226, %v234
  %v840 = vmul.f32 %v230, %v234
  %v841 = vmul.f32 %v226, %v239
  %v842 = vmul.f32 %v230, %v239
  %v843 = vmul.f32 %v226, %v244
  %v844 = vmul.f32 %v230, %v244
  %v845 = vmul.f32 %v226, %v249
  %v846 = vmul.f32 %v230, %v249
  %v847 = vmul.f32 %v226, %v254
  %v848 = vmul.f32 %v230, %v254
  %v849 = vmul.f32 %v226, %v259
  %v850 = vmul.f32 %v230, %v259
  %v851 = vmul.f32 %v226, %v264
  %v852 = vmul.f32 %v230, %v264
  %v853 = vmul.f32 %v226, %v269
  %v854 = vmul.f32 %v230, %v269
  %v855 = vmul.f32 %v226, %v274
  %v856 = vmul.f32 %v230, %v274
  %v857 = vmul.f32 %v226, %v279
  %v858 = vmul.f32 %v230, %v279
  %v859 = vmul.f32 %v226, %v284
  %v860 = vmul.f32 %v230, %v284
  %v861 = vmul.f32 %v226, %v289
  %v862 = vmul.f32 %v230, %v289
  %v863 = vmul.f32 %v226, %v294
  %v864 = vmul.f32 %v230, %v294
  %v865 = vmul.f32 %v226, %v299
  %v866 = vmul.f32 %v230, %v299
  %v867 = vmul.f32 %v226, %v304
  %v868 = vmul.f32 %v230, %v304
  %v869 = vmul.f32 %v226, %v309
  %v870 = vmul.f32 %v230, %v309
  %v871 = vmul.f32 %v226, %v314
  %v872 = vmul.f32 %v230, %v314
  %v873 = vmul.f32 %v226, %v319
  %v874 = vmul.f32 %v230, %v319
  %v875 = vmul.f32 %v226, %v324
  %v876 = vmul.f32 %v230, %v324
  %v877 = vmul.f32 %v226, %v329
  %v878 = vmul.f32 %v230, %v329
  %v879 = vmul.f32 %v226, %v334
  %v880 = vmul.f32 %v230, %v334
  %v881 = vmul.f32 %v226, %v339
  %v882 = vmul.f32 %v230, %v339
  %v883 = vmul.f32 %v226, %v344
  %v884 = vmul.f32 %v230, %v344
  %v885 = vmul.f32 %v226, %v349
  %v886 = vmul.f32 %v230, %v349
  %v887 = vmul.f32 %v226, %v354
  %v888 = vmul.f32 %v230, %v354
  %v889 = vmul.f32 %v226, %v359
  %v890 = vmul.f32 %v230, %v359
  %v891 = vmul.f32 %v226, %v364
  %v892 = vmul.f32 %v230, %v364
  %v893 = vmul.f32 %v226, %v369
  %v894 = vmul.f32 %v230, %v369
  %v895 = vmul.f32 %v226, %v374
  %v896 = vmul.f32 %v230, %v374
  %v897 = vmul.f32 %v226, %v379
  %v898 = vmul.f32 %v230, %v379
  %v899 = vmul.f32 %v226, %v384
  %v900 = vmul.f32 %v230, %v384
  %v901 = vmul.f32 %v226, %v389
  %v902 = vmul.f32 %v230, %v389
  %v903 = vlaneseq
  %v904 = vshrl.u32 %v903, 7
  %v905 = vsub.s32 1, %v904
  %v906 = vrot.slane %v39, %v905
  %v907 = vlaneseq
  %v908 = vshrl.u32 %v907, 7
  %v909 = vsub.s32 5, %v908
  %v910 = vrot.slane %v39, %v909
  %v911 = vlaneseq
  %v912 = vshrl.u32 %v911, 7
  %v913 = vsub.s32 1, %v912
  %v914 = vrot.slane %v40, %v913
  %v915 = vlaneseq
  %v916 = vshrl.u32 %v915, 7
  %v917 = vsub.s32 5, %v916
  %v918 = vrot.slane %v40, %v917
  %v919 = vlaneseq
  %v920 = vshrl.u32 %v919, 7
  %v921 = vsub.s32 1, %v920
  %v922 = vrot.slane %v41, %v921
  %v923 = vlaneseq
  %v924 = vshrl.u32 %v923, 7
  %v925 = vsub.s32 5, %v924
  %v926 = vrot.slane %v41, %v925
  %v927 = vlaneseq
  %v928 = vshrl.u32 %v927, 7
  %v929 = vsub.s32 1, %v928
  %v930 = vrot.slane %v42, %v929
  %v931 = vlaneseq
  %v932 = vshrl.u32 %v931, 7
  %v933 = vsub.s32 5, %v932
  %v934 = vrot.slane %v42, %v933
  %v935 = vlaneseq
  %v936 = vshrl.u32 %v935, 7
  %v937 = vsub.s32 1, %v936
  %v938 = vrot.slane %v43, %v937
  %v939 = vlaneseq
  %v940 = vshrl.u32 %v939, 7
  %v941 = vsub.s32 5, %v940
  %v942 = vrot.slane %v43, %v941
  %v943 = vlaneseq
  %v944 = vshrl.u32 %v943, 7
  %v945 = vsub.s32 1, %v944
  %v946 = vrot.slane %v44, %v945
  %v947 = vlaneseq
  %v948 = vshrl.u32 %v947, 7
  %v949 = vsub.s32 5, %v948
  %v950 = vrot.slane %v44, %v949
  %v951 = vlaneseq
  %v952 = vshrl.u32 %v951, 7
  %v953 = vsub.s32 1, %v952
  %v954 = vrot.slane %v45, %v953
  %v955 = vlaneseq
  %v956 = vshrl.u32 %v955, 7
  %v957 = vsub.s32 5, %v956
  %v958 = vrot.slane %v45, %v957
  %v959 = vlaneseq
  %v960 = vshrl.u32 %v959, 7
  %v961 = vsub.s32 1, %v960
  %v962 = vrot.slane %v46, %v961
  %v963 = vlaneseq
  %v964 = vshrl.u32 %v963, 7
  %v965 = vsub.s32 5, %v964
  %v966 = vrot.slane %v46, %v965
  %v983 = vlaneseq
  %v984 = vshrl.u32 %v983, 7
  %v985 = vsub.s32 1, %v984
  %v986 = vrot.slane %v906, %v985
  %v987 = vlaneseq
  %v988 = vshrl.u32 %v987, 7
  %v989 = vsub.s32 1, %v988
  %v990 = vrot.slane %v910, %v989
  %v991 = vlaneseq
  %v992 = vshrl.u32 %v991, 7
  %v993 = vsub.s32 1, %v992
  %v994 = vrot.slane %v914, %v993
  %v995 = vlaneseq
  %v996 = vshrl.u32 %v995, 7
  %v997 = vsub.s32 1, %v996
  %v998 = vrot.slane %v918, %v997
  %v999 = vlaneseq
  %v1000 = vshrl.u32 %v999, 7
  %v1001 = vsub.s32 1, %v1000
  %v1002 = vrot.slane %v922, %v1001
  %v1003 = vlaneseq
  %v1004 = vshrl.u32 %v1003, 7
  %v1005 = vsub.s32 1, %v1004
  %v1006 = vrot.slane %v926, %v1005
  %v1007 = vlaneseq
  %v1008 = vshrl.u32 %v1007, 7
  %v1009 = vsub.s32 1, %v1008
  %v1010 = vrot.slane %v930, %v1009
  %v1011 = vlaneseq
  %v1012 = vshrl.u32 %v1011, 7
  %v1013 = vsub.s32 1, %v1012
  %v1014 = vrot.slane %v934, %v1013
  %v1015 = vlaneseq
  %v1016 = vshrl.u32 %v1015, 7
  %v1017 = vsub.s32 1, %v1016
  %v1018 = vrot.slane %v938, %v1017
  %v1019 = vlaneseq
  %v1020 = vshrl.u32 %v1019, 7
  %v1021 = vsub.s32 1, %v1020
  %v1022 = vrot.slane %v942, %v1021
  %v1023 = vlaneseq
  %v1024 = vshrl.u32 %v1023, 7
  %v1025 = vsub.s32 1, %v1024
  %v1026 = vrot.slane %v946, %v1025
  %v1027 = vlaneseq
  %v1028 = vshrl.u32 %v1027, 7
  %v1029 = vsub.s32 1, %v1028
  %v1030 = vrot.slane %v950, %v1029
  %v1031 = vlaneseq
  %v1032 = vshrl.u32 %v1031, 7
  %v1033 = vsub.s32 1, %v1032
  %v1034 = vrot.slane %v954, %v1033
  %v1035 = vlaneseq
  %v1036 = vshrl.u32 %v1035, 7
  %v1037 = vsub.s32 1, %v1036
  %v1038 = vrot.slane %v958, %v1037
  %v1039 = vlaneseq
  %v1040 = vshrl.u32 %v1039, 7
  %v1041 = vsub.s32 1, %v1040
  %v1042 = vrot.slane %v962, %v1041
  %v1043 = vlaneseq
  %v1044 = vshrl.u32 %v1043, 7
  %v1045 = vsub.s32 1, %v1044
  %v1046 = vrot.slane %v966, %v1045
  %1047 = vset.pattern.permute.xlu0 1
  %1048 = vperm.xlu0 %1047, %v47
  %v1049 = vpop.permute.xlu0 %1048
  %1051 = vset.pattern.permute.xlu0 1
  %1052 = vperm.xlu0 %1051, %v48
  %v1053 = vpop.permute.xlu0 %1052
  %1055 = vset.pattern.permute.xlu0 1
  %1056 = vperm.xlu0 %1055, %v49
  %v1057 = vpop.permute.xlu0 %1056
  %1059 = vset.pattern.permute.xlu0 1
  %1060 = vperm.xlu0 %1059, %v50
  %v1061 = vpop.permute.xlu0 %1060
  %1063 = vset.pattern.permute.xlu0 1
  %1064 = vperm.xlu0 %1063, %v51
  %v1065 = vpop.permute.xlu0 %1064
  %1067 = vset.pattern.permute.xlu0 1
  %1068 = vperm.xlu0 %1067, %v52
  %v1069 = vpop.permute.xlu0 %1068
  %1071 = vset.pattern.permute.xlu0 1
  %1072 = vperm.xlu0 %1071, %v53
  %v1073 = vpop.permute.xlu0 %1072
  %1075 = vset.pattern.permute.xlu0 1
  %1076 = vperm.xlu0 %1075, %v54
  %v1077 = vpop.permute.xlu0 %1076
  %1079 = vset.pattern.permute.xlu0 1
  %1080 = vperm.xlu0 %1079, %v55
  %v1081 = vpop.permute.xlu0 %1080
  %1083 = vset.pattern.permute.xlu0 1
  %1084 = vperm.xlu0 %1083, %v56
  %v1085 = vpop.permute.xlu0 %1084
  %1087 = vset.pattern.permute.xlu0 1
  %1088 = vperm.xlu0 %1087, %v57
  %v1089 = vpop.permute.xlu0 %1088
  %1091 = vset.pattern.permute.xlu0 1
  %1092 = vperm.xlu0 %1091, %v58
  %v1093 = vpop.permute.xlu0 %1092
  %1095 = vset.pattern.permute.xlu0 1
  %1096 = vperm.xlu0 %1095, %v59
  %v1097 = vpop.permute.xlu0 %1096
  %1099 = vset.pattern.permute.xlu0 1
  %1100 = vperm.xlu0 %1099, %v60
  %v1101 = vpop.permute.xlu0 %1100
  %1103 = vset.pattern.permute.xlu0 1
  %1104 = vperm.xlu0 %1103, %v61
  %v1105 = vpop.permute.xlu0 %1104
  %1107 = vset.pattern.permute.xlu0 1
  %1108 = vperm.xlu0 %1107, %v62
  %v1109 = vpop.permute.xlu0 %1108
  %1111 = vset.pattern.permute.xlu0 1
  %1112 = vperm.xlu0 %1111, %v63
  %v1113 = vpop.permute.xlu0 %1112
  %1115 = vset.pattern.permute.xlu0 1
  %1116 = vperm.xlu0 %1115, %v64
  %v1117 = vpop.permute.xlu0 %1116
  %1119 = vset.pattern.permute.xlu0 1
  %1120 = vperm.xlu0 %1119, %v65
  %v1121 = vpop.permute.xlu0 %1120
  %1123 = vset.pattern.permute.xlu0 1
  %1124 = vperm.xlu0 %1123, %v66
  %v1125 = vpop.permute.xlu0 %1124
  %1127 = vset.pattern.permute.xlu0 1
  %1128 = vperm.xlu0 %1127, %v67
  %v1129 = vpop.permute.xlu0 %1128
  %1131 = vset.pattern.permute.xlu0 1
  %1132 = vperm.xlu0 %1131, %v68
  %v1133 = vpop.permute.xlu0 %1132
  %1135 = vset.pattern.permute.xlu0 1
  %1136 = vperm.xlu0 %1135, %v69
  %v1137 = vpop.permute.xlu0 %1136
  %1139 = vset.pattern.permute.xlu0 1
  %1140 = vperm.xlu0 %1139, %v70
  %v1141 = vpop.permute.xlu0 %1140
  %1143 = vset.pattern.permute.xlu0 1
  %1144 = vperm.xlu0 %1143, %v71
  %v1145 = vpop.permute.xlu0 %1144
  %1147 = vset.pattern.permute.xlu0 1
  %1148 = vperm.xlu0 %1147, %v72
  %v1149 = vpop.permute.xlu0 %1148
  %1151 = vset.pattern.permute.xlu0 1
  %1152 = vperm.xlu0 %1151, %v73
  %v1153 = vpop.permute.xlu0 %1152
  %1155 = vset.pattern.permute.xlu0 1
  %1156 = vperm.xlu0 %1155, %v74
  %v1157 = vpop.permute.xlu0 %1156
  %1159 = vset.pattern.permute.xlu0 1
  %1160 = vperm.xlu0 %1159, %v75
  %v1161 = vpop.permute.xlu0 %1160
  %1163 = vset.pattern.permute.xlu0 1
  %1164 = vperm.xlu0 %1163, %v76
  %v1165 = vpop.permute.xlu0 %1164
  %1167 = vset.pattern.permute.xlu0 1
  %1168 = vperm.xlu0 %1167, %v77
  %v1169 = vpop.permute.xlu0 %1168
  %1171 = vset.pattern.permute.xlu0 1
  %1172 = vperm.xlu0 %1171, %v78
  %v1173 = vpop.permute.xlu0 %1172
  %v1175 = vmul.f32 %v986, %v1049
  %v1176 = vmul.f32 %v990, %v1049
  %v1177 = vmul.f32 %v986, %v1053
  %v1178 = vmul.f32 %v990, %v1053
  %v1179 = vmul.f32 %v986, %v1057
  %v1180 = vmul.f32 %v990, %v1057
  %v1181 = vmul.f32 %v986, %v1061
  %v1182 = vmul.f32 %v990, %v1061
  %v1183 = vmul.f32 %v986, %v1065
  %v1184 = vmul.f32 %v990, %v1065
  %v1185 = vmul.f32 %v986, %v1069
  %v1186 = vmul.f32 %v990, %v1069
  %v1187 = vmul.f32 %v986, %v1073
  %v1188 = vmul.f32 %v990, %v1073
  %v1189 = vmul.f32 %v986, %v1077
  %v1190 = vmul.f32 %v990, %v1077
  %v1191 = vmul.f32 %v986, %v1081
  %v1192 = vmul.f32 %v990, %v1081
  %v1193 = vmul.f32 %v986, %v1085
  %v1194 = vmul.f32 %v990, %v1085
  %v1195 = vmul.f32 %v986, %v1089
  %v1196 = vmul.f32 %v990, %v1089
  %v1197 = vmul.f32 %v986, %v1093
  %v1198 = vmul.f32 %v990, %v1093
  %v1199 = vmul.f32 %v986, %v1097
  %v1200 = vmul.f32 %v990, %v1097
  %v1201 = vmul.f32 %v986, %v1101
  %v1202 = vmul.f32 %v990, %v1101
  %v1203 = vmul.f32 %v986, %v1105
  %v1204 = vmul.f32 %v990, %v1105
  %v1205 = vmul.f32 %v986, %v1109
  %v1206 = vmul.f32 %v990, %v1109
  %v1207 = vmul.f32 %v986, %v1113
  %v1208 = vmul.f32 %v990, %v1113
  %v1209 = vmul.f32 %v986, %v1117
  %v1210 = vmul.f32 %v990, %v1117
  %v1211 = vmul.f32 %v986, %v1121
  %v1212 = vmul.f32 %v990, %v1121
  %v1213 = vmul.f32 %v986, %v1125
  %v1214 = vmul.f32 %v990, %v1125
  %v1215 = vmul.f32 %v986, %v1129
  %v1216 = vmul.f32 %v990, %v1129
  %v1217 = vmul.f32 %v986, %v1133
  %v1218 = vmul.f32 %v990, %v1133
  %v1219 = vmul.f32 %v986, %v1137
  %v1220 = vmul.f32 %v990, %v1137
  %v1221 = vmul.f32 %v986, %v1141
  %v1222 = vmul.f32 %v990, %v1141
  %v1223 = vmul.f32 %v986, %v1145
  %v1224 = vmul.f32 %v990, %v1145
  %v1225 = vmul.f32 %v986, %v1149
  %v1226 = vmul.f32 %v990, %v1149
  %v1227 = vmul.f32 %v986, %v1153
  %v1228 = vmul.f32 %v990, %v1153
  %v1229 = vmul.f32 %v986, %v1157
  %v1230 = vmul.f32 %v990, %v1157
  %v1231 = vmul.f32 %v986, %v1161
  %v1232 = vmul.f32 %v990, %v1161
  %v1233 = vmul.f32 %v986, %v1165
  %v1234 = vmul.f32 %v990, %v1165
  %v1235 = vmul.f32 %v986, %v1169
  %v1236 = vmul.f32 %v990, %v1169
  %v1237 = vmul.f32 %v986, %v1173
  %v1238 = vmul.f32 %v990, %v1173
  %v1239 = vmul.f32 %v994, %v1049
  %v1240 = vmul.f32 %v998, %v1049
  %v1241 = vmul.f32 %v994, %v1053
  %v1242 = vmul.f32 %v998, %v1053
  %v1243 = vmul.f32 %v994, %v1057
  %v1244 = vmul.f32 %v998, %v1057
  %v1245 = vmul.f32 %v994, %v1061
  %v1246 = vmul.f32 %v998, %v1061
  %v1247 = vmul.f32 %v994, %v1065
  %v1248 = vmul.f32 %v998, %v1065
  %v1249 = vmul.f32 %v994, %v1069
  %v1250 = vmul.f32 %v998, %v1069
  %v1251 = vmul.f32 %v994, %v1073
  %v1252 = vmul.f32 %v998, %v1073
  %v1253 = vmul.f32 %v994, %v1077
  %v1254 = vmul.f32 %v998, %v1077
  %v1255 = vmul.f32 %v994, %v1081
  %v1256 = vmul.f32 %v998, %v1081
  %v1257 = vmul.f32 %v994, %v1085
  %v1258 = vmul.f32 %v998, %v1085
  %v1259 = vmul.f32 %v994, %v1089
  %v1260 = vmul.f32 %v998, %v1089
  %v1261 = vmul.f32 %v994, %v1093
  %v1262 = vmul.f32 %v998, %v1093
  %v1263 = vmul.f32 %v994, %v1097
  %v1264 = vmul.f32 %v998, %v1097
  %v1265 = vmul.f32 %v994, %v1101
  %v1266 = vmul.f32 %v998, %v1101
  %v1267 = vmul.f32 %v994, %v1105
  %v1268 = vmul.f32 %v998, %v1105
  %v1269 = vmul.f32 %v994, %v1109
  %v1270 = vmul.f32 %v998, %v1109
  %v1271 = vmul.f32 %v994, %v1113
  %v1272 = vmul.f32 %v998, %v1113
  %v1273 = vmul.f32 %v994, %v1117
  %v1274 = vmul.f32 %v998, %v1117
  %v1275 = vmul.f32 %v994, %v1121
  %v1276 = vmul.f32 %v998, %v1121
  %v1277 = vmul.f32 %v994, %v1125
  %v1278 = vmul.f32 %v998, %v1125
  %v1279 = vmul.f32 %v994, %v1129
  %v1280 = vmul.f32 %v998, %v1129
  %v1281 = vmul.f32 %v994, %v1133
  %v1282 = vmul.f32 %v998, %v1133
  %v1283 = vmul.f32 %v994, %v1137
  %v1284 = vmul.f32 %v998, %v1137
  %v1285 = vmul.f32 %v994, %v1141
  %v1286 = vmul.f32 %v998, %v1141
  %v1287 = vmul.f32 %v994, %v1145
  %v1288 = vmul.f32 %v998, %v1145
  %v1289 = vmul.f32 %v994, %v1149
  %v1290 = vmul.f32 %v998, %v1149
  %v1291 = vmul.f32 %v994, %v1153
  %v1292 = vmul.f32 %v998, %v1153
  %v1293 = vmul.f32 %v994, %v1157
  %v1294 = vmul.f32 %v998, %v1157
  %v1295 = vmul.f32 %v994, %v1161
  %v1296 = vmul.f32 %v998, %v1161
  %v1297 = vmul.f32 %v994, %v1165
  %v1298 = vmul.f32 %v998, %v1165
  %v1299 = vmul.f32 %v994, %v1169
  %v1300 = vmul.f32 %v998, %v1169
  %v1301 = vmul.f32 %v994, %v1173
  %v1302 = vmul.f32 %v998, %v1173
  %v1303 = vmul.f32 %v1002, %v1049
  %v1304 = vmul.f32 %v1006, %v1049
  %v1305 = vmul.f32 %v1002, %v1053
  %v1306 = vmul.f32 %v1006, %v1053
  %v1307 = vmul.f32 %v1002, %v1057
  %v1308 = vmul.f32 %v1006, %v1057
  %v1309 = vmul.f32 %v1002, %v1061
  %v1310 = vmul.f32 %v1006, %v1061
  %v1311 = vmul.f32 %v1002, %v1065
  %v1312 = vmul.f32 %v1006, %v1065
  %v1313 = vmul.f32 %v1002, %v1069
  %v1314 = vmul.f32 %v1006, %v1069
  %v1315 = vmul.f32 %v1002, %v1073
  %v1316 = vmul.f32 %v1006, %v1073
  %v1317 = vmul.f32 %v1002, %v1077
  %v1318 = vmul.f32 %v1006, %v1077
  %v1319 = vmul.f32 %v1002, %v1081
  %v1320 = vmul.f32 %v1006, %v1081
  %v1321 = vmul.f32 %v1002, %v1085
  %v1322 = vmul.f32 %v1006, %v1085
  %v1323 = vmul.f32 %v1002, %v1089
  %v1324 = vmul.f32 %v1006, %v1089
  %v1325 = vmul.f32 %v1002, %v1093
  %v1326 = vmul.f32 %v1006, %v1093
  %v1327 = vmul.f32 %v1002, %v1097
  %v1328 = vmul.f32 %v1006, %v1097
  %v1329 = vmul.f32 %v1002, %v1101
  %v1330 = vmul.f32 %v1006, %v1101
  %v1331 = vmul.f32 %v1002, %v1105
  %v1332 = vmul.f32 %v1006, %v1105
  %v1333 = vmul.f32 %v1002, %v1109
  %v1334 = vmul.f32 %v1006, %v1109
  %v1335 = vmul.f32 %v1002, %v1113
  %v1336 = vmul.f32 %v1006, %v1113
  %v1337 = vmul.f32 %v1002, %v1117
  %v1338 = vmul.f32 %v1006, %v1117
  %v1339 = vmul.f32 %v1002, %v1121
  %v1340 = vmul.f32 %v1006, %v1121
  %v1341 = vmul.f32 %v1002, %v1125
  %v1342 = vmul.f32 %v1006, %v1125
  %v1343 = vmul.f32 %v1002, %v1129
  %v1344 = vmul.f32 %v1006, %v1129
  %v1345 = vmul.f32 %v1002, %v1133
  %v1346 = vmul.f32 %v1006, %v1133
  %v1347 = vmul.f32 %v1002, %v1137
  %v1348 = vmul.f32 %v1006, %v1137
  %v1349 = vmul.f32 %v1002, %v1141
  %v1350 = vmul.f32 %v1006, %v1141
  %v1351 = vmul.f32 %v1002, %v1145
  %v1352 = vmul.f32 %v1006, %v1145
  %v1353 = vmul.f32 %v1002, %v1149
  %v1354 = vmul.f32 %v1006, %v1149
  %v1355 = vmul.f32 %v1002, %v1153
  %v1356 = vmul.f32 %v1006, %v1153
  %v1357 = vmul.f32 %v1002, %v1157
  %v1358 = vmul.f32 %v1006, %v1157
  %v1359 = vmul.f32 %v1002, %v1161
  %v1360 = vmul.f32 %v1006, %v1161
  %v1361 = vmul.f32 %v1002, %v1165
  %v1362 = vmul.f32 %v1006, %v1165
  %v1363 = vmul.f32 %v1002, %v1169
  %v1364 = vmul.f32 %v1006, %v1169
  %v1365 = vmul.f32 %v1002, %v1173
  %v1366 = vmul.f32 %v1006, %v1173
  %v1367 = vmul.f32 %v1010, %v1049
  %v1368 = vmul.f32 %v1014, %v1049
  %v1369 = vmul.f32 %v1010, %v1053
  %v1370 = vmul.f32 %v1014, %v1053
  %v1371 = vmul.f32 %v1010, %v1057
  %v1372 = vmul.f32 %v1014, %v1057
  %v1373 = vmul.f32 %v1010, %v1061
  %v1374 = vmul.f32 %v1014, %v1061
  %v1375 = vmul.f32 %v1010, %v1065
  %v1376 = vmul.f32 %v1014, %v1065
  %v1377 = vmul.f32 %v1010, %v1069
  %v1378 = vmul.f32 %v1014, %v1069
  %v1379 = vmul.f32 %v1010, %v1073
  %v1380 = vmul.f32 %v1014, %v1073
  %v1381 = vmul.f32 %v1010, %v1077
  %v1382 = vmul.f32 %v1014, %v1077
  %v1383 = vmul.f32 %v1010, %v1081
  %v1384 = vmul.f32 %v1014, %v1081
  %v1385 = vmul.f32 %v1010, %v1085
  %v1386 = vmul.f32 %v1014, %v1085
  %v1387 = vmul.f32 %v1010, %v1089
  %v1388 = vmul.f32 %v1014, %v1089
  %v1389 = vmul.f32 %v1010, %v1093
  %v1390 = vmul.f32 %v1014, %v1093
  %v1391 = vmul.f32 %v1010, %v1097
  %v1392 = vmul.f32 %v1014, %v1097
  %v1393 = vmul.f32 %v1010, %v1101
  %v1394 = vmul.f32 %v1014, %v1101
  %v1395 = vmul.f32 %v1010, %v1105
  %v1396 = vmul.f32 %v1014, %v1105
  %v1397 = vmul.f32 %v1010, %v1109
  %v1398 = vmul.f32 %v1014, %v1109
  %v1399 = vmul.f32 %v1010, %v1113
  %v1400 = vmul.f32 %v1014, %v1113
  %v1401 = vmul.f32 %v1010, %v1117
  %v1402 = vmul.f32 %v1014, %v1117
  %v1403 = vmul.f32 %v1010, %v1121
  %v1404 = vmul.f32 %v1014, %v1121
  %v1405 = vmul.f32 %v1010, %v1125
  %v1406 = vmul.f32 %v1014, %v1125
  %v1407 = vmul.f32 %v1010, %v1129
  %v1408 = vmul.f32 %v1014, %v1129
  %v1409 = vmul.f32 %v1010, %v1133
  %v1410 = vmul.f32 %v1014, %v1133
  %v1411 = vmul.f32 %v1010, %v1137
  %v1412 = vmul.f32 %v1014, %v1137
  %v1413 = vmul.f32 %v1010, %v1141
  %v1414 = vmul.f32 %v1014, %v1141
  %v1415 = vmul.f32 %v1010, %v1145
  %v1416 = vmul.f32 %v1014, %v1145
  %v1417 = vmul.f32 %v1010, %v1149
  %v1418 = vmul.f32 %v1014, %v1149
  %v1419 = vmul.f32 %v1010, %v1153
  %v1420 = vmul.f32 %v1014, %v1153
  %v1421 = vmul.f32 %v1010, %v1157
  %v1422 = vmul.f32 %v1014, %v1157
  %v1423 = vmul.f32 %v1010, %v1161
  %v1424 = vmul.f32 %v1014, %v1161
  %v1425 = vmul.f32 %v1010, %v1165
  %v1426 = vmul.f32 %v1014, %v1165
  %v1427 = vmul.f32 %v1010, %v1169
  %v1428 = vmul.f32 %v1014, %v1169
  %v1429 = vmul.f32 %v1010, %v1173
  %v1430 = vmul.f32 %v1014, %v1173
  %v1431 = vmul.f32 %v1018, %v1049
  %v1432 = vmul.f32 %v1022, %v1049
  %v1433 = vmul.f32 %v1018, %v1053
  %v1434 = vmul.f32 %v1022, %v1053
  %v1435 = vmul.f32 %v1018, %v1057
  %v1436 = vmul.f32 %v1022, %v1057
  %v1437 = vmul.f32 %v1018, %v1061
  %v1438 = vmul.f32 %v1022, %v1061
  %v1439 = vmul.f32 %v1018, %v1065
  %v1440 = vmul.f32 %v1022, %v1065
  %v1441 = vmul.f32 %v1018, %v1069
  %v1442 = vmul.f32 %v1022, %v1069
  %v1443 = vmul.f32 %v1018, %v1073
  %v1444 = vmul.f32 %v1022, %v1073
  %v1445 = vmul.f32 %v1018, %v1077
  %v1446 = vmul.f32 %v1022, %v1077
  %v1447 = vmul.f32 %v1018, %v1081
  %v1448 = vmul.f32 %v1022, %v1081
  %v1449 = vmul.f32 %v1018, %v1085
  %v1450 = vmul.f32 %v1022, %v1085
  %v1451 = vmul.f32 %v1018, %v1089
  %v1452 = vmul.f32 %v1022, %v1089
  %v1453 = vmul.f32 %v1018, %v1093
  %v1454 = vmul.f32 %v1022, %v1093
  %v1455 = vmul.f32 %v1018, %v1097
  %v1456 = vmul.f32 %v1022, %v1097
  %v1457 = vmul.f32 %v1018, %v1101
  %v1458 = vmul.f32 %v1022, %v1101
  %v1459 = vmul.f32 %v1018, %v1105
  %v1460 = vmul.f32 %v1022, %v1105
  %v1461 = vmul.f32 %v1018, %v1109
  %v1462 = vmul.f32 %v1022, %v1109
  %v1463 = vmul.f32 %v1018, %v1113
  %v1464 = vmul.f32 %v1022, %v1113
  %v1465 = vmul.f32 %v1018, %v1117
  %v1466 = vmul.f32 %v1022, %v1117
  %v1467 = vmul.f32 %v1018, %v1121
  %v1468 = vmul.f32 %v1022, %v1121
  %v1469 = vmul.f32 %v1018, %v1125
  %v1470 = vmul.f32 %v1022, %v1125
  %v1471 = vmul.f32 %v1018, %v1129
  %v1472 = vmul.f32 %v1022, %v1129
  %v1473 = vmul.f32 %v1018, %v1133
  %v1474 = vmul.f32 %v1022, %v1133
  %v1475 = vmul.f32 %v1018, %v1137
  %v1476 = vmul.f32 %v1022, %v1137
  %v1477 = vmul.f32 %v1018, %v1141
  %v1478 = vmul.f32 %v1022, %v1141
  %v1479 = vmul.f32 %v1018, %v1145
  %v1480 = vmul.f32 %v1022, %v1145
  %v1481 = vmul.f32 %v1018, %v1149
  %v1482 = vmul.f32 %v1022, %v1149
  %v1483 = vmul.f32 %v1018, %v1153
  %v1484 = vmul.f32 %v1022, %v1153
  %v1485 = vmul.f32 %v1018, %v1157
  %v1486 = vmul.f32 %v1022, %v1157
  %v1487 = vmul.f32 %v1018, %v1161
  %v1488 = vmul.f32 %v1022, %v1161
  %v1489 = vmul.f32 %v1018, %v1165
  %v1490 = vmul.f32 %v1022, %v1165
  %v1491 = vmul.f32 %v1018, %v1169
  %v1492 = vmul.f32 %v1022, %v1169
  %v1493 = vmul.f32 %v1018, %v1173
  %v1494 = vmul.f32 %v1022, %v1173
  %v1495 = vmul.f32 %v1026, %v1049
  %v1496 = vmul.f32 %v1030, %v1049
  %v1497 = vmul.f32 %v1026, %v1053
  %v1498 = vmul.f32 %v1030, %v1053
  %v1499 = vmul.f32 %v1026, %v1057
  %v1500 = vmul.f32 %v1030, %v1057
  %v1501 = vmul.f32 %v1026, %v1061
  %v1502 = vmul.f32 %v1030, %v1061
  %v1503 = vmul.f32 %v1026, %v1065
  %v1504 = vmul.f32 %v1030, %v1065
  %v1505 = vmul.f32 %v1026, %v1069
  %v1506 = vmul.f32 %v1030, %v1069
  %v1507 = vmul.f32 %v1026, %v1073
  %v1508 = vmul.f32 %v1030, %v1073
  %v1509 = vmul.f32 %v1026, %v1077
  %v1510 = vmul.f32 %v1030, %v1077
  %v1511 = vmul.f32 %v1026, %v1081
  %v1512 = vmul.f32 %v1030, %v1081
  %v1513 = vmul.f32 %v1026, %v1085
  %v1514 = vmul.f32 %v1030, %v1085
  %v1515 = vmul.f32 %v1026, %v1089
  %v1516 = vmul.f32 %v1030, %v1089
  %v1517 = vmul.f32 %v1026, %v1093
  %v1518 = vmul.f32 %v1030, %v1093
  %v1519 = vmul.f32 %v1026, %v1097
  %v1520 = vmul.f32 %v1030, %v1097
  %v1521 = vmul.f32 %v1026, %v1101
  %v1522 = vmul.f32 %v1030, %v1101
  %v1523 = vmul.f32 %v1026, %v1105
  %v1524 = vmul.f32 %v1030, %v1105
  %v1525 = vmul.f32 %v1026, %v1109
  %v1526 = vmul.f32 %v1030, %v1109
  %v1527 = vmul.f32 %v1026, %v1113
  %v1528 = vmul.f32 %v1030, %v1113
  %v1529 = vmul.f32 %v1026, %v1117
  %v1530 = vmul.f32 %v1030, %v1117
  %v1531 = vmul.f32 %v1026, %v1121
  %v1532 = vmul.f32 %v1030, %v1121
  %v1533 = vmul.f32 %v1026, %v1125
  %v1534 = vmul.f32 %v1030, %v1125
  %v1535 = vmul.f32 %v1026, %v1129
  %v1536 = vmul.f32 %v1030, %v1129
  %v1537 = vmul.f32 %v1026, %v1133
  %v1538 = vmul.f32 %v1030, %v1133
  %v1539 = vmul.f32 %v1026, %v1137
  %v1540 = vmul.f32 %v1030, %v1137
  %v1541 = vmul.f32 %v1026, %v1141
  %v1542 = vmul.f32 %v1030, %v1141
  %v1543 = vmul.f32 %v1026, %v1145
  %v1544 = vmul.f32 %v1030, %v1145
  %v1545 = vmul.f32 %v1026, %v1149
  %v1546 = vmul.f32 %v1030, %v1149
  %v1547 = vmul.f32 %v1026, %v1153
  %v1548 = vmul.f32 %v1030, %v1153
  %v1549 = vmul.f32 %v1026, %v1157
  %v1550 = vmul.f32 %v1030, %v1157
  %v1551 = vmul.f32 %v1026, %v1161
  %v1552 = vmul.f32 %v1030, %v1161
  %v1553 = vmul.f32 %v1026, %v1165
  %v1554 = vmul.f32 %v1030, %v1165
  %v1555 = vmul.f32 %v1026, %v1169
  %v1556 = vmul.f32 %v1030, %v1169
  %v1557 = vmul.f32 %v1026, %v1173
  %v1558 = vmul.f32 %v1030, %v1173
  %v1559 = vmul.f32 %v1034, %v1049
  %v1560 = vmul.f32 %v1038, %v1049
  %v1561 = vmul.f32 %v1034, %v1053
  %v1562 = vmul.f32 %v1038, %v1053
  %v1563 = vmul.f32 %v1034, %v1057
  %v1564 = vmul.f32 %v1038, %v1057
  %v1565 = vmul.f32 %v1034, %v1061
  %v1566 = vmul.f32 %v1038, %v1061
  %v1567 = vmul.f32 %v1034, %v1065
  %v1568 = vmul.f32 %v1038, %v1065
  %v1569 = vmul.f32 %v1034, %v1069
  %v1570 = vmul.f32 %v1038, %v1069
  %v1571 = vmul.f32 %v1034, %v1073
  %v1572 = vmul.f32 %v1038, %v1073
  %v1573 = vmul.f32 %v1034, %v1077
  %v1574 = vmul.f32 %v1038, %v1077
  %v1575 = vmul.f32 %v1034, %v1081
  %v1576 = vmul.f32 %v1038, %v1081
  %v1577 = vmul.f32 %v1034, %v1085
  %v1578 = vmul.f32 %v1038, %v1085
  %v1579 = vmul.f32 %v1034, %v1089
  %v1580 = vmul.f32 %v1038, %v1089
  %v1581 = vmul.f32 %v1034, %v1093
  %v1582 = vmul.f32 %v1038, %v1093
  %v1583 = vmul.f32 %v1034, %v1097
  %v1584 = vmul.f32 %v1038, %v1097
  %v1585 = vmul.f32 %v1034, %v1101
  %v1586 = vmul.f32 %v1038, %v1101
  %v1587 = vmul.f32 %v1034, %v1105
  %v1588 = vmul.f32 %v1038, %v1105
  %v1589 = vmul.f32 %v1034, %v1109
  %v1590 = vmul.f32 %v1038, %v1109
  %v1591 = vmul.f32 %v1034, %v1113
  %v1592 = vmul.f32 %v1038, %v1113
  %v1593 = vmul.f32 %v1034, %v1117
  %v1594 = vmul.f32 %v1038, %v1117
  %v1595 = vmul.f32 %v1034, %v1121
  %v1596 = vmul.f32 %v1038, %v1121
  %v1597 = vmul.f32 %v1034, %v1125
  %v1598 = vmul.f32 %v1038, %v1125
  %v1599 = vmul.f32 %v1034, %v1129
  %v1600 = vmul.f32 %v1038, %v1129
  %v1601 = vmul.f32 %v1034, %v1133
  %v1602 = vmul.f32 %v1038, %v1133
  %v1603 = vmul.f32 %v1034, %v1137
  %v1604 = vmul.f32 %v1038, %v1137
  %v1605 = vmul.f32 %v1034, %v1141
  %v1606 = vmul.f32 %v1038, %v1141
  %v1607 = vmul.f32 %v1034, %v1145
  %v1608 = vmul.f32 %v1038, %v1145
  %v1609 = vmul.f32 %v1034, %v1149
  %v1610 = vmul.f32 %v1038, %v1149
  %v1611 = vmul.f32 %v1034, %v1153
  %v1612 = vmul.f32 %v1038, %v1153
  %v1613 = vmul.f32 %v1034, %v1157
  %v1614 = vmul.f32 %v1038, %v1157
  %v1615 = vmul.f32 %v1034, %v1161
  %v1616 = vmul.f32 %v1038, %v1161
  %v1617 = vmul.f32 %v1034, %v1165
  %v1618 = vmul.f32 %v1038, %v1165
  %v1619 = vmul.f32 %v1034, %v1169
  %v1620 = vmul.f32 %v1038, %v1169
  %v1621 = vmul.f32 %v1034, %v1173
  %v1622 = vmul.f32 %v1038, %v1173
  %v1623 = vmul.f32 %v1042, %v1049
  %v1624 = vmul.f32 %v1046, %v1049
  %v1625 = vmul.f32 %v1042, %v1053
  %v1626 = vmul.f32 %v1046, %v1053
  %v1627 = vmul.f32 %v1042, %v1057
  %v1628 = vmul.f32 %v1046, %v1057
  %v1629 = vmul.f32 %v1042, %v1061
  %v1630 = vmul.f32 %v1046, %v1061
  %v1631 = vmul.f32 %v1042, %v1065
  %v1632 = vmul.f32 %v1046, %v1065
  %v1633 = vmul.f32 %v1042, %v1069
  %v1634 = vmul.f32 %v1046, %v1069
  %v1635 = vmul.f32 %v1042, %v1073
  %v1636 = vmul.f32 %v1046, %v1073
  %v1637 = vmul.f32 %v1042, %v1077
  %v1638 = vmul.f32 %v1046, %v1077
  %v1639 = vmul.f32 %v1042, %v1081
  %v1640 = vmul.f32 %v1046, %v1081
  %v1641 = vmul.f32 %v1042, %v1085
  %v1642 = vmul.f32 %v1046, %v1085
  %v1643 = vmul.f32 %v1042, %v1089
  %v1644 = vmul.f32 %v1046, %v1089
  %v1645 = vmul.f32 %v1042, %v1093
  %v1646 = vmul.f32 %v1046, %v1093
  %v1647 = vmul.f32 %v1042, %v1097
  %v1648 = vmul.f32 %v1046, %v1097
  %v1649 = vmul.f32 %v1042, %v1101
  %v1650 = vmul.f32 %v1046, %v1101
  %v1651 = vmul.f32 %v1042, %v1105
  %v1652 = vmul.f32 %v1046, %v1105
  %v1653 = vmul.f32 %v1042, %v1109
  %v1654 = vmul.f32 %v1046, %v1109
  %v1655 = vmul.f32 %v1042, %v1113
  %v1656 = vmul.f32 %v1046, %v1113
  %v1657 = vmul.f32 %v1042, %v1117
  %v1658 = vmul.f32 %v1046, %v1117
  %v1659 = vmul.f32 %v1042, %v1121
  %v1660 = vmul.f32 %v1046, %v1121
  %v1661 = vmul.f32 %v1042, %v1125
  %v1662 = vmul.f32 %v1046, %v1125
  %v1663 = vmul.f32 %v1042, %v1129
  %v1664 = vmul.f32 %v1046, %v1129
  %v1665 = vmul.f32 %v1042, %v1133
  %v1666 = vmul.f32 %v1046, %v1133
  %v1667 = vmul.f32 %v1042, %v1137
  %v1668 = vmul.f32 %v1046, %v1137
  %v1669 = vmul.f32 %v1042, %v1141
  %v1670 = vmul.f32 %v1046, %v1141
  %v1671 = vmul.f32 %v1042, %v1145
  %v1672 = vmul.f32 %v1046, %v1145
  %v1673 = vmul.f32 %v1042, %v1149
  %v1674 = vmul.f32 %v1046, %v1149
  %v1675 = vmul.f32 %v1042, %v1153
  %v1676 = vmul.f32 %v1046, %v1153
  %v1677 = vmul.f32 %v1042, %v1157
  %v1678 = vmul.f32 %v1046, %v1157
  %v1679 = vmul.f32 %v1042, %v1161
  %v1680 = vmul.f32 %v1046, %v1161
  %v1681 = vmul.f32 %v1042, %v1165
  %v1682 = vmul.f32 %v1046, %v1165
  %v1683 = vmul.f32 %v1042, %v1169
  %v1684 = vmul.f32 %v1046, %v1169
  %v1685 = vmul.f32 %v1042, %v1173
  %v1686 = vmul.f32 %v1046, %v1173
  %v1687 = vadd.f32 %v391, %v1175
  %v1688 = vadd.f32 %v392, %v1176
  %v1689 = vadd.f32 %v393, %v1177
  %v1690 = vadd.f32 %v394, %v1178
  %v1691 = vadd.f32 %v395, %v1179
  %v1692 = vadd.f32 %v396, %v1180
  %v1693 = vadd.f32 %v397, %v1181
  %v1694 = vadd.f32 %v398, %v1182
  %v1695 = vadd.f32 %v399, %v1183
  %v1696 = vadd.f32 %v400, %v1184
  %v1697 = vadd.f32 %v401, %v1185
  %v1698 = vadd.f32 %v402, %v1186
  %v1699 = vadd.f32 %v403, %v1187
  %v1700 = vadd.f32 %v404, %v1188
  %v1701 = vadd.f32 %v405, %v1189
  %v1702 = vadd.f32 %v406, %v1190
  %v1703 = vadd.f32 %v407, %v1191
  %v1704 = vadd.f32 %v408, %v1192
  %v1705 = vadd.f32 %v409, %v1193
  %v1706 = vadd.f32 %v410, %v1194
  %v1707 = vadd.f32 %v411, %v1195
  %v1708 = vadd.f32 %v412, %v1196
  %v1709 = vadd.f32 %v413, %v1197
  %v1710 = vadd.f32 %v414, %v1198
  %v1711 = vadd.f32 %v415, %v1199
  %v1712 = vadd.f32 %v416, %v1200
  %v1713 = vadd.f32 %v417, %v1201
  %v1714 = vadd.f32 %v418, %v1202
  %v1715 = vadd.f32 %v419, %v1203
  %v1716 = vadd.f32 %v420, %v1204
  %v1717 = vadd.f32 %v421, %v1205
  %v1718 = vadd.f32 %v422, %v1206
  %v1719 = vadd.f32 %v423, %v1207
  %v1720 = vadd.f32 %v424, %v1208
  %v1721 = vadd.f32 %v425, %v1209
  %v1722 = vadd.f32 %v426, %v1210
  %v1723 = vadd.f32 %v427, %v1211
  %v1724 = vadd.f32 %v428, %v1212
  %v1725 = vadd.f32 %v429, %v1213
  %v1726 = vadd.f32 %v430, %v1214
  %v1727 = vadd.f32 %v431, %v1215
  %v1728 = vadd.f32 %v432, %v1216
  %v1729 = vadd.f32 %v433, %v1217
  %v1730 = vadd.f32 %v434, %v1218
  %v1731 = vadd.f32 %v435, %v1219
  %v1732 = vadd.f32 %v436, %v1220
  %v1733 = vadd.f32 %v437, %v1221
  %v1734 = vadd.f32 %v438, %v1222
  %v1735 = vadd.f32 %v439, %v1223
  %v1736 = vadd.f32 %v440, %v1224
  %v1737 = vadd.f32 %v441, %v1225
  %v1738 = vadd.f32 %v442, %v1226
  %v1739 = vadd.f32 %v443, %v1227
  %v1740 = vadd.f32 %v444, %v1228
  %v1741 = vadd.f32 %v445, %v1229
  %v1742 = vadd.f32 %v446, %v1230
  %v1743 = vadd.f32 %v447, %v1231
  %v1744 = vadd.f32 %v448, %v1232
  %v1745 = vadd.f32 %v449, %v1233
  %v1746 = vadd.f32 %v450, %v1234
  %v1747 = vadd.f32 %v451, %v1235
  %v1748 = vadd.f32 %v452, %v1236
  %v1749 = vadd.f32 %v453, %v1237
  %v1750 = vadd.f32 %v454, %v1238
  %v1751 = vadd.f32 %v455, %v1239
  %v1752 = vadd.f32 %v456, %v1240
  %v1753 = vadd.f32 %v457, %v1241
  %v1754 = vadd.f32 %v458, %v1242
  %v1755 = vadd.f32 %v459, %v1243
  %v1756 = vadd.f32 %v460, %v1244
  %v1757 = vadd.f32 %v461, %v1245
  %v1758 = vadd.f32 %v462, %v1246
  %v1759 = vadd.f32 %v463, %v1247
  %v1760 = vadd.f32 %v464, %v1248
  %v1761 = vadd.f32 %v465, %v1249
  %v1762 = vadd.f32 %v466, %v1250
  %v1763 = vadd.f32 %v467, %v1251
  %v1764 = vadd.f32 %v468, %v1252
  %v1765 = vadd.f32 %v469, %v1253
  %v1766 = vadd.f32 %v470, %v1254
  %v1767 = vadd.f32 %v471, %v1255
  %v1768 = vadd.f32 %v472, %v1256
  %v1769 = vadd.f32 %v473, %v1257
  %v1770 = vadd.f32 %v474, %v1258
  %v1771 = vadd.f32 %v475, %v1259
  %v1772 = vadd.f32 %v476, %v1260
  %v1773 = vadd.f32 %v477, %v1261
  %v1774 = vadd.f32 %v478, %v1262
  %v1775 = vadd.f32 %v479, %v1263
  %v1776 = vadd.f32 %v480, %v1264
  %v1777 = vadd.f32 %v481, %v1265
  %v1778 = vadd.f32 %v482, %v1266
  %v1779 = vadd.f32 %v483, %v1267
  %v1780 = vadd.f32 %v484, %v1268
  %v1781 = vadd.f32 %v485, %v1269
  %v1782 = vadd.f32 %v486, %v1270
  %v1783 = vadd.f32 %v487, %v1271
  %v1784 = vadd.f32 %v488, %v1272
  %v1785 = vadd.f32 %v489, %v1273
  %v1786 = vadd.f32 %v490, %v1274
  %v1787 = vadd.f32 %v491, %v1275
  %v1788 = vadd.f32 %v492, %v1276
  %v1789 = vadd.f32 %v493, %v1277
  %v1790 = vadd.f32 %v494, %v1278
  %v1791 = vadd.f32 %v495, %v1279
  %v1792 = vadd.f32 %v496, %v1280
  %v1793 = vadd.f32 %v497, %v1281
  %v1794 = vadd.f32 %v498, %v1282
  %v1795 = vadd.f32 %v499, %v1283
  %v1796 = vadd.f32 %v500, %v1284
  %v1797 = vadd.f32 %v501, %v1285
  %v1798 = vadd.f32 %v502, %v1286
  %v1799 = vadd.f32 %v503, %v1287
  %v1800 = vadd.f32 %v504, %v1288
  %v1801 = vadd.f32 %v505, %v1289
  %v1802 = vadd.f32 %v506, %v1290
  %v1803 = vadd.f32 %v507, %v1291
  %v1804 = vadd.f32 %v508, %v1292
  %v1805 = vadd.f32 %v509, %v1293
  %v1806 = vadd.f32 %v510, %v1294
  %v1807 = vadd.f32 %v511, %v1295
  %v1808 = vadd.f32 %v512, %v1296
  %v1809 = vadd.f32 %v513, %v1297
  %v1810 = vadd.f32 %v514, %v1298
  %v1811 = vadd.f32 %v515, %v1299
  %v1812 = vadd.f32 %v516, %v1300
  %v1813 = vadd.f32 %v517, %v1301
  %v1814 = vadd.f32 %v518, %v1302
  %v1815 = vadd.f32 %v519, %v1303
  %v1816 = vadd.f32 %v520, %v1304
  %v1817 = vadd.f32 %v521, %v1305
  %v1818 = vadd.f32 %v522, %v1306
  %v1819 = vadd.f32 %v523, %v1307
  %v1820 = vadd.f32 %v524, %v1308
  %v1821 = vadd.f32 %v525, %v1309
  %v1822 = vadd.f32 %v526, %v1310
  %v1823 = vadd.f32 %v527, %v1311
  %v1824 = vadd.f32 %v528, %v1312
  %v1825 = vadd.f32 %v529, %v1313
  %v1826 = vadd.f32 %v530, %v1314
  %v1827 = vadd.f32 %v531, %v1315
  %v1828 = vadd.f32 %v532, %v1316
  %v1829 = vadd.f32 %v533, %v1317
  %v1830 = vadd.f32 %v534, %v1318
  %v1831 = vadd.f32 %v535, %v1319
  %v1832 = vadd.f32 %v536, %v1320
  %v1833 = vadd.f32 %v537, %v1321
  %v1834 = vadd.f32 %v538, %v1322
  %v1835 = vadd.f32 %v539, %v1323
  %v1836 = vadd.f32 %v540, %v1324
  %v1837 = vadd.f32 %v541, %v1325
  %v1838 = vadd.f32 %v542, %v1326
  %v1839 = vadd.f32 %v543, %v1327
  %v1840 = vadd.f32 %v544, %v1328
  %v1841 = vadd.f32 %v545, %v1329
  %v1842 = vadd.f32 %v546, %v1330
  %v1843 = vadd.f32 %v547, %v1331
  %v1844 = vadd.f32 %v548, %v1332
  %v1845 = vadd.f32 %v549, %v1333
  %v1846 = vadd.f32 %v550, %v1334
  %v1847 = vadd.f32 %v551, %v1335
  %v1848 = vadd.f32 %v552, %v1336
  %v1849 = vadd.f32 %v553, %v1337
  %v1850 = vadd.f32 %v554, %v1338
  %v1851 = vadd.f32 %v555, %v1339
  %v1852 = vadd.f32 %v556, %v1340
  %v1853 = vadd.f32 %v557, %v1341
  %v1854 = vadd.f32 %v558, %v1342
  %v1855 = vadd.f32 %v559, %v1343
  %v1856 = vadd.f32 %v560, %v1344
  %v1857 = vadd.f32 %v561, %v1345
  %v1858 = vadd.f32 %v562, %v1346
  %v1859 = vadd.f32 %v563, %v1347
  %v1860 = vadd.f32 %v564, %v1348
  %v1861 = vadd.f32 %v565, %v1349
  %v1862 = vadd.f32 %v566, %v1350
  %v1863 = vadd.f32 %v567, %v1351
  %v1864 = vadd.f32 %v568, %v1352
  %v1865 = vadd.f32 %v569, %v1353
  %v1866 = vadd.f32 %v570, %v1354
  %v1867 = vadd.f32 %v571, %v1355
  %v1868 = vadd.f32 %v572, %v1356
  %v1869 = vadd.f32 %v573, %v1357
  %v1870 = vadd.f32 %v574, %v1358
  %v1871 = vadd.f32 %v575, %v1359
  %v1872 = vadd.f32 %v576, %v1360
  %v1873 = vadd.f32 %v577, %v1361
  %v1874 = vadd.f32 %v578, %v1362
  %v1875 = vadd.f32 %v579, %v1363
  %v1876 = vadd.f32 %v580, %v1364
  %v1877 = vadd.f32 %v581, %v1365
  %v1878 = vadd.f32 %v582, %v1366
  %v1879 = vadd.f32 %v583, %v1367
  %v1880 = vadd.f32 %v584, %v1368
  %v1881 = vadd.f32 %v585, %v1369
  %v1882 = vadd.f32 %v586, %v1370
  %v1883 = vadd.f32 %v587, %v1371
  %v1884 = vadd.f32 %v588, %v1372
  %v1885 = vadd.f32 %v589, %v1373
  %v1886 = vadd.f32 %v590, %v1374
  %v1887 = vadd.f32 %v591, %v1375
  %v1888 = vadd.f32 %v592, %v1376
  %v1889 = vadd.f32 %v593, %v1377
  %v1890 = vadd.f32 %v594, %v1378
  %v1891 = vadd.f32 %v595, %v1379
  %v1892 = vadd.f32 %v596, %v1380
  %v1893 = vadd.f32 %v597, %v1381
  %v1894 = vadd.f32 %v598, %v1382
  %v1895 = vadd.f32 %v599, %v1383
  %v1896 = vadd.f32 %v600, %v1384
  %v1897 = vadd.f32 %v601, %v1385
  %v1898 = vadd.f32 %v602, %v1386
  %v1899 = vadd.f32 %v603, %v1387
  %v1900 = vadd.f32 %v604, %v1388
  %v1901 = vadd.f32 %v605, %v1389
  %v1902 = vadd.f32 %v606, %v1390
  %v1903 = vadd.f32 %v607, %v1391
  %v1904 = vadd.f32 %v608, %v1392
  %v1905 = vadd.f32 %v609, %v1393
  %v1906 = vadd.f32 %v610, %v1394
  %v1907 = vadd.f32 %v611, %v1395
  %v1908 = vadd.f32 %v612, %v1396
  %v1909 = vadd.f32 %v613, %v1397
  %v1910 = vadd.f32 %v614, %v1398
  %v1911 = vadd.f32 %v615, %v1399
  %v1912 = vadd.f32 %v616, %v1400
  %v1913 = vadd.f32 %v617, %v1401
  %v1914 = vadd.f32 %v618, %v1402
  %v1915 = vadd.f32 %v619, %v1403
  %v1916 = vadd.f32 %v620, %v1404
  %v1917 = vadd.f32 %v621, %v1405
  %v1918 = vadd.f32 %v622, %v1406
  %v1919 = vadd.f32 %v623, %v1407
  %v1920 = vadd.f32 %v624, %v1408
  %v1921 = vadd.f32 %v625, %v1409
  %v1922 = vadd.f32 %v626, %v1410
  %v1923 = vadd.f32 %v627, %v1411
  %v1924 = vadd.f32 %v628, %v1412
  %v1925 = vadd.f32 %v629, %v1413
  %v1926 = vadd.f32 %v630, %v1414
  %v1927 = vadd.f32 %v631, %v1415
  %v1928 = vadd.f32 %v632, %v1416
  %v1929 = vadd.f32 %v633, %v1417
  %v1930 = vadd.f32 %v634, %v1418
  %v1931 = vadd.f32 %v635, %v1419
  %v1932 = vadd.f32 %v636, %v1420
  %v1933 = vadd.f32 %v637, %v1421
  %v1934 = vadd.f32 %v638, %v1422
  %v1935 = vadd.f32 %v639, %v1423
  %v1936 = vadd.f32 %v640, %v1424
  %v1937 = vadd.f32 %v641, %v1425
  %v1938 = vadd.f32 %v642, %v1426
  %v1939 = vadd.f32 %v643, %v1427
  %v1940 = vadd.f32 %v644, %v1428
  %v1941 = vadd.f32 %v645, %v1429
  %v1942 = vadd.f32 %v646, %v1430
  %v1943 = vadd.f32 %v647, %v1431
  %v1944 = vadd.f32 %v648, %v1432
  %v1945 = vadd.f32 %v649, %v1433
  %v1946 = vadd.f32 %v650, %v1434
  %v1947 = vadd.f32 %v651, %v1435
  %v1948 = vadd.f32 %v652, %v1436
  %v1949 = vadd.f32 %v653, %v1437
  %v1950 = vadd.f32 %v654, %v1438
  %v1951 = vadd.f32 %v655, %v1439
  %v1952 = vadd.f32 %v656, %v1440
  %v1953 = vadd.f32 %v657, %v1441
  %v1954 = vadd.f32 %v658, %v1442
  %v1955 = vadd.f32 %v659, %v1443
  %v1956 = vadd.f32 %v660, %v1444
  %v1957 = vadd.f32 %v661, %v1445
  %v1958 = vadd.f32 %v662, %v1446
  %v1959 = vadd.f32 %v663, %v1447
  %v1960 = vadd.f32 %v664, %v1448
  %v1961 = vadd.f32 %v665, %v1449
  %v1962 = vadd.f32 %v666, %v1450
  %v1963 = vadd.f32 %v667, %v1451
  %v1964 = vadd.f32 %v668, %v1452
  %v1965 = vadd.f32 %v669, %v1453
  %v1966 = vadd.f32 %v670, %v1454
  %v1967 = vadd.f32 %v671, %v1455
  %v1968 = vadd.f32 %v672, %v1456
  %v1969 = vadd.f32 %v673, %v1457
  %v1970 = vadd.f32 %v674, %v1458
  %v1971 = vadd.f32 %v675, %v1459
  %v1972 = vadd.f32 %v676, %v1460
  %v1973 = vadd.f32 %v677, %v1461
  %v1974 = vadd.f32 %v678, %v1462
  %v1975 = vadd.f32 %v679, %v1463
  %v1976 = vadd.f32 %v680, %v1464
  %v1977 = vadd.f32 %v681, %v1465
  %v1978 = vadd.f32 %v682, %v1466
  %v1979 = vadd.f32 %v683, %v1467
  %v1980 = vadd.f32 %v684, %v1468
  %v1981 = vadd.f32 %v685, %v1469
  %v1982 = vadd.f32 %v686, %v1470
  %v1983 = vadd.f32 %v687, %v1471
  %v1984 = vadd.f32 %v688, %v1472
  %v1985 = vadd.f32 %v689, %v1473
  %v1986 = vadd.f32 %v690, %v1474
  %v1987 = vadd.f32 %v691, %v1475
  %v1988 = vadd.f32 %v692, %v1476
  %v1989 = vadd.f32 %v693, %v1477
  %v1990 = vadd.f32 %v694, %v1478
  %v1991 = vadd.f32 %v695, %v1479
  %v1992 = vadd.f32 %v696, %v1480
  %v1993 = vadd.f32 %v697, %v1481
  %v1994 = vadd.f32 %v698, %v1482
  %v1995 = vadd.f32 %v699, %v1483
  %v1996 = vadd.f32 %v700, %v1484
  %v1997 = vadd.f32 %v701, %v1485
  %v1998 = vadd.f32 %v702, %v1486
  %v1999 = vadd.f32 %v703, %v1487
  %v2000 = vadd.f32 %v704, %v1488
  %v2001 = vadd.f32 %v705, %v1489
  %v2002 = vadd.f32 %v706, %v1490
  %v2003 = vadd.f32 %v707, %v1491
  %v2004 = vadd.f32 %v708, %v1492
  %v2005 = vadd.f32 %v709, %v1493
  %v2006 = vadd.f32 %v710, %v1494
  %v2007 = vadd.f32 %v711, %v1495
  %v2008 = vadd.f32 %v712, %v1496
  %v2009 = vadd.f32 %v713, %v1497
  %v2010 = vadd.f32 %v714, %v1498
  %v2011 = vadd.f32 %v715, %v1499
  %v2012 = vadd.f32 %v716, %v1500
  %v2013 = vadd.f32 %v717, %v1501
  %v2014 = vadd.f32 %v718, %v1502
  %v2015 = vadd.f32 %v719, %v1503
  %v2016 = vadd.f32 %v720, %v1504
  %v2017 = vadd.f32 %v721, %v1505
  %v2018 = vadd.f32 %v722, %v1506
  %v2019 = vadd.f32 %v723, %v1507
  %v2020 = vadd.f32 %v724, %v1508
  %v2021 = vadd.f32 %v725, %v1509
  %v2022 = vadd.f32 %v726, %v1510
  %v2023 = vadd.f32 %v727, %v1511
  %v2024 = vadd.f32 %v728, %v1512
  %v2025 = vadd.f32 %v729, %v1513
  %v2026 = vadd.f32 %v730, %v1514
  %v2027 = vadd.f32 %v731, %v1515
  %v2028 = vadd.f32 %v732, %v1516
  %v2029 = vadd.f32 %v733, %v1517
  %v2030 = vadd.f32 %v734, %v1518
  %v2031 = vadd.f32 %v735, %v1519
  %v2032 = vadd.f32 %v736, %v1520
  %v2033 = vadd.f32 %v737, %v1521
  %v2034 = vadd.f32 %v738, %v1522
  %v2035 = vadd.f32 %v739, %v1523
  %v2036 = vadd.f32 %v740, %v1524
  %v2037 = vadd.f32 %v741, %v1525
  %v2038 = vadd.f32 %v742, %v1526
  %v2039 = vadd.f32 %v743, %v1527
  %v2040 = vadd.f32 %v744, %v1528
  %v2041 = vadd.f32 %v745, %v1529
  %v2042 = vadd.f32 %v746, %v1530
  %v2043 = vadd.f32 %v747, %v1531
  %v2044 = vadd.f32 %v748, %v1532
  %v2045 = vadd.f32 %v749, %v1533
  %v2046 = vadd.f32 %v750, %v1534
  %v2047 = vadd.f32 %v751, %v1535
  %v2048 = vadd.f32 %v752, %v1536
  %v2049 = vadd.f32 %v753, %v1537
  %v2050 = vadd.f32 %v754, %v1538
  %v2051 = vadd.f32 %v755, %v1539
  %v2052 = vadd.f32 %v756, %v1540
  %v2053 = vadd.f32 %v757, %v1541
  %v2054 = vadd.f32 %v758, %v1542
  %v2055 = vadd.f32 %v759, %v1543
  %v2056 = vadd.f32 %v760, %v1544
  %v2057 = vadd.f32 %v761, %v1545
  %v2058 = vadd.f32 %v762, %v1546
  %v2059 = vadd.f32 %v763, %v1547
  %v2060 = vadd.f32 %v764, %v1548
  %v2061 = vadd.f32 %v765, %v1549
  %v2062 = vadd.f32 %v766, %v1550
  %v2063 = vadd.f32 %v767, %v1551
  %v2064 = vadd.f32 %v768, %v1552
  %v2065 = vadd.f32 %v769, %v1553
  %v2066 = vadd.f32 %v770, %v1554
  %v2067 = vadd.f32 %v771, %v1555
  %v2068 = vadd.f32 %v772, %v1556
  %v2069 = vadd.f32 %v773, %v1557
  %v2070 = vadd.f32 %v774, %v1558
  %v2071 = vadd.f32 %v775, %v1559
  %v2072 = vadd.f32 %v776, %v1560
  %v2073 = vadd.f32 %v777, %v1561
  %v2074 = vadd.f32 %v778, %v1562
  %v2075 = vadd.f32 %v779, %v1563
  %v2076 = vadd.f32 %v780, %v1564
  %v2077 = vadd.f32 %v781, %v1565
  %v2078 = vadd.f32 %v782, %v1566
  %v2079 = vadd.f32 %v783, %v1567
  %v2080 = vadd.f32 %v784, %v1568
  %v2081 = vadd.f32 %v785, %v1569
  %v2082 = vadd.f32 %v786, %v1570
  %v2083 = vadd.f32 %v787, %v1571
  %v2084 = vadd.f32 %v788, %v1572
  %v2085 = vadd.f32 %v789, %v1573
  %v2086 = vadd.f32 %v790, %v1574
  %v2087 = vadd.f32 %v791, %v1575
  %v2088 = vadd.f32 %v792, %v1576
  %v2089 = vadd.f32 %v793, %v1577
  %v2090 = vadd.f32 %v794, %v1578
  %v2091 = vadd.f32 %v795, %v1579
  %v2092 = vadd.f32 %v796, %v1580
  %v2093 = vadd.f32 %v797, %v1581
  %v2094 = vadd.f32 %v798, %v1582
  %v2095 = vadd.f32 %v799, %v1583
  %v2096 = vadd.f32 %v800, %v1584
  %v2097 = vadd.f32 %v801, %v1585
  %v2098 = vadd.f32 %v802, %v1586
  %v2099 = vadd.f32 %v803, %v1587
  %v2100 = vadd.f32 %v804, %v1588
  %v2101 = vadd.f32 %v805, %v1589
  %v2102 = vadd.f32 %v806, %v1590
  %v2103 = vadd.f32 %v807, %v1591
  %v2104 = vadd.f32 %v808, %v1592
  %v2105 = vadd.f32 %v809, %v1593
  %v2106 = vadd.f32 %v810, %v1594
  %v2107 = vadd.f32 %v811, %v1595
  %v2108 = vadd.f32 %v812, %v1596
  %v2109 = vadd.f32 %v813, %v1597
  %v2110 = vadd.f32 %v814, %v1598
  %v2111 = vadd.f32 %v815, %v1599
  %v2112 = vadd.f32 %v816, %v1600
  %v2113 = vadd.f32 %v817, %v1601
  %v2114 = vadd.f32 %v818, %v1602
  %v2115 = vadd.f32 %v819, %v1603
  %v2116 = vadd.f32 %v820, %v1604
  %v2117 = vadd.f32 %v821, %v1605
  %v2118 = vadd.f32 %v822, %v1606
  %v2119 = vadd.f32 %v823, %v1607
  %v2120 = vadd.f32 %v824, %v1608
  %v2121 = vadd.f32 %v825, %v1609
  %v2122 = vadd.f32 %v826, %v1610
  %v2123 = vadd.f32 %v827, %v1611
  %v2124 = vadd.f32 %v828, %v1612
  %v2125 = vadd.f32 %v829, %v1613
  %v2126 = vadd.f32 %v830, %v1614
  %v2127 = vadd.f32 %v831, %v1615
  %v2128 = vadd.f32 %v832, %v1616
  %v2129 = vadd.f32 %v833, %v1617
  %v2130 = vadd.f32 %v834, %v1618
  %v2131 = vadd.f32 %v835, %v1619
  %v2132 = vadd.f32 %v836, %v1620
  %v2133 = vadd.f32 %v837, %v1621
  %v2134 = vadd.f32 %v838, %v1622
  %v2135 = vadd.f32 %v839, %v1623
  %v2136 = vadd.f32 %v840, %v1624
  %v2137 = vadd.f32 %v841, %v1625
  %v2138 = vadd.f32 %v842, %v1626
  %v2139 = vadd.f32 %v843, %v1627
  %v2140 = vadd.f32 %v844, %v1628
  %v2141 = vadd.f32 %v845, %v1629
  %v2142 = vadd.f32 %v846, %v1630
  %v2143 = vadd.f32 %v847, %v1631
  %v2144 = vadd.f32 %v848, %v1632
  %v2145 = vadd.f32 %v849, %v1633
  %v2146 = vadd.f32 %v850, %v1634
  %v2147 = vadd.f32 %v851, %v1635
  %v2148 = vadd.f32 %v852, %v1636
  %v2149 = vadd.f32 %v853, %v1637
  %v2150 = vadd.f32 %v854, %v1638
  %v2151 = vadd.f32 %v855, %v1639
  %v2152 = vadd.f32 %v856, %v1640
  %v2153 = vadd.f32 %v857, %v1641
  %v2154 = vadd.f32 %v858, %v1642
  %v2155 = vadd.f32 %v859, %v1643
  %v2156 = vadd.f32 %v860, %v1644
  %v2157 = vadd.f32 %v861, %v1645
  %v2158 = vadd.f32 %v862, %v1646
  %v2159 = vadd.f32 %v863, %v1647
  %v2160 = vadd.f32 %v864, %v1648
  %v2161 = vadd.f32 %v865, %v1649
  %v2162 = vadd.f32 %v866, %v1650
  %v2163 = vadd.f32 %v867, %v1651
  %v2164 = vadd.f32 %v868, %v1652
  %v2165 = vadd.f32 %v869, %v1653
  %v2166 = vadd.f32 %v870, %v1654
  %v2167 = vadd.f32 %v871, %v1655
  %v2168 = vadd.f32 %v872, %v1656
  %v2169 = vadd.f32 %v873, %v1657
  %v2170 = vadd.f32 %v874, %v1658
  %v2171 = vadd.f32 %v875, %v1659
  %v2172 = vadd.f32 %v876, %v1660
  %v2173 = vadd.f32 %v877, %v1661
  %v2174 = vadd.f32 %v878, %v1662
  %v2175 = vadd.f32 %v879, %v1663
  %v2176 = vadd.f32 %v880, %v1664
  %v2177 = vadd.f32 %v881, %v1665
  %v2178 = vadd.f32 %v882, %v1666
  %v2179 = vadd.f32 %v883, %v1667
  %v2180 = vadd.f32 %v884, %v1668
  %v2181 = vadd.f32 %v885, %v1669
  %v2182 = vadd.f32 %v886, %v1670
  %v2183 = vadd.f32 %v887, %v1671
  %v2184 = vadd.f32 %v888, %v1672
  %v2185 = vadd.f32 %v889, %v1673
  %v2186 = vadd.f32 %v890, %v1674
  %v2187 = vadd.f32 %v891, %v1675
  %v2188 = vadd.f32 %v892, %v1676
  %v2189 = vadd.f32 %v893, %v1677
  %v2190 = vadd.f32 %v894, %v1678
  %v2191 = vadd.f32 %v895, %v1679
  %v2192 = vadd.f32 %v896, %v1680
  %v2193 = vadd.f32 %v897, %v1681
  %v2194 = vadd.f32 %v898, %v1682
  %v2195 = vadd.f32 %v899, %v1683
  %v2196 = vadd.f32 %v900, %v1684
  %v2197 = vadd.f32 %v901, %v1685
  %v2198 = vadd.f32 %v902, %v1686
  %v2199 = vlaneseq
  %v2200 = vshrl.u32 %v2199, 7
  %v2201 = vsub.s32 2, %v2200
  %v2202 = vrot.slane %v39, %v2201
  %v2203 = vlaneseq
  %v2204 = vshrl.u32 %v2203, 7
  %v2205 = vsub.s32 6, %v2204
  %v2206 = vrot.slane %v39, %v2205
  %v2207 = vlaneseq
  %v2208 = vshrl.u32 %v2207, 7
  %v2209 = vsub.s32 2, %v2208
  %v2210 = vrot.slane %v40, %v2209
  %v2211 = vlaneseq
  %v2212 = vshrl.u32 %v2211, 7
  %v2213 = vsub.s32 6, %v2212
  %v2214 = vrot.slane %v40, %v2213
  %v2215 = vlaneseq
  %v2216 = vshrl.u32 %v2215, 7
  %v2217 = vsub.s32 2, %v2216
  %v2218 = vrot.slane %v41, %v2217
  %v2219 = vlaneseq
  %v2220 = vshrl.u32 %v2219, 7
  %v2221 = vsub.s32 6, %v2220
  %v2222 = vrot.slane %v41, %v2221
  %v2223 = vlaneseq
  %v2224 = vshrl.u32 %v2223, 7
  %v2225 = vsub.s32 2, %v2224
  %v2226 = vrot.slane %v42, %v2225
  %v2227 = vlaneseq
  %v2228 = vshrl.u32 %v2227, 7
  %v2229 = vsub.s32 6, %v2228
  %v2230 = vrot.slane %v42, %v2229
  %v2231 = vlaneseq
  %v2232 = vshrl.u32 %v2231, 7
  %v2233 = vsub.s32 2, %v2232
  %v2234 = vrot.slane %v43, %v2233
  %v2235 = vlaneseq
  %v2236 = vshrl.u32 %v2235, 7
  %v2237 = vsub.s32 6, %v2236
  %v2238 = vrot.slane %v43, %v2237
  %v2239 = vlaneseq
  %v2240 = vshrl.u32 %v2239, 7
  %v2241 = vsub.s32 2, %v2240
  %v2242 = vrot.slane %v44, %v2241
  %v2243 = vlaneseq
  %v2244 = vshrl.u32 %v2243, 7
  %v2245 = vsub.s32 6, %v2244
  %v2246 = vrot.slane %v44, %v2245
  %v2247 = vlaneseq
  %v2248 = vshrl.u32 %v2247, 7
  %v2249 = vsub.s32 2, %v2248
  %v2250 = vrot.slane %v45, %v2249
  %v2251 = vlaneseq
  %v2252 = vshrl.u32 %v2251, 7
  %v2253 = vsub.s32 6, %v2252
  %v2254 = vrot.slane %v45, %v2253
  %v2255 = vlaneseq
  %v2256 = vshrl.u32 %v2255, 7
  %v2257 = vsub.s32 2, %v2256
  %v2258 = vrot.slane %v46, %v2257
  %v2259 = vlaneseq
  %v2260 = vshrl.u32 %v2259, 7
  %v2261 = vsub.s32 6, %v2260
  %v2262 = vrot.slane %v46, %v2261
  %v2279 = vlaneseq
  %v2280 = vshrl.u32 %v2279, 7
  %v2281 = vsub.s32 2, %v2280
  %v2282 = vrot.slane %v2202, %v2281
  %v2283 = vlaneseq
  %v2284 = vshrl.u32 %v2283, 7
  %v2285 = vsub.s32 2, %v2284
  %v2286 = vrot.slane %v2206, %v2285
  %v2287 = vlaneseq
  %v2288 = vshrl.u32 %v2287, 7
  %v2289 = vsub.s32 2, %v2288
  %v2290 = vrot.slane %v2210, %v2289
  %v2291 = vlaneseq
  %v2292 = vshrl.u32 %v2291, 7
  %v2293 = vsub.s32 2, %v2292
  %v2294 = vrot.slane %v2214, %v2293
  %v2295 = vlaneseq
  %v2296 = vshrl.u32 %v2295, 7
  %v2297 = vsub.s32 2, %v2296
  %v2298 = vrot.slane %v2218, %v2297
  %v2299 = vlaneseq
  %v2300 = vshrl.u32 %v2299, 7
  %v2301 = vsub.s32 2, %v2300
  %v2302 = vrot.slane %v2222, %v2301
  %v2303 = vlaneseq
  %v2304 = vshrl.u32 %v2303, 7
  %v2305 = vsub.s32 2, %v2304
  %v2306 = vrot.slane %v2226, %v2305
  %v2307 = vlaneseq
  %v2308 = vshrl.u32 %v2307, 7
  %v2309 = vsub.s32 2, %v2308
  %v2310 = vrot.slane %v2230, %v2309
  %v2311 = vlaneseq
  %v2312 = vshrl.u32 %v2311, 7
  %v2313 = vsub.s32 2, %v2312
  %v2314 = vrot.slane %v2234, %v2313
  %v2315 = vlaneseq
  %v2316 = vshrl.u32 %v2315, 7
  %v2317 = vsub.s32 2, %v2316
  %v2318 = vrot.slane %v2238, %v2317
  %v2319 = vlaneseq
  %v2320 = vshrl.u32 %v2319, 7
  %v2321 = vsub.s32 2, %v2320
  %v2322 = vrot.slane %v2242, %v2321
  %v2323 = vlaneseq
  %v2324 = vshrl.u32 %v2323, 7
  %v2325 = vsub.s32 2, %v2324
  %v2326 = vrot.slane %v2246, %v2325
  %v2327 = vlaneseq
  %v2328 = vshrl.u32 %v2327, 7
  %v2329 = vsub.s32 2, %v2328
  %v2330 = vrot.slane %v2250, %v2329
  %v2331 = vlaneseq
  %v2332 = vshrl.u32 %v2331, 7
  %v2333 = vsub.s32 2, %v2332
  %v2334 = vrot.slane %v2254, %v2333
  %v2335 = vlaneseq
  %v2336 = vshrl.u32 %v2335, 7
  %v2337 = vsub.s32 2, %v2336
  %v2338 = vrot.slane %v2258, %v2337
  %v2339 = vlaneseq
  %v2340 = vshrl.u32 %v2339, 7
  %v2341 = vsub.s32 2, %v2340
  %v2342 = vrot.slane %v2262, %v2341
  %2343 = vset.pattern.permute.xlu0 2
  %2344 = vperm.xlu0 %2343, %v47
  %v2345 = vpop.permute.xlu0 %2344
  %2347 = vset.pattern.permute.xlu0 2
  %2348 = vperm.xlu0 %2347, %v48
  %v2349 = vpop.permute.xlu0 %2348
  %2351 = vset.pattern.permute.xlu0 2
  %2352 = vperm.xlu0 %2351, %v49
  %v2353 = vpop.permute.xlu0 %2352
  %2355 = vset.pattern.permute.xlu0 2
  %2356 = vperm.xlu0 %2355, %v50
  %v2357 = vpop.permute.xlu0 %2356
  %2359 = vset.pattern.permute.xlu0 2
  %2360 = vperm.xlu0 %2359, %v51
  %v2361 = vpop.permute.xlu0 %2360
  %2363 = vset.pattern.permute.xlu0 2
  %2364 = vperm.xlu0 %2363, %v52
  %v2365 = vpop.permute.xlu0 %2364
  %2367 = vset.pattern.permute.xlu0 2
  %2368 = vperm.xlu0 %2367, %v53
  %v2369 = vpop.permute.xlu0 %2368
  %2371 = vset.pattern.permute.xlu0 2
  %2372 = vperm.xlu0 %2371, %v54
  %v2373 = vpop.permute.xlu0 %2372
  %2375 = vset.pattern.permute.xlu0 2
  %2376 = vperm.xlu0 %2375, %v55
  %v2377 = vpop.permute.xlu0 %2376
  %2379 = vset.pattern.permute.xlu0 2
  %2380 = vperm.xlu0 %2379, %v56
  %v2381 = vpop.permute.xlu0 %2380
  %2383 = vset.pattern.permute.xlu0 2
  %2384 = vperm.xlu0 %2383, %v57
  %v2385 = vpop.permute.xlu0 %2384
  %2387 = vset.pattern.permute.xlu0 2
  %2388 = vperm.xlu0 %2387, %v58
  %v2389 = vpop.permute.xlu0 %2388
  %2391 = vset.pattern.permute.xlu0 2
  %2392 = vperm.xlu0 %2391, %v59
  %v2393 = vpop.permute.xlu0 %2392
  %2395 = vset.pattern.permute.xlu0 2
  %2396 = vperm.xlu0 %2395, %v60
  %v2397 = vpop.permute.xlu0 %2396
  %2399 = vset.pattern.permute.xlu0 2
  %2400 = vperm.xlu0 %2399, %v61
  %v2401 = vpop.permute.xlu0 %2400
  %2403 = vset.pattern.permute.xlu0 2
  %2404 = vperm.xlu0 %2403, %v62
  %v2405 = vpop.permute.xlu0 %2404
  %2407 = vset.pattern.permute.xlu0 2
  %2408 = vperm.xlu0 %2407, %v63
  %v2409 = vpop.permute.xlu0 %2408
  %2411 = vset.pattern.permute.xlu0 2
  %2412 = vperm.xlu0 %2411, %v64
  %v2413 = vpop.permute.xlu0 %2412
  %2415 = vset.pattern.permute.xlu0 2
  %2416 = vperm.xlu0 %2415, %v65
  %v2417 = vpop.permute.xlu0 %2416
  %2419 = vset.pattern.permute.xlu0 2
  %2420 = vperm.xlu0 %2419, %v66
  %v2421 = vpop.permute.xlu0 %2420
  %2423 = vset.pattern.permute.xlu0 2
  %2424 = vperm.xlu0 %2423, %v67
  %v2425 = vpop.permute.xlu0 %2424
  %2427 = vset.pattern.permute.xlu0 2
  %2428 = vperm.xlu0 %2427, %v68
  %v2429 = vpop.permute.xlu0 %2428
  %2431 = vset.pattern.permute.xlu0 2
  %2432 = vperm.xlu0 %2431, %v69
  %v2433 = vpop.permute.xlu0 %2432
  %2435 = vset.pattern.permute.xlu0 2
  %2436 = vperm.xlu0 %2435, %v70
  %v2437 = vpop.permute.xlu0 %2436
  %2439 = vset.pattern.permute.xlu0 2
  %2440 = vperm.xlu0 %2439, %v71
  %v2441 = vpop.permute.xlu0 %2440
  %2443 = vset.pattern.permute.xlu0 2
  %2444 = vperm.xlu0 %2443, %v72
  %v2445 = vpop.permute.xlu0 %2444
  %2447 = vset.pattern.permute.xlu0 2
  %2448 = vperm.xlu0 %2447, %v73
  %v2449 = vpop.permute.xlu0 %2448
  %2451 = vset.pattern.permute.xlu0 2
  %2452 = vperm.xlu0 %2451, %v74
  %v2453 = vpop.permute.xlu0 %2452
  %2455 = vset.pattern.permute.xlu0 2
  %2456 = vperm.xlu0 %2455, %v75
  %v2457 = vpop.permute.xlu0 %2456
  %2459 = vset.pattern.permute.xlu0 2
  %2460 = vperm.xlu0 %2459, %v76
  %v2461 = vpop.permute.xlu0 %2460
  %2463 = vset.pattern.permute.xlu0 2
  %2464 = vperm.xlu0 %2463, %v77
  %v2465 = vpop.permute.xlu0 %2464
  %2467 = vset.pattern.permute.xlu0 2
  %2468 = vperm.xlu0 %2467, %v78
  %v2469 = vpop.permute.xlu0 %2468
  %v2471 = vmul.f32 %v2282, %v2345
  %v2472 = vmul.f32 %v2286, %v2345
  %v2473 = vmul.f32 %v2282, %v2349
  %v2474 = vmul.f32 %v2286, %v2349
  %v2475 = vmul.f32 %v2282, %v2353
  %v2476 = vmul.f32 %v2286, %v2353
  %v2477 = vmul.f32 %v2282, %v2357
  %v2478 = vmul.f32 %v2286, %v2357
  %v2479 = vmul.f32 %v2282, %v2361
  %v2480 = vmul.f32 %v2286, %v2361
  %v2481 = vmul.f32 %v2282, %v2365
  %v2482 = vmul.f32 %v2286, %v2365
  %v2483 = vmul.f32 %v2282, %v2369
  %v2484 = vmul.f32 %v2286, %v2369
  %v2485 = vmul.f32 %v2282, %v2373
  %v2486 = vmul.f32 %v2286, %v2373
  %v2487 = vmul.f32 %v2282, %v2377
  %v2488 = vmul.f32 %v2286, %v2377
  %v2489 = vmul.f32 %v2282, %v2381
  %v2490 = vmul.f32 %v2286, %v2381
  %v2491 = vmul.f32 %v2282, %v2385
  %v2492 = vmul.f32 %v2286, %v2385
  %v2493 = vmul.f32 %v2282, %v2389
  %v2494 = vmul.f32 %v2286, %v2389
  %v2495 = vmul.f32 %v2282, %v2393
  %v2496 = vmul.f32 %v2286, %v2393
  %v2497 = vmul.f32 %v2282, %v2397
  %v2498 = vmul.f32 %v2286, %v2397
  %v2499 = vmul.f32 %v2282, %v2401
  %v2500 = vmul.f32 %v2286, %v2401
  %v2501 = vmul.f32 %v2282, %v2405
  %v2502 = vmul.f32 %v2286, %v2405
  %v2503 = vmul.f32 %v2282, %v2409
  %v2504 = vmul.f32 %v2286, %v2409
  %v2505 = vmul.f32 %v2282, %v2413
  %v2506 = vmul.f32 %v2286, %v2413
  %v2507 = vmul.f32 %v2282, %v2417
  %v2508 = vmul.f32 %v2286, %v2417
  %v2509 = vmul.f32 %v2282, %v2421
  %v2510 = vmul.f32 %v2286, %v2421
  %v2511 = vmul.f32 %v2282, %v2425
  %v2512 = vmul.f32 %v2286, %v2425
  %v2513 = vmul.f32 %v2282, %v2429
  %v2514 = vmul.f32 %v2286, %v2429
  %v2515 = vmul.f32 %v2282, %v2433
  %v2516 = vmul.f32 %v2286, %v2433
  %v2517 = vmul.f32 %v2282, %v2437
  %v2518 = vmul.f32 %v2286, %v2437
  %v2519 = vmul.f32 %v2282, %v2441
  %v2520 = vmul.f32 %v2286, %v2441
  %v2521 = vmul.f32 %v2282, %v2445
  %v2522 = vmul.f32 %v2286, %v2445
  %v2523 = vmul.f32 %v2282, %v2449
  %v2524 = vmul.f32 %v2286, %v2449
  %v2525 = vmul.f32 %v2282, %v2453
  %v2526 = vmul.f32 %v2286, %v2453
  %v2527 = vmul.f32 %v2282, %v2457
  %v2528 = vmul.f32 %v2286, %v2457
  %v2529 = vmul.f32 %v2282, %v2461
  %v2530 = vmul.f32 %v2286, %v2461
  %v2531 = vmul.f32 %v2282, %v2465
  %v2532 = vmul.f32 %v2286, %v2465
  %v2533 = vmul.f32 %v2282, %v2469
  %v2534 = vmul.f32 %v2286, %v2469
  %v2535 = vmul.f32 %v2290, %v2345
  %v2536 = vmul.f32 %v2294, %v2345
  %v2537 = vmul.f32 %v2290, %v2349
  %v2538 = vmul.f32 %v2294, %v2349
  %v2539 = vmul.f32 %v2290, %v2353
  %v2540 = vmul.f32 %v2294, %v2353
  %v2541 = vmul.f32 %v2290, %v2357
  %v2542 = vmul.f32 %v2294, %v2357
  %v2543 = vmul.f32 %v2290, %v2361
  %v2544 = vmul.f32 %v2294, %v2361
  %v2545 = vmul.f32 %v2290, %v2365
  %v2546 = vmul.f32 %v2294, %v2365
  %v2547 = vmul.f32 %v2290, %v2369
  %v2548 = vmul.f32 %v2294, %v2369
  %v2549 = vmul.f32 %v2290, %v2373
  %v2550 = vmul.f32 %v2294, %v2373
  %v2551 = vmul.f32 %v2290, %v2377
  %v2552 = vmul.f32 %v2294, %v2377
  %v2553 = vmul.f32 %v2290, %v2381
  %v2554 = vmul.f32 %v2294, %v2381
  %v2555 = vmul.f32 %v2290, %v2385
  %v2556 = vmul.f32 %v2294, %v2385
  %v2557 = vmul.f32 %v2290, %v2389
  %v2558 = vmul.f32 %v2294, %v2389
  %v2559 = vmul.f32 %v2290, %v2393
  %v2560 = vmul.f32 %v2294, %v2393
  %v2561 = vmul.f32 %v2290, %v2397
  %v2562 = vmul.f32 %v2294, %v2397
  %v2563 = vmul.f32 %v2290, %v2401
  %v2564 = vmul.f32 %v2294, %v2401
  %v2565 = vmul.f32 %v2290, %v2405
  %v2566 = vmul.f32 %v2294, %v2405
  %v2567 = vmul.f32 %v2290, %v2409
  %v2568 = vmul.f32 %v2294, %v2409
  %v2569 = vmul.f32 %v2290, %v2413
  %v2570 = vmul.f32 %v2294, %v2413
  %v2571 = vmul.f32 %v2290, %v2417
  %v2572 = vmul.f32 %v2294, %v2417
  %v2573 = vmul.f32 %v2290, %v2421
  %v2574 = vmul.f32 %v2294, %v2421
  %v2575 = vmul.f32 %v2290, %v2425
  %v2576 = vmul.f32 %v2294, %v2425
  %v2577 = vmul.f32 %v2290, %v2429
  %v2578 = vmul.f32 %v2294, %v2429
  %v2579 = vmul.f32 %v2290, %v2433
  %v2580 = vmul.f32 %v2294, %v2433
  %v2581 = vmul.f32 %v2290, %v2437
  %v2582 = vmul.f32 %v2294, %v2437
  %v2583 = vmul.f32 %v2290, %v2441
  %v2584 = vmul.f32 %v2294, %v2441
  %v2585 = vmul.f32 %v2290, %v2445
  %v2586 = vmul.f32 %v2294, %v2445
  %v2587 = vmul.f32 %v2290, %v2449
  %v2588 = vmul.f32 %v2294, %v2449
  %v2589 = vmul.f32 %v2290, %v2453
  %v2590 = vmul.f32 %v2294, %v2453
  %v2591 = vmul.f32 %v2290, %v2457
  %v2592 = vmul.f32 %v2294, %v2457
  %v2593 = vmul.f32 %v2290, %v2461
  %v2594 = vmul.f32 %v2294, %v2461
  %v2595 = vmul.f32 %v2290, %v2465
  %v2596 = vmul.f32 %v2294, %v2465
  %v2597 = vmul.f32 %v2290, %v2469
  %v2598 = vmul.f32 %v2294, %v2469
  %v2599 = vmul.f32 %v2298, %v2345
  %v2600 = vmul.f32 %v2302, %v2345
  %v2601 = vmul.f32 %v2298, %v2349
  %v2602 = vmul.f32 %v2302, %v2349
  %v2603 = vmul.f32 %v2298, %v2353
  %v2604 = vmul.f32 %v2302, %v2353
  %v2605 = vmul.f32 %v2298, %v2357
  %v2606 = vmul.f32 %v2302, %v2357
  %v2607 = vmul.f32 %v2298, %v2361
  %v2608 = vmul.f32 %v2302, %v2361
  %v2609 = vmul.f32 %v2298, %v2365
  %v2610 = vmul.f32 %v2302, %v2365
  %v2611 = vmul.f32 %v2298, %v2369
  %v2612 = vmul.f32 %v2302, %v2369
  %v2613 = vmul.f32 %v2298, %v2373
  %v2614 = vmul.f32 %v2302, %v2373
  %v2615 = vmul.f32 %v2298, %v2377
  %v2616 = vmul.f32 %v2302, %v2377
  %v2617 = vmul.f32 %v2298, %v2381
  %v2618 = vmul.f32 %v2302, %v2381
  %v2619 = vmul.f32 %v2298, %v2385
  %v2620 = vmul.f32 %v2302, %v2385
  %v2621 = vmul.f32 %v2298, %v2389
  %v2622 = vmul.f32 %v2302, %v2389
  %v2623 = vmul.f32 %v2298, %v2393
  %v2624 = vmul.f32 %v2302, %v2393
  %v2625 = vmul.f32 %v2298, %v2397
  %v2626 = vmul.f32 %v2302, %v2397
  %v2627 = vmul.f32 %v2298, %v2401
  %v2628 = vmul.f32 %v2302, %v2401
  %v2629 = vmul.f32 %v2298, %v2405
  %v2630 = vmul.f32 %v2302, %v2405
  %v2631 = vmul.f32 %v2298, %v2409
  %v2632 = vmul.f32 %v2302, %v2409
  %v2633 = vmul.f32 %v2298, %v2413
  %v2634 = vmul.f32 %v2302, %v2413
  %v2635 = vmul.f32 %v2298, %v2417
  %v2636 = vmul.f32 %v2302, %v2417
  %v2637 = vmul.f32 %v2298, %v2421
  %v2638 = vmul.f32 %v2302, %v2421
  %v2639 = vmul.f32 %v2298, %v2425
  %v2640 = vmul.f32 %v2302, %v2425
  %v2641 = vmul.f32 %v2298, %v2429
  %v2642 = vmul.f32 %v2302, %v2429
  %v2643 = vmul.f32 %v2298, %v2433
  %v2644 = vmul.f32 %v2302, %v2433
  %v2645 = vmul.f32 %v2298, %v2437
  %v2646 = vmul.f32 %v2302, %v2437
  %v2647 = vmul.f32 %v2298, %v2441
  %v2648 = vmul.f32 %v2302, %v2441
  %v2649 = vmul.f32 %v2298, %v2445
  %v2650 = vmul.f32 %v2302, %v2445
  %v2651 = vmul.f32 %v2298, %v2449
  %v2652 = vmul.f32 %v2302, %v2449
  %v2653 = vmul.f32 %v2298, %v2453
  %v2654 = vmul.f32 %v2302, %v2453
  %v2655 = vmul.f32 %v2298, %v2457
  %v2656 = vmul.f32 %v2302, %v2457
  %v2657 = vmul.f32 %v2298, %v2461
  %v2658 = vmul.f32 %v2302, %v2461
  %v2659 = vmul.f32 %v2298, %v2465
  %v2660 = vmul.f32 %v2302, %v2465
  %v2661 = vmul.f32 %v2298, %v2469
  %v2662 = vmul.f32 %v2302, %v2469
  %v2663 = vmul.f32 %v2306, %v2345
  %v2664 = vmul.f32 %v2310, %v2345
  %v2665 = vmul.f32 %v2306, %v2349
  %v2666 = vmul.f32 %v2310, %v2349
  %v2667 = vmul.f32 %v2306, %v2353
  %v2668 = vmul.f32 %v2310, %v2353
  %v2669 = vmul.f32 %v2306, %v2357
  %v2670 = vmul.f32 %v2310, %v2357
  %v2671 = vmul.f32 %v2306, %v2361
  %v2672 = vmul.f32 %v2310, %v2361
  %v2673 = vmul.f32 %v2306, %v2365
  %v2674 = vmul.f32 %v2310, %v2365
  %v2675 = vmul.f32 %v2306, %v2369
  %v2676 = vmul.f32 %v2310, %v2369
  %v2677 = vmul.f32 %v2306, %v2373
  %v2678 = vmul.f32 %v2310, %v2373
  %v2679 = vmul.f32 %v2306, %v2377
  %v2680 = vmul.f32 %v2310, %v2377
  %v2681 = vmul.f32 %v2306, %v2381
  %v2682 = vmul.f32 %v2310, %v2381
  %v2683 = vmul.f32 %v2306, %v2385
  %v2684 = vmul.f32 %v2310, %v2385
  %v2685 = vmul.f32 %v2306, %v2389
  %v2686 = vmul.f32 %v2310, %v2389
  %v2687 = vmul.f32 %v2306, %v2393
  %v2688 = vmul.f32 %v2310, %v2393
  %v2689 = vmul.f32 %v2306, %v2397
  %v2690 = vmul.f32 %v2310, %v2397
  %v2691 = vmul.f32 %v2306, %v2401
  %v2692 = vmul.f32 %v2310, %v2401
  %v2693 = vmul.f32 %v2306, %v2405
  %v2694 = vmul.f32 %v2310, %v2405
  %v2695 = vmul.f32 %v2306, %v2409
  %v2696 = vmul.f32 %v2310, %v2409
  %v2697 = vmul.f32 %v2306, %v2413
  %v2698 = vmul.f32 %v2310, %v2413
  %v2699 = vmul.f32 %v2306, %v2417
  %v2700 = vmul.f32 %v2310, %v2417
  %v2701 = vmul.f32 %v2306, %v2421
  %v2702 = vmul.f32 %v2310, %v2421
  %v2703 = vmul.f32 %v2306, %v2425
  %v2704 = vmul.f32 %v2310, %v2425
  %v2705 = vmul.f32 %v2306, %v2429
  %v2706 = vmul.f32 %v2310, %v2429
  %v2707 = vmul.f32 %v2306, %v2433
  %v2708 = vmul.f32 %v2310, %v2433
  %v2709 = vmul.f32 %v2306, %v2437
  %v2710 = vmul.f32 %v2310, %v2437
  %v2711 = vmul.f32 %v2306, %v2441
  %v2712 = vmul.f32 %v2310, %v2441
  %v2713 = vmul.f32 %v2306, %v2445
  %v2714 = vmul.f32 %v2310, %v2445
  %v2715 = vmul.f32 %v2306, %v2449
  %v2716 = vmul.f32 %v2310, %v2449
  %v2717 = vmul.f32 %v2306, %v2453
  %v2718 = vmul.f32 %v2310, %v2453
  %v2719 = vmul.f32 %v2306, %v2457
  %v2720 = vmul.f32 %v2310, %v2457
  %v2721 = vmul.f32 %v2306, %v2461
  %v2722 = vmul.f32 %v2310, %v2461
  %v2723 = vmul.f32 %v2306, %v2465
  %v2724 = vmul.f32 %v2310, %v2465
  %v2725 = vmul.f32 %v2306, %v2469
  %v2726 = vmul.f32 %v2310, %v2469
  %v2727 = vmul.f32 %v2314, %v2345
  %v2728 = vmul.f32 %v2318, %v2345
  %v2729 = vmul.f32 %v2314, %v2349
  %v2730 = vmul.f32 %v2318, %v2349
  %v2731 = vmul.f32 %v2314, %v2353
  %v2732 = vmul.f32 %v2318, %v2353
  %v2733 = vmul.f32 %v2314, %v2357
  %v2734 = vmul.f32 %v2318, %v2357
  %v2735 = vmul.f32 %v2314, %v2361
  %v2736 = vmul.f32 %v2318, %v2361
  %v2737 = vmul.f32 %v2314, %v2365
  %v2738 = vmul.f32 %v2318, %v2365
  %v2739 = vmul.f32 %v2314, %v2369
  %v2740 = vmul.f32 %v2318, %v2369
  %v2741 = vmul.f32 %v2314, %v2373
  %v2742 = vmul.f32 %v2318, %v2373
  %v2743 = vmul.f32 %v2314, %v2377
  %v2744 = vmul.f32 %v2318, %v2377
  %v2745 = vmul.f32 %v2314, %v2381
  %v2746 = vmul.f32 %v2318, %v2381
  %v2747 = vmul.f32 %v2314, %v2385
  %v2748 = vmul.f32 %v2318, %v2385
  %v2749 = vmul.f32 %v2314, %v2389
  %v2750 = vmul.f32 %v2318, %v2389
  %v2751 = vmul.f32 %v2314, %v2393
  %v2752 = vmul.f32 %v2318, %v2393
  %v2753 = vmul.f32 %v2314, %v2397
  %v2754 = vmul.f32 %v2318, %v2397
  %v2755 = vmul.f32 %v2314, %v2401
  %v2756 = vmul.f32 %v2318, %v2401
  %v2757 = vmul.f32 %v2314, %v2405
  %v2758 = vmul.f32 %v2318, %v2405
  %v2759 = vmul.f32 %v2314, %v2409
  %v2760 = vmul.f32 %v2318, %v2409
  %v2761 = vmul.f32 %v2314, %v2413
  %v2762 = vmul.f32 %v2318, %v2413
  %v2763 = vmul.f32 %v2314, %v2417
  %v2764 = vmul.f32 %v2318, %v2417
  %v2765 = vmul.f32 %v2314, %v2421
  %v2766 = vmul.f32 %v2318, %v2421
  %v2767 = vmul.f32 %v2314, %v2425
  %v2768 = vmul.f32 %v2318, %v2425
  %v2769 = vmul.f32 %v2314, %v2429
  %v2770 = vmul.f32 %v2318, %v2429
  %v2771 = vmul.f32 %v2314, %v2433
  %v2772 = vmul.f32 %v2318, %v2433
  %v2773 = vmul.f32 %v2314, %v2437
  %v2774 = vmul.f32 %v2318, %v2437
  %v2775 = vmul.f32 %v2314, %v2441
  %v2776 = vmul.f32 %v2318, %v2441
  %v2777 = vmul.f32 %v2314, %v2445
  %v2778 = vmul.f32 %v2318, %v2445
  %v2779 = vmul.f32 %v2314, %v2449
  %v2780 = vmul.f32 %v2318, %v2449
  %v2781 = vmul.f32 %v2314, %v2453
  %v2782 = vmul.f32 %v2318, %v2453
  %v2783 = vmul.f32 %v2314, %v2457
  %v2784 = vmul.f32 %v2318, %v2457
  %v2785 = vmul.f32 %v2314, %v2461
  %v2786 = vmul.f32 %v2318, %v2461
  %v2787 = vmul.f32 %v2314, %v2465
  %v2788 = vmul.f32 %v2318, %v2465
  %v2789 = vmul.f32 %v2314, %v2469
  %v2790 = vmul.f32 %v2318, %v2469
  %v2791 = vmul.f32 %v2322, %v2345
  %v2792 = vmul.f32 %v2326, %v2345
  %v2793 = vmul.f32 %v2322, %v2349
  %v2794 = vmul.f32 %v2326, %v2349
  %v2795 = vmul.f32 %v2322, %v2353
  %v2796 = vmul.f32 %v2326, %v2353
  %v2797 = vmul.f32 %v2322, %v2357
  %v2798 = vmul.f32 %v2326, %v2357
  %v2799 = vmul.f32 %v2322, %v2361
  %v2800 = vmul.f32 %v2326, %v2361
  %v2801 = vmul.f32 %v2322, %v2365
  %v2802 = vmul.f32 %v2326, %v2365
  %v2803 = vmul.f32 %v2322, %v2369
  %v2804 = vmul.f32 %v2326, %v2369
  %v2805 = vmul.f32 %v2322, %v2373
  %v2806 = vmul.f32 %v2326, %v2373
  %v2807 = vmul.f32 %v2322, %v2377
  %v2808 = vmul.f32 %v2326, %v2377
  %v2809 = vmul.f32 %v2322, %v2381
  %v2810 = vmul.f32 %v2326, %v2381
  %v2811 = vmul.f32 %v2322, %v2385
  %v2812 = vmul.f32 %v2326, %v2385
  %v2813 = vmul.f32 %v2322, %v2389
  %v2814 = vmul.f32 %v2326, %v2389
  %v2815 = vmul.f32 %v2322, %v2393
  %v2816 = vmul.f32 %v2326, %v2393
  %v2817 = vmul.f32 %v2322, %v2397
  %v2818 = vmul.f32 %v2326, %v2397
  %v2819 = vmul.f32 %v2322, %v2401
  %v2820 = vmul.f32 %v2326, %v2401
  %v2821 = vmul.f32 %v2322, %v2405
  %v2822 = vmul.f32 %v2326, %v2405
  %v2823 = vmul.f32 %v2322, %v2409
  %v2824 = vmul.f32 %v2326, %v2409
  %v2825 = vmul.f32 %v2322, %v2413
  %v2826 = vmul.f32 %v2326, %v2413
  %v2827 = vmul.f32 %v2322, %v2417
  %v2828 = vmul.f32 %v2326, %v2417
  %v2829 = vmul.f32 %v2322, %v2421
  %v2830 = vmul.f32 %v2326, %v2421
  %v2831 = vmul.f32 %v2322, %v2425
  %v2832 = vmul.f32 %v2326, %v2425
  %v2833 = vmul.f32 %v2322, %v2429
  %v2834 = vmul.f32 %v2326, %v2429
  %v2835 = vmul.f32 %v2322, %v2433
  %v2836 = vmul.f32 %v2326, %v2433
  %v2837 = vmul.f32 %v2322, %v2437
  %v2838 = vmul.f32 %v2326, %v2437
  %v2839 = vmul.f32 %v2322, %v2441
  %v2840 = vmul.f32 %v2326, %v2441
  %v2841 = vmul.f32 %v2322, %v2445
  %v2842 = vmul.f32 %v2326, %v2445
  %v2843 = vmul.f32 %v2322, %v2449
  %v2844 = vmul.f32 %v2326, %v2449
  %v2845 = vmul.f32 %v2322, %v2453
  %v2846 = vmul.f32 %v2326, %v2453
  %v2847 = vmul.f32 %v2322, %v2457
  %v2848 = vmul.f32 %v2326, %v2457
  %v2849 = vmul.f32 %v2322, %v2461
  %v2850 = vmul.f32 %v2326, %v2461
  %v2851 = vmul.f32 %v2322, %v2465
  %v2852 = vmul.f32 %v2326, %v2465
  %v2853 = vmul.f32 %v2322, %v2469
  %v2854 = vmul.f32 %v2326, %v2469
  %v2855 = vmul.f32 %v2330, %v2345
  %v2856 = vmul.f32 %v2334, %v2345
  %v2857 = vmul.f32 %v2330, %v2349
  %v2858 = vmul.f32 %v2334, %v2349
  %v2859 = vmul.f32 %v2330, %v2353
  %v2860 = vmul.f32 %v2334, %v2353
  %v2861 = vmul.f32 %v2330, %v2357
  %v2862 = vmul.f32 %v2334, %v2357
  %v2863 = vmul.f32 %v2330, %v2361
  %v2864 = vmul.f32 %v2334, %v2361
  %v2865 = vmul.f32 %v2330, %v2365
  %v2866 = vmul.f32 %v2334, %v2365
  %v2867 = vmul.f32 %v2330, %v2369
  %v2868 = vmul.f32 %v2334, %v2369
  %v2869 = vmul.f32 %v2330, %v2373
  %v2870 = vmul.f32 %v2334, %v2373
  %v2871 = vmul.f32 %v2330, %v2377
  %v2872 = vmul.f32 %v2334, %v2377
  %v2873 = vmul.f32 %v2330, %v2381
  %v2874 = vmul.f32 %v2334, %v2381
  %v2875 = vmul.f32 %v2330, %v2385
  %v2876 = vmul.f32 %v2334, %v2385
  %v2877 = vmul.f32 %v2330, %v2389
  %v2878 = vmul.f32 %v2334, %v2389
  %v2879 = vmul.f32 %v2330, %v2393
  %v2880 = vmul.f32 %v2334, %v2393
  %v2881 = vmul.f32 %v2330, %v2397
  %v2882 = vmul.f32 %v2334, %v2397
  %v2883 = vmul.f32 %v2330, %v2401
  %v2884 = vmul.f32 %v2334, %v2401
  %v2885 = vmul.f32 %v2330, %v2405
  %v2886 = vmul.f32 %v2334, %v2405
  %v2887 = vmul.f32 %v2330, %v2409
  %v2888 = vmul.f32 %v2334, %v2409
  %v2889 = vmul.f32 %v2330, %v2413
  %v2890 = vmul.f32 %v2334, %v2413
  %v2891 = vmul.f32 %v2330, %v2417
  %v2892 = vmul.f32 %v2334, %v2417
  %v2893 = vmul.f32 %v2330, %v2421
  %v2894 = vmul.f32 %v2334, %v2421
  %v2895 = vmul.f32 %v2330, %v2425
  %v2896 = vmul.f32 %v2334, %v2425
  %v2897 = vmul.f32 %v2330, %v2429
  %v2898 = vmul.f32 %v2334, %v2429
  %v2899 = vmul.f32 %v2330, %v2433
  %v2900 = vmul.f32 %v2334, %v2433
  %v2901 = vmul.f32 %v2330, %v2437
  %v2902 = vmul.f32 %v2334, %v2437
  %v2903 = vmul.f32 %v2330, %v2441
  %v2904 = vmul.f32 %v2334, %v2441
  %v2905 = vmul.f32 %v2330, %v2445
  %v2906 = vmul.f32 %v2334, %v2445
  %v2907 = vmul.f32 %v2330, %v2449
  %v2908 = vmul.f32 %v2334, %v2449
  %v2909 = vmul.f32 %v2330, %v2453
  %v2910 = vmul.f32 %v2334, %v2453
  %v2911 = vmul.f32 %v2330, %v2457
  %v2912 = vmul.f32 %v2334, %v2457
  %v2913 = vmul.f32 %v2330, %v2461
  %v2914 = vmul.f32 %v2334, %v2461
  %v2915 = vmul.f32 %v2330, %v2465
  %v2916 = vmul.f32 %v2334, %v2465
  %v2917 = vmul.f32 %v2330, %v2469
  %v2918 = vmul.f32 %v2334, %v2469
  %v2919 = vmul.f32 %v2338, %v2345
  %v2920 = vmul.f32 %v2342, %v2345
  %v2921 = vmul.f32 %v2338, %v2349
  %v2922 = vmul.f32 %v2342, %v2349
  %v2923 = vmul.f32 %v2338, %v2353
  %v2924 = vmul.f32 %v2342, %v2353
  %v2925 = vmul.f32 %v2338, %v2357
  %v2926 = vmul.f32 %v2342, %v2357
  %v2927 = vmul.f32 %v2338, %v2361
  %v2928 = vmul.f32 %v2342, %v2361
  %v2929 = vmul.f32 %v2338, %v2365
  %v2930 = vmul.f32 %v2342, %v2365
  %v2931 = vmul.f32 %v2338, %v2369
  %v2932 = vmul.f32 %v2342, %v2369
  %v2933 = vmul.f32 %v2338, %v2373
  %v2934 = vmul.f32 %v2342, %v2373
  %v2935 = vmul.f32 %v2338, %v2377
  %v2936 = vmul.f32 %v2342, %v2377
  %v2937 = vmul.f32 %v2338, %v2381
  %v2938 = vmul.f32 %v2342, %v2381
  %v2939 = vmul.f32 %v2338, %v2385
  %v2940 = vmul.f32 %v2342, %v2385
  %v2941 = vmul.f32 %v2338, %v2389
  %v2942 = vmul.f32 %v2342, %v2389
  %v2943 = vmul.f32 %v2338, %v2393
  %v2944 = vmul.f32 %v2342, %v2393
  %v2945 = vmul.f32 %v2338, %v2397
  %v2946 = vmul.f32 %v2342, %v2397
  %v2947 = vmul.f32 %v2338, %v2401
  %v2948 = vmul.f32 %v2342, %v2401
  %v2949 = vmul.f32 %v2338, %v2405
  %v2950 = vmul.f32 %v2342, %v2405
  %v2951 = vmul.f32 %v2338, %v2409
  %v2952 = vmul.f32 %v2342, %v2409
  %v2953 = vmul.f32 %v2338, %v2413
  %v2954 = vmul.f32 %v2342, %v2413
  %v2955 = vmul.f32 %v2338, %v2417
  %v2956 = vmul.f32 %v2342, %v2417
  %v2957 = vmul.f32 %v2338, %v2421
  %v2958 = vmul.f32 %v2342, %v2421
  %v2959 = vmul.f32 %v2338, %v2425
  %v2960 = vmul.f32 %v2342, %v2425
  %v2961 = vmul.f32 %v2338, %v2429
  %v2962 = vmul.f32 %v2342, %v2429
  %v2963 = vmul.f32 %v2338, %v2433
  %v2964 = vmul.f32 %v2342, %v2433
  %v2965 = vmul.f32 %v2338, %v2437
  %v2966 = vmul.f32 %v2342, %v2437
  %v2967 = vmul.f32 %v2338, %v2441
  %v2968 = vmul.f32 %v2342, %v2441
  %v2969 = vmul.f32 %v2338, %v2445
  %v2970 = vmul.f32 %v2342, %v2445
  %v2971 = vmul.f32 %v2338, %v2449
  %v2972 = vmul.f32 %v2342, %v2449
  %v2973 = vmul.f32 %v2338, %v2453
  %v2974 = vmul.f32 %v2342, %v2453
  %v2975 = vmul.f32 %v2338, %v2457
  %v2976 = vmul.f32 %v2342, %v2457
  %v2977 = vmul.f32 %v2338, %v2461
  %v2978 = vmul.f32 %v2342, %v2461
  %v2979 = vmul.f32 %v2338, %v2465
  %v2980 = vmul.f32 %v2342, %v2465
  %v2981 = vmul.f32 %v2338, %v2469
  %v2982 = vmul.f32 %v2342, %v2469
  %v2983 = vadd.f32 %v1687, %v2471
  %v2984 = vadd.f32 %v1688, %v2472
  %v2985 = vadd.f32 %v1689, %v2473
  %v2986 = vadd.f32 %v1690, %v2474
  %v2987 = vadd.f32 %v1691, %v2475
  %v2988 = vadd.f32 %v1692, %v2476
  %v2989 = vadd.f32 %v1693, %v2477
  %v2990 = vadd.f32 %v1694, %v2478
  %v2991 = vadd.f32 %v1695, %v2479
  %v2992 = vadd.f32 %v1696, %v2480
  %v2993 = vadd.f32 %v1697, %v2481
  %v2994 = vadd.f32 %v1698, %v2482
  %v2995 = vadd.f32 %v1699, %v2483
  %v2996 = vadd.f32 %v1700, %v2484
  %v2997 = vadd.f32 %v1701, %v2485
  %v2998 = vadd.f32 %v1702, %v2486
  %v2999 = vadd.f32 %v1703, %v2487
  %v3000 = vadd.f32 %v1704, %v2488
  %v3001 = vadd.f32 %v1705, %v2489
  %v3002 = vadd.f32 %v1706, %v2490
  %v3003 = vadd.f32 %v1707, %v2491
  %v3004 = vadd.f32 %v1708, %v2492
  %v3005 = vadd.f32 %v1709, %v2493
  %v3006 = vadd.f32 %v1710, %v2494
  %v3007 = vadd.f32 %v1711, %v2495
  %v3008 = vadd.f32 %v1712, %v2496
  %v3009 = vadd.f32 %v1713, %v2497
  %v3010 = vadd.f32 %v1714, %v2498
  %v3011 = vadd.f32 %v1715, %v2499
  %v3012 = vadd.f32 %v1716, %v2500
  %v3013 = vadd.f32 %v1717, %v2501
  %v3014 = vadd.f32 %v1718, %v2502
  %v3015 = vadd.f32 %v1719, %v2503
  %v3016 = vadd.f32 %v1720, %v2504
  %v3017 = vadd.f32 %v1721, %v2505
  %v3018 = vadd.f32 %v1722, %v2506
  %v3019 = vadd.f32 %v1723, %v2507
  %v3020 = vadd.f32 %v1724, %v2508
  %v3021 = vadd.f32 %v1725, %v2509
  %v3022 = vadd.f32 %v1726, %v2510
  %v3023 = vadd.f32 %v1727, %v2511
  %v3024 = vadd.f32 %v1728, %v2512
  %v3025 = vadd.f32 %v1729, %v2513
  %v3026 = vadd.f32 %v1730, %v2514
  %v3027 = vadd.f32 %v1731, %v2515
  %v3028 = vadd.f32 %v1732, %v2516
  %v3029 = vadd.f32 %v1733, %v2517
  %v3030 = vadd.f32 %v1734, %v2518
  %v3031 = vadd.f32 %v1735, %v2519
  %v3032 = vadd.f32 %v1736, %v2520
  %v3033 = vadd.f32 %v1737, %v2521
  %v3034 = vadd.f32 %v1738, %v2522
  %v3035 = vadd.f32 %v1739, %v2523
  %v3036 = vadd.f32 %v1740, %v2524
  %v3037 = vadd.f32 %v1741, %v2525
  %v3038 = vadd.f32 %v1742, %v2526
  %v3039 = vadd.f32 %v1743, %v2527
  %v3040 = vadd.f32 %v1744, %v2528
  %v3041 = vadd.f32 %v1745, %v2529
  %v3042 = vadd.f32 %v1746, %v2530
  %v3043 = vadd.f32 %v1747, %v2531
  %v3044 = vadd.f32 %v1748, %v2532
  %v3045 = vadd.f32 %v1749, %v2533
  %v3046 = vadd.f32 %v1750, %v2534
  %v3047 = vadd.f32 %v1751, %v2535
  %v3048 = vadd.f32 %v1752, %v2536
  %v3049 = vadd.f32 %v1753, %v2537
  %v3050 = vadd.f32 %v1754, %v2538
  %v3051 = vadd.f32 %v1755, %v2539
  %v3052 = vadd.f32 %v1756, %v2540
  %v3053 = vadd.f32 %v1757, %v2541
  %v3054 = vadd.f32 %v1758, %v2542
  %v3055 = vadd.f32 %v1759, %v2543
  %v3056 = vadd.f32 %v1760, %v2544
  %v3057 = vadd.f32 %v1761, %v2545
  %v3058 = vadd.f32 %v1762, %v2546
  %v3059 = vadd.f32 %v1763, %v2547
  %v3060 = vadd.f32 %v1764, %v2548
  %v3061 = vadd.f32 %v1765, %v2549
  %v3062 = vadd.f32 %v1766, %v2550
  %v3063 = vadd.f32 %v1767, %v2551
  %v3064 = vadd.f32 %v1768, %v2552
  %v3065 = vadd.f32 %v1769, %v2553
  %v3066 = vadd.f32 %v1770, %v2554
  %v3067 = vadd.f32 %v1771, %v2555
  %v3068 = vadd.f32 %v1772, %v2556
  %v3069 = vadd.f32 %v1773, %v2557
  %v3070 = vadd.f32 %v1774, %v2558
  %v3071 = vadd.f32 %v1775, %v2559
  %v3072 = vadd.f32 %v1776, %v2560
  %v3073 = vadd.f32 %v1777, %v2561
  %v3074 = vadd.f32 %v1778, %v2562
  %v3075 = vadd.f32 %v1779, %v2563
  %v3076 = vadd.f32 %v1780, %v2564
  %v3077 = vadd.f32 %v1781, %v2565
  %v3078 = vadd.f32 %v1782, %v2566
  %v3079 = vadd.f32 %v1783, %v2567
  %v3080 = vadd.f32 %v1784, %v2568
  %v3081 = vadd.f32 %v1785, %v2569
  %v3082 = vadd.f32 %v1786, %v2570
  %v3083 = vadd.f32 %v1787, %v2571
  %v3084 = vadd.f32 %v1788, %v2572
  %v3085 = vadd.f32 %v1789, %v2573
  %v3086 = vadd.f32 %v1790, %v2574
  %v3087 = vadd.f32 %v1791, %v2575
  %v3088 = vadd.f32 %v1792, %v2576
  %v3089 = vadd.f32 %v1793, %v2577
  %v3090 = vadd.f32 %v1794, %v2578
  %v3091 = vadd.f32 %v1795, %v2579
  %v3092 = vadd.f32 %v1796, %v2580
  %v3093 = vadd.f32 %v1797, %v2581
  %v3094 = vadd.f32 %v1798, %v2582
  %v3095 = vadd.f32 %v1799, %v2583
  %v3096 = vadd.f32 %v1800, %v2584
  %v3097 = vadd.f32 %v1801, %v2585
  %v3098 = vadd.f32 %v1802, %v2586
  %v3099 = vadd.f32 %v1803, %v2587
  %v3100 = vadd.f32 %v1804, %v2588
  %v3101 = vadd.f32 %v1805, %v2589
  %v3102 = vadd.f32 %v1806, %v2590
  %v3103 = vadd.f32 %v1807, %v2591
  %v3104 = vadd.f32 %v1808, %v2592
  %v3105 = vadd.f32 %v1809, %v2593
  %v3106 = vadd.f32 %v1810, %v2594
  %v3107 = vadd.f32 %v1811, %v2595
  %v3108 = vadd.f32 %v1812, %v2596
  %v3109 = vadd.f32 %v1813, %v2597
  %v3110 = vadd.f32 %v1814, %v2598
  %v3111 = vadd.f32 %v1815, %v2599
  %v3112 = vadd.f32 %v1816, %v2600
  %v3113 = vadd.f32 %v1817, %v2601
  %v3114 = vadd.f32 %v1818, %v2602
  %v3115 = vadd.f32 %v1819, %v2603
  %v3116 = vadd.f32 %v1820, %v2604
  %v3117 = vadd.f32 %v1821, %v2605
  %v3118 = vadd.f32 %v1822, %v2606
  %v3119 = vadd.f32 %v1823, %v2607
  %v3120 = vadd.f32 %v1824, %v2608
  %v3121 = vadd.f32 %v1825, %v2609
  %v3122 = vadd.f32 %v1826, %v2610
  %v3123 = vadd.f32 %v1827, %v2611
  %v3124 = vadd.f32 %v1828, %v2612
  %v3125 = vadd.f32 %v1829, %v2613
  %v3126 = vadd.f32 %v1830, %v2614
  %v3127 = vadd.f32 %v1831, %v2615
  %v3128 = vadd.f32 %v1832, %v2616
  %v3129 = vadd.f32 %v1833, %v2617
  %v3130 = vadd.f32 %v1834, %v2618
  %v3131 = vadd.f32 %v1835, %v2619
  %v3132 = vadd.f32 %v1836, %v2620
  %v3133 = vadd.f32 %v1837, %v2621
  %v3134 = vadd.f32 %v1838, %v2622
  %v3135 = vadd.f32 %v1839, %v2623
  %v3136 = vadd.f32 %v1840, %v2624
  %v3137 = vadd.f32 %v1841, %v2625
  %v3138 = vadd.f32 %v1842, %v2626
  %v3139 = vadd.f32 %v1843, %v2627
  %v3140 = vadd.f32 %v1844, %v2628
  %v3141 = vadd.f32 %v1845, %v2629
  %v3142 = vadd.f32 %v1846, %v2630
  %v3143 = vadd.f32 %v1847, %v2631
  %v3144 = vadd.f32 %v1848, %v2632
  %v3145 = vadd.f32 %v1849, %v2633
  %v3146 = vadd.f32 %v1850, %v2634
  %v3147 = vadd.f32 %v1851, %v2635
  %v3148 = vadd.f32 %v1852, %v2636
  %v3149 = vadd.f32 %v1853, %v2637
  %v3150 = vadd.f32 %v1854, %v2638
  %v3151 = vadd.f32 %v1855, %v2639
  %v3152 = vadd.f32 %v1856, %v2640
  %v3153 = vadd.f32 %v1857, %v2641
  %v3154 = vadd.f32 %v1858, %v2642
  %v3155 = vadd.f32 %v1859, %v2643
  %v3156 = vadd.f32 %v1860, %v2644
  %v3157 = vadd.f32 %v1861, %v2645
  %v3158 = vadd.f32 %v1862, %v2646
  %v3159 = vadd.f32 %v1863, %v2647
  %v3160 = vadd.f32 %v1864, %v2648
  %v3161 = vadd.f32 %v1865, %v2649
  %v3162 = vadd.f32 %v1866, %v2650
  %v3163 = vadd.f32 %v1867, %v2651
  %v3164 = vadd.f32 %v1868, %v2652
  %v3165 = vadd.f32 %v1869, %v2653
  %v3166 = vadd.f32 %v1870, %v2654
  %v3167 = vadd.f32 %v1871, %v2655
  %v3168 = vadd.f32 %v1872, %v2656
  %v3169 = vadd.f32 %v1873, %v2657
  %v3170 = vadd.f32 %v1874, %v2658
  %v3171 = vadd.f32 %v1875, %v2659
  %v3172 = vadd.f32 %v1876, %v2660
  %v3173 = vadd.f32 %v1877, %v2661
  %v3174 = vadd.f32 %v1878, %v2662
  %v3175 = vadd.f32 %v1879, %v2663
  %v3176 = vadd.f32 %v1880, %v2664
  %v3177 = vadd.f32 %v1881, %v2665
  %v3178 = vadd.f32 %v1882, %v2666
  %v3179 = vadd.f32 %v1883, %v2667
  %v3180 = vadd.f32 %v1884, %v2668
  %v3181 = vadd.f32 %v1885, %v2669
  %v3182 = vadd.f32 %v1886, %v2670
  %v3183 = vadd.f32 %v1887, %v2671
  %v3184 = vadd.f32 %v1888, %v2672
  %v3185 = vadd.f32 %v1889, %v2673
  %v3186 = vadd.f32 %v1890, %v2674
  %v3187 = vadd.f32 %v1891, %v2675
  %v3188 = vadd.f32 %v1892, %v2676
  %v3189 = vadd.f32 %v1893, %v2677
  %v3190 = vadd.f32 %v1894, %v2678
  %v3191 = vadd.f32 %v1895, %v2679
  %v3192 = vadd.f32 %v1896, %v2680
  %v3193 = vadd.f32 %v1897, %v2681
  %v3194 = vadd.f32 %v1898, %v2682
  %v3195 = vadd.f32 %v1899, %v2683
  %v3196 = vadd.f32 %v1900, %v2684
  %v3197 = vadd.f32 %v1901, %v2685
  %v3198 = vadd.f32 %v1902, %v2686
  %v3199 = vadd.f32 %v1903, %v2687
  %v3200 = vadd.f32 %v1904, %v2688
  %v3201 = vadd.f32 %v1905, %v2689
  %v3202 = vadd.f32 %v1906, %v2690
  %v3203 = vadd.f32 %v1907, %v2691
  %v3204 = vadd.f32 %v1908, %v2692
  %v3205 = vadd.f32 %v1909, %v2693
  %v3206 = vadd.f32 %v1910, %v2694
  %v3207 = vadd.f32 %v1911, %v2695
  %v3208 = vadd.f32 %v1912, %v2696
  %v3209 = vadd.f32 %v1913, %v2697
  %v3210 = vadd.f32 %v1914, %v2698
  %v3211 = vadd.f32 %v1915, %v2699
  %v3212 = vadd.f32 %v1916, %v2700
  %v3213 = vadd.f32 %v1917, %v2701
  %v3214 = vadd.f32 %v1918, %v2702
  %v3215 = vadd.f32 %v1919, %v2703
  %v3216 = vadd.f32 %v1920, %v2704
  %v3217 = vadd.f32 %v1921, %v2705
  %v3218 = vadd.f32 %v1922, %v2706
  %v3219 = vadd.f32 %v1923, %v2707
  %v3220 = vadd.f32 %v1924, %v2708
  %v3221 = vadd.f32 %v1925, %v2709
  %v3222 = vadd.f32 %v1926, %v2710
  %v3223 = vadd.f32 %v1927, %v2711
  %v3224 = vadd.f32 %v1928, %v2712
  %v3225 = vadd.f32 %v1929, %v2713
  %v3226 = vadd.f32 %v1930, %v2714
  %v3227 = vadd.f32 %v1931, %v2715
  %v3228 = vadd.f32 %v1932, %v2716
  %v3229 = vadd.f32 %v1933, %v2717
  %v3230 = vadd.f32 %v1934, %v2718
  %v3231 = vadd.f32 %v1935, %v2719
  %v3232 = vadd.f32 %v1936, %v2720
  %v3233 = vadd.f32 %v1937, %v2721
  %v3234 = vadd.f32 %v1938, %v2722
  %v3235 = vadd.f32 %v1939, %v2723
  %v3236 = vadd.f32 %v1940, %v2724
  %v3237 = vadd.f32 %v1941, %v2725
  %v3238 = vadd.f32 %v1942, %v2726
  %v3239 = vadd.f32 %v1943, %v2727
  %v3240 = vadd.f32 %v1944, %v2728
  %v3241 = vadd.f32 %v1945, %v2729
  %v3242 = vadd.f32 %v1946, %v2730
  %v3243 = vadd.f32 %v1947, %v2731
  %v3244 = vadd.f32 %v1948, %v2732
  %v3245 = vadd.f32 %v1949, %v2733
  %v3246 = vadd.f32 %v1950, %v2734
  %v3247 = vadd.f32 %v1951, %v2735
  %v3248 = vadd.f32 %v1952, %v2736
  %v3249 = vadd.f32 %v1953, %v2737
  %v3250 = vadd.f32 %v1954, %v2738
  %v3251 = vadd.f32 %v1955, %v2739
  %v3252 = vadd.f32 %v1956, %v2740
  %v3253 = vadd.f32 %v1957, %v2741
  %v3254 = vadd.f32 %v1958, %v2742
  %v3255 = vadd.f32 %v1959, %v2743
  %v3256 = vadd.f32 %v1960, %v2744
  %v3257 = vadd.f32 %v1961, %v2745
  %v3258 = vadd.f32 %v1962, %v2746
  %v3259 = vadd.f32 %v1963, %v2747
  %v3260 = vadd.f32 %v1964, %v2748
  %v3261 = vadd.f32 %v1965, %v2749
  %v3262 = vadd.f32 %v1966, %v2750
  %v3263 = vadd.f32 %v1967, %v2751
  %v3264 = vadd.f32 %v1968, %v2752
  %v3265 = vadd.f32 %v1969, %v2753
  %v3266 = vadd.f32 %v1970, %v2754
  %v3267 = vadd.f32 %v1971, %v2755
  %v3268 = vadd.f32 %v1972, %v2756
  %v3269 = vadd.f32 %v1973, %v2757
  %v3270 = vadd.f32 %v1974, %v2758
  %v3271 = vadd.f32 %v1975, %v2759
  %v3272 = vadd.f32 %v1976, %v2760
  %v3273 = vadd.f32 %v1977, %v2761
  %v3274 = vadd.f32 %v1978, %v2762
  %v3275 = vadd.f32 %v1979, %v2763
  %v3276 = vadd.f32 %v1980, %v2764
  %v3277 = vadd.f32 %v1981, %v2765
  %v3278 = vadd.f32 %v1982, %v2766
  %v3279 = vadd.f32 %v1983, %v2767
  %v3280 = vadd.f32 %v1984, %v2768
  %v3281 = vadd.f32 %v1985, %v2769
  %v3282 = vadd.f32 %v1986, %v2770
  %v3283 = vadd.f32 %v1987, %v2771
  %v3284 = vadd.f32 %v1988, %v2772
  %v3285 = vadd.f32 %v1989, %v2773
  %v3286 = vadd.f32 %v1990, %v2774
  %v3287 = vadd.f32 %v1991, %v2775
  %v3288 = vadd.f32 %v1992, %v2776
  %v3289 = vadd.f32 %v1993, %v2777
  %v3290 = vadd.f32 %v1994, %v2778
  %v3291 = vadd.f32 %v1995, %v2779
  %v3292 = vadd.f32 %v1996, %v2780
  %v3293 = vadd.f32 %v1997, %v2781
  %v3294 = vadd.f32 %v1998, %v2782
  %v3295 = vadd.f32 %v1999, %v2783
  %v3296 = vadd.f32 %v2000, %v2784
  %v3297 = vadd.f32 %v2001, %v2785
  %v3298 = vadd.f32 %v2002, %v2786
  %v3299 = vadd.f32 %v2003, %v2787
  %v3300 = vadd.f32 %v2004, %v2788
  %v3301 = vadd.f32 %v2005, %v2789
  %v3302 = vadd.f32 %v2006, %v2790
  %v3303 = vadd.f32 %v2007, %v2791
  %v3304 = vadd.f32 %v2008, %v2792
  %v3305 = vadd.f32 %v2009, %v2793
  %v3306 = vadd.f32 %v2010, %v2794
  %v3307 = vadd.f32 %v2011, %v2795
  %v3308 = vadd.f32 %v2012, %v2796
  %v3309 = vadd.f32 %v2013, %v2797
  %v3310 = vadd.f32 %v2014, %v2798
  %v3311 = vadd.f32 %v2015, %v2799
  %v3312 = vadd.f32 %v2016, %v2800
  %v3313 = vadd.f32 %v2017, %v2801
  %v3314 = vadd.f32 %v2018, %v2802
  %v3315 = vadd.f32 %v2019, %v2803
  %v3316 = vadd.f32 %v2020, %v2804
  %v3317 = vadd.f32 %v2021, %v2805
  %v3318 = vadd.f32 %v2022, %v2806
  %v3319 = vadd.f32 %v2023, %v2807
  %v3320 = vadd.f32 %v2024, %v2808
  %v3321 = vadd.f32 %v2025, %v2809
  %v3322 = vadd.f32 %v2026, %v2810
  %v3323 = vadd.f32 %v2027, %v2811
  %v3324 = vadd.f32 %v2028, %v2812
  %v3325 = vadd.f32 %v2029, %v2813
  %v3326 = vadd.f32 %v2030, %v2814
  %v3327 = vadd.f32 %v2031, %v2815
  %v3328 = vadd.f32 %v2032, %v2816
  %v3329 = vadd.f32 %v2033, %v2817
  %v3330 = vadd.f32 %v2034, %v2818
  %v3331 = vadd.f32 %v2035, %v2819
  %v3332 = vadd.f32 %v2036, %v2820
  %v3333 = vadd.f32 %v2037, %v2821
  %v3334 = vadd.f32 %v2038, %v2822
  %v3335 = vadd.f32 %v2039, %v2823
  %v3336 = vadd.f32 %v2040, %v2824
  %v3337 = vadd.f32 %v2041, %v2825
  %v3338 = vadd.f32 %v2042, %v2826
  %v3339 = vadd.f32 %v2043, %v2827
  %v3340 = vadd.f32 %v2044, %v2828
  %v3341 = vadd.f32 %v2045, %v2829
  %v3342 = vadd.f32 %v2046, %v2830
  %v3343 = vadd.f32 %v2047, %v2831
  %v3344 = vadd.f32 %v2048, %v2832
  %v3345 = vadd.f32 %v2049, %v2833
  %v3346 = vadd.f32 %v2050, %v2834
  %v3347 = vadd.f32 %v2051, %v2835
  %v3348 = vadd.f32 %v2052, %v2836
  %v3349 = vadd.f32 %v2053, %v2837
  %v3350 = vadd.f32 %v2054, %v2838
  %v3351 = vadd.f32 %v2055, %v2839
  %v3352 = vadd.f32 %v2056, %v2840
  %v3353 = vadd.f32 %v2057, %v2841
  %v3354 = vadd.f32 %v2058, %v2842
  %v3355 = vadd.f32 %v2059, %v2843
  %v3356 = vadd.f32 %v2060, %v2844
  %v3357 = vadd.f32 %v2061, %v2845
  %v3358 = vadd.f32 %v2062, %v2846
  %v3359 = vadd.f32 %v2063, %v2847
  %v3360 = vadd.f32 %v2064, %v2848
  %v3361 = vadd.f32 %v2065, %v2849
  %v3362 = vadd.f32 %v2066, %v2850
  %v3363 = vadd.f32 %v2067, %v2851
  %v3364 = vadd.f32 %v2068, %v2852
  %v3365 = vadd.f32 %v2069, %v2853
  %v3366 = vadd.f32 %v2070, %v2854
  %v3367 = vadd.f32 %v2071, %v2855
  %v3368 = vadd.f32 %v2072, %v2856
  %v3369 = vadd.f32 %v2073, %v2857
  %v3370 = vadd.f32 %v2074, %v2858
  %v3371 = vadd.f32 %v2075, %v2859
  %v3372 = vadd.f32 %v2076, %v2860
  %v3373 = vadd.f32 %v2077, %v2861
  %v3374 = vadd.f32 %v2078, %v2862
  %v3375 = vadd.f32 %v2079, %v2863
  %v3376 = vadd.f32 %v2080, %v2864
  %v3377 = vadd.f32 %v2081, %v2865
  %v3378 = vadd.f32 %v2082, %v2866
  %v3379 = vadd.f32 %v2083, %v2867
  %v3380 = vadd.f32 %v2084, %v2868
  %v3381 = vadd.f32 %v2085, %v2869
  %v3382 = vadd.f32 %v2086, %v2870
  %v3383 = vadd.f32 %v2087, %v2871
  %v3384 = vadd.f32 %v2088, %v2872
  %v3385 = vadd.f32 %v2089, %v2873
  %v3386 = vadd.f32 %v2090, %v2874
  %v3387 = vadd.f32 %v2091, %v2875
  %v3388 = vadd.f32 %v2092, %v2876
  %v3389 = vadd.f32 %v2093, %v2877
  %v3390 = vadd.f32 %v2094, %v2878
  %v3391 = vadd.f32 %v2095, %v2879
  %v3392 = vadd.f32 %v2096, %v2880
  %v3393 = vadd.f32 %v2097, %v2881
  %v3394 = vadd.f32 %v2098, %v2882
  %v3395 = vadd.f32 %v2099, %v2883
  %v3396 = vadd.f32 %v2100, %v2884
  %v3397 = vadd.f32 %v2101, %v2885
  %v3398 = vadd.f32 %v2102, %v2886
  %v3399 = vadd.f32 %v2103, %v2887
  %v3400 = vadd.f32 %v2104, %v2888
  %v3401 = vadd.f32 %v2105, %v2889
  %v3402 = vadd.f32 %v2106, %v2890
  %v3403 = vadd.f32 %v2107, %v2891
  %v3404 = vadd.f32 %v2108, %v2892
  %v3405 = vadd.f32 %v2109, %v2893
  %v3406 = vadd.f32 %v2110, %v2894
  %v3407 = vadd.f32 %v2111, %v2895
  %v3408 = vadd.f32 %v2112, %v2896
  %v3409 = vadd.f32 %v2113, %v2897
  %v3410 = vadd.f32 %v2114, %v2898
  %v3411 = vadd.f32 %v2115, %v2899
  %v3412 = vadd.f32 %v2116, %v2900
  %v3413 = vadd.f32 %v2117, %v2901
  %v3414 = vadd.f32 %v2118, %v2902
  %v3415 = vadd.f32 %v2119, %v2903
  %v3416 = vadd.f32 %v2120, %v2904
  %v3417 = vadd.f32 %v2121, %v2905
  %v3418 = vadd.f32 %v2122, %v2906
  %v3419 = vadd.f32 %v2123, %v2907
  %v3420 = vadd.f32 %v2124, %v2908
  %v3421 = vadd.f32 %v2125, %v2909
  %v3422 = vadd.f32 %v2126, %v2910
  %v3423 = vadd.f32 %v2127, %v2911
  %v3424 = vadd.f32 %v2128, %v2912
  %v3425 = vadd.f32 %v2129, %v2913
  %v3426 = vadd.f32 %v2130, %v2914
  %v3427 = vadd.f32 %v2131, %v2915
  %v3428 = vadd.f32 %v2132, %v2916
  %v3429 = vadd.f32 %v2133, %v2917
  %v3430 = vadd.f32 %v2134, %v2918
  %v3431 = vadd.f32 %v2135, %v2919
  %v3432 = vadd.f32 %v2136, %v2920
  %v3433 = vadd.f32 %v2137, %v2921
  %v3434 = vadd.f32 %v2138, %v2922
  %v3435 = vadd.f32 %v2139, %v2923
  %v3436 = vadd.f32 %v2140, %v2924
  %v3437 = vadd.f32 %v2141, %v2925
  %v3438 = vadd.f32 %v2142, %v2926
  %v3439 = vadd.f32 %v2143, %v2927
  %v3440 = vadd.f32 %v2144, %v2928
  %v3441 = vadd.f32 %v2145, %v2929
  %v3442 = vadd.f32 %v2146, %v2930
  %v3443 = vadd.f32 %v2147, %v2931
  %v3444 = vadd.f32 %v2148, %v2932
  %v3445 = vadd.f32 %v2149, %v2933
  %v3446 = vadd.f32 %v2150, %v2934
  %v3447 = vadd.f32 %v2151, %v2935
  %v3448 = vadd.f32 %v2152, %v2936
  %v3449 = vadd.f32 %v2153, %v2937
  %v3450 = vadd.f32 %v2154, %v2938
  %v3451 = vadd.f32 %v2155, %v2939
  %v3452 = vadd.f32 %v2156, %v2940
  %v3453 = vadd.f32 %v2157, %v2941
  %v3454 = vadd.f32 %v2158, %v2942
  %v3455 = vadd.f32 %v2159, %v2943
  %v3456 = vadd.f32 %v2160, %v2944
  %v3457 = vadd.f32 %v2161, %v2945
  %v3458 = vadd.f32 %v2162, %v2946
  %v3459 = vadd.f32 %v2163, %v2947
  %v3460 = vadd.f32 %v2164, %v2948
  %v3461 = vadd.f32 %v2165, %v2949
  %v3462 = vadd.f32 %v2166, %v2950
  %v3463 = vadd.f32 %v2167, %v2951
  %v3464 = vadd.f32 %v2168, %v2952
  %v3465 = vadd.f32 %v2169, %v2953
  %v3466 = vadd.f32 %v2170, %v2954
  %v3467 = vadd.f32 %v2171, %v2955
  %v3468 = vadd.f32 %v2172, %v2956
  %v3469 = vadd.f32 %v2173, %v2957
  %v3470 = vadd.f32 %v2174, %v2958
  %v3471 = vadd.f32 %v2175, %v2959
  %v3472 = vadd.f32 %v2176, %v2960
  %v3473 = vadd.f32 %v2177, %v2961
  %v3474 = vadd.f32 %v2178, %v2962
  %v3475 = vadd.f32 %v2179, %v2963
  %v3476 = vadd.f32 %v2180, %v2964
  %v3477 = vadd.f32 %v2181, %v2965
  %v3478 = vadd.f32 %v2182, %v2966
  %v3479 = vadd.f32 %v2183, %v2967
  %v3480 = vadd.f32 %v2184, %v2968
  %v3481 = vadd.f32 %v2185, %v2969
  %v3482 = vadd.f32 %v2186, %v2970
  %v3483 = vadd.f32 %v2187, %v2971
  %v3484 = vadd.f32 %v2188, %v2972
  %v3485 = vadd.f32 %v2189, %v2973
  %v3486 = vadd.f32 %v2190, %v2974
  %v3487 = vadd.f32 %v2191, %v2975
  %v3488 = vadd.f32 %v2192, %v2976
  %v3489 = vadd.f32 %v2193, %v2977
  %v3490 = vadd.f32 %v2194, %v2978
  %v3491 = vadd.f32 %v2195, %v2979
  %v3492 = vadd.f32 %v2196, %v2980
  %v3493 = vadd.f32 %v2197, %v2981
  %v3494 = vadd.f32 %v2198, %v2982
  %v3495 = vlaneseq
  %v3496 = vshrl.u32 %v3495, 7
  %v3497 = vsub.s32 3, %v3496
  %v3498 = vrot.slane %v39, %v3497
  %v3499 = vlaneseq
  %v3500 = vshrl.u32 %v3499, 7
  %v3501 = vsub.s32 7, %v3500
  %v3502 = vrot.slane %v39, %v3501
  %v3503 = vlaneseq
  %v3504 = vshrl.u32 %v3503, 7
  %v3505 = vsub.s32 3, %v3504
  %v3506 = vrot.slane %v40, %v3505
  %v3507 = vlaneseq
  %v3508 = vshrl.u32 %v3507, 7
  %v3509 = vsub.s32 7, %v3508
  %v3510 = vrot.slane %v40, %v3509
  %v3511 = vlaneseq
  %v3512 = vshrl.u32 %v3511, 7
  %v3513 = vsub.s32 3, %v3512
  %v3514 = vrot.slane %v41, %v3513
  %v3515 = vlaneseq
  %v3516 = vshrl.u32 %v3515, 7
  %v3517 = vsub.s32 7, %v3516
  %v3518 = vrot.slane %v41, %v3517
  %v3519 = vlaneseq
  %v3520 = vshrl.u32 %v3519, 7
  %v3521 = vsub.s32 3, %v3520
  %v3522 = vrot.slane %v42, %v3521
  %v3523 = vlaneseq
  %v3524 = vshrl.u32 %v3523, 7
  %v3525 = vsub.s32 7, %v3524
  %v3526 = vrot.slane %v42, %v3525
  %v3527 = vlaneseq
  %v3528 = vshrl.u32 %v3527, 7
  %v3529 = vsub.s32 3, %v3528
  %v3530 = vrot.slane %v43, %v3529
  %v3531 = vlaneseq
  %v3532 = vshrl.u32 %v3531, 7
  %v3533 = vsub.s32 7, %v3532
  %v3534 = vrot.slane %v43, %v3533
  %v3535 = vlaneseq
  %v3536 = vshrl.u32 %v3535, 7
  %v3537 = vsub.s32 3, %v3536
  %v3538 = vrot.slane %v44, %v3537
  %v3539 = vlaneseq
  %v3540 = vshrl.u32 %v3539, 7
  %v3541 = vsub.s32 7, %v3540
  %v3542 = vrot.slane %v44, %v3541
  %v3543 = vlaneseq
  %v3544 = vshrl.u32 %v3543, 7
  %v3545 = vsub.s32 3, %v3544
  %v3546 = vrot.slane %v45, %v3545
  %v3547 = vlaneseq
  %v3548 = vshrl.u32 %v3547, 7
  %v3549 = vsub.s32 7, %v3548
  %v3550 = vrot.slane %v45, %v3549
  %v3551 = vlaneseq
  %v3552 = vshrl.u32 %v3551, 7
  %v3553 = vsub.s32 3, %v3552
  %v3554 = vrot.slane %v46, %v3553
  %v3555 = vlaneseq
  %v3556 = vshrl.u32 %v3555, 7
  %v3557 = vsub.s32 7, %v3556
  %v3558 = vrot.slane %v46, %v3557
  %v3575 = vlaneseq
  %v3576 = vshrl.u32 %v3575, 7
  %v3577 = vsub.s32 3, %v3576
  %v3578 = vrot.slane %v3498, %v3577
  %v3579 = vlaneseq
  %v3580 = vshrl.u32 %v3579, 7
  %v3581 = vsub.s32 3, %v3580
  %v3582 = vrot.slane %v3502, %v3581
  %v3583 = vlaneseq
  %v3584 = vshrl.u32 %v3583, 7
  %v3585 = vsub.s32 3, %v3584
  %v3586 = vrot.slane %v3506, %v3585
  %v3587 = vlaneseq
  %v3588 = vshrl.u32 %v3587, 7
  %v3589 = vsub.s32 3, %v3588
  %v3590 = vrot.slane %v3510, %v3589
  %v3591 = vlaneseq
  %v3592 = vshrl.u32 %v3591, 7
  %v3593 = vsub.s32 3, %v3592
  %v3594 = vrot.slane %v3514, %v3593
  %v3595 = vlaneseq
  %v3596 = vshrl.u32 %v3595, 7
  %v3597 = vsub.s32 3, %v3596
  %v3598 = vrot.slane %v3518, %v3597
  %v3599 = vlaneseq
  %v3600 = vshrl.u32 %v3599, 7
  %v3601 = vsub.s32 3, %v3600
  %v3602 = vrot.slane %v3522, %v3601
  %v3603 = vlaneseq
  %v3604 = vshrl.u32 %v3603, 7
  %v3605 = vsub.s32 3, %v3604
  %v3606 = vrot.slane %v3526, %v3605
  %v3607 = vlaneseq
  %v3608 = vshrl.u32 %v3607, 7
  %v3609 = vsub.s32 3, %v3608
  %v3610 = vrot.slane %v3530, %v3609
  %v3611 = vlaneseq
  %v3612 = vshrl.u32 %v3611, 7
  %v3613 = vsub.s32 3, %v3612
  %v3614 = vrot.slane %v3534, %v3613
  %v3615 = vlaneseq
  %v3616 = vshrl.u32 %v3615, 7
  %v3617 = vsub.s32 3, %v3616
  %v3618 = vrot.slane %v3538, %v3617
  %v3619 = vlaneseq
  %v3620 = vshrl.u32 %v3619, 7
  %v3621 = vsub.s32 3, %v3620
  %v3622 = vrot.slane %v3542, %v3621
  %v3623 = vlaneseq
  %v3624 = vshrl.u32 %v3623, 7
  %v3625 = vsub.s32 3, %v3624
  %v3626 = vrot.slane %v3546, %v3625
  %v3627 = vlaneseq
  %v3628 = vshrl.u32 %v3627, 7
  %v3629 = vsub.s32 3, %v3628
  %v3630 = vrot.slane %v3550, %v3629
  %v3631 = vlaneseq
  %v3632 = vshrl.u32 %v3631, 7
  %v3633 = vsub.s32 3, %v3632
  %v3634 = vrot.slane %v3554, %v3633
  %v3635 = vlaneseq
  %v3636 = vshrl.u32 %v3635, 7
  %v3637 = vsub.s32 3, %v3636
  %v3638 = vrot.slane %v3558, %v3637
  %3639 = vset.pattern.permute.xlu0 3
  %3640 = vperm.xlu0 %3639, %v47
  %v3641 = vpop.permute.xlu0 %3640
  %3643 = vset.pattern.permute.xlu0 3
  %3644 = vperm.xlu0 %3643, %v48
  %v3645 = vpop.permute.xlu0 %3644
  %3647 = vset.pattern.permute.xlu0 3
  %3648 = vperm.xlu0 %3647, %v49
  %v3649 = vpop.permute.xlu0 %3648
  %3651 = vset.pattern.permute.xlu0 3
  %3652 = vperm.xlu0 %3651, %v50
  %v3653 = vpop.permute.xlu0 %3652
  %3655 = vset.pattern.permute.xlu0 3
  %3656 = vperm.xlu0 %3655, %v51
  %v3657 = vpop.permute.xlu0 %3656
  %3659 = vset.pattern.permute.xlu0 3
  %3660 = vperm.xlu0 %3659, %v52
  %v3661 = vpop.permute.xlu0 %3660
  %3663 = vset.pattern.permute.xlu0 3
  %3664 = vperm.xlu0 %3663, %v53
  %v3665 = vpop.permute.xlu0 %3664
  %3667 = vset.pattern.permute.xlu0 3
  %3668 = vperm.xlu0 %3667, %v54
  %v3669 = vpop.permute.xlu0 %3668
  %3671 = vset.pattern.permute.xlu0 3
  %3672 = vperm.xlu0 %3671, %v55
  %v3673 = vpop.permute.xlu0 %3672
  %3675 = vset.pattern.permute.xlu0 3
  %3676 = vperm.xlu0 %3675, %v56
  %v3677 = vpop.permute.xlu0 %3676
  %3679 = vset.pattern.permute.xlu0 3
  %3680 = vperm.xlu0 %3679, %v57
  %v3681 = vpop.permute.xlu0 %3680
  %3683 = vset.pattern.permute.xlu0 3
  %3684 = vperm.xlu0 %3683, %v58
  %v3685 = vpop.permute.xlu0 %3684
  %3687 = vset.pattern.permute.xlu0 3
  %3688 = vperm.xlu0 %3687, %v59
  %v3689 = vpop.permute.xlu0 %3688
  %3691 = vset.pattern.permute.xlu0 3
  %3692 = vperm.xlu0 %3691, %v60
  %v3693 = vpop.permute.xlu0 %3692
  %3695 = vset.pattern.permute.xlu0 3
  %3696 = vperm.xlu0 %3695, %v61
  %v3697 = vpop.permute.xlu0 %3696
  %3699 = vset.pattern.permute.xlu0 3
  %3700 = vperm.xlu0 %3699, %v62
  %v3701 = vpop.permute.xlu0 %3700
  %3703 = vset.pattern.permute.xlu0 3
  %3704 = vperm.xlu0 %3703, %v63
  %v3705 = vpop.permute.xlu0 %3704
  %3707 = vset.pattern.permute.xlu0 3
  %3708 = vperm.xlu0 %3707, %v64
  %v3709 = vpop.permute.xlu0 %3708
  %3711 = vset.pattern.permute.xlu0 3
  %3712 = vperm.xlu0 %3711, %v65
  %v3713 = vpop.permute.xlu0 %3712
  %3715 = vset.pattern.permute.xlu0 3
  %3716 = vperm.xlu0 %3715, %v66
  %v3717 = vpop.permute.xlu0 %3716
  %3719 = vset.pattern.permute.xlu0 3
  %3720 = vperm.xlu0 %3719, %v67
  %v3721 = vpop.permute.xlu0 %3720
  %3723 = vset.pattern.permute.xlu0 3
  %3724 = vperm.xlu0 %3723, %v68
  %v3725 = vpop.permute.xlu0 %3724
  %3727 = vset.pattern.permute.xlu0 3
  %3728 = vperm.xlu0 %3727, %v69
  %v3729 = vpop.permute.xlu0 %3728
  %3731 = vset.pattern.permute.xlu0 3
  %3732 = vperm.xlu0 %3731, %v70
  %v3733 = vpop.permute.xlu0 %3732
  %3735 = vset.pattern.permute.xlu0 3
  %3736 = vperm.xlu0 %3735, %v71
  %v3737 = vpop.permute.xlu0 %3736
  %3739 = vset.pattern.permute.xlu0 3
  %3740 = vperm.xlu0 %3739, %v72
  %v3741 = vpop.permute.xlu0 %3740
  %3743 = vset.pattern.permute.xlu0 3
  %3744 = vperm.xlu0 %3743, %v73
  %v3745 = vpop.permute.xlu0 %3744
  %3747 = vset.pattern.permute.xlu0 3
  %3748 = vperm.xlu0 %3747, %v74
  %v3749 = vpop.permute.xlu0 %3748
  %3751 = vset.pattern.permute.xlu0 3
  %3752 = vperm.xlu0 %3751, %v75
  %v3753 = vpop.permute.xlu0 %3752
  %3755 = vset.pattern.permute.xlu0 3
  %3756 = vperm.xlu0 %3755, %v76
  %v3757 = vpop.permute.xlu0 %3756
  %3759 = vset.pattern.permute.xlu0 3
  %3760 = vperm.xlu0 %3759, %v77
  %v3761 = vpop.permute.xlu0 %3760
  %3763 = vset.pattern.permute.xlu0 3
  %3764 = vperm.xlu0 %3763, %v78
  %v3765 = vpop.permute.xlu0 %3764
  %v3767 = vmul.f32 %v3578, %v3641
  %v3768 = vmul.f32 %v3582, %v3641
  %v3769 = vmul.f32 %v3578, %v3645
  %v3770 = vmul.f32 %v3582, %v3645
  %v3771 = vmul.f32 %v3578, %v3649
  %v3772 = vmul.f32 %v3582, %v3649
  %v3773 = vmul.f32 %v3578, %v3653
  %v3774 = vmul.f32 %v3582, %v3653
  %v3775 = vmul.f32 %v3578, %v3657
  %v3776 = vmul.f32 %v3582, %v3657
  %v3777 = vmul.f32 %v3578, %v3661
  %v3778 = vmul.f32 %v3582, %v3661
  %v3779 = vmul.f32 %v3578, %v3665
  %v3780 = vmul.f32 %v3582, %v3665
  %v3781 = vmul.f32 %v3578, %v3669
  %v3782 = vmul.f32 %v3582, %v3669
  %v3783 = vmul.f32 %v3578, %v3673
  %v3784 = vmul.f32 %v3582, %v3673
  %v3785 = vmul.f32 %v3578, %v3677
  %v3786 = vmul.f32 %v3582, %v3677
  %v3787 = vmul.f32 %v3578, %v3681
  %v3788 = vmul.f32 %v3582, %v3681
  %v3789 = vmul.f32 %v3578, %v3685
  %v3790 = vmul.f32 %v3582, %v3685
  %v3791 = vmul.f32 %v3578, %v3689
  %v3792 = vmul.f32 %v3582, %v3689
  %v3793 = vmul.f32 %v3578, %v3693
  %v3794 = vmul.f32 %v3582, %v3693
  %v3795 = vmul.f32 %v3578, %v3697
  %v3796 = vmul.f32 %v3582, %v3697
  %v3797 = vmul.f32 %v3578, %v3701
  %v3798 = vmul.f32 %v3582, %v3701
  %v3799 = vmul.f32 %v3578, %v3705
  %v3800 = vmul.f32 %v3582, %v3705
  %v3801 = vmul.f32 %v3578, %v3709
  %v3802 = vmul.f32 %v3582, %v3709
  %v3803 = vmul.f32 %v3578, %v3713
  %v3804 = vmul.f32 %v3582, %v3713
  %v3805 = vmul.f32 %v3578, %v3717
  %v3806 = vmul.f32 %v3582, %v3717
  %v3807 = vmul.f32 %v3578, %v3721
  %v3808 = vmul.f32 %v3582, %v3721
  %v3809 = vmul.f32 %v3578, %v3725
  %v3810 = vmul.f32 %v3582, %v3725
  %v3811 = vmul.f32 %v3578, %v3729
  %v3812 = vmul.f32 %v3582, %v3729
  %v3813 = vmul.f32 %v3578, %v3733
  %v3814 = vmul.f32 %v3582, %v3733
  %v3815 = vmul.f32 %v3578, %v3737
  %v3816 = vmul.f32 %v3582, %v3737
  %v3817 = vmul.f32 %v3578, %v3741
  %v3818 = vmul.f32 %v3582, %v3741
  %v3819 = vmul.f32 %v3578, %v3745
  %v3820 = vmul.f32 %v3582, %v3745
  %v3821 = vmul.f32 %v3578, %v3749
  %v3822 = vmul.f32 %v3582, %v3749
  %v3823 = vmul.f32 %v3578, %v3753
  %v3824 = vmul.f32 %v3582, %v3753
  %v3825 = vmul.f32 %v3578, %v3757
  %v3826 = vmul.f32 %v3582, %v3757
  %v3827 = vmul.f32 %v3578, %v3761
  %v3828 = vmul.f32 %v3582, %v3761
  %v3829 = vmul.f32 %v3578, %v3765
  %v3830 = vmul.f32 %v3582, %v3765
  %v3831 = vmul.f32 %v3586, %v3641
  %v3832 = vmul.f32 %v3590, %v3641
  %v3833 = vmul.f32 %v3586, %v3645
  %v3834 = vmul.f32 %v3590, %v3645
  %v3835 = vmul.f32 %v3586, %v3649
  %v3836 = vmul.f32 %v3590, %v3649
  %v3837 = vmul.f32 %v3586, %v3653
  %v3838 = vmul.f32 %v3590, %v3653
  %v3839 = vmul.f32 %v3586, %v3657
  %v3840 = vmul.f32 %v3590, %v3657
  %v3841 = vmul.f32 %v3586, %v3661
  %v3842 = vmul.f32 %v3590, %v3661
  %v3843 = vmul.f32 %v3586, %v3665
  %v3844 = vmul.f32 %v3590, %v3665
  %v3845 = vmul.f32 %v3586, %v3669
  %v3846 = vmul.f32 %v3590, %v3669
  %v3847 = vmul.f32 %v3586, %v3673
  %v3848 = vmul.f32 %v3590, %v3673
  %v3849 = vmul.f32 %v3586, %v3677
  %v3850 = vmul.f32 %v3590, %v3677
  %v3851 = vmul.f32 %v3586, %v3681
  %v3852 = vmul.f32 %v3590, %v3681
  %v3853 = vmul.f32 %v3586, %v3685
  %v3854 = vmul.f32 %v3590, %v3685
  %v3855 = vmul.f32 %v3586, %v3689
  %v3856 = vmul.f32 %v3590, %v3689
  %v3857 = vmul.f32 %v3586, %v3693
  %v3858 = vmul.f32 %v3590, %v3693
  %v3859 = vmul.f32 %v3586, %v3697
  %v3860 = vmul.f32 %v3590, %v3697
  %v3861 = vmul.f32 %v3586, %v3701
  %v3862 = vmul.f32 %v3590, %v3701
  %v3863 = vmul.f32 %v3586, %v3705
  %v3864 = vmul.f32 %v3590, %v3705
  %v3865 = vmul.f32 %v3586, %v3709
  %v3866 = vmul.f32 %v3590, %v3709
  %v3867 = vmul.f32 %v3586, %v3713
  %v3868 = vmul.f32 %v3590, %v3713
  %v3869 = vmul.f32 %v3586, %v3717
  %v3870 = vmul.f32 %v3590, %v3717
  %v3871 = vmul.f32 %v3586, %v3721
  %v3872 = vmul.f32 %v3590, %v3721
  %v3873 = vmul.f32 %v3586, %v3725
  %v3874 = vmul.f32 %v3590, %v3725
  %v3875 = vmul.f32 %v3586, %v3729
  %v3876 = vmul.f32 %v3590, %v3729
  %v3877 = vmul.f32 %v3586, %v3733
  %v3878 = vmul.f32 %v3590, %v3733
  %v3879 = vmul.f32 %v3586, %v3737
  %v3880 = vmul.f32 %v3590, %v3737
  %v3881 = vmul.f32 %v3586, %v3741
  %v3882 = vmul.f32 %v3590, %v3741
  %v3883 = vmul.f32 %v3586, %v3745
  %v3884 = vmul.f32 %v3590, %v3745
  %v3885 = vmul.f32 %v3586, %v3749
  %v3886 = vmul.f32 %v3590, %v3749
  %v3887 = vmul.f32 %v3586, %v3753
  %v3888 = vmul.f32 %v3590, %v3753
  %v3889 = vmul.f32 %v3586, %v3757
  %v3890 = vmul.f32 %v3590, %v3757
  %v3891 = vmul.f32 %v3586, %v3761
  %v3892 = vmul.f32 %v3590, %v3761
  %v3893 = vmul.f32 %v3586, %v3765
  %v3894 = vmul.f32 %v3590, %v3765
  %v3895 = vmul.f32 %v3594, %v3641
  %v3896 = vmul.f32 %v3598, %v3641
  %v3897 = vmul.f32 %v3594, %v3645
  %v3898 = vmul.f32 %v3598, %v3645
  %v3899 = vmul.f32 %v3594, %v3649
  %v3900 = vmul.f32 %v3598, %v3649
  %v3901 = vmul.f32 %v3594, %v3653
  %v3902 = vmul.f32 %v3598, %v3653
  %v3903 = vmul.f32 %v3594, %v3657
  %v3904 = vmul.f32 %v3598, %v3657
  %v3905 = vmul.f32 %v3594, %v3661
  %v3906 = vmul.f32 %v3598, %v3661
  %v3907 = vmul.f32 %v3594, %v3665
  %v3908 = vmul.f32 %v3598, %v3665
  %v3909 = vmul.f32 %v3594, %v3669
  %v3910 = vmul.f32 %v3598, %v3669
  %v3911 = vmul.f32 %v3594, %v3673
  %v3912 = vmul.f32 %v3598, %v3673
  %v3913 = vmul.f32 %v3594, %v3677
  %v3914 = vmul.f32 %v3598, %v3677
  %v3915 = vmul.f32 %v3594, %v3681
  %v3916 = vmul.f32 %v3598, %v3681
  %v3917 = vmul.f32 %v3594, %v3685
  %v3918 = vmul.f32 %v3598, %v3685
  %v3919 = vmul.f32 %v3594, %v3689
  %v3920 = vmul.f32 %v3598, %v3689
  %v3921 = vmul.f32 %v3594, %v3693
  %v3922 = vmul.f32 %v3598, %v3693
  %v3923 = vmul.f32 %v3594, %v3697
  %v3924 = vmul.f32 %v3598, %v3697
  %v3925 = vmul.f32 %v3594, %v3701
  %v3926 = vmul.f32 %v3598, %v3701
  %v3927 = vmul.f32 %v3594, %v3705
  %v3928 = vmul.f32 %v3598, %v3705
  %v3929 = vmul.f32 %v3594, %v3709
  %v3930 = vmul.f32 %v3598, %v3709
  %v3931 = vmul.f32 %v3594, %v3713
  %v3932 = vmul.f32 %v3598, %v3713
  %v3933 = vmul.f32 %v3594, %v3717
  %v3934 = vmul.f32 %v3598, %v3717
  %v3935 = vmul.f32 %v3594, %v3721
  %v3936 = vmul.f32 %v3598, %v3721
  %v3937 = vmul.f32 %v3594, %v3725
  %v3938 = vmul.f32 %v3598, %v3725
  %v3939 = vmul.f32 %v3594, %v3729
  %v3940 = vmul.f32 %v3598, %v3729
  %v3941 = vmul.f32 %v3594, %v3733
  %v3942 = vmul.f32 %v3598, %v3733
  %v3943 = vmul.f32 %v3594, %v3737
  %v3944 = vmul.f32 %v3598, %v3737
  %v3945 = vmul.f32 %v3594, %v3741
  %v3946 = vmul.f32 %v3598, %v3741
  %v3947 = vmul.f32 %v3594, %v3745
  %v3948 = vmul.f32 %v3598, %v3745
  %v3949 = vmul.f32 %v3594, %v3749
  %v3950 = vmul.f32 %v3598, %v3749
  %v3951 = vmul.f32 %v3594, %v3753
  %v3952 = vmul.f32 %v3598, %v3753
  %v3953 = vmul.f32 %v3594, %v3757
  %v3954 = vmul.f32 %v3598, %v3757
  %v3955 = vmul.f32 %v3594, %v3761
  %v3956 = vmul.f32 %v3598, %v3761
  %v3957 = vmul.f32 %v3594, %v3765
  %v3958 = vmul.f32 %v3598, %v3765
  %v3959 = vmul.f32 %v3602, %v3641
  %v3960 = vmul.f32 %v3606, %v3641
  %v3961 = vmul.f32 %v3602, %v3645
  %v3962 = vmul.f32 %v3606, %v3645
  %v3963 = vmul.f32 %v3602, %v3649
  %v3964 = vmul.f32 %v3606, %v3649
  %v3965 = vmul.f32 %v3602, %v3653
  %v3966 = vmul.f32 %v3606, %v3653
  %v3967 = vmul.f32 %v3602, %v3657
  %v3968 = vmul.f32 %v3606, %v3657
  %v3969 = vmul.f32 %v3602, %v3661
  %v3970 = vmul.f32 %v3606, %v3661
  %v3971 = vmul.f32 %v3602, %v3665
  %v3972 = vmul.f32 %v3606, %v3665
  %v3973 = vmul.f32 %v3602, %v3669
  %v3974 = vmul.f32 %v3606, %v3669
  %v3975 = vmul.f32 %v3602, %v3673
  %v3976 = vmul.f32 %v3606, %v3673
  %v3977 = vmul.f32 %v3602, %v3677
  %v3978 = vmul.f32 %v3606, %v3677
  %v3979 = vmul.f32 %v3602, %v3681
  %v3980 = vmul.f32 %v3606, %v3681
  %v3981 = vmul.f32 %v3602, %v3685
  %v3982 = vmul.f32 %v3606, %v3685
  %v3983 = vmul.f32 %v3602, %v3689
  %v3984 = vmul.f32 %v3606, %v3689
  %v3985 = vmul.f32 %v3602, %v3693
  %v3986 = vmul.f32 %v3606, %v3693
  %v3987 = vmul.f32 %v3602, %v3697
  %v3988 = vmul.f32 %v3606, %v3697
  %v3989 = vmul.f32 %v3602, %v3701
  %v3990 = vmul.f32 %v3606, %v3701
  %v3991 = vmul.f32 %v3602, %v3705
  %v3992 = vmul.f32 %v3606, %v3705
  %v3993 = vmul.f32 %v3602, %v3709
  %v3994 = vmul.f32 %v3606, %v3709
  %v3995 = vmul.f32 %v3602, %v3713
  %v3996 = vmul.f32 %v3606, %v3713
  %v3997 = vmul.f32 %v3602, %v3717
  %v3998 = vmul.f32 %v3606, %v3717
  %v3999 = vmul.f32 %v3602, %v3721
  %v4000 = vmul.f32 %v3606, %v3721
  %v4001 = vmul.f32 %v3602, %v3725
  %v4002 = vmul.f32 %v3606, %v3725
  %v4003 = vmul.f32 %v3602, %v3729
  %v4004 = vmul.f32 %v3606, %v3729
  %v4005 = vmul.f32 %v3602, %v3733
  %v4006 = vmul.f32 %v3606, %v3733
  %v4007 = vmul.f32 %v3602, %v3737
  %v4008 = vmul.f32 %v3606, %v3737
  %v4009 = vmul.f32 %v3602, %v3741
  %v4010 = vmul.f32 %v3606, %v3741
  %v4011 = vmul.f32 %v3602, %v3745
  %v4012 = vmul.f32 %v3606, %v3745
  %v4013 = vmul.f32 %v3602, %v3749
  %v4014 = vmul.f32 %v3606, %v3749
  %v4015 = vmul.f32 %v3602, %v3753
  %v4016 = vmul.f32 %v3606, %v3753
  %v4017 = vmul.f32 %v3602, %v3757
  %v4018 = vmul.f32 %v3606, %v3757
  %v4019 = vmul.f32 %v3602, %v3761
  %v4020 = vmul.f32 %v3606, %v3761
  %v4021 = vmul.f32 %v3602, %v3765
  %v4022 = vmul.f32 %v3606, %v3765
  %v4023 = vmul.f32 %v3610, %v3641
  %v4024 = vmul.f32 %v3614, %v3641
  %v4025 = vmul.f32 %v3610, %v3645
  %v4026 = vmul.f32 %v3614, %v3645
  %v4027 = vmul.f32 %v3610, %v3649
  %v4028 = vmul.f32 %v3614, %v3649
  %v4029 = vmul.f32 %v3610, %v3653
  %v4030 = vmul.f32 %v3614, %v3653
  %v4031 = vmul.f32 %v3610, %v3657
  %v4032 = vmul.f32 %v3614, %v3657
  %v4033 = vmul.f32 %v3610, %v3661
  %v4034 = vmul.f32 %v3614, %v3661
  %v4035 = vmul.f32 %v3610, %v3665
  %v4036 = vmul.f32 %v3614, %v3665
  %v4037 = vmul.f32 %v3610, %v3669
  %v4038 = vmul.f32 %v3614, %v3669
  %v4039 = vmul.f32 %v3610, %v3673
  %v4040 = vmul.f32 %v3614, %v3673
  %v4041 = vmul.f32 %v3610, %v3677
  %v4042 = vmul.f32 %v3614, %v3677
  %v4043 = vmul.f32 %v3610, %v3681
  %v4044 = vmul.f32 %v3614, %v3681
  %v4045 = vmul.f32 %v3610, %v3685
  %v4046 = vmul.f32 %v3614, %v3685
  %v4047 = vmul.f32 %v3610, %v3689
  %v4048 = vmul.f32 %v3614, %v3689
  %v4049 = vmul.f32 %v3610, %v3693
  %v4050 = vmul.f32 %v3614, %v3693
  %v4051 = vmul.f32 %v3610, %v3697
  %v4052 = vmul.f32 %v3614, %v3697
  %v4053 = vmul.f32 %v3610, %v3701
  %v4054 = vmul.f32 %v3614, %v3701
  %v4055 = vmul.f32 %v3610, %v3705
  %v4056 = vmul.f32 %v3614, %v3705
  %v4057 = vmul.f32 %v3610, %v3709
  %v4058 = vmul.f32 %v3614, %v3709
  %v4059 = vmul.f32 %v3610, %v3713
  %v4060 = vmul.f32 %v3614, %v3713
  %v4061 = vmul.f32 %v3610, %v3717
  %v4062 = vmul.f32 %v3614, %v3717
  %v4063 = vmul.f32 %v3610, %v3721
  %v4064 = vmul.f32 %v3614, %v3721
  %v4065 = vmul.f32 %v3610, %v3725
  %v4066 = vmul.f32 %v3614, %v3725
  %v4067 = vmul.f32 %v3610, %v3729
  %v4068 = vmul.f32 %v3614, %v3729
  %v4069 = vmul.f32 %v3610, %v3733
  %v4070 = vmul.f32 %v3614, %v3733
  %v4071 = vmul.f32 %v3610, %v3737
  %v4072 = vmul.f32 %v3614, %v3737
  %v4073 = vmul.f32 %v3610, %v3741
  %v4074 = vmul.f32 %v3614, %v3741
  %v4075 = vmul.f32 %v3610, %v3745
  %v4076 = vmul.f32 %v3614, %v3745
  %v4077 = vmul.f32 %v3610, %v3749
  %v4078 = vmul.f32 %v3614, %v3749
  %v4079 = vmul.f32 %v3610, %v3753
  %v4080 = vmul.f32 %v3614, %v3753
  %v4081 = vmul.f32 %v3610, %v3757
  %v4082 = vmul.f32 %v3614, %v3757
  %v4083 = vmul.f32 %v3610, %v3761
  %v4084 = vmul.f32 %v3614, %v3761
  %v4085 = vmul.f32 %v3610, %v3765
  %v4086 = vmul.f32 %v3614, %v3765
  %v4087 = vmul.f32 %v3618, %v3641
  %v4088 = vmul.f32 %v3622, %v3641
  %v4089 = vmul.f32 %v3618, %v3645
  %v4090 = vmul.f32 %v3622, %v3645
  %v4091 = vmul.f32 %v3618, %v3649
  %v4092 = vmul.f32 %v3622, %v3649
  %v4093 = vmul.f32 %v3618, %v3653
  %v4094 = vmul.f32 %v3622, %v3653
  %v4095 = vmul.f32 %v3618, %v3657
  %v4096 = vmul.f32 %v3622, %v3657
  %v4097 = vmul.f32 %v3618, %v3661
  %v4098 = vmul.f32 %v3622, %v3661
  %v4099 = vmul.f32 %v3618, %v3665
  %v4100 = vmul.f32 %v3622, %v3665
  %v4101 = vmul.f32 %v3618, %v3669
  %v4102 = vmul.f32 %v3622, %v3669
  %v4103 = vmul.f32 %v3618, %v3673
  %v4104 = vmul.f32 %v3622, %v3673
  %v4105 = vmul.f32 %v3618, %v3677
  %v4106 = vmul.f32 %v3622, %v3677
  %v4107 = vmul.f32 %v3618, %v3681
  %v4108 = vmul.f32 %v3622, %v3681
  %v4109 = vmul.f32 %v3618, %v3685
  %v4110 = vmul.f32 %v3622, %v3685
  %v4111 = vmul.f32 %v3618, %v3689
  %v4112 = vmul.f32 %v3622, %v3689
  %v4113 = vmul.f32 %v3618, %v3693
  %v4114 = vmul.f32 %v3622, %v3693
  %v4115 = vmul.f32 %v3618, %v3697
  %v4116 = vmul.f32 %v3622, %v3697
  %v4117 = vmul.f32 %v3618, %v3701
  %v4118 = vmul.f32 %v3622, %v3701
  %v4119 = vmul.f32 %v3618, %v3705
  %v4120 = vmul.f32 %v3622, %v3705
  %v4121 = vmul.f32 %v3618, %v3709
  %v4122 = vmul.f32 %v3622, %v3709
  %v4123 = vmul.f32 %v3618, %v3713
  %v4124 = vmul.f32 %v3622, %v3713
  %v4125 = vmul.f32 %v3618, %v3717
  %v4126 = vmul.f32 %v3622, %v3717
  %v4127 = vmul.f32 %v3618, %v3721
  %v4128 = vmul.f32 %v3622, %v3721
  %v4129 = vmul.f32 %v3618, %v3725
  %v4130 = vmul.f32 %v3622, %v3725
  %v4131 = vmul.f32 %v3618, %v3729
  %v4132 = vmul.f32 %v3622, %v3729
  %v4133 = vmul.f32 %v3618, %v3733
  %v4134 = vmul.f32 %v3622, %v3733
  %v4135 = vmul.f32 %v3618, %v3737
  %v4136 = vmul.f32 %v3622, %v3737
  %v4137 = vmul.f32 %v3618, %v3741
  %v4138 = vmul.f32 %v3622, %v3741
  %v4139 = vmul.f32 %v3618, %v3745
  %v4140 = vmul.f32 %v3622, %v3745
  %v4141 = vmul.f32 %v3618, %v3749
  %v4142 = vmul.f32 %v3622, %v3749
  %v4143 = vmul.f32 %v3618, %v3753
  %v4144 = vmul.f32 %v3622, %v3753
  %v4145 = vmul.f32 %v3618, %v3757
  %v4146 = vmul.f32 %v3622, %v3757
  %v4147 = vmul.f32 %v3618, %v3761
  %v4148 = vmul.f32 %v3622, %v3761
  %v4149 = vmul.f32 %v3618, %v3765
  %v4150 = vmul.f32 %v3622, %v3765
  %v4151 = vmul.f32 %v3626, %v3641
  %v4152 = vmul.f32 %v3630, %v3641
  %v4153 = vmul.f32 %v3626, %v3645
  %v4154 = vmul.f32 %v3630, %v3645
  %v4155 = vmul.f32 %v3626, %v3649
  %v4156 = vmul.f32 %v3630, %v3649
  %v4157 = vmul.f32 %v3626, %v3653
  %v4158 = vmul.f32 %v3630, %v3653
  %v4159 = vmul.f32 %v3626, %v3657
  %v4160 = vmul.f32 %v3630, %v3657
  %v4161 = vmul.f32 %v3626, %v3661
  %v4162 = vmul.f32 %v3630, %v3661
  %v4163 = vmul.f32 %v3626, %v3665
  %v4164 = vmul.f32 %v3630, %v3665
  %v4165 = vmul.f32 %v3626, %v3669
  %v4166 = vmul.f32 %v3630, %v3669
  %v4167 = vmul.f32 %v3626, %v3673
  %v4168 = vmul.f32 %v3630, %v3673
  %v4169 = vmul.f32 %v3626, %v3677
  %v4170 = vmul.f32 %v3630, %v3677
  %v4171 = vmul.f32 %v3626, %v3681
  %v4172 = vmul.f32 %v3630, %v3681
  %v4173 = vmul.f32 %v3626, %v3685
  %v4174 = vmul.f32 %v3630, %v3685
  %v4175 = vmul.f32 %v3626, %v3689
  %v4176 = vmul.f32 %v3630, %v3689
  %v4177 = vmul.f32 %v3626, %v3693
  %v4178 = vmul.f32 %v3630, %v3693
  %v4179 = vmul.f32 %v3626, %v3697
  %v4180 = vmul.f32 %v3630, %v3697
  %v4181 = vmul.f32 %v3626, %v3701
  %v4182 = vmul.f32 %v3630, %v3701
  %v4183 = vmul.f32 %v3626, %v3705
  %v4184 = vmul.f32 %v3630, %v3705
  %v4185 = vmul.f32 %v3626, %v3709
  %v4186 = vmul.f32 %v3630, %v3709
  %v4187 = vmul.f32 %v3626, %v3713
  %v4188 = vmul.f32 %v3630, %v3713
  %v4189 = vmul.f32 %v3626, %v3717
  %v4190 = vmul.f32 %v3630, %v3717
  %v4191 = vmul.f32 %v3626, %v3721
  %v4192 = vmul.f32 %v3630, %v3721
  %v4193 = vmul.f32 %v3626, %v3725
  %v4194 = vmul.f32 %v3630, %v3725
  %v4195 = vmul.f32 %v3626, %v3729
  %v4196 = vmul.f32 %v3630, %v3729
  %v4197 = vmul.f32 %v3626, %v3733
  %v4198 = vmul.f32 %v3630, %v3733
  %v4199 = vmul.f32 %v3626, %v3737
  %v4200 = vmul.f32 %v3630, %v3737
  %v4201 = vmul.f32 %v3626, %v3741
  %v4202 = vmul.f32 %v3630, %v3741
  %v4203 = vmul.f32 %v3626, %v3745
  %v4204 = vmul.f32 %v3630, %v3745
  %v4205 = vmul.f32 %v3626, %v3749
  %v4206 = vmul.f32 %v3630, %v3749
  %v4207 = vmul.f32 %v3626, %v3753
  %v4208 = vmul.f32 %v3630, %v3753
  %v4209 = vmul.f32 %v3626, %v3757
  %v4210 = vmul.f32 %v3630, %v3757
  %v4211 = vmul.f32 %v3626, %v3761
  %v4212 = vmul.f32 %v3630, %v3761
  %v4213 = vmul.f32 %v3626, %v3765
  %v4214 = vmul.f32 %v3630, %v3765
  %v4215 = vmul.f32 %v3634, %v3641
  %v4216 = vmul.f32 %v3638, %v3641
  %v4217 = vmul.f32 %v3634, %v3645
  %v4218 = vmul.f32 %v3638, %v3645
  %v4219 = vmul.f32 %v3634, %v3649
  %v4220 = vmul.f32 %v3638, %v3649
  %v4221 = vmul.f32 %v3634, %v3653
  %v4222 = vmul.f32 %v3638, %v3653
  %v4223 = vmul.f32 %v3634, %v3657
  %v4224 = vmul.f32 %v3638, %v3657
  %v4225 = vmul.f32 %v3634, %v3661
  %v4226 = vmul.f32 %v3638, %v3661
  %v4227 = vmul.f32 %v3634, %v3665
  %v4228 = vmul.f32 %v3638, %v3665
  %v4229 = vmul.f32 %v3634, %v3669
  %v4230 = vmul.f32 %v3638, %v3669
  %v4231 = vmul.f32 %v3634, %v3673
  %v4232 = vmul.f32 %v3638, %v3673
  %v4233 = vmul.f32 %v3634, %v3677
  %v4234 = vmul.f32 %v3638, %v3677
  %v4235 = vmul.f32 %v3634, %v3681
  %v4236 = vmul.f32 %v3638, %v3681
  %v4237 = vmul.f32 %v3634, %v3685
  %v4238 = vmul.f32 %v3638, %v3685
  %v4239 = vmul.f32 %v3634, %v3689
  %v4240 = vmul.f32 %v3638, %v3689
  %v4241 = vmul.f32 %v3634, %v3693
  %v4242 = vmul.f32 %v3638, %v3693
  %v4243 = vmul.f32 %v3634, %v3697
  %v4244 = vmul.f32 %v3638, %v3697
  %v4245 = vmul.f32 %v3634, %v3701
  %v4246 = vmul.f32 %v3638, %v3701
  %v4247 = vmul.f32 %v3634, %v3705
  %v4248 = vmul.f32 %v3638, %v3705
  %v4249 = vmul.f32 %v3634, %v3709
  %v4250 = vmul.f32 %v3638, %v3709
  %v4251 = vmul.f32 %v3634, %v3713
  %v4252 = vmul.f32 %v3638, %v3713
  %v4253 = vmul.f32 %v3634, %v3717
  %v4254 = vmul.f32 %v3638, %v3717
  %v4255 = vmul.f32 %v3634, %v3721
  %v4256 = vmul.f32 %v3638, %v3721
  %v4257 = vmul.f32 %v3634, %v3725
  %v4258 = vmul.f32 %v3638, %v3725
  %v4259 = vmul.f32 %v3634, %v3729
  %v4260 = vmul.f32 %v3638, %v3729
  %v4261 = vmul.f32 %v3634, %v3733
  %v4262 = vmul.f32 %v3638, %v3733
  %v4263 = vmul.f32 %v3634, %v3737
  %v4264 = vmul.f32 %v3638, %v3737
  %v4265 = vmul.f32 %v3634, %v3741
  %v4266 = vmul.f32 %v3638, %v3741
  %v4267 = vmul.f32 %v3634, %v3745
  %v4268 = vmul.f32 %v3638, %v3745
  %v4269 = vmul.f32 %v3634, %v3749
  %v4270 = vmul.f32 %v3638, %v3749
  %v4271 = vmul.f32 %v3634, %v3753
  %v4272 = vmul.f32 %v3638, %v3753
  %v4273 = vmul.f32 %v3634, %v3757
  %v4274 = vmul.f32 %v3638, %v3757
  %v4275 = vmul.f32 %v3634, %v3761
  %v4276 = vmul.f32 %v3638, %v3761
  %v4277 = vmul.f32 %v3634, %v3765
  %v4278 = vmul.f32 %v3638, %v3765
  %v4279 = vadd.f32 %v2983, %v3767
  %v4280 = vadd.f32 %v2984, %v3768
  %v4281 = vadd.f32 %v2985, %v3769
  %v4282 = vadd.f32 %v2986, %v3770
  %v4283 = vadd.f32 %v2987, %v3771
  %v4284 = vadd.f32 %v2988, %v3772
  %v4285 = vadd.f32 %v2989, %v3773
  %v4286 = vadd.f32 %v2990, %v3774
  %v4287 = vadd.f32 %v2991, %v3775
  %v4288 = vadd.f32 %v2992, %v3776
  %v4289 = vadd.f32 %v2993, %v3777
  %v4290 = vadd.f32 %v2994, %v3778
  %v4291 = vadd.f32 %v2995, %v3779
  %v4292 = vadd.f32 %v2996, %v3780
  %v4293 = vadd.f32 %v2997, %v3781
  %v4294 = vadd.f32 %v2998, %v3782
  %v4295 = vadd.f32 %v2999, %v3783
  %v4296 = vadd.f32 %v3000, %v3784
  %v4297 = vadd.f32 %v3001, %v3785
  %v4298 = vadd.f32 %v3002, %v3786
  %v4299 = vadd.f32 %v3003, %v3787
  %v4300 = vadd.f32 %v3004, %v3788
  %v4301 = vadd.f32 %v3005, %v3789
  %v4302 = vadd.f32 %v3006, %v3790
  %v4303 = vadd.f32 %v3007, %v3791
  %v4304 = vadd.f32 %v3008, %v3792
  %v4305 = vadd.f32 %v3009, %v3793
  %v4306 = vadd.f32 %v3010, %v3794
  %v4307 = vadd.f32 %v3011, %v3795
  %v4308 = vadd.f32 %v3012, %v3796
  %v4309 = vadd.f32 %v3013, %v3797
  %v4310 = vadd.f32 %v3014, %v3798
  %v4311 = vadd.f32 %v3015, %v3799
  %v4312 = vadd.f32 %v3016, %v3800
  %v4313 = vadd.f32 %v3017, %v3801
  %v4314 = vadd.f32 %v3018, %v3802
  %v4315 = vadd.f32 %v3019, %v3803
  %v4316 = vadd.f32 %v3020, %v3804
  %v4317 = vadd.f32 %v3021, %v3805
  %v4318 = vadd.f32 %v3022, %v3806
  %v4319 = vadd.f32 %v3023, %v3807
  %v4320 = vadd.f32 %v3024, %v3808
  %v4321 = vadd.f32 %v3025, %v3809
  %v4322 = vadd.f32 %v3026, %v3810
  %v4323 = vadd.f32 %v3027, %v3811
  %v4324 = vadd.f32 %v3028, %v3812
  %v4325 = vadd.f32 %v3029, %v3813
  %v4326 = vadd.f32 %v3030, %v3814
  %v4327 = vadd.f32 %v3031, %v3815
  %v4328 = vadd.f32 %v3032, %v3816
  %v4329 = vadd.f32 %v3033, %v3817
  %v4330 = vadd.f32 %v3034, %v3818
  %v4331 = vadd.f32 %v3035, %v3819
  %v4332 = vadd.f32 %v3036, %v3820
  %v4333 = vadd.f32 %v3037, %v3821
  %v4334 = vadd.f32 %v3038, %v3822
  %v4335 = vadd.f32 %v3039, %v3823
  %v4336 = vadd.f32 %v3040, %v3824
  %v4337 = vadd.f32 %v3041, %v3825
  %v4338 = vadd.f32 %v3042, %v3826
  %v4339 = vadd.f32 %v3043, %v3827
  %v4340 = vadd.f32 %v3044, %v3828
  %v4341 = vadd.f32 %v3045, %v3829
  %v4342 = vadd.f32 %v3046, %v3830
  %v4343 = vadd.f32 %v3047, %v3831
  %v4344 = vadd.f32 %v3048, %v3832
  %v4345 = vadd.f32 %v3049, %v3833
  %v4346 = vadd.f32 %v3050, %v3834
  %v4347 = vadd.f32 %v3051, %v3835
  %v4348 = vadd.f32 %v3052, %v3836
  %v4349 = vadd.f32 %v3053, %v3837
  %v4350 = vadd.f32 %v3054, %v3838
  %v4351 = vadd.f32 %v3055, %v3839
  %v4352 = vadd.f32 %v3056, %v3840
  %v4353 = vadd.f32 %v3057, %v3841
  %v4354 = vadd.f32 %v3058, %v3842
  %v4355 = vadd.f32 %v3059, %v3843
  %v4356 = vadd.f32 %v3060, %v3844
  %v4357 = vadd.f32 %v3061, %v3845
  %v4358 = vadd.f32 %v3062, %v3846
  %v4359 = vadd.f32 %v3063, %v3847
  %v4360 = vadd.f32 %v3064, %v3848
  %v4361 = vadd.f32 %v3065, %v3849
  %v4362 = vadd.f32 %v3066, %v3850
  %v4363 = vadd.f32 %v3067, %v3851
  %v4364 = vadd.f32 %v3068, %v3852
  %v4365 = vadd.f32 %v3069, %v3853
  %v4366 = vadd.f32 %v3070, %v3854
  %v4367 = vadd.f32 %v3071, %v3855
  %v4368 = vadd.f32 %v3072, %v3856
  %v4369 = vadd.f32 %v3073, %v3857
  %v4370 = vadd.f32 %v3074, %v3858
  %v4371 = vadd.f32 %v3075, %v3859
  %v4372 = vadd.f32 %v3076, %v3860
  %v4373 = vadd.f32 %v3077, %v3861
  %v4374 = vadd.f32 %v3078, %v3862
  %v4375 = vadd.f32 %v3079, %v3863
  %v4376 = vadd.f32 %v3080, %v3864
  %v4377 = vadd.f32 %v3081, %v3865
  %v4378 = vadd.f32 %v3082, %v3866
  %v4379 = vadd.f32 %v3083, %v3867
  %v4380 = vadd.f32 %v3084, %v3868
  %v4381 = vadd.f32 %v3085, %v3869
  %v4382 = vadd.f32 %v3086, %v3870
  %v4383 = vadd.f32 %v3087, %v3871
  %v4384 = vadd.f32 %v3088, %v3872
  %v4385 = vadd.f32 %v3089, %v3873
  %v4386 = vadd.f32 %v3090, %v3874
  %v4387 = vadd.f32 %v3091, %v3875
  %v4388 = vadd.f32 %v3092, %v3876
  %v4389 = vadd.f32 %v3093, %v3877
  %v4390 = vadd.f32 %v3094, %v3878
  %v4391 = vadd.f32 %v3095, %v3879
  %v4392 = vadd.f32 %v3096, %v3880
  %v4393 = vadd.f32 %v3097, %v3881
  %v4394 = vadd.f32 %v3098, %v3882
  %v4395 = vadd.f32 %v3099, %v3883
  %v4396 = vadd.f32 %v3100, %v3884
  %v4397 = vadd.f32 %v3101, %v3885
  %v4398 = vadd.f32 %v3102, %v3886
  %v4399 = vadd.f32 %v3103, %v3887
  %v4400 = vadd.f32 %v3104, %v3888
  %v4401 = vadd.f32 %v3105, %v3889
  %v4402 = vadd.f32 %v3106, %v3890
  %v4403 = vadd.f32 %v3107, %v3891
  %v4404 = vadd.f32 %v3108, %v3892
  %v4405 = vadd.f32 %v3109, %v3893
  %v4406 = vadd.f32 %v3110, %v3894
  %v4407 = vadd.f32 %v3111, %v3895
  %v4408 = vadd.f32 %v3112, %v3896
  %v4409 = vadd.f32 %v3113, %v3897
  %v4410 = vadd.f32 %v3114, %v3898
  %v4411 = vadd.f32 %v3115, %v3899
  %v4412 = vadd.f32 %v3116, %v3900
  %v4413 = vadd.f32 %v3117, %v3901
  %v4414 = vadd.f32 %v3118, %v3902
  %v4415 = vadd.f32 %v3119, %v3903
  %v4416 = vadd.f32 %v3120, %v3904
  %v4417 = vadd.f32 %v3121, %v3905
  %v4418 = vadd.f32 %v3122, %v3906
  %v4419 = vadd.f32 %v3123, %v3907
  %v4420 = vadd.f32 %v3124, %v3908
  %v4421 = vadd.f32 %v3125, %v3909
  %v4422 = vadd.f32 %v3126, %v3910
  %v4423 = vadd.f32 %v3127, %v3911
  %v4424 = vadd.f32 %v3128, %v3912
  %v4425 = vadd.f32 %v3129, %v3913
  %v4426 = vadd.f32 %v3130, %v3914
  %v4427 = vadd.f32 %v3131, %v3915
  %v4428 = vadd.f32 %v3132, %v3916
  %v4429 = vadd.f32 %v3133, %v3917
  %v4430 = vadd.f32 %v3134, %v3918
  %v4431 = vadd.f32 %v3135, %v3919
  %v4432 = vadd.f32 %v3136, %v3920
  %v4433 = vadd.f32 %v3137, %v3921
  %v4434 = vadd.f32 %v3138, %v3922
  %v4435 = vadd.f32 %v3139, %v3923
  %v4436 = vadd.f32 %v3140, %v3924
  %v4437 = vadd.f32 %v3141, %v3925
  %v4438 = vadd.f32 %v3142, %v3926
  %v4439 = vadd.f32 %v3143, %v3927
  %v4440 = vadd.f32 %v3144, %v3928
  %v4441 = vadd.f32 %v3145, %v3929
  %v4442 = vadd.f32 %v3146, %v3930
  %v4443 = vadd.f32 %v3147, %v3931
  %v4444 = vadd.f32 %v3148, %v3932
  %v4445 = vadd.f32 %v3149, %v3933
  %v4446 = vadd.f32 %v3150, %v3934
  %v4447 = vadd.f32 %v3151, %v3935
  %v4448 = vadd.f32 %v3152, %v3936
  %v4449 = vadd.f32 %v3153, %v3937
  %v4450 = vadd.f32 %v3154, %v3938
  %v4451 = vadd.f32 %v3155, %v3939
  %v4452 = vadd.f32 %v3156, %v3940
  %v4453 = vadd.f32 %v3157, %v3941
  %v4454 = vadd.f32 %v3158, %v3942
  %v4455 = vadd.f32 %v3159, %v3943
  %v4456 = vadd.f32 %v3160, %v3944
  %v4457 = vadd.f32 %v3161, %v3945
  %v4458 = vadd.f32 %v3162, %v3946
  %v4459 = vadd.f32 %v3163, %v3947
  %v4460 = vadd.f32 %v3164, %v3948
  %v4461 = vadd.f32 %v3165, %v3949
  %v4462 = vadd.f32 %v3166, %v3950
  %v4463 = vadd.f32 %v3167, %v3951
  %v4464 = vadd.f32 %v3168, %v3952
  %v4465 = vadd.f32 %v3169, %v3953
  %v4466 = vadd.f32 %v3170, %v3954
  %v4467 = vadd.f32 %v3171, %v3955
  %v4468 = vadd.f32 %v3172, %v3956
  %v4469 = vadd.f32 %v3173, %v3957
  %v4470 = vadd.f32 %v3174, %v3958
  %v4471 = vadd.f32 %v3175, %v3959
  %v4472 = vadd.f32 %v3176, %v3960
  %v4473 = vadd.f32 %v3177, %v3961
  %v4474 = vadd.f32 %v3178, %v3962
  %v4475 = vadd.f32 %v3179, %v3963
  %v4476 = vadd.f32 %v3180, %v3964
  %v4477 = vadd.f32 %v3181, %v3965
  %v4478 = vadd.f32 %v3182, %v3966
  %v4479 = vadd.f32 %v3183, %v3967
  %v4480 = vadd.f32 %v3184, %v3968
  %v4481 = vadd.f32 %v3185, %v3969
  %v4482 = vadd.f32 %v3186, %v3970
  %v4483 = vadd.f32 %v3187, %v3971
  %v4484 = vadd.f32 %v3188, %v3972
  %v4485 = vadd.f32 %v3189, %v3973
  %v4486 = vadd.f32 %v3190, %v3974
  %v4487 = vadd.f32 %v3191, %v3975
  %v4488 = vadd.f32 %v3192, %v3976
  %v4489 = vadd.f32 %v3193, %v3977
  %v4490 = vadd.f32 %v3194, %v3978
  %v4491 = vadd.f32 %v3195, %v3979
  %v4492 = vadd.f32 %v3196, %v3980
  %v4493 = vadd.f32 %v3197, %v3981
  %v4494 = vadd.f32 %v3198, %v3982
  %v4495 = vadd.f32 %v3199, %v3983
  %v4496 = vadd.f32 %v3200, %v3984
  %v4497 = vadd.f32 %v3201, %v3985
  %v4498 = vadd.f32 %v3202, %v3986
  %v4499 = vadd.f32 %v3203, %v3987
  %v4500 = vadd.f32 %v3204, %v3988
  %v4501 = vadd.f32 %v3205, %v3989
  %v4502 = vadd.f32 %v3206, %v3990
  %v4503 = vadd.f32 %v3207, %v3991
  %v4504 = vadd.f32 %v3208, %v3992
  %v4505 = vadd.f32 %v3209, %v3993
  %v4506 = vadd.f32 %v3210, %v3994
  %v4507 = vadd.f32 %v3211, %v3995
  %v4508 = vadd.f32 %v3212, %v3996
  %v4509 = vadd.f32 %v3213, %v3997
  %v4510 = vadd.f32 %v3214, %v3998
  %v4511 = vadd.f32 %v3215, %v3999
  %v4512 = vadd.f32 %v3216, %v4000
  %v4513 = vadd.f32 %v3217, %v4001
  %v4514 = vadd.f32 %v3218, %v4002
  %v4515 = vadd.f32 %v3219, %v4003
  %v4516 = vadd.f32 %v3220, %v4004
  %v4517 = vadd.f32 %v3221, %v4005
  %v4518 = vadd.f32 %v3222, %v4006
  %v4519 = vadd.f32 %v3223, %v4007
  %v4520 = vadd.f32 %v3224, %v4008
  %v4521 = vadd.f32 %v3225, %v4009
  %v4522 = vadd.f32 %v3226, %v4010
  %v4523 = vadd.f32 %v3227, %v4011
  %v4524 = vadd.f32 %v3228, %v4012
  %v4525 = vadd.f32 %v3229, %v4013
  %v4526 = vadd.f32 %v3230, %v4014
  %v4527 = vadd.f32 %v3231, %v4015
  %v4528 = vadd.f32 %v3232, %v4016
  %v4529 = vadd.f32 %v3233, %v4017
  %v4530 = vadd.f32 %v3234, %v4018
  %v4531 = vadd.f32 %v3235, %v4019
  %v4532 = vadd.f32 %v3236, %v4020
  %v4533 = vadd.f32 %v3237, %v4021
  %v4534 = vadd.f32 %v3238, %v4022
  %v4535 = vadd.f32 %v3239, %v4023
  %v4536 = vadd.f32 %v3240, %v4024
  %v4537 = vadd.f32 %v3241, %v4025
  %v4538 = vadd.f32 %v3242, %v4026
  %v4539 = vadd.f32 %v3243, %v4027
  %v4540 = vadd.f32 %v3244, %v4028
  %v4541 = vadd.f32 %v3245, %v4029
  %v4542 = vadd.f32 %v3246, %v4030
  %v4543 = vadd.f32 %v3247, %v4031
  %v4544 = vadd.f32 %v3248, %v4032
  %v4545 = vadd.f32 %v3249, %v4033
  %v4546 = vadd.f32 %v3250, %v4034
  %v4547 = vadd.f32 %v3251, %v4035
  %v4548 = vadd.f32 %v3252, %v4036
  %v4549 = vadd.f32 %v3253, %v4037
  %v4550 = vadd.f32 %v3254, %v4038
  %v4551 = vadd.f32 %v3255, %v4039
  %v4552 = vadd.f32 %v3256, %v4040
  %v4553 = vadd.f32 %v3257, %v4041
  %v4554 = vadd.f32 %v3258, %v4042
  %v4555 = vadd.f32 %v3259, %v4043
  %v4556 = vadd.f32 %v3260, %v4044
  %v4557 = vadd.f32 %v3261, %v4045
  %v4558 = vadd.f32 %v3262, %v4046
  %v4559 = vadd.f32 %v3263, %v4047
  %v4560 = vadd.f32 %v3264, %v4048
  %v4561 = vadd.f32 %v3265, %v4049
  %v4562 = vadd.f32 %v3266, %v4050
  %v4563 = vadd.f32 %v3267, %v4051
  %v4564 = vadd.f32 %v3268, %v4052
  %v4565 = vadd.f32 %v3269, %v4053
  %v4566 = vadd.f32 %v3270, %v4054
  %v4567 = vadd.f32 %v3271, %v4055
  %v4568 = vadd.f32 %v3272, %v4056
  %v4569 = vadd.f32 %v3273, %v4057
  %v4570 = vadd.f32 %v3274, %v4058
  %v4571 = vadd.f32 %v3275, %v4059
  %v4572 = vadd.f32 %v3276, %v4060
  %v4573 = vadd.f32 %v3277, %v4061
  %v4574 = vadd.f32 %v3278, %v4062
  %v4575 = vadd.f32 %v3279, %v4063
  %v4576 = vadd.f32 %v3280, %v4064
  %v4577 = vadd.f32 %v3281, %v4065
  %v4578 = vadd.f32 %v3282, %v4066
  %v4579 = vadd.f32 %v3283, %v4067
  %v4580 = vadd.f32 %v3284, %v4068
  %v4581 = vadd.f32 %v3285, %v4069
  %v4582 = vadd.f32 %v3286, %v4070
  %v4583 = vadd.f32 %v3287, %v4071
  %v4584 = vadd.f32 %v3288, %v4072
  %v4585 = vadd.f32 %v3289, %v4073
  %v4586 = vadd.f32 %v3290, %v4074
  %v4587 = vadd.f32 %v3291, %v4075
  %v4588 = vadd.f32 %v3292, %v4076
  %v4589 = vadd.f32 %v3293, %v4077
  %v4590 = vadd.f32 %v3294, %v4078
  %v4591 = vadd.f32 %v3295, %v4079
  %v4592 = vadd.f32 %v3296, %v4080
  %v4593 = vadd.f32 %v3297, %v4081
  %v4594 = vadd.f32 %v3298, %v4082
  %v4595 = vadd.f32 %v3299, %v4083
  %v4596 = vadd.f32 %v3300, %v4084
  %v4597 = vadd.f32 %v3301, %v4085
  %v4598 = vadd.f32 %v3302, %v4086
  %v4599 = vadd.f32 %v3303, %v4087
  %v4600 = vadd.f32 %v3304, %v4088
  %v4601 = vadd.f32 %v3305, %v4089
  %v4602 = vadd.f32 %v3306, %v4090
  %v4603 = vadd.f32 %v3307, %v4091
  %v4604 = vadd.f32 %v3308, %v4092
  %v4605 = vadd.f32 %v3309, %v4093
  %v4606 = vadd.f32 %v3310, %v4094
  %v4607 = vadd.f32 %v3311, %v4095
  %v4608 = vadd.f32 %v3312, %v4096
  %v4609 = vadd.f32 %v3313, %v4097
  %v4610 = vadd.f32 %v3314, %v4098
  %v4611 = vadd.f32 %v3315, %v4099
  %v4612 = vadd.f32 %v3316, %v4100
  %v4613 = vadd.f32 %v3317, %v4101
  %v4614 = vadd.f32 %v3318, %v4102
  %v4615 = vadd.f32 %v3319, %v4103
  %v4616 = vadd.f32 %v3320, %v4104
  %v4617 = vadd.f32 %v3321, %v4105
  %v4618 = vadd.f32 %v3322, %v4106
  %v4619 = vadd.f32 %v3323, %v4107
  %v4620 = vadd.f32 %v3324, %v4108
  %v4621 = vadd.f32 %v3325, %v4109
  %v4622 = vadd.f32 %v3326, %v4110
  %v4623 = vadd.f32 %v3327, %v4111
  %v4624 = vadd.f32 %v3328, %v4112
  %v4625 = vadd.f32 %v3329, %v4113
  %v4626 = vadd.f32 %v3330, %v4114
  %v4627 = vadd.f32 %v3331, %v4115
  %v4628 = vadd.f32 %v3332, %v4116
  %v4629 = vadd.f32 %v3333, %v4117
  %v4630 = vadd.f32 %v3334, %v4118
  %v4631 = vadd.f32 %v3335, %v4119
  %v4632 = vadd.f32 %v3336, %v4120
  %v4633 = vadd.f32 %v3337, %v4121
  %v4634 = vadd.f32 %v3338, %v4122
  %v4635 = vadd.f32 %v3339, %v4123
  %v4636 = vadd.f32 %v3340, %v4124
  %v4637 = vadd.f32 %v3341, %v4125
  %v4638 = vadd.f32 %v3342, %v4126
  %v4639 = vadd.f32 %v3343, %v4127
  %v4640 = vadd.f32 %v3344, %v4128
  %v4641 = vadd.f32 %v3345, %v4129
  %v4642 = vadd.f32 %v3346, %v4130
  %v4643 = vadd.f32 %v3347, %v4131
  %v4644 = vadd.f32 %v3348, %v4132
  %v4645 = vadd.f32 %v3349, %v4133
  %v4646 = vadd.f32 %v3350, %v4134
  %v4647 = vadd.f32 %v3351, %v4135
  %v4648 = vadd.f32 %v3352, %v4136
  %v4649 = vadd.f32 %v3353, %v4137
  %v4650 = vadd.f32 %v3354, %v4138
  %v4651 = vadd.f32 %v3355, %v4139
  %v4652 = vadd.f32 %v3356, %v4140
  %v4653 = vadd.f32 %v3357, %v4141
  %v4654 = vadd.f32 %v3358, %v4142
  %v4655 = vadd.f32 %v3359, %v4143
  %v4656 = vadd.f32 %v3360, %v4144
  %v4657 = vadd.f32 %v3361, %v4145
  %v4658 = vadd.f32 %v3362, %v4146
  %v4659 = vadd.f32 %v3363, %v4147
  %v4660 = vadd.f32 %v3364, %v4148
  %v4661 = vadd.f32 %v3365, %v4149
  %v4662 = vadd.f32 %v3366, %v4150
  %v4663 = vadd.f32 %v3367, %v4151
  %v4664 = vadd.f32 %v3368, %v4152
  %v4665 = vadd.f32 %v3369, %v4153
  %v4666 = vadd.f32 %v3370, %v4154
  %v4667 = vadd.f32 %v3371, %v4155
  %v4668 = vadd.f32 %v3372, %v4156
  %v4669 = vadd.f32 %v3373, %v4157
  %v4670 = vadd.f32 %v3374, %v4158
  %v4671 = vadd.f32 %v3375, %v4159
  %v4672 = vadd.f32 %v3376, %v4160
  %v4673 = vadd.f32 %v3377, %v4161
  %v4674 = vadd.f32 %v3378, %v4162
  %v4675 = vadd.f32 %v3379, %v4163
  %v4676 = vadd.f32 %v3380, %v4164
  %v4677 = vadd.f32 %v3381, %v4165
  %v4678 = vadd.f32 %v3382, %v4166
  %v4679 = vadd.f32 %v3383, %v4167
  %v4680 = vadd.f32 %v3384, %v4168
  %v4681 = vadd.f32 %v3385, %v4169
  %v4682 = vadd.f32 %v3386, %v4170
  %v4683 = vadd.f32 %v3387, %v4171
  %v4684 = vadd.f32 %v3388, %v4172
  %v4685 = vadd.f32 %v3389, %v4173
  %v4686 = vadd.f32 %v3390, %v4174
  %v4687 = vadd.f32 %v3391, %v4175
  %v4688 = vadd.f32 %v3392, %v4176
  %v4689 = vadd.f32 %v3393, %v4177
  %v4690 = vadd.f32 %v3394, %v4178
  %v4691 = vadd.f32 %v3395, %v4179
  %v4692 = vadd.f32 %v3396, %v4180
  %v4693 = vadd.f32 %v3397, %v4181
  %v4694 = vadd.f32 %v3398, %v4182
  %v4695 = vadd.f32 %v3399, %v4183
  %v4696 = vadd.f32 %v3400, %v4184
  %v4697 = vadd.f32 %v3401, %v4185
  %v4698 = vadd.f32 %v3402, %v4186
  %v4699 = vadd.f32 %v3403, %v4187
  %v4700 = vadd.f32 %v3404, %v4188
  %v4701 = vadd.f32 %v3405, %v4189
  %v4702 = vadd.f32 %v3406, %v4190
  %v4703 = vadd.f32 %v3407, %v4191
  %v4704 = vadd.f32 %v3408, %v4192
  %v4705 = vadd.f32 %v3409, %v4193
  %v4706 = vadd.f32 %v3410, %v4194
  %v4707 = vadd.f32 %v3411, %v4195
  %v4708 = vadd.f32 %v3412, %v4196
  %v4709 = vadd.f32 %v3413, %v4197
  %v4710 = vadd.f32 %v3414, %v4198
  %v4711 = vadd.f32 %v3415, %v4199
  %v4712 = vadd.f32 %v3416, %v4200
  %v4713 = vadd.f32 %v3417, %v4201
  %v4714 = vadd.f32 %v3418, %v4202
  %v4715 = vadd.f32 %v3419, %v4203
  %v4716 = vadd.f32 %v3420, %v4204
  %v4717 = vadd.f32 %v3421, %v4205
  %v4718 = vadd.f32 %v3422, %v4206
  %v4719 = vadd.f32 %v3423, %v4207
  %v4720 = vadd.f32 %v3424, %v4208
  %v4721 = vadd.f32 %v3425, %v4209
  %v4722 = vadd.f32 %v3426, %v4210
  %v4723 = vadd.f32 %v3427, %v4211
  %v4724 = vadd.f32 %v3428, %v4212
  %v4725 = vadd.f32 %v3429, %v4213
  %v4726 = vadd.f32 %v3430, %v4214
  %v4727 = vadd.f32 %v3431, %v4215
  %v4728 = vadd.f32 %v3432, %v4216
  %v4729 = vadd.f32 %v3433, %v4217
  %v4730 = vadd.f32 %v3434, %v4218
  %v4731 = vadd.f32 %v3435, %v4219
  %v4732 = vadd.f32 %v3436, %v4220
  %v4733 = vadd.f32 %v3437, %v4221
  %v4734 = vadd.f32 %v3438, %v4222
  %v4735 = vadd.f32 %v3439, %v4223
  %v4736 = vadd.f32 %v3440, %v4224
  %v4737 = vadd.f32 %v3441, %v4225
  %v4738 = vadd.f32 %v3442, %v4226
  %v4739 = vadd.f32 %v3443, %v4227
  %v4740 = vadd.f32 %v3444, %v4228
  %v4741 = vadd.f32 %v3445, %v4229
  %v4742 = vadd.f32 %v3446, %v4230
  %v4743 = vadd.f32 %v3447, %v4231
  %v4744 = vadd.f32 %v3448, %v4232
  %v4745 = vadd.f32 %v3449, %v4233
  %v4746 = vadd.f32 %v3450, %v4234
  %v4747 = vadd.f32 %v3451, %v4235
  %v4748 = vadd.f32 %v3452, %v4236
  %v4749 = vadd.f32 %v3453, %v4237
  %v4750 = vadd.f32 %v3454, %v4238
  %v4751 = vadd.f32 %v3455, %v4239
  %v4752 = vadd.f32 %v3456, %v4240
  %v4753 = vadd.f32 %v3457, %v4241
  %v4754 = vadd.f32 %v3458, %v4242
  %v4755 = vadd.f32 %v3459, %v4243
  %v4756 = vadd.f32 %v3460, %v4244
  %v4757 = vadd.f32 %v3461, %v4245
  %v4758 = vadd.f32 %v3462, %v4246
  %v4759 = vadd.f32 %v3463, %v4247
  %v4760 = vadd.f32 %v3464, %v4248
  %v4761 = vadd.f32 %v3465, %v4249
  %v4762 = vadd.f32 %v3466, %v4250
  %v4763 = vadd.f32 %v3467, %v4251
  %v4764 = vadd.f32 %v3468, %v4252
  %v4765 = vadd.f32 %v3469, %v4253
  %v4766 = vadd.f32 %v3470, %v4254
  %v4767 = vadd.f32 %v3471, %v4255
  %v4768 = vadd.f32 %v3472, %v4256
  %v4769 = vadd.f32 %v3473, %v4257
  %v4770 = vadd.f32 %v3474, %v4258
  %v4771 = vadd.f32 %v3475, %v4259
  %v4772 = vadd.f32 %v3476, %v4260
  %v4773 = vadd.f32 %v3477, %v4261
  %v4774 = vadd.f32 %v3478, %v4262
  %v4775 = vadd.f32 %v3479, %v4263
  %v4776 = vadd.f32 %v3480, %v4264
  %v4777 = vadd.f32 %v3481, %v4265
  %v4778 = vadd.f32 %v3482, %v4266
  %v4779 = vadd.f32 %v3483, %v4267
  %v4780 = vadd.f32 %v3484, %v4268
  %v4781 = vadd.f32 %v3485, %v4269
  %v4782 = vadd.f32 %v3486, %v4270
  %v4783 = vadd.f32 %v3487, %v4271
  %v4784 = vadd.f32 %v3488, %v4272
  %v4785 = vadd.f32 %v3489, %v4273
  %v4786 = vadd.f32 %v3490, %v4274
  %v4787 = vadd.f32 %v3491, %v4275
  %v4788 = vadd.f32 %v3492, %v4276
  %v4789 = vadd.f32 %v3493, %v4277
  %v4790 = vadd.f32 %v3494, %v4278
  %v4791 = vld [vmem:[%s2] sm:$0xff]
  %v4792 = vld [vmem:[%s2 + $0x8] sm:$0xff]
  %v4793 = vld [vmem:[%s2 + $0x10] sm:$0xff]
  %v4794 = vld [vmem:[%s2 + $0x18] sm:$0xff]
  %v4795 = vld [vmem:[%s2 + $0x20] sm:$0xff]
  %v4796 = vld [vmem:[%s2 + $0x28] sm:$0xff]
  %v4797 = vld [vmem:[%s2 + $0x30] sm:$0xff]
  %v4798 = vld [vmem:[%s2 + $0x38] sm:$0xff]
  %v4799 = vld [vmem:[%s2 + $0x40] sm:$0xff]
  %v4800 = vld [vmem:[%s2 + $0x48] sm:$0xff]
  %v4801 = vld [vmem:[%s2 + $0x50] sm:$0xff]
  %v4802 = vld [vmem:[%s2 + $0x58] sm:$0xff]
  %v4803 = vld [vmem:[%s2 + $0x60] sm:$0xff]
  %v4804 = vld [vmem:[%s2 + $0x68] sm:$0xff]
  %v4805 = vld [vmem:[%s2 + $0x70] sm:$0xff]
  %v4806 = vld [vmem:[%s2 + $0x78] sm:$0xff]
  %v4807 = vld [vmem:[%s2 + $0x80] sm:$0xff]
  %v4808 = vld [vmem:[%s2 + $0x88] sm:$0xff]
  %v4809 = vld [vmem:[%s2 + $0x90] sm:$0xff]
  %v4810 = vld [vmem:[%s2 + $0x98] sm:$0xff]
  %v4811 = vld [vmem:[%s2 + $0xa0] sm:$0xff]
  %v4812 = vld [vmem:[%s2 + $0xa8] sm:$0xff]
  %v4813 = vld [vmem:[%s2 + $0xb0] sm:$0xff]
  %v4814 = vld [vmem:[%s2 + $0xb8] sm:$0xff]
  %v4815 = vld [vmem:[%s2 + $0xc0] sm:$0xff]
  %v4816 = vld [vmem:[%s2 + $0xc8] sm:$0xff]
  %v4817 = vld [vmem:[%s2 + $0xd0] sm:$0xff]
  %v4818 = vld [vmem:[%s2 + $0xd8] sm:$0xff]
  %v4819 = vld [vmem:[%s2 + $0xe0] sm:$0xff]
  %v4820 = vld [vmem:[%s2 + $0xe8] sm:$0xff]
  %v4821 = vld [vmem:[%s2 + $0xf0] sm:$0xff]
  %v4822 = vld [vmem:[%s2 + $0xf8] sm:$0xff]
  %4824 = vset.pattern.permute.xlu0 0
  %4825 = vperm.xlu0 %4824, %v4791
  %v4826 = vpop.permute.xlu0 %4825
  %4829 = vset.pattern.permute.xlu0 0
  %4830 = vperm.xlu0 %4829, %v4792
  %v4831 = vpop.permute.xlu0 %4830
  %4834 = vset.pattern.permute.xlu0 0
  %4835 = vperm.xlu0 %4834, %v4793
  %v4836 = vpop.permute.xlu0 %4835
  %4839 = vset.pattern.permute.xlu0 0
  %4840 = vperm.xlu0 %4839, %v4794
  %v4841 = vpop.permute.xlu0 %4840
  %4844 = vset.pattern.permute.xlu0 0
  %4845 = vperm.xlu0 %4844, %v4795
  %v4846 = vpop.permute.xlu0 %4845
  %4849 = vset.pattern.permute.xlu0 0
  %4850 = vperm.xlu0 %4849, %v4796
  %v4851 = vpop.permute.xlu0 %4850
  %4854 = vset.pattern.permute.xlu0 0
  %4855 = vperm.xlu0 %4854, %v4797
  %v4856 = vpop.permute.xlu0 %4855
  %4859 = vset.pattern.permute.xlu0 0
  %4860 = vperm.xlu0 %4859, %v4798
  %v4861 = vpop.permute.xlu0 %4860
  %4864 = vset.pattern.permute.xlu0 0
  %4865 = vperm.xlu0 %4864, %v4799
  %v4866 = vpop.permute.xlu0 %4865
  %4869 = vset.pattern.permute.xlu0 0
  %4870 = vperm.xlu0 %4869, %v4800
  %v4871 = vpop.permute.xlu0 %4870
  %4874 = vset.pattern.permute.xlu0 0
  %4875 = vperm.xlu0 %4874, %v4801
  %v4876 = vpop.permute.xlu0 %4875
  %4879 = vset.pattern.permute.xlu0 0
  %4880 = vperm.xlu0 %4879, %v4802
  %v4881 = vpop.permute.xlu0 %4880
  %4884 = vset.pattern.permute.xlu0 0
  %4885 = vperm.xlu0 %4884, %v4803
  %v4886 = vpop.permute.xlu0 %4885
  %4889 = vset.pattern.permute.xlu0 0
  %4890 = vperm.xlu0 %4889, %v4804
  %v4891 = vpop.permute.xlu0 %4890
  %4894 = vset.pattern.permute.xlu0 0
  %4895 = vperm.xlu0 %4894, %v4805
  %v4896 = vpop.permute.xlu0 %4895
  %4899 = vset.pattern.permute.xlu0 0
  %4900 = vperm.xlu0 %4899, %v4806
  %v4901 = vpop.permute.xlu0 %4900
  %4904 = vset.pattern.permute.xlu0 0
  %4905 = vperm.xlu0 %4904, %v4807
  %v4906 = vpop.permute.xlu0 %4905
  %4909 = vset.pattern.permute.xlu0 0
  %4910 = vperm.xlu0 %4909, %v4808
  %v4911 = vpop.permute.xlu0 %4910
  %4914 = vset.pattern.permute.xlu0 0
  %4915 = vperm.xlu0 %4914, %v4809
  %v4916 = vpop.permute.xlu0 %4915
  %4919 = vset.pattern.permute.xlu0 0
  %4920 = vperm.xlu0 %4919, %v4810
  %v4921 = vpop.permute.xlu0 %4920
  %4924 = vset.pattern.permute.xlu0 0
  %4925 = vperm.xlu0 %4924, %v4811
  %v4926 = vpop.permute.xlu0 %4925
  %4929 = vset.pattern.permute.xlu0 0
  %4930 = vperm.xlu0 %4929, %v4812
  %v4931 = vpop.permute.xlu0 %4930
  %4934 = vset.pattern.permute.xlu0 0
  %4935 = vperm.xlu0 %4934, %v4813
  %v4936 = vpop.permute.xlu0 %4935
  %4939 = vset.pattern.permute.xlu0 0
  %4940 = vperm.xlu0 %4939, %v4814
  %v4941 = vpop.permute.xlu0 %4940
  %4944 = vset.pattern.permute.xlu0 0
  %4945 = vperm.xlu0 %4944, %v4815
  %v4946 = vpop.permute.xlu0 %4945
  %4949 = vset.pattern.permute.xlu0 0
  %4950 = vperm.xlu0 %4949, %v4816
  %v4951 = vpop.permute.xlu0 %4950
  %4954 = vset.pattern.permute.xlu0 0
  %4955 = vperm.xlu0 %4954, %v4817
  %v4956 = vpop.permute.xlu0 %4955
  %4959 = vset.pattern.permute.xlu0 0
  %4960 = vperm.xlu0 %4959, %v4818
  %v4961 = vpop.permute.xlu0 %4960
  %4964 = vset.pattern.permute.xlu0 0
  %4965 = vperm.xlu0 %4964, %v4819
  %v4966 = vpop.permute.xlu0 %4965
  %4969 = vset.pattern.permute.xlu0 0
  %4970 = vperm.xlu0 %4969, %v4820
  %v4971 = vpop.permute.xlu0 %4970
  %4974 = vset.pattern.permute.xlu0 0
  %4975 = vperm.xlu0 %4974, %v4821
  %v4976 = vpop.permute.xlu0 %4975
  %4979 = vset.pattern.permute.xlu0 0
  %4980 = vperm.xlu0 %4979, %v4822
  %v4981 = vpop.permute.xlu0 %4980
  %v4983 = vadd.f32 %v4279, %v4826
  %v4984 = vadd.f32 %v4280, %v4826
  %v4985 = vadd.f32 %v4281, %v4831
  %v4986 = vadd.f32 %v4282, %v4831
  %v4987 = vadd.f32 %v4283, %v4836
  %v4988 = vadd.f32 %v4284, %v4836
  %v4989 = vadd.f32 %v4285, %v4841
  %v4990 = vadd.f32 %v4286, %v4841
  %v4991 = vadd.f32 %v4287, %v4846
  %v4992 = vadd.f32 %v4288, %v4846
  %v4993 = vadd.f32 %v4289, %v4851
  %v4994 = vadd.f32 %v4290, %v4851
  %v4995 = vadd.f32 %v4291, %v4856
  %v4996 = vadd.f32 %v4292, %v4856
  %v4997 = vadd.f32 %v4293, %v4861
  %v4998 = vadd.f32 %v4294, %v4861
  %v4999 = vadd.f32 %v4295, %v4866
  %v5000 = vadd.f32 %v4296, %v4866
  %v5001 = vadd.f32 %v4297, %v4871
  %v5002 = vadd.f32 %v4298, %v4871
  %v5003 = vadd.f32 %v4299, %v4876
  %v5004 = vadd.f32 %v4300, %v4876
  %v5005 = vadd.f32 %v4301, %v4881
  %v5006 = vadd.f32 %v4302, %v4881
  %v5007 = vadd.f32 %v4303, %v4886
  %v5008 = vadd.f32 %v4304, %v4886
  %v5009 = vadd.f32 %v4305, %v4891
  %v5010 = vadd.f32 %v4306, %v4891
  %v5011 = vadd.f32 %v4307, %v4896
  %v5012 = vadd.f32 %v4308, %v4896
  %v5013 = vadd.f32 %v4309, %v4901
  %v5014 = vadd.f32 %v4310, %v4901
  %v5015 = vadd.f32 %v4311, %v4906
  %v5016 = vadd.f32 %v4312, %v4906
  %v5017 = vadd.f32 %v4313, %v4911
  %v5018 = vadd.f32 %v4314, %v4911
  %v5019 = vadd.f32 %v4315, %v4916
  %v5020 = vadd.f32 %v4316, %v4916
  %v5021 = vadd.f32 %v4317, %v4921
  %v5022 = vadd.f32 %v4318, %v4921
  %v5023 = vadd.f32 %v4319, %v4926
  %v5024 = vadd.f32 %v4320, %v4926
  %v5025 = vadd.f32 %v4321, %v4931
  %v5026 = vadd.f32 %v4322, %v4931
  %v5027 = vadd.f32 %v4323, %v4936
  %v5028 = vadd.f32 %v4324, %v4936
  %v5029 = vadd.f32 %v4325, %v4941
  %v5030 = vadd.f32 %v4326, %v4941
  %v5031 = vadd.f32 %v4327, %v4946
  %v5032 = vadd.f32 %v4328, %v4946
  %v5033 = vadd.f32 %v4329, %v4951
  %v5034 = vadd.f32 %v4330, %v4951
  %v5035 = vadd.f32 %v4331, %v4956
  %v5036 = vadd.f32 %v4332, %v4956
  %v5037 = vadd.f32 %v4333, %v4961
  %v5038 = vadd.f32 %v4334, %v4961
  %v5039 = vadd.f32 %v4335, %v4966
  %v5040 = vadd.f32 %v4336, %v4966
  %v5041 = vadd.f32 %v4337, %v4971
  %v5042 = vadd.f32 %v4338, %v4971
  %v5043 = vadd.f32 %v4339, %v4976
  %v5044 = vadd.f32 %v4340, %v4976
  %v5045 = vadd.f32 %v4341, %v4981
  %v5046 = vadd.f32 %v4342, %v4981
  %v5047 = vadd.f32 %v4343, %v4826
  %v5048 = vadd.f32 %v4344, %v4826
  %v5049 = vadd.f32 %v4345, %v4831
  %v5050 = vadd.f32 %v4346, %v4831
  %v5051 = vadd.f32 %v4347, %v4836
  %v5052 = vadd.f32 %v4348, %v4836
  %v5053 = vadd.f32 %v4349, %v4841
  %v5054 = vadd.f32 %v4350, %v4841
  %v5055 = vadd.f32 %v4351, %v4846
  %v5056 = vadd.f32 %v4352, %v4846
  %v5057 = vadd.f32 %v4353, %v4851
  %v5058 = vadd.f32 %v4354, %v4851
  %v5059 = vadd.f32 %v4355, %v4856
  %v5060 = vadd.f32 %v4356, %v4856
  %v5061 = vadd.f32 %v4357, %v4861
  %v5062 = vadd.f32 %v4358, %v4861
  %v5063 = vadd.f32 %v4359, %v4866
  %v5064 = vadd.f32 %v4360, %v4866
  %v5065 = vadd.f32 %v4361, %v4871
  %v5066 = vadd.f32 %v4362, %v4871
  %v5067 = vadd.f32 %v4363, %v4876
  %v5068 = vadd.f32 %v4364, %v4876
  %v5069 = vadd.f32 %v4365, %v4881
  %v5070 = vadd.f32 %v4366, %v4881
  %v5071 = vadd.f32 %v4367, %v4886
  %v5072 = vadd.f32 %v4368, %v4886
  %v5073 = vadd.f32 %v4369, %v4891
  %v5074 = vadd.f32 %v4370, %v4891
  %v5075 = vadd.f32 %v4371, %v4896
  %v5076 = vadd.f32 %v4372, %v4896
  %v5077 = vadd.f32 %v4373, %v4901
  %v5078 = vadd.f32 %v4374, %v4901
  %v5079 = vadd.f32 %v4375, %v4906
  %v5080 = vadd.f32 %v4376, %v4906
  %v5081 = vadd.f32 %v4377, %v4911
  %v5082 = vadd.f32 %v4378, %v4911
  %v5083 = vadd.f32 %v4379, %v4916
  %v5084 = vadd.f32 %v4380, %v4916
  %v5085 = vadd.f32 %v4381, %v4921
  %v5086 = vadd.f32 %v4382, %v4921
  %v5087 = vadd.f32 %v4383, %v4926
  %v5088 = vadd.f32 %v4384, %v4926
  %v5089 = vadd.f32 %v4385, %v4931
  %v5090 = vadd.f32 %v4386, %v4931
  %v5091 = vadd.f32 %v4387, %v4936
  %v5092 = vadd.f32 %v4388, %v4936
  %v5093 = vadd.f32 %v4389, %v4941
  %v5094 = vadd.f32 %v4390, %v4941
  %v5095 = vadd.f32 %v4391, %v4946
  %v5096 = vadd.f32 %v4392, %v4946
  %v5097 = vadd.f32 %v4393, %v4951
  %v5098 = vadd.f32 %v4394, %v4951
  %v5099 = vadd.f32 %v4395, %v4956
  %v5100 = vadd.f32 %v4396, %v4956
  %v5101 = vadd.f32 %v4397, %v4961
  %v5102 = vadd.f32 %v4398, %v4961
  %v5103 = vadd.f32 %v4399, %v4966
  %v5104 = vadd.f32 %v4400, %v4966
  %v5105 = vadd.f32 %v4401, %v4971
  %v5106 = vadd.f32 %v4402, %v4971
  %v5107 = vadd.f32 %v4403, %v4976
  %v5108 = vadd.f32 %v4404, %v4976
  %v5109 = vadd.f32 %v4405, %v4981
  %v5110 = vadd.f32 %v4406, %v4981
  %v5111 = vadd.f32 %v4407, %v4826
  %v5112 = vadd.f32 %v4408, %v4826
  %v5113 = vadd.f32 %v4409, %v4831
  %v5114 = vadd.f32 %v4410, %v4831
  %v5115 = vadd.f32 %v4411, %v4836
  %v5116 = vadd.f32 %v4412, %v4836
  %v5117 = vadd.f32 %v4413, %v4841
  %v5118 = vadd.f32 %v4414, %v4841
  %v5119 = vadd.f32 %v4415, %v4846
  %v5120 = vadd.f32 %v4416, %v4846
  %v5121 = vadd.f32 %v4417, %v4851
  %v5122 = vadd.f32 %v4418, %v4851
  %v5123 = vadd.f32 %v4419, %v4856
  %v5124 = vadd.f32 %v4420, %v4856
  %v5125 = vadd.f32 %v4421, %v4861
  %v5126 = vadd.f32 %v4422, %v4861
  %v5127 = vadd.f32 %v4423, %v4866
  %v5128 = vadd.f32 %v4424, %v4866
  %v5129 = vadd.f32 %v4425, %v4871
  %v5130 = vadd.f32 %v4426, %v4871
  %v5131 = vadd.f32 %v4427, %v4876
  %v5132 = vadd.f32 %v4428, %v4876
  %v5133 = vadd.f32 %v4429, %v4881
  %v5134 = vadd.f32 %v4430, %v4881
  %v5135 = vadd.f32 %v4431, %v4886
  %v5136 = vadd.f32 %v4432, %v4886
  %v5137 = vadd.f32 %v4433, %v4891
  %v5138 = vadd.f32 %v4434, %v4891
  %v5139 = vadd.f32 %v4435, %v4896
  %v5140 = vadd.f32 %v4436, %v4896
  %v5141 = vadd.f32 %v4437, %v4901
  %v5142 = vadd.f32 %v4438, %v4901
  %v5143 = vadd.f32 %v4439, %v4906
  %v5144 = vadd.f32 %v4440, %v4906
  %v5145 = vadd.f32 %v4441, %v4911
  %v5146 = vadd.f32 %v4442, %v4911
  %v5147 = vadd.f32 %v4443, %v4916
  %v5148 = vadd.f32 %v4444, %v4916
  %v5149 = vadd.f32 %v4445, %v4921
  %v5150 = vadd.f32 %v4446, %v4921
  %v5151 = vadd.f32 %v4447, %v4926
  %v5152 = vadd.f32 %v4448, %v4926
  %v5153 = vadd.f32 %v4449, %v4931
  %v5154 = vadd.f32 %v4450, %v4931
  %v5155 = vadd.f32 %v4451, %v4936
  %v5156 = vadd.f32 %v4452, %v4936
  %v5157 = vadd.f32 %v4453, %v4941
  %v5158 = vadd.f32 %v4454, %v4941
  %v5159 = vadd.f32 %v4455, %v4946
  %v5160 = vadd.f32 %v4456, %v4946
  %v5161 = vadd.f32 %v4457, %v4951
  %v5162 = vadd.f32 %v4458, %v4951
  %v5163 = vadd.f32 %v4459, %v4956
  %v5164 = vadd.f32 %v4460, %v4956
  %v5165 = vadd.f32 %v4461, %v4961
  %v5166 = vadd.f32 %v4462, %v4961
  %v5167 = vadd.f32 %v4463, %v4966
  %v5168 = vadd.f32 %v4464, %v4966
  %v5169 = vadd.f32 %v4465, %v4971
  %v5170 = vadd.f32 %v4466, %v4971
  %v5171 = vadd.f32 %v4467, %v4976
  %v5172 = vadd.f32 %v4468, %v4976
  %v5173 = vadd.f32 %v4469, %v4981
  %v5174 = vadd.f32 %v4470, %v4981
  %v5175 = vadd.f32 %v4471, %v4826
  %v5176 = vadd.f32 %v4472, %v4826
  %v5177 = vadd.f32 %v4473, %v4831
  %v5178 = vadd.f32 %v4474, %v4831
  %v5179 = vadd.f32 %v4475, %v4836
  %v5180 = vadd.f32 %v4476, %v4836
  %v5181 = vadd.f32 %v4477, %v4841
  %v5182 = vadd.f32 %v4478, %v4841
  %v5183 = vadd.f32 %v4479, %v4846
  %v5184 = vadd.f32 %v4480, %v4846
  %v5185 = vadd.f32 %v4481, %v4851
  %v5186 = vadd.f32 %v4482, %v4851
  %v5187 = vadd.f32 %v4483, %v4856
  %v5188 = vadd.f32 %v4484, %v4856
  %v5189 = vadd.f32 %v4485, %v4861
  %v5190 = vadd.f32 %v4486, %v4861
  %v5191 = vadd.f32 %v4487, %v4866
  %v5192 = vadd.f32 %v4488, %v4866
  %v5193 = vadd.f32 %v4489, %v4871
  %v5194 = vadd.f32 %v4490, %v4871
  %v5195 = vadd.f32 %v4491, %v4876
  %v5196 = vadd.f32 %v4492, %v4876
  %v5197 = vadd.f32 %v4493, %v4881
  %v5198 = vadd.f32 %v4494, %v4881
  %v5199 = vadd.f32 %v4495, %v4886
  %v5200 = vadd.f32 %v4496, %v4886
  %v5201 = vadd.f32 %v4497, %v4891
  %v5202 = vadd.f32 %v4498, %v4891
  %v5203 = vadd.f32 %v4499, %v4896
  %v5204 = vadd.f32 %v4500, %v4896
  %v5205 = vadd.f32 %v4501, %v4901
  %v5206 = vadd.f32 %v4502, %v4901
  %v5207 = vadd.f32 %v4503, %v4906
  %v5208 = vadd.f32 %v4504, %v4906
  %v5209 = vadd.f32 %v4505, %v4911
  %v5210 = vadd.f32 %v4506, %v4911
  %v5211 = vadd.f32 %v4507, %v4916
  %v5212 = vadd.f32 %v4508, %v4916
  %v5213 = vadd.f32 %v4509, %v4921
  %v5214 = vadd.f32 %v4510, %v4921
  %v5215 = vadd.f32 %v4511, %v4926
  %v5216 = vadd.f32 %v4512, %v4926
  %v5217 = vadd.f32 %v4513, %v4931
  %v5218 = vadd.f32 %v4514, %v4931
  %v5219 = vadd.f32 %v4515, %v4936
  %v5220 = vadd.f32 %v4516, %v4936
  %v5221 = vadd.f32 %v4517, %v4941
  %v5222 = vadd.f32 %v4518, %v4941
  %v5223 = vadd.f32 %v4519, %v4946
  %v5224 = vadd.f32 %v4520, %v4946
  %v5225 = vadd.f32 %v4521, %v4951
  %v5226 = vadd.f32 %v4522, %v4951
  %v5227 = vadd.f32 %v4523, %v4956
  %v5228 = vadd.f32 %v4524, %v4956
  %v5229 = vadd.f32 %v4525, %v4961
  %v5230 = vadd.f32 %v4526, %v4961
  %v5231 = vadd.f32 %v4527, %v4966
  %v5232 = vadd.f32 %v4528, %v4966
  %v5233 = vadd.f32 %v4529, %v4971
  %v5234 = vadd.f32 %v4530, %v4971
  %v5235 = vadd.f32 %v4531, %v4976
  %v5236 = vadd.f32 %v4532, %v4976
  %v5237 = vadd.f32 %v4533, %v4981
  %v5238 = vadd.f32 %v4534, %v4981
  %v5239 = vadd.f32 %v4535, %v4826
  %v5240 = vadd.f32 %v4536, %v4826
  %v5241 = vadd.f32 %v4537, %v4831
  %v5242 = vadd.f32 %v4538, %v4831
  %v5243 = vadd.f32 %v4539, %v4836
  %v5244 = vadd.f32 %v4540, %v4836
  %v5245 = vadd.f32 %v4541, %v4841
  %v5246 = vadd.f32 %v4542, %v4841
  %v5247 = vadd.f32 %v4543, %v4846
  %v5248 = vadd.f32 %v4544, %v4846
  %v5249 = vadd.f32 %v4545, %v4851
  %v5250 = vadd.f32 %v4546, %v4851
  %v5251 = vadd.f32 %v4547, %v4856
  %v5252 = vadd.f32 %v4548, %v4856
  %v5253 = vadd.f32 %v4549, %v4861
  %v5254 = vadd.f32 %v4550, %v4861
  %v5255 = vadd.f32 %v4551, %v4866
  %v5256 = vadd.f32 %v4552, %v4866
  %v5257 = vadd.f32 %v4553, %v4871
  %v5258 = vadd.f32 %v4554, %v4871
  %v5259 = vadd.f32 %v4555, %v4876
  %v5260 = vadd.f32 %v4556, %v4876
  %v5261 = vadd.f32 %v4557, %v4881
  %v5262 = vadd.f32 %v4558, %v4881
  %v5263 = vadd.f32 %v4559, %v4886
  %v5264 = vadd.f32 %v4560, %v4886
  %v5265 = vadd.f32 %v4561, %v4891
  %v5266 = vadd.f32 %v4562, %v4891
  %v5267 = vadd.f32 %v4563, %v4896
  %v5268 = vadd.f32 %v4564, %v4896
  %v5269 = vadd.f32 %v4565, %v4901
  %v5270 = vadd.f32 %v4566, %v4901
  %v5271 = vadd.f32 %v4567, %v4906
  %v5272 = vadd.f32 %v4568, %v4906
  %v5273 = vadd.f32 %v4569, %v4911
  %v5274 = vadd.f32 %v4570, %v4911
  %v5275 = vadd.f32 %v4571, %v4916
  %v5276 = vadd.f32 %v4572, %v4916
  %v5277 = vadd.f32 %v4573, %v4921
  %v5278 = vadd.f32 %v4574, %v4921
  %v5279 = vadd.f32 %v4575, %v4926
  %v5280 = vadd.f32 %v4576, %v4926
  %v5281 = vadd.f32 %v4577, %v4931
  %v5282 = vadd.f32 %v4578, %v4931
  %v5283 = vadd.f32 %v4579, %v4936
  %v5284 = vadd.f32 %v4580, %v4936
  %v5285 = vadd.f32 %v4581, %v4941
  %v5286 = vadd.f32 %v4582, %v4941
  %v5287 = vadd.f32 %v4583, %v4946
  %v5288 = vadd.f32 %v4584, %v4946
  %v5289 = vadd.f32 %v4585, %v4951
  %v5290 = vadd.f32 %v4586, %v4951
  %v5291 = vadd.f32 %v4587, %v4956
  %v5292 = vadd.f32 %v4588, %v4956
  %v5293 = vadd.f32 %v4589, %v4961
  %v5294 = vadd.f32 %v4590, %v4961
  %v5295 = vadd.f32 %v4591, %v4966
  %v5296 = vadd.f32 %v4592, %v4966
  %v5297 = vadd.f32 %v4593, %v4971
  %v5298 = vadd.f32 %v4594, %v4971
  %v5299 = vadd.f32 %v4595, %v4976
  %v5300 = vadd.f32 %v4596, %v4976
  %v5301 = vadd.f32 %v4597, %v4981
  %v5302 = vadd.f32 %v4598, %v4981
  %v5303 = vadd.f32 %v4599, %v4826
  %v5304 = vadd.f32 %v4600, %v4826
  %v5305 = vadd.f32 %v4601, %v4831
  %v5306 = vadd.f32 %v4602, %v4831
  %v5307 = vadd.f32 %v4603, %v4836
  %v5308 = vadd.f32 %v4604, %v4836
  %v5309 = vadd.f32 %v4605, %v4841
  %v5310 = vadd.f32 %v4606, %v4841
  %v5311 = vadd.f32 %v4607, %v4846
  %v5312 = vadd.f32 %v4608, %v4846
  %v5313 = vadd.f32 %v4609, %v4851
  %v5314 = vadd.f32 %v4610, %v4851
  %v5315 = vadd.f32 %v4611, %v4856
  %v5316 = vadd.f32 %v4612, %v4856
  %v5317 = vadd.f32 %v4613, %v4861
  %v5318 = vadd.f32 %v4614, %v4861
  %v5319 = vadd.f32 %v4615, %v4866
  %v5320 = vadd.f32 %v4616, %v4866
  %v5321 = vadd.f32 %v4617, %v4871
  %v5322 = vadd.f32 %v4618, %v4871
  %v5323 = vadd.f32 %v4619, %v4876
  %v5324 = vadd.f32 %v4620, %v4876
  %v5325 = vadd.f32 %v4621, %v4881
  %v5326 = vadd.f32 %v4622, %v4881
  %v5327 = vadd.f32 %v4623, %v4886
  %v5328 = vadd.f32 %v4624, %v4886
  %v5329 = vadd.f32 %v4625, %v4891
  %v5330 = vadd.f32 %v4626, %v4891
  %v5331 = vadd.f32 %v4627, %v4896
  %v5332 = vadd.f32 %v4628, %v4896
  %v5333 = vadd.f32 %v4629, %v4901
  %v5334 = vadd.f32 %v4630, %v4901
  %v5335 = vadd.f32 %v4631, %v4906
  %v5336 = vadd.f32 %v4632, %v4906
  %v5337 = vadd.f32 %v4633, %v4911
  %v5338 = vadd.f32 %v4634, %v4911
  %v5339 = vadd.f32 %v4635, %v4916
  %v5340 = vadd.f32 %v4636, %v4916
  %v5341 = vadd.f32 %v4637, %v4921
  %v5342 = vadd.f32 %v4638, %v4921
  %v5343 = vadd.f32 %v4639, %v4926
  %v5344 = vadd.f32 %v4640, %v4926
  %v5345 = vadd.f32 %v4641, %v4931
  %v5346 = vadd.f32 %v4642, %v4931
  %v5347 = vadd.f32 %v4643, %v4936
  %v5348 = vadd.f32 %v4644, %v4936
  %v5349 = vadd.f32 %v4645, %v4941
  %v5350 = vadd.f32 %v4646, %v4941
  %v5351 = vadd.f32 %v4647, %v4946
  %v5352 = vadd.f32 %v4648, %v4946
  %v5353 = vadd.f32 %v4649, %v4951
  %v5354 = vadd.f32 %v4650, %v4951
  %v5355 = vadd.f32 %v4651, %v4956
  %v5356 = vadd.f32 %v4652, %v4956
  %v5357 = vadd.f32 %v4653, %v4961
  %v5358 = vadd.f32 %v4654, %v4961
  %v5359 = vadd.f32 %v4655, %v4966
  %v5360 = vadd.f32 %v4656, %v4966
  %v5361 = vadd.f32 %v4657, %v4971
  %v5362 = vadd.f32 %v4658, %v4971
  %v5363 = vadd.f32 %v4659, %v4976
  %v5364 = vadd.f32 %v4660, %v4976
  %v5365 = vadd.f32 %v4661, %v4981
  %v5366 = vadd.f32 %v4662, %v4981
  %v5367 = vadd.f32 %v4663, %v4826
  %v5368 = vadd.f32 %v4664, %v4826
  %v5369 = vadd.f32 %v4665, %v4831
  %v5370 = vadd.f32 %v4666, %v4831
  %v5371 = vadd.f32 %v4667, %v4836
  %v5372 = vadd.f32 %v4668, %v4836
  %v5373 = vadd.f32 %v4669, %v4841
  %v5374 = vadd.f32 %v4670, %v4841
  %v5375 = vadd.f32 %v4671, %v4846
  %v5376 = vadd.f32 %v4672, %v4846
  %v5377 = vadd.f32 %v4673, %v4851
  %v5378 = vadd.f32 %v4674, %v4851
  %v5379 = vadd.f32 %v4675, %v4856
  %v5380 = vadd.f32 %v4676, %v4856
  %v5381 = vadd.f32 %v4677, %v4861
  %v5382 = vadd.f32 %v4678, %v4861
  %v5383 = vadd.f32 %v4679, %v4866
  %v5384 = vadd.f32 %v4680, %v4866
  %v5385 = vadd.f32 %v4681, %v4871
  %v5386 = vadd.f32 %v4682, %v4871
  %v5387 = vadd.f32 %v4683, %v4876
  %v5388 = vadd.f32 %v4684, %v4876
  %v5389 = vadd.f32 %v4685, %v4881
  %v5390 = vadd.f32 %v4686, %v4881
  %v5391 = vadd.f32 %v4687, %v4886
  %v5392 = vadd.f32 %v4688, %v4886
  %v5393 = vadd.f32 %v4689, %v4891
  %v5394 = vadd.f32 %v4690, %v4891
  %v5395 = vadd.f32 %v4691, %v4896
  %v5396 = vadd.f32 %v4692, %v4896
  %v5397 = vadd.f32 %v4693, %v4901
  %v5398 = vadd.f32 %v4694, %v4901
  %v5399 = vadd.f32 %v4695, %v4906
  %v5400 = vadd.f32 %v4696, %v4906
  %v5401 = vadd.f32 %v4697, %v4911
  %v5402 = vadd.f32 %v4698, %v4911
  %v5403 = vadd.f32 %v4699, %v4916
  %v5404 = vadd.f32 %v4700, %v4916
  %v5405 = vadd.f32 %v4701, %v4921
  %v5406 = vadd.f32 %v4702, %v4921
  %v5407 = vadd.f32 %v4703, %v4926
  %v5408 = vadd.f32 %v4704, %v4926
  %v5409 = vadd.f32 %v4705, %v4931
  %v5410 = vadd.f32 %v4706, %v4931
  %v5411 = vadd.f32 %v4707, %v4936
  %v5412 = vadd.f32 %v4708, %v4936
  %v5413 = vadd.f32 %v4709, %v4941
  %v5414 = vadd.f32 %v4710, %v4941
  %v5415 = vadd.f32 %v4711, %v4946
  %v5416 = vadd.f32 %v4712, %v4946
  %v5417 = vadd.f32 %v4713, %v4951
  %v5418 = vadd.f32 %v4714, %v4951
  %v5419 = vadd.f32 %v4715, %v4956
  %v5420 = vadd.f32 %v4716, %v4956
  %v5421 = vadd.f32 %v4717, %v4961
  %v5422 = vadd.f32 %v4718, %v4961
  %v5423 = vadd.f32 %v4719, %v4966
  %v5424 = vadd.f32 %v4720, %v4966
  %v5425 = vadd.f32 %v4721, %v4971
  %v5426 = vadd.f32 %v4722, %v4971
  %v5427 = vadd.f32 %v4723, %v4976
  %v5428 = vadd.f32 %v4724, %v4976
  %v5429 = vadd.f32 %v4725, %v4981
  %v5430 = vadd.f32 %v4726, %v4981
  %v5431 = vadd.f32 %v4727, %v4826
  %v5432 = vadd.f32 %v4728, %v4826
  %v5433 = vadd.f32 %v4729, %v4831
  %v5434 = vadd.f32 %v4730, %v4831
  %v5435 = vadd.f32 %v4731, %v4836
  %v5436 = vadd.f32 %v4732, %v4836
  %v5437 = vadd.f32 %v4733, %v4841
  %v5438 = vadd.f32 %v4734, %v4841
  %v5439 = vadd.f32 %v4735, %v4846
  %v5440 = vadd.f32 %v4736, %v4846
  %v5441 = vadd.f32 %v4737, %v4851
  %v5442 = vadd.f32 %v4738, %v4851
  %v5443 = vadd.f32 %v4739, %v4856
  %v5444 = vadd.f32 %v4740, %v4856
  %v5445 = vadd.f32 %v4741, %v4861
  %v5446 = vadd.f32 %v4742, %v4861
  %v5447 = vadd.f32 %v4743, %v4866
  %v5448 = vadd.f32 %v4744, %v4866
  %v5449 = vadd.f32 %v4745, %v4871
  %v5450 = vadd.f32 %v4746, %v4871
  %v5451 = vadd.f32 %v4747, %v4876
  %v5452 = vadd.f32 %v4748, %v4876
  %v5453 = vadd.f32 %v4749, %v4881
  %v5454 = vadd.f32 %v4750, %v4881
  %v5455 = vadd.f32 %v4751, %v4886
  %v5456 = vadd.f32 %v4752, %v4886
  %v5457 = vadd.f32 %v4753, %v4891
  %v5458 = vadd.f32 %v4754, %v4891
  %v5459 = vadd.f32 %v4755, %v4896
  %v5460 = vadd.f32 %v4756, %v4896
  %v5461 = vadd.f32 %v4757, %v4901
  %v5462 = vadd.f32 %v4758, %v4901
  %v5463 = vadd.f32 %v4759, %v4906
  %v5464 = vadd.f32 %v4760, %v4906
  %v5465 = vadd.f32 %v4761, %v4911
  %v5466 = vadd.f32 %v4762, %v4911
  %v5467 = vadd.f32 %v4763, %v4916
  %v5468 = vadd.f32 %v4764, %v4916
  %v5469 = vadd.f32 %v4765, %v4921
  %v5470 = vadd.f32 %v4766, %v4921
  %v5471 = vadd.f32 %v4767, %v4926
  %v5472 = vadd.f32 %v4768, %v4926
  %v5473 = vadd.f32 %v4769, %v4931
  %v5474 = vadd.f32 %v4770, %v4931
  %v5475 = vadd.f32 %v4771, %v4936
  %v5476 = vadd.f32 %v4772, %v4936
  %v5477 = vadd.f32 %v4773, %v4941
  %v5478 = vadd.f32 %v4774, %v4941
  %v5479 = vadd.f32 %v4775, %v4946
  %v5480 = vadd.f32 %v4776, %v4946
  %v5481 = vadd.f32 %v4777, %v4951
  %v5482 = vadd.f32 %v4778, %v4951
  %v5483 = vadd.f32 %v4779, %v4956
  %v5484 = vadd.f32 %v4780, %v4956
  %v5485 = vadd.f32 %v4781, %v4961
  %v5486 = vadd.f32 %v4782, %v4961
  %v5487 = vadd.f32 %v4783, %v4966
  %v5488 = vadd.f32 %v4784, %v4966
  %v5489 = vadd.f32 %v4785, %v4971
  %v5490 = vadd.f32 %v4786, %v4971
  %v5491 = vadd.f32 %v4787, %v4976
  %v5492 = vadd.f32 %v4788, %v4976
  %v5493 = vadd.f32 %v4789, %v4981
  %v5494 = vadd.f32 %v4790, %v4981
  %v5495 = vmax.f32 %v4983, 0.0
  %v5496 = vmax.f32 %v4984, 0.0
  %v5497 = vmax.f32 %v4985, 0.0
  %v5498 = vmax.f32 %v4986, 0.0
  %v5499 = vmax.f32 %v4987, 0.0
  %v5500 = vmax.f32 %v4988, 0.0
  %v5501 = vmax.f32 %v4989, 0.0
  %v5502 = vmax.f32 %v4990, 0.0
  %v5503 = vmax.f32 %v4991, 0.0
  %v5504 = vmax.f32 %v4992, 0.0
  %v5505 = vmax.f32 %v4993, 0.0
  %v5506 = vmax.f32 %v4994, 0.0
  %v5507 = vmax.f32 %v4995, 0.0
  %v5508 = vmax.f32 %v4996, 0.0
  %v5509 = vmax.f32 %v4997, 0.0
  %v5510 = vmax.f32 %v4998, 0.0
  %v5511 = vmax.f32 %v4999, 0.0
  %v5512 = vmax.f32 %v5000, 0.0
  %v5513 = vmax.f32 %v5001, 0.0
  %v5514 = vmax.f32 %v5002, 0.0
  %v5515 = vmax.f32 %v5003, 0.0
  %v5516 = vmax.f32 %v5004, 0.0
  %v5517 = vmax.f32 %v5005, 0.0
  %v5518 = vmax.f32 %v5006, 0.0
  %v5519 = vmax.f32 %v5007, 0.0
  %v5520 = vmax.f32 %v5008, 0.0
  %v5521 = vmax.f32 %v5009, 0.0
  %v5522 = vmax.f32 %v5010, 0.0
  %v5523 = vmax.f32 %v5011, 0.0
  %v5524 = vmax.f32 %v5012, 0.0
  %v5525 = vmax.f32 %v5013, 0.0
  %v5526 = vmax.f32 %v5014, 0.0
  %v5527 = vmax.f32 %v5015, 0.0
  %v5528 = vmax.f32 %v5016, 0.0
  %v5529 = vmax.f32 %v5017, 0.0
  %v5530 = vmax.f32 %v5018, 0.0
  %v5531 = vmax.f32 %v5019, 0.0
  %v5532 = vmax.f32 %v5020, 0.0
  %v5533 = vmax.f32 %v5021, 0.0
  %v5534 = vmax.f32 %v5022, 0.0
  %v5535 = vmax.f32 %v5023, 0.0
  %v5536 = vmax.f32 %v5024, 0.0
  %v5537 = vmax.f32 %v5025, 0.0
  %v5538 = vmax.f32 %v5026, 0.0
  %v5539 = vmax.f32 %v5027, 0.0
  %v5540 = vmax.f32 %v5028, 0.0
  %v5541 = vmax.f32 %v5029, 0.0
  %v5542 = vmax.f32 %v5030, 0.0
  %v5543 = vmax.f32 %v5031, 0.0
  %v5544 = vmax.f32 %v5032, 0.0
  %v5545 = vmax.f32 %v5033, 0.0
  %v5546 = vmax.f32 %v5034, 0.0
  %v5547 = vmax.f32 %v5035, 0.0
  %v5548 = vmax.f32 %v5036, 0.0
  %v5549 = vmax.f32 %v5037, 0.0
  %v5550 = vmax.f32 %v5038, 0.0
  %v5551 = vmax.f32 %v5039, 0.0
  %v5552 = vmax.f32 %v5040, 0.0
  %v5553 = vmax.f32 %v5041, 0.0
  %v5554 = vmax.f32 %v5042, 0.0
  %v5555 = vmax.f32 %v5043, 0.0
  %v5556 = vmax.f32 %v5044, 0.0
  %v5557 = vmax.f32 %v5045, 0.0
  %v5558 = vmax.f32 %v5046, 0.0
  %v5559 = vmax.f32 %v5047, 0.0
  %v5560 = vmax.f32 %v5048, 0.0
  %v5561 = vmax.f32 %v5049, 0.0
  %v5562 = vmax.f32 %v5050, 0.0
  %v5563 = vmax.f32 %v5051, 0.0
  %v5564 = vmax.f32 %v5052, 0.0
  %v5565 = vmax.f32 %v5053, 0.0
  %v5566 = vmax.f32 %v5054, 0.0
  %v5567 = vmax.f32 %v5055, 0.0
  %v5568 = vmax.f32 %v5056, 0.0
  %v5569 = vmax.f32 %v5057, 0.0
  %v5570 = vmax.f32 %v5058, 0.0
  %v5571 = vmax.f32 %v5059, 0.0
  %v5572 = vmax.f32 %v5060, 0.0
  %v5573 = vmax.f32 %v5061, 0.0
  %v5574 = vmax.f32 %v5062, 0.0
  %v5575 = vmax.f32 %v5063, 0.0
  %v5576 = vmax.f32 %v5064, 0.0
  %v5577 = vmax.f32 %v5065, 0.0
  %v5578 = vmax.f32 %v5066, 0.0
  %v5579 = vmax.f32 %v5067, 0.0
  %v5580 = vmax.f32 %v5068, 0.0
  %v5581 = vmax.f32 %v5069, 0.0
  %v5582 = vmax.f32 %v5070, 0.0
  %v5583 = vmax.f32 %v5071, 0.0
  %v5584 = vmax.f32 %v5072, 0.0
  %v5585 = vmax.f32 %v5073, 0.0
  %v5586 = vmax.f32 %v5074, 0.0
  %v5587 = vmax.f32 %v5075, 0.0
  %v5588 = vmax.f32 %v5076, 0.0
  %v5589 = vmax.f32 %v5077, 0.0
  %v5590 = vmax.f32 %v5078, 0.0
  %v5591 = vmax.f32 %v5079, 0.0
  %v5592 = vmax.f32 %v5080, 0.0
  %v5593 = vmax.f32 %v5081, 0.0
  %v5594 = vmax.f32 %v5082, 0.0
  %v5595 = vmax.f32 %v5083, 0.0
  %v5596 = vmax.f32 %v5084, 0.0
  %v5597 = vmax.f32 %v5085, 0.0
  %v5598 = vmax.f32 %v5086, 0.0
  %v5599 = vmax.f32 %v5087, 0.0
  %v5600 = vmax.f32 %v5088, 0.0
  %v5601 = vmax.f32 %v5089, 0.0
  %v5602 = vmax.f32 %v5090, 0.0
  %v5603 = vmax.f32 %v5091, 0.0
  %v5604 = vmax.f32 %v5092, 0.0
  %v5605 = vmax.f32 %v5093, 0.0
  %v5606 = vmax.f32 %v5094, 0.0
  %v5607 = vmax.f32 %v5095, 0.0
  %v5608 = vmax.f32 %v5096, 0.0
  %v5609 = vmax.f32 %v5097, 0.0
  %v5610 = vmax.f32 %v5098, 0.0
  %v5611 = vmax.f32 %v5099, 0.0
  %v5612 = vmax.f32 %v5100, 0.0
  %v5613 = vmax.f32 %v5101, 0.0
  %v5614 = vmax.f32 %v5102, 0.0
  %v5615 = vmax.f32 %v5103, 0.0
  %v5616 = vmax.f32 %v5104, 0.0
  %v5617 = vmax.f32 %v5105, 0.0
  %v5618 = vmax.f32 %v5106, 0.0
  %v5619 = vmax.f32 %v5107, 0.0
  %v5620 = vmax.f32 %v5108, 0.0
  %v5621 = vmax.f32 %v5109, 0.0
  %v5622 = vmax.f32 %v5110, 0.0
  %v5623 = vmax.f32 %v5111, 0.0
  %v5624 = vmax.f32 %v5112, 0.0
  %v5625 = vmax.f32 %v5113, 0.0
  %v5626 = vmax.f32 %v5114, 0.0
  %v5627 = vmax.f32 %v5115, 0.0
  %v5628 = vmax.f32 %v5116, 0.0
  %v5629 = vmax.f32 %v5117, 0.0
  %v5630 = vmax.f32 %v5118, 0.0
  %v5631 = vmax.f32 %v5119, 0.0
  %v5632 = vmax.f32 %v5120, 0.0
  %v5633 = vmax.f32 %v5121, 0.0
  %v5634 = vmax.f32 %v5122, 0.0
  %v5635 = vmax.f32 %v5123, 0.0
  %v5636 = vmax.f32 %v5124, 0.0
  %v5637 = vmax.f32 %v5125, 0.0
  %v5638 = vmax.f32 %v5126, 0.0
  %v5639 = vmax.f32 %v5127, 0.0
  %v5640 = vmax.f32 %v5128, 0.0
  %v5641 = vmax.f32 %v5129, 0.0
  %v5642 = vmax.f32 %v5130, 0.0
  %v5643 = vmax.f32 %v5131, 0.0
  %v5644 = vmax.f32 %v5132, 0.0
  %v5645 = vmax.f32 %v5133, 0.0
  %v5646 = vmax.f32 %v5134, 0.0
  %v5647 = vmax.f32 %v5135, 0.0
  %v5648 = vmax.f32 %v5136, 0.0
  %v5649 = vmax.f32 %v5137, 0.0
  %v5650 = vmax.f32 %v5138, 0.0
  %v5651 = vmax.f32 %v5139, 0.0
  %v5652 = vmax.f32 %v5140, 0.0
  %v5653 = vmax.f32 %v5141, 0.0
  %v5654 = vmax.f32 %v5142, 0.0
  %v5655 = vmax.f32 %v5143, 0.0
  %v5656 = vmax.f32 %v5144, 0.0
  %v5657 = vmax.f32 %v5145, 0.0
  %v5658 = vmax.f32 %v5146, 0.0
  %v5659 = vmax.f32 %v5147, 0.0
  %v5660 = vmax.f32 %v5148, 0.0
  %v5661 = vmax.f32 %v5149, 0.0
  %v5662 = vmax.f32 %v5150, 0.0
  %v5663 = vmax.f32 %v5151, 0.0
  %v5664 = vmax.f32 %v5152, 0.0
  %v5665 = vmax.f32 %v5153, 0.0
  %v5666 = vmax.f32 %v5154, 0.0
  %v5667 = vmax.f32 %v5155, 0.0
  %v5668 = vmax.f32 %v5156, 0.0
  %v5669 = vmax.f32 %v5157, 0.0
  %v5670 = vmax.f32 %v5158, 0.0
  %v5671 = vmax.f32 %v5159, 0.0
  %v5672 = vmax.f32 %v5160, 0.0
  %v5673 = vmax.f32 %v5161, 0.0
  %v5674 = vmax.f32 %v5162, 0.0
  %v5675 = vmax.f32 %v5163, 0.0
  %v5676 = vmax.f32 %v5164, 0.0
  %v5677 = vmax.f32 %v5165, 0.0
  %v5678 = vmax.f32 %v5166, 0.0
  %v5679 = vmax.f32 %v5167, 0.0
  %v5680 = vmax.f32 %v5168, 0.0
  %v5681 = vmax.f32 %v5169, 0.0
  %v5682 = vmax.f32 %v5170, 0.0
  %v5683 = vmax.f32 %v5171, 0.0
  %v5684 = vmax.f32 %v5172, 0.0
  %v5685 = vmax.f32 %v5173, 0.0
  %v5686 = vmax.f32 %v5174, 0.0
  %v5687 = vmax.f32 %v5175, 0.0
  %v5688 = vmax.f32 %v5176, 0.0
  %v5689 = vmax.f32 %v5177, 0.0
  %v5690 = vmax.f32 %v5178, 0.0
  %v5691 = vmax.f32 %v5179, 0.0
  %v5692 = vmax.f32 %v5180, 0.0
  %v5693 = vmax.f32 %v5181, 0.0
  %v5694 = vmax.f32 %v5182, 0.0
  %v5695 = vmax.f32 %v5183, 0.0
  %v5696 = vmax.f32 %v5184, 0.0
  %v5697 = vmax.f32 %v5185, 0.0
  %v5698 = vmax.f32 %v5186, 0.0
  %v5699 = vmax.f32 %v5187, 0.0
  %v5700 = vmax.f32 %v5188, 0.0
  %v5701 = vmax.f32 %v5189, 0.0
  %v5702 = vmax.f32 %v5190, 0.0
  %v5703 = vmax.f32 %v5191, 0.0
  %v5704 = vmax.f32 %v5192, 0.0
  %v5705 = vmax.f32 %v5193, 0.0
  %v5706 = vmax.f32 %v5194, 0.0
  %v5707 = vmax.f32 %v5195, 0.0
  %v5708 = vmax.f32 %v5196, 0.0
  %v5709 = vmax.f32 %v5197, 0.0
  %v5710 = vmax.f32 %v5198, 0.0
  %v5711 = vmax.f32 %v5199, 0.0
  %v5712 = vmax.f32 %v5200, 0.0
  %v5713 = vmax.f32 %v5201, 0.0
  %v5714 = vmax.f32 %v5202, 0.0
  %v5715 = vmax.f32 %v5203, 0.0
  %v5716 = vmax.f32 %v5204, 0.0
  %v5717 = vmax.f32 %v5205, 0.0
  %v5718 = vmax.f32 %v5206, 0.0
  %v5719 = vmax.f32 %v5207, 0.0
  %v5720 = vmax.f32 %v5208, 0.0
  %v5721 = vmax.f32 %v5209, 0.0
  %v5722 = vmax.f32 %v5210, 0.0
  %v5723 = vmax.f32 %v5211, 0.0
  %v5724 = vmax.f32 %v5212, 0.0
  %v5725 = vmax.f32 %v5213, 0.0
  %v5726 = vmax.f32 %v5214, 0.0
  %v5727 = vmax.f32 %v5215, 0.0
  %v5728 = vmax.f32 %v5216, 0.0
  %v5729 = vmax.f32 %v5217, 0.0
  %v5730 = vmax.f32 %v5218, 0.0
  %v5731 = vmax.f32 %v5219, 0.0
  %v5732 = vmax.f32 %v5220, 0.0
  %v5733 = vmax.f32 %v5221, 0.0
  %v5734 = vmax.f32 %v5222, 0.0
  %v5735 = vmax.f32 %v5223, 0.0
  %v5736 = vmax.f32 %v5224, 0.0
  %v5737 = vmax.f32 %v5225, 0.0
  %v5738 = vmax.f32 %v5226, 0.0
  %v5739 = vmax.f32 %v5227, 0.0
  %v5740 = vmax.f32 %v5228, 0.0
  %v5741 = vmax.f32 %v5229, 0.0
  %v5742 = vmax.f32 %v5230, 0.0
  %v5743 = vmax.f32 %v5231, 0.0
  %v5744 = vmax.f32 %v5232, 0.0
  %v5745 = vmax.f32 %v5233, 0.0
  %v5746 = vmax.f32 %v5234, 0.0
  %v5747 = vmax.f32 %v5235, 0.0
  %v5748 = vmax.f32 %v5236, 0.0
  %v5749 = vmax.f32 %v5237, 0.0
  %v5750 = vmax.f32 %v5238, 0.0
  %v5751 = vmax.f32 %v5239, 0.0
  %v5752 = vmax.f32 %v5240, 0.0
  %v5753 = vmax.f32 %v5241, 0.0
  %v5754 = vmax.f32 %v5242, 0.0
  %v5755 = vmax.f32 %v5243, 0.0
  %v5756 = vmax.f32 %v5244, 0.0
  %v5757 = vmax.f32 %v5245, 0.0
  %v5758 = vmax.f32 %v5246, 0.0
  %v5759 = vmax.f32 %v5247, 0.0
  %v5760 = vmax.f32 %v5248, 0.0
  %v5761 = vmax.f32 %v5249, 0.0
  %v5762 = vmax.f32 %v5250, 0.0
  %v5763 = vmax.f32 %v5251, 0.0
  %v5764 = vmax.f32 %v5252, 0.0
  %v5765 = vmax.f32 %v5253, 0.0
  %v5766 = vmax.f32 %v5254, 0.0
  %v5767 = vmax.f32 %v5255, 0.0
  %v5768 = vmax.f32 %v5256, 0.0
  %v5769 = vmax.f32 %v5257, 0.0
  %v5770 = vmax.f32 %v5258, 0.0
  %v5771 = vmax.f32 %v5259, 0.0
  %v5772 = vmax.f32 %v5260, 0.0
  %v5773 = vmax.f32 %v5261, 0.0
  %v5774 = vmax.f32 %v5262, 0.0
  %v5775 = vmax.f32 %v5263, 0.0
  %v5776 = vmax.f32 %v5264, 0.0
  %v5777 = vmax.f32 %v5265, 0.0
  %v5778 = vmax.f32 %v5266, 0.0
  %v5779 = vmax.f32 %v5267, 0.0
  %v5780 = vmax.f32 %v5268, 0.0
  %v5781 = vmax.f32 %v5269, 0.0
  %v5782 = vmax.f32 %v5270, 0.0
  %v5783 = vmax.f32 %v5271, 0.0
  %v5784 = vmax.f32 %v5272, 0.0
  %v5785 = vmax.f32 %v5273, 0.0
  %v5786 = vmax.f32 %v5274, 0.0
  %v5787 = vmax.f32 %v5275, 0.0
  %v5788 = vmax.f32 %v5276, 0.0
  %v5789 = vmax.f32 %v5277, 0.0
  %v5790 = vmax.f32 %v5278, 0.0
  %v5791 = vmax.f32 %v5279, 0.0
  %v5792 = vmax.f32 %v5280, 0.0
  %v5793 = vmax.f32 %v5281, 0.0
  %v5794 = vmax.f32 %v5282, 0.0
  %v5795 = vmax.f32 %v5283, 0.0
  %v5796 = vmax.f32 %v5284, 0.0
  %v5797 = vmax.f32 %v5285, 0.0
  %v5798 = vmax.f32 %v5286, 0.0
  %v5799 = vmax.f32 %v5287, 0.0
  %v5800 = vmax.f32 %v5288, 0.0
  %v5801 = vmax.f32 %v5289, 0.0
  %v5802 = vmax.f32 %v5290, 0.0
  %v5803 = vmax.f32 %v5291, 0.0
  %v5804 = vmax.f32 %v5292, 0.0
  %v5805 = vmax.f32 %v5293, 0.0
  %v5806 = vmax.f32 %v5294, 0.0
  %v5807 = vmax.f32 %v5295, 0.0
  %v5808 = vmax.f32 %v5296, 0.0
  %v5809 = vmax.f32 %v5297, 0.0
  %v5810 = vmax.f32 %v5298, 0.0
  %v5811 = vmax.f32 %v5299, 0.0
  %v5812 = vmax.f32 %v5300, 0.0
  %v5813 = vmax.f32 %v5301, 0.0
  %v5814 = vmax.f32 %v5302, 0.0
  %v5815 = vmax.f32 %v5303, 0.0
  %v5816 = vmax.f32 %v5304, 0.0
  %v5817 = vmax.f32 %v5305, 0.0
  %v5818 = vmax.f32 %v5306, 0.0
  %v5819 = vmax.f32 %v5307, 0.0
  %v5820 = vmax.f32 %v5308, 0.0
  %v5821 = vmax.f32 %v5309, 0.0
  %v5822 = vmax.f32 %v5310, 0.0
  %v5823 = vmax.f32 %v5311, 0.0
  %v5824 = vmax.f32 %v5312, 0.0
  %v5825 = vmax.f32 %v5313, 0.0
  %v5826 = vmax.f32 %v5314, 0.0
  %v5827 = vmax.f32 %v5315, 0.0
  %v5828 = vmax.f32 %v5316, 0.0
  %v5829 = vmax.f32 %v5317, 0.0
  %v5830 = vmax.f32 %v5318, 0.0
  %v5831 = vmax.f32 %v5319, 0.0
  %v5832 = vmax.f32 %v5320, 0.0
  %v5833 = vmax.f32 %v5321, 0.0
  %v5834 = vmax.f32 %v5322, 0.0
  %v5835 = vmax.f32 %v5323, 0.0
  %v5836 = vmax.f32 %v5324, 0.0
  %v5837 = vmax.f32 %v5325, 0.0
  %v5838 = vmax.f32 %v5326, 0.0
  %v5839 = vmax.f32 %v5327, 0.0
  %v5840 = vmax.f32 %v5328, 0.0
  %v5841 = vmax.f32 %v5329, 0.0
  %v5842 = vmax.f32 %v5330, 0.0
  %v5843 = vmax.f32 %v5331, 0.0
  %v5844 = vmax.f32 %v5332, 0.0
  %v5845 = vmax.f32 %v5333, 0.0
  %v5846 = vmax.f32 %v5334, 0.0
  %v5847 = vmax.f32 %v5335, 0.0
  %v5848 = vmax.f32 %v5336, 0.0
  %v5849 = vmax.f32 %v5337, 0.0
  %v5850 = vmax.f32 %v5338, 0.0
  %v5851 = vmax.f32 %v5339, 0.0
  %v5852 = vmax.f32 %v5340, 0.0
  %v5853 = vmax.f32 %v5341, 0.0
  %v5854 = vmax.f32 %v5342, 0.0
  %v5855 = vmax.f32 %v5343, 0.0
  %v5856 = vmax.f32 %v5344, 0.0
  %v5857 = vmax.f32 %v5345, 0.0
  %v5858 = vmax.f32 %v5346, 0.0
  %v5859 = vmax.f32 %v5347, 0.0
  %v5860 = vmax.f32 %v5348, 0.0
  %v5861 = vmax.f32 %v5349, 0.0
  %v5862 = vmax.f32 %v5350, 0.0
  %v5863 = vmax.f32 %v5351, 0.0
  %v5864 = vmax.f32 %v5352, 0.0
  %v5865 = vmax.f32 %v5353, 0.0
  %v5866 = vmax.f32 %v5354, 0.0
  %v5867 = vmax.f32 %v5355, 0.0
  %v5868 = vmax.f32 %v5356, 0.0
  %v5869 = vmax.f32 %v5357, 0.0
  %v5870 = vmax.f32 %v5358, 0.0
  %v5871 = vmax.f32 %v5359, 0.0
  %v5872 = vmax.f32 %v5360, 0.0
  %v5873 = vmax.f32 %v5361, 0.0
  %v5874 = vmax.f32 %v5362, 0.0
  %v5875 = vmax.f32 %v5363, 0.0
  %v5876 = vmax.f32 %v5364, 0.0
  %v5877 = vmax.f32 %v5365, 0.0
  %v5878 = vmax.f32 %v5366, 0.0
  %v5879 = vmax.f32 %v5367, 0.0
  %v5880 = vmax.f32 %v5368, 0.0
  %v5881 = vmax.f32 %v5369, 0.0
  %v5882 = vmax.f32 %v5370, 0.0
  %v5883 = vmax.f32 %v5371, 0.0
  %v5884 = vmax.f32 %v5372, 0.0
  %v5885 = vmax.f32 %v5373, 0.0
  %v5886 = vmax.f32 %v5374, 0.0
  %v5887 = vmax.f32 %v5375, 0.0
  %v5888 = vmax.f32 %v5376, 0.0
  %v5889 = vmax.f32 %v5377, 0.0
  %v5890 = vmax.f32 %v5378, 0.0
  %v5891 = vmax.f32 %v5379, 0.0
  %v5892 = vmax.f32 %v5380, 0.0
  %v5893 = vmax.f32 %v5381, 0.0
  %v5894 = vmax.f32 %v5382, 0.0
  %v5895 = vmax.f32 %v5383, 0.0
  %v5896 = vmax.f32 %v5384, 0.0
  %v5897 = vmax.f32 %v5385, 0.0
  %v5898 = vmax.f32 %v5386, 0.0
  %v5899 = vmax.f32 %v5387, 0.0
  %v5900 = vmax.f32 %v5388, 0.0
  %v5901 = vmax.f32 %v5389, 0.0
  %v5902 = vmax.f32 %v5390, 0.0
  %v5903 = vmax.f32 %v5391, 0.0
  %v5904 = vmax.f32 %v5392, 0.0
  %v5905 = vmax.f32 %v5393, 0.0
  %v5906 = vmax.f32 %v5394, 0.0
  %v5907 = vmax.f32 %v5395, 0.0
  %v5908 = vmax.f32 %v5396, 0.0
  %v5909 = vmax.f32 %v5397, 0.0
  %v5910 = vmax.f32 %v5398, 0.0
  %v5911 = vmax.f32 %v5399, 0.0
  %v5912 = vmax.f32 %v5400, 0.0
  %v5913 = vmax.f32 %v5401, 0.0
  %v5914 = vmax.f32 %v5402, 0.0
  %v5915 = vmax.f32 %v5403, 0.0
  %v5916 = vmax.f32 %v5404, 0.0
  %v5917 = vmax.f32 %v5405, 0.0
  %v5918 = vmax.f32 %v5406, 0.0
  %v5919 = vmax.f32 %v5407, 0.0
  %v5920 = vmax.f32 %v5408, 0.0
  %v5921 = vmax.f32 %v5409, 0.0
  %v5922 = vmax.f32 %v5410, 0.0
  %v5923 = vmax.f32 %v5411, 0.0
  %v5924 = vmax.f32 %v5412, 0.0
  %v5925 = vmax.f32 %v5413, 0.0
  %v5926 = vmax.f32 %v5414, 0.0
  %v5927 = vmax.f32 %v5415, 0.0
  %v5928 = vmax.f32 %v5416, 0.0
  %v5929 = vmax.f32 %v5417, 0.0
  %v5930 = vmax.f32 %v5418, 0.0
  %v5931 = vmax.f32 %v5419, 0.0
  %v5932 = vmax.f32 %v5420, 0.0
  %v5933 = vmax.f32 %v5421, 0.0
  %v5934 = vmax.f32 %v5422, 0.0
  %v5935 = vmax.f32 %v5423, 0.0
  %v5936 = vmax.f32 %v5424, 0.0
  %v5937 = vmax.f32 %v5425, 0.0
  %v5938 = vmax.f32 %v5426, 0.0
  %v5939 = vmax.f32 %v5427, 0.0
  %v5940 = vmax.f32 %v5428, 0.0
  %v5941 = vmax.f32 %v5429, 0.0
  %v5942 = vmax.f32 %v5430, 0.0
  %v5943 = vmax.f32 %v5431, 0.0
  %v5944 = vmax.f32 %v5432, 0.0
  %v5945 = vmax.f32 %v5433, 0.0
  %v5946 = vmax.f32 %v5434, 0.0
  %v5947 = vmax.f32 %v5435, 0.0
  %v5948 = vmax.f32 %v5436, 0.0
  %v5949 = vmax.f32 %v5437, 0.0
  %v5950 = vmax.f32 %v5438, 0.0
  %v5951 = vmax.f32 %v5439, 0.0
  %v5952 = vmax.f32 %v5440, 0.0
  %v5953 = vmax.f32 %v5441, 0.0
  %v5954 = vmax.f32 %v5442, 0.0
  %v5955 = vmax.f32 %v5443, 0.0
  %v5956 = vmax.f32 %v5444, 0.0
  %v5957 = vmax.f32 %v5445, 0.0
  %v5958 = vmax.f32 %v5446, 0.0
  %v5959 = vmax.f32 %v5447, 0.0
  %v5960 = vmax.f32 %v5448, 0.0
  %v5961 = vmax.f32 %v5449, 0.0
  %v5962 = vmax.f32 %v5450, 0.0
  %v5963 = vmax.f32 %v5451, 0.0
  %v5964 = vmax.f32 %v5452, 0.0
  %v5965 = vmax.f32 %v5453, 0.0
  %v5966 = vmax.f32 %v5454, 0.0
  %v5967 = vmax.f32 %v5455, 0.0
  %v5968 = vmax.f32 %v5456, 0.0
  %v5969 = vmax.f32 %v5457, 0.0
  %v5970 = vmax.f32 %v5458, 0.0
  %v5971 = vmax.f32 %v5459, 0.0
  %v5972 = vmax.f32 %v5460, 0.0
  %v5973 = vmax.f32 %v5461, 0.0
  %v5974 = vmax.f32 %v5462, 0.0
  %v5975 = vmax.f32 %v5463, 0.0
  %v5976 = vmax.f32 %v5464, 0.0
  %v5977 = vmax.f32 %v5465, 0.0
  %v5978 = vmax.f32 %v5466, 0.0
  %v5979 = vmax.f32 %v5467, 0.0
  %v5980 = vmax.f32 %v5468, 0.0
  %v5981 = vmax.f32 %v5469, 0.0
  %v5982 = vmax.f32 %v5470, 0.0
  %v5983 = vmax.f32 %v5471, 0.0
  %v5984 = vmax.f32 %v5472, 0.0
  %v5985 = vmax.f32 %v5473, 0.0
  %v5986 = vmax.f32 %v5474, 0.0
  %v5987 = vmax.f32 %v5475, 0.0
  %v5988 = vmax.f32 %v5476, 0.0
  %v5989 = vmax.f32 %v5477, 0.0
  %v5990 = vmax.f32 %v5478, 0.0
  %v5991 = vmax.f32 %v5479, 0.0
  %v5992 = vmax.f32 %v5480, 0.0
  %v5993 = vmax.f32 %v5481, 0.0
  %v5994 = vmax.f32 %v5482, 0.0
  %v5995 = vmax.f32 %v5483, 0.0
  %v5996 = vmax.f32 %v5484, 0.0
  %v5997 = vmax.f32 %v5485, 0.0
  %v5998 = vmax.f32 %v5486, 0.0
  %v5999 = vmax.f32 %v5487, 0.0
  %v6000 = vmax.f32 %v5488, 0.0
  %v6001 = vmax.f32 %v5489, 0.0
  %v6002 = vmax.f32 %v5490, 0.0
  %v6003 = vmax.f32 %v5491, 0.0
  %v6004 = vmax.f32 %v5492, 0.0
  %v6005 = vmax.f32 %v5493, 0.0
  %v6006 = vmax.f32 %v5494, 0.0
  %v6007 = vld [vmem:[#allocation2] sm:$0xff]
  %v6008 = vld [vmem:[#allocation2 + $0x8] sm:$0xff]
  %v6009 = vadd.f32 %v5495, %v5496
  %6010 = vadd.xlane.f32.xlu0 %v6009
  %v6011 = vpop.xlane.xlu0 %6010
  %v6012 = vadd.f32 %v5497, %v5498
  %6013 = vadd.xlane.f32.xlu0 %v6012
  %v6014 = vpop.xlane.xlu0 %6013
  %v6015 = vadd.f32 %v5499, %v5500
  %6016 = vadd.xlane.f32.xlu0 %v6015
  %v6017 = vpop.xlane.xlu0 %6016
  %v6018 = vadd.f32 %v5501, %v5502
  %6019 = vadd.xlane.f32.xlu0 %v6018
  %v6020 = vpop.xlane.xlu0 %6019
  %v6021 = vadd.f32 %v5503, %v5504
  %6022 = vadd.xlane.f32.xlu0 %v6021
  %v6023 = vpop.xlane.xlu0 %6022
  %v6024 = vadd.f32 %v5505, %v5506
  %6025 = vadd.xlane.f32.xlu0 %v6024
  %v6026 = vpop.xlane.xlu0 %6025
  %v6027 = vadd.f32 %v5507, %v5508
  %6028 = vadd.xlane.f32.xlu0 %v6027
  %v6029 = vpop.xlane.xlu0 %6028
  %v6030 = vadd.f32 %v5509, %v5510
  %6031 = vadd.xlane.f32.xlu0 %v6030
  %v6032 = vpop.xlane.xlu0 %6031
  %v6033 = vadd.f32 %v5511, %v5512
  %6034 = vadd.xlane.f32.xlu0 %v6033
  %v6035 = vpop.xlane.xlu0 %6034
  %v6036 = vadd.f32 %v5513, %v5514
  %6037 = vadd.xlane.f32.xlu0 %v6036
  %v6038 = vpop.xlane.xlu0 %6037
  %v6039 = vadd.f32 %v5515, %v5516
  %6040 = vadd.xlane.f32.xlu0 %v6039
  %v6041 = vpop.xlane.xlu0 %6040
  %v6042 = vadd.f32 %v5517, %v5518
  %6043 = vadd.xlane.f32.xlu0 %v6042
  %v6044 = vpop.xlane.xlu0 %6043
  %v6045 = vadd.f32 %v5519, %v5520
  %6046 = vadd.xlane.f32.xlu0 %v6045
  %v6047 = vpop.xlane.xlu0 %6046
  %v6048 = vadd.f32 %v5521, %v5522
  %6049 = vadd.xlane.f32.xlu0 %v6048
  %v6050 = vpop.xlane.xlu0 %6049
  %v6051 = vadd.f32 %v5523, %v5524
  %6052 = vadd.xlane.f32.xlu0 %v6051
  %v6053 = vpop.xlane.xlu0 %6052
  %v6054 = vadd.f32 %v5525, %v5526
  %6055 = vadd.xlane.f32.xlu0 %v6054
  %v6056 = vpop.xlane.xlu0 %6055
  %v6057 = vadd.f32 %v5527, %v5528
  %6058 = vadd.xlane.f32.xlu0 %v6057
  %v6059 = vpop.xlane.xlu0 %6058
  %v6060 = vadd.f32 %v5529, %v5530
  %6061 = vadd.xlane.f32.xlu0 %v6060
  %v6062 = vpop.xlane.xlu0 %6061
  %v6063 = vadd.f32 %v5531, %v5532
  %6064 = vadd.xlane.f32.xlu0 %v6063
  %v6065 = vpop.xlane.xlu0 %6064
  %v6066 = vadd.f32 %v5533, %v5534
  %6067 = vadd.xlane.f32.xlu0 %v6066
  %v6068 = vpop.xlane.xlu0 %6067
  %v6069 = vadd.f32 %v5535, %v5536
  %6070 = vadd.xlane.f32.xlu0 %v6069
  %v6071 = vpop.xlane.xlu0 %6070
  %v6072 = vadd.f32 %v5537, %v5538
  %6073 = vadd.xlane.f32.xlu0 %v6072
  %v6074 = vpop.xlane.xlu0 %6073
  %v6075 = vadd.f32 %v5539, %v5540
  %6076 = vadd.xlane.f32.xlu0 %v6075
  %v6077 = vpop.xlane.xlu0 %6076
  %v6078 = vadd.f32 %v5541, %v5542
  %6079 = vadd.xlane.f32.xlu0 %v6078
  %v6080 = vpop.xlane.xlu0 %6079
  %v6081 = vadd.f32 %v5543, %v5544
  %6082 = vadd.xlane.f32.xlu0 %v6081
  %v6083 = vpop.xlane.xlu0 %6082
  %v6084 = vadd.f32 %v5545, %v5546
  %6085 = vadd.xlane.f32.xlu0 %v6084
  %v6086 = vpop.xlane.xlu0 %6085
  %v6087 = vadd.f32 %v5547, %v5548
  %6088 = vadd.xlane.f32.xlu0 %v6087
  %v6089 = vpop.xlane.xlu0 %6088
  %v6090 = vadd.f32 %v5549, %v5550
  %6091 = vadd.xlane.f32.xlu0 %v6090
  %v6092 = vpop.xlane.xlu0 %6091
  %v6093 = vadd.f32 %v5551, %v5552
  %6094 = vadd.xlane.f32.xlu0 %v6093
  %v6095 = vpop.xlane.xlu0 %6094
  %v6096 = vadd.f32 %v5553, %v5554
  %6097 = vadd.xlane.f32.xlu0 %v6096
  %v6098 = vpop.xlane.xlu0 %6097
  %v6099 = vadd.f32 %v5555, %v5556
  %6100 = vadd.xlane.f32.xlu0 %v6099
  %v6101 = vpop.xlane.xlu0 %6100
  %v6102 = vadd.f32 %v5557, %v5558
  %6103 = vadd.xlane.f32.xlu0 %v6102
  %v6104 = vpop.xlane.xlu0 %6103
  %v6105 = vadd.f32 %v5559, %v5560
  %6106 = vadd.xlane.f32.xlu0 %v6105
  %v6107 = vpop.xlane.xlu0 %6106
  %v6108 = vadd.f32 %v5561, %v5562
  %6109 = vadd.xlane.f32.xlu0 %v6108
  %v6110 = vpop.xlane.xlu0 %6109
  %v6111 = vadd.f32 %v5563, %v5564
  %6112 = vadd.xlane.f32.xlu0 %v6111
  %v6113 = vpop.xlane.xlu0 %6112
  %v6114 = vadd.f32 %v5565, %v5566
  %6115 = vadd.xlane.f32.xlu0 %v6114
  %v6116 = vpop.xlane.xlu0 %6115
  %v6117 = vadd.f32 %v5567, %v5568
  %6118 = vadd.xlane.f32.xlu0 %v6117
  %v6119 = vpop.xlane.xlu0 %6118
  %v6120 = vadd.f32 %v5569, %v5570
  %6121 = vadd.xlane.f32.xlu0 %v6120
  %v6122 = vpop.xlane.xlu0 %6121
  %v6123 = vadd.f32 %v5571, %v5572
  %6124 = vadd.xlane.f32.xlu0 %v6123
  %v6125 = vpop.xlane.xlu0 %6124
  %v6126 = vadd.f32 %v5573, %v5574
  %6127 = vadd.xlane.f32.xlu0 %v6126
  %v6128 = vpop.xlane.xlu0 %6127
  %v6129 = vadd.f32 %v5575, %v5576
  %6130 = vadd.xlane.f32.xlu0 %v6129
  %v6131 = vpop.xlane.xlu0 %6130
  %v6132 = vadd.f32 %v5577, %v5578
  %6133 = vadd.xlane.f32.xlu0 %v6132
  %v6134 = vpop.xlane.xlu0 %6133
  %v6135 = vadd.f32 %v5579, %v5580
  %6136 = vadd.xlane.f32.xlu0 %v6135
  %v6137 = vpop.xlane.xlu0 %6136
  %v6138 = vadd.f32 %v5581, %v5582
  %6139 = vadd.xlane.f32.xlu0 %v6138
  %v6140 = vpop.xlane.xlu0 %6139
  %v6141 = vadd.f32 %v5583, %v5584
  %6142 = vadd.xlane.f32.xlu0 %v6141
  %v6143 = vpop.xlane.xlu0 %6142
  %v6144 = vadd.f32 %v5585, %v5586
  %6145 = vadd.xlane.f32.xlu0 %v6144
  %v6146 = vpop.xlane.xlu0 %6145
  %v6147 = vadd.f32 %v5587, %v5588
  %6148 = vadd.xlane.f32.xlu0 %v6147
  %v6149 = vpop.xlane.xlu0 %6148
  %v6150 = vadd.f32 %v5589, %v5590
  %6151 = vadd.xlane.f32.xlu0 %v6150
  %v6152 = vpop.xlane.xlu0 %6151
  %v6153 = vadd.f32 %v5591, %v5592
  %6154 = vadd.xlane.f32.xlu0 %v6153
  %v6155 = vpop.xlane.xlu0 %6154
  %v6156 = vadd.f32 %v5593, %v5594
  %6157 = vadd.xlane.f32.xlu0 %v6156
  %v6158 = vpop.xlane.xlu0 %6157
  %v6159 = vadd.f32 %v5595, %v5596
  %6160 = vadd.xlane.f32.xlu0 %v6159
  %v6161 = vpop.xlane.xlu0 %6160
  %v6162 = vadd.f32 %v5597, %v5598
  %6163 = vadd.xlane.f32.xlu0 %v6162
  %v6164 = vpop.xlane.xlu0 %6163
  %v6165 = vadd.f32 %v5599, %v5600
  %6166 = vadd.xlane.f32.xlu0 %v6165
  %v6167 = vpop.xlane.xlu0 %6166
  %v6168 = vadd.f32 %v5601, %v5602
  %6169 = vadd.xlane.f32.xlu0 %v6168
  %v6170 = vpop.xlane.xlu0 %6169
  %v6171 = vadd.f32 %v5603, %v5604
  %6172 = vadd.xlane.f32.xlu0 %v6171
  %v6173 = vpop.xlane.xlu0 %6172
  %v6174 = vadd.f32 %v5605, %v5606
  %6175 = vadd.xlane.f32.xlu0 %v6174
  %v6176 = vpop.xlane.xlu0 %6175
  %v6177 = vadd.f32 %v5607, %v5608
  %6178 = vadd.xlane.f32.xlu0 %v6177
  %v6179 = vpop.xlane.xlu0 %6178
  %v6180 = vadd.f32 %v5609, %v5610
  %6181 = vadd.xlane.f32.xlu0 %v6180
  %v6182 = vpop.xlane.xlu0 %6181
  %v6183 = vadd.f32 %v5611, %v5612
  %6184 = vadd.xlane.f32.xlu0 %v6183
  %v6185 = vpop.xlane.xlu0 %6184
  %v6186 = vadd.f32 %v5613, %v5614
  %6187 = vadd.xlane.f32.xlu0 %v6186
  %v6188 = vpop.xlane.xlu0 %6187
  %v6189 = vadd.f32 %v5615, %v5616
  %6190 = vadd.xlane.f32.xlu0 %v6189
  %v6191 = vpop.xlane.xlu0 %6190
  %v6192 = vadd.f32 %v5617, %v5618
  %6193 = vadd.xlane.f32.xlu0 %v6192
  %v6194 = vpop.xlane.xlu0 %6193
  %v6195 = vadd.f32 %v5619, %v5620
  %6196 = vadd.xlane.f32.xlu0 %v6195
  %v6197 = vpop.xlane.xlu0 %6196
  %v6198 = vadd.f32 %v5621, %v5622
  %6199 = vadd.xlane.f32.xlu0 %v6198
  %v6200 = vpop.xlane.xlu0 %6199
  %v6201 = vadd.f32 %v5623, %v5624
  %6202 = vadd.xlane.f32.xlu0 %v6201
  %v6203 = vpop.xlane.xlu0 %6202
  %v6204 = vadd.f32 %v5625, %v5626
  %6205 = vadd.xlane.f32.xlu0 %v6204
  %v6206 = vpop.xlane.xlu0 %6205
  %v6207 = vadd.f32 %v5627, %v5628
  %6208 = vadd.xlane.f32.xlu0 %v6207
  %v6209 = vpop.xlane.xlu0 %6208
  %v6210 = vadd.f32 %v5629, %v5630
  %6211 = vadd.xlane.f32.xlu0 %v6210
  %v6212 = vpop.xlane.xlu0 %6211
  %v6213 = vadd.f32 %v5631, %v5632
  %6214 = vadd.xlane.f32.xlu0 %v6213
  %v6215 = vpop.xlane.xlu0 %6214
  %v6216 = vadd.f32 %v5633, %v5634
  %6217 = vadd.xlane.f32.xlu0 %v6216
  %v6218 = vpop.xlane.xlu0 %6217
  %v6219 = vadd.f32 %v5635, %v5636
  %6220 = vadd.xlane.f32.xlu0 %v6219
  %v6221 = vpop.xlane.xlu0 %6220
  %v6222 = vadd.f32 %v5637, %v5638
  %6223 = vadd.xlane.f32.xlu0 %v6222
  %v6224 = vpop.xlane.xlu0 %6223
  %v6225 = vadd.f32 %v5639, %v5640
  %6226 = vadd.xlane.f32.xlu0 %v6225
  %v6227 = vpop.xlane.xlu0 %6226
  %v6228 = vadd.f32 %v5641, %v5642
  %6229 = vadd.xlane.f32.xlu0 %v6228
  %v6230 = vpop.xlane.xlu0 %6229
  %v6231 = vadd.f32 %v5643, %v5644
  %6232 = vadd.xlane.f32.xlu0 %v6231
  %v6233 = vpop.xlane.xlu0 %6232
  %v6234 = vadd.f32 %v5645, %v5646
  %6235 = vadd.xlane.f32.xlu0 %v6234
  %v6236 = vpop.xlane.xlu0 %6235
  %v6237 = vadd.f32 %v5647, %v5648
  %6238 = vadd.xlane.f32.xlu0 %v6237
  %v6239 = vpop.xlane.xlu0 %6238
  %v6240 = vadd.f32 %v5649, %v5650
  %6241 = vadd.xlane.f32.xlu0 %v6240
  %v6242 = vpop.xlane.xlu0 %6241
  %v6243 = vadd.f32 %v5651, %v5652
  %6244 = vadd.xlane.f32.xlu0 %v6243
  %v6245 = vpop.xlane.xlu0 %6244
  %v6246 = vadd.f32 %v5653, %v5654
  %6247 = vadd.xlane.f32.xlu0 %v6246
  %v6248 = vpop.xlane.xlu0 %6247
  %v6249 = vadd.f32 %v5655, %v5656
  %6250 = vadd.xlane.f32.xlu0 %v6249
  %v6251 = vpop.xlane.xlu0 %6250
  %v6252 = vadd.f32 %v5657, %v5658
  %6253 = vadd.xlane.f32.xlu0 %v6252
  %v6254 = vpop.xlane.xlu0 %6253
  %v6255 = vadd.f32 %v5659, %v5660
  %6256 = vadd.xlane.f32.xlu0 %v6255
  %v6257 = vpop.xlane.xlu0 %6256
  %v6258 = vadd.f32 %v5661, %v5662
  %6259 = vadd.xlane.f32.xlu0 %v6258
  %v6260 = vpop.xlane.xlu0 %6259
  %v6261 = vadd.f32 %v5663, %v5664
  %6262 = vadd.xlane.f32.xlu0 %v6261
  %v6263 = vpop.xlane.xlu0 %6262
  %v6264 = vadd.f32 %v5665, %v5666
  %6265 = vadd.xlane.f32.xlu0 %v6264
  %v6266 = vpop.xlane.xlu0 %6265
  %v6267 = vadd.f32 %v5667, %v5668
  %6268 = vadd.xlane.f32.xlu0 %v6267
  %v6269 = vpop.xlane.xlu0 %6268
  %v6270 = vadd.f32 %v5669, %v5670
  %6271 = vadd.xlane.f32.xlu0 %v6270
  %v6272 = vpop.xlane.xlu0 %6271
  %v6273 = vadd.f32 %v5671, %v5672
  %6274 = vadd.xlane.f32.xlu0 %v6273
  %v6275 = vpop.xlane.xlu0 %6274
  %v6276 = vadd.f32 %v5673, %v5674
  %6277 = vadd.xlane.f32.xlu0 %v6276
  %v6278 = vpop.xlane.xlu0 %6277
  %v6279 = vadd.f32 %v5675, %v5676
  %6280 = vadd.xlane.f32.xlu0 %v6279
  %v6281 = vpop.xlane.xlu0 %6280
  %v6282 = vadd.f32 %v5677, %v5678
  %6283 = vadd.xlane.f32.xlu0 %v6282
  %v6284 = vpop.xlane.xlu0 %6283
  %v6285 = vadd.f32 %v5679, %v5680
  %6286 = vadd.xlane.f32.xlu0 %v6285
  %v6287 = vpop.xlane.xlu0 %6286
  %v6288 = vadd.f32 %v5681, %v5682
  %6289 = vadd.xlane.f32.xlu0 %v6288
  %v6290 = vpop.xlane.xlu0 %6289
  %v6291 = vadd.f32 %v5683, %v5684
  %6292 = vadd.xlane.f32.xlu0 %v6291
  %v6293 = vpop.xlane.xlu0 %6292
  %v6294 = vadd.f32 %v5685, %v5686
  %6295 = vadd.xlane.f32.xlu0 %v6294
  %v6296 = vpop.xlane.xlu0 %6295
  %v6297 = vadd.f32 %v5687, %v5688
  %6298 = vadd.xlane.f32.xlu0 %v6297
  %v6299 = vpop.xlane.xlu0 %6298
  %v6300 = vadd.f32 %v5689, %v5690
  %6301 = vadd.xlane.f32.xlu0 %v6300
  %v6302 = vpop.xlane.xlu0 %6301
  %v6303 = vadd.f32 %v5691, %v5692
  %6304 = vadd.xlane.f32.xlu0 %v6303
  %v6305 = vpop.xlane.xlu0 %6304
  %v6306 = vadd.f32 %v5693, %v5694
  %6307 = vadd.xlane.f32.xlu0 %v6306
  %v6308 = vpop.xlane.xlu0 %6307
  %v6309 = vadd.f32 %v5695, %v5696
  %6310 = vadd.xlane.f32.xlu0 %v6309
  %v6311 = vpop.xlane.xlu0 %6310
  %v6312 = vadd.f32 %v5697, %v5698
  %6313 = vadd.xlane.f32.xlu0 %v6312
  %v6314 = vpop.xlane.xlu0 %6313
  %v6315 = vadd.f32 %v5699, %v5700
  %6316 = vadd.xlane.f32.xlu0 %v6315
  %v6317 = vpop.xlane.xlu0 %6316
  %v6318 = vadd.f32 %v5701, %v5702
  %6319 = vadd.xlane.f32.xlu0 %v6318
  %v6320 = vpop.xlane.xlu0 %6319
  %v6321 = vadd.f32 %v5703, %v5704
  %6322 = vadd.xlane.f32.xlu0 %v6321
  %v6323 = vpop.xlane.xlu0 %6322
  %v6324 = vadd.f32 %v5705, %v5706
  %6325 = vadd.xlane.f32.xlu0 %v6324
  %v6326 = vpop.xlane.xlu0 %6325
  %v6327 = vadd.f32 %v5707, %v5708
  %6328 = vadd.xlane.f32.xlu0 %v6327
  %v6329 = vpop.xlane.xlu0 %6328
  %v6330 = vadd.f32 %v5709, %v5710
  %6331 = vadd.xlane.f32.xlu0 %v6330
  %v6332 = vpop.xlane.xlu0 %6331
  %v6333 = vadd.f32 %v5711, %v5712
  %6334 = vadd.xlane.f32.xlu0 %v6333
  %v6335 = vpop.xlane.xlu0 %6334
  %v6336 = vadd.f32 %v5713, %v5714
  %6337 = vadd.xlane.f32.xlu0 %v6336
  %v6338 = vpop.xlane.xlu0 %6337
  %v6339 = vadd.f32 %v5715, %v5716
  %6340 = vadd.xlane.f32.xlu0 %v6339
  %v6341 = vpop.xlane.xlu0 %6340
  %v6342 = vadd.f32 %v5717, %v5718
  %6343 = vadd.xlane.f32.xlu0 %v6342
  %v6344 = vpop.xlane.xlu0 %6343
  %v6345 = vadd.f32 %v5719, %v5720
  %6346 = vadd.xlane.f32.xlu0 %v6345
  %v6347 = vpop.xlane.xlu0 %6346
  %v6348 = vadd.f32 %v5721, %v5722
  %6349 = vadd.xlane.f32.xlu0 %v6348
  %v6350 = vpop.xlane.xlu0 %6349
  %v6351 = vadd.f32 %v5723, %v5724
  %6352 = vadd.xlane.f32.xlu0 %v6351
  %v6353 = vpop.xlane.xlu0 %6352
  %v6354 = vadd.f32 %v5725, %v5726
  %6355 = vadd.xlane.f32.xlu0 %v6354
  %v6356 = vpop.xlane.xlu0 %6355
  %v6357 = vadd.f32 %v5727, %v5728
  %6358 = vadd.xlane.f32.xlu0 %v6357
  %v6359 = vpop.xlane.xlu0 %6358
  %v6360 = vadd.f32 %v5729, %v5730
  %6361 = vadd.xlane.f32.xlu0 %v6360
  %v6362 = vpop.xlane.xlu0 %6361
  %v6363 = vadd.f32 %v5731, %v5732
  %6364 = vadd.xlane.f32.xlu0 %v6363
  %v6365 = vpop.xlane.xlu0 %6364
  %v6366 = vadd.f32 %v5733, %v5734
  %6367 = vadd.xlane.f32.xlu0 %v6366
  %v6368 = vpop.xlane.xlu0 %6367
  %v6369 = vadd.f32 %v5735, %v5736
  %6370 = vadd.xlane.f32.xlu0 %v6369
  %v6371 = vpop.xlane.xlu0 %6370
  %v6372 = vadd.f32 %v5737, %v5738
  %6373 = vadd.xlane.f32.xlu0 %v6372
  %v6374 = vpop.xlane.xlu0 %6373
  %v6375 = vadd.f32 %v5739, %v5740
  %6376 = vadd.xlane.f32.xlu0 %v6375
  %v6377 = vpop.xlane.xlu0 %6376
  %v6378 = vadd.f32 %v5741, %v5742
  %6379 = vadd.xlane.f32.xlu0 %v6378
  %v6380 = vpop.xlane.xlu0 %6379
  %v6381 = vadd.f32 %v5743, %v5744
  %6382 = vadd.xlane.f32.xlu0 %v6381
  %v6383 = vpop.xlane.xlu0 %6382
  %v6384 = vadd.f32 %v5745, %v5746
  %6385 = vadd.xlane.f32.xlu0 %v6384
  %v6386 = vpop.xlane.xlu0 %6385
  %v6387 = vadd.f32 %v5747, %v5748
  %6388 = vadd.xlane.f32.xlu0 %v6387
  %v6389 = vpop.xlane.xlu0 %6388
  %v6390 = vadd.f32 %v5749, %v5750
  %6391 = vadd.xlane.f32.xlu0 %v6390
  %v6392 = vpop.xlane.xlu0 %6391
  %v6393 = vadd.f32 %v5751, %v5752
  %6394 = vadd.xlane.f32.xlu0 %v6393
  %v6395 = vpop.xlane.xlu0 %6394
  %v6396 = vadd.f32 %v5753, %v5754
  %6397 = vadd.xlane.f32.xlu0 %v6396
  %v6398 = vpop.xlane.xlu0 %6397
  %v6399 = vadd.f32 %v5755, %v5756
  %6400 = vadd.xlane.f32.xlu0 %v6399
  %v6401 = vpop.xlane.xlu0 %6400
  %v6402 = vadd.f32 %v5757, %v5758
  %6403 = vadd.xlane.f32.xlu0 %v6402
  %v6404 = vpop.xlane.xlu0 %6403
  %v6405 = vadd.f32 %v5759, %v5760
  %6406 = vadd.xlane.f32.xlu0 %v6405
  %v6407 = vpop.xlane.xlu0 %6406
  %v6408 = vadd.f32 %v5761, %v5762
  %6409 = vadd.xlane.f32.xlu0 %v6408
  %v6410 = vpop.xlane.xlu0 %6409
  %v6411 = vadd.f32 %v5763, %v5764
  %6412 = vadd.xlane.f32.xlu0 %v6411
  %v6413 = vpop.xlane.xlu0 %6412
  %v6414 = vadd.f32 %v5765, %v5766
  %6415 = vadd.xlane.f32.xlu0 %v6414
  %v6416 = vpop.xlane.xlu0 %6415
  %v6417 = vadd.f32 %v5767, %v5768
  %6418 = vadd.xlane.f32.xlu0 %v6417
  %v6419 = vpop.xlane.xlu0 %6418
  %v6420 = vadd.f32 %v5769, %v5770
  %6421 = vadd.xlane.f32.xlu0 %v6420
  %v6422 = vpop.xlane.xlu0 %6421
  %v6423 = vadd.f32 %v5771, %v5772
  %6424 = vadd.xlane.f32.xlu0 %v6423
  %v6425 = vpop.xlane.xlu0 %6424
  %v6426 = vadd.f32 %v5773, %v5774
  %6427 = vadd.xlane.f32.xlu0 %v6426
  %v6428 = vpop.xlane.xlu0 %6427
  %v6429 = vadd.f32 %v5775, %v5776
  %6430 = vadd.xlane.f32.xlu0 %v6429
  %v6431 = vpop.xlane.xlu0 %6430
  %v6432 = vadd.f32 %v5777, %v5778
  %6433 = vadd.xlane.f32.xlu0 %v6432
  %v6434 = vpop.xlane.xlu0 %6433
  %v6435 = vadd.f32 %v5779, %v5780
  %6436 = vadd.xlane.f32.xlu0 %v6435
  %v6437 = vpop.xlane.xlu0 %6436
  %v6438 = vadd.f32 %v5781, %v5782
  %6439 = vadd.xlane.f32.xlu0 %v6438
  %v6440 = vpop.xlane.xlu0 %6439
  %v6441 = vadd.f32 %v5783, %v5784
  %6442 = vadd.xlane.f32.xlu0 %v6441
  %v6443 = vpop.xlane.xlu0 %6442
  %v6444 = vadd.f32 %v5785, %v5786
  %6445 = vadd.xlane.f32.xlu0 %v6444
  %v6446 = vpop.xlane.xlu0 %6445
  %v6447 = vadd.f32 %v5787, %v5788
  %6448 = vadd.xlane.f32.xlu0 %v6447
  %v6449 = vpop.xlane.xlu0 %6448
  %v6450 = vadd.f32 %v5789, %v5790
  %6451 = vadd.xlane.f32.xlu0 %v6450
  %v6452 = vpop.xlane.xlu0 %6451
  %v6453 = vadd.f32 %v5791, %v5792
  %6454 = vadd.xlane.f32.xlu0 %v6453
  %v6455 = vpop.xlane.xlu0 %6454
  %v6456 = vadd.f32 %v5793, %v5794
  %6457 = vadd.xlane.f32.xlu0 %v6456
  %v6458 = vpop.xlane.xlu0 %6457
  %v6459 = vadd.f32 %v5795, %v5796
  %6460 = vadd.xlane.f32.xlu0 %v6459
  %v6461 = vpop.xlane.xlu0 %6460
  %v6462 = vadd.f32 %v5797, %v5798
  %6463 = vadd.xlane.f32.xlu0 %v6462
  %v6464 = vpop.xlane.xlu0 %6463
  %v6465 = vadd.f32 %v5799, %v5800
  %6466 = vadd.xlane.f32.xlu0 %v6465
  %v6467 = vpop.xlane.xlu0 %6466
  %v6468 = vadd.f32 %v5801, %v5802
  %6469 = vadd.xlane.f32.xlu0 %v6468
  %v6470 = vpop.xlane.xlu0 %6469
  %v6471 = vadd.f32 %v5803, %v5804
  %6472 = vadd.xlane.f32.xlu0 %v6471
  %v6473 = vpop.xlane.xlu0 %6472
  %v6474 = vadd.f32 %v5805, %v5806
  %6475 = vadd.xlane.f32.xlu0 %v6474
  %v6476 = vpop.xlane.xlu0 %6475
  %v6477 = vadd.f32 %v5807, %v5808
  %6478 = vadd.xlane.f32.xlu0 %v6477
  %v6479 = vpop.xlane.xlu0 %6478
  %v6480 = vadd.f32 %v5809, %v5810
  %6481 = vadd.xlane.f32.xlu0 %v6480
  %v6482 = vpop.xlane.xlu0 %6481
  %v6483 = vadd.f32 %v5811, %v5812
  %6484 = vadd.xlane.f32.xlu0 %v6483
  %v6485 = vpop.xlane.xlu0 %6484
  %v6486 = vadd.f32 %v5813, %v5814
  %6487 = vadd.xlane.f32.xlu0 %v6486
  %v6488 = vpop.xlane.xlu0 %6487
  %v6489 = vadd.f32 %v5815, %v5816
  %6490 = vadd.xlane.f32.xlu0 %v6489
  %v6491 = vpop.xlane.xlu0 %6490
  %v6492 = vadd.f32 %v5817, %v5818
  %6493 = vadd.xlane.f32.xlu0 %v6492
  %v6494 = vpop.xlane.xlu0 %6493
  %v6495 = vadd.f32 %v5819, %v5820
  %6496 = vadd.xlane.f32.xlu0 %v6495
  %v6497 = vpop.xlane.xlu0 %6496
  %v6498 = vadd.f32 %v5821, %v5822
  %6499 = vadd.xlane.f32.xlu0 %v6498
  %v6500 = vpop.xlane.xlu0 %6499
  %v6501 = vadd.f32 %v5823, %v5824
  %6502 = vadd.xlane.f32.xlu0 %v6501
  %v6503 = vpop.xlane.xlu0 %6502
  %v6504 = vadd.f32 %v5825, %v5826
  %6505 = vadd.xlane.f32.xlu0 %v6504
  %v6506 = vpop.xlane.xlu0 %6505
  %v6507 = vadd.f32 %v5827, %v5828
  %6508 = vadd.xlane.f32.xlu0 %v6507
  %v6509 = vpop.xlane.xlu0 %6508
  %v6510 = vadd.f32 %v5829, %v5830
  %6511 = vadd.xlane.f32.xlu0 %v6510
  %v6512 = vpop.xlane.xlu0 %6511
  %v6513 = vadd.f32 %v5831, %v5832
  %6514 = vadd.xlane.f32.xlu0 %v6513
  %v6515 = vpop.xlane.xlu0 %6514
  %v6516 = vadd.f32 %v5833, %v5834
  %6517 = vadd.xlane.f32.xlu0 %v6516
  %v6518 = vpop.xlane.xlu0 %6517
  %v6519 = vadd.f32 %v5835, %v5836
  %6520 = vadd.xlane.f32.xlu0 %v6519
  %v6521 = vpop.xlane.xlu0 %6520
  %v6522 = vadd.f32 %v5837, %v5838
  %6523 = vadd.xlane.f32.xlu0 %v6522
  %v6524 = vpop.xlane.xlu0 %6523
  %v6525 = vadd.f32 %v5839, %v5840
  %6526 = vadd.xlane.f32.xlu0 %v6525
  %v6527 = vpop.xlane.xlu0 %6526
  %v6528 = vadd.f32 %v5841, %v5842
  %6529 = vadd.xlane.f32.xlu0 %v6528
  %v6530 = vpop.xlane.xlu0 %6529
  %v6531 = vadd.f32 %v5843, %v5844
  %6532 = vadd.xlane.f32.xlu0 %v6531
  %v6533 = vpop.xlane.xlu0 %6532
  %v6534 = vadd.f32 %v5845, %v5846
  %6535 = vadd.xlane.f32.xlu0 %v6534
  %v6536 = vpop.xlane.xlu0 %6535
  %v6537 = vadd.f32 %v5847, %v5848
  %6538 = vadd.xlane.f32.xlu0 %v6537
  %v6539 = vpop.xlane.xlu0 %6538
  %v6540 = vadd.f32 %v5849, %v5850
  %6541 = vadd.xlane.f32.xlu0 %v6540
  %v6542 = vpop.xlane.xlu0 %6541
  %v6543 = vadd.f32 %v5851, %v5852
  %6544 = vadd.xlane.f32.xlu0 %v6543
  %v6545 = vpop.xlane.xlu0 %6544
  %v6546 = vadd.f32 %v5853, %v5854
  %6547 = vadd.xlane.f32.xlu0 %v6546
  %v6548 = vpop.xlane.xlu0 %6547
  %v6549 = vadd.f32 %v5855, %v5856
  %6550 = vadd.xlane.f32.xlu0 %v6549
  %v6551 = vpop.xlane.xlu0 %6550
  %v6552 = vadd.f32 %v5857, %v5858
  %6553 = vadd.xlane.f32.xlu0 %v6552
  %v6554 = vpop.xlane.xlu0 %6553
  %v6555 = vadd.f32 %v5859, %v5860
  %6556 = vadd.xlane.f32.xlu0 %v6555
  %v6557 = vpop.xlane.xlu0 %6556
  %v6558 = vadd.f32 %v5861, %v5862
  %6559 = vadd.xlane.f32.xlu0 %v6558
  %v6560 = vpop.xlane.xlu0 %6559
  %v6561 = vadd.f32 %v5863, %v5864
  %6562 = vadd.xlane.f32.xlu0 %v6561
  %v6563 = vpop.xlane.xlu0 %6562
  %v6564 = vadd.f32 %v5865, %v5866
  %6565 = vadd.xlane.f32.xlu0 %v6564
  %v6566 = vpop.xlane.xlu0 %6565
  %v6567 = vadd.f32 %v5867, %v5868
  %6568 = vadd.xlane.f32.xlu0 %v6567
  %v6569 = vpop.xlane.xlu0 %6568
  %v6570 = vadd.f32 %v5869, %v5870
  %6571 = vadd.xlane.f32.xlu0 %v6570
  %v6572 = vpop.xlane.xlu0 %6571
  %v6573 = vadd.f32 %v5871, %v5872
  %6574 = vadd.xlane.f32.xlu0 %v6573
  %v6575 = vpop.xlane.xlu0 %6574
  %v6576 = vadd.f32 %v5873, %v5874
  %6577 = vadd.xlane.f32.xlu0 %v6576
  %v6578 = vpop.xlane.xlu0 %6577
  %v6579 = vadd.f32 %v5875, %v5876
  %6580 = vadd.xlane.f32.xlu0 %v6579
  %v6581 = vpop.xlane.xlu0 %6580
  %v6582 = vadd.f32 %v5877, %v5878
  %6583 = vadd.xlane.f32.xlu0 %v6582
  %v6584 = vpop.xlane.xlu0 %6583
  %v6585 = vadd.f32 %v5879, %v5880
  %6586 = vadd.xlane.f32.xlu0 %v6585
  %v6587 = vpop.xlane.xlu0 %6586
  %v6588 = vadd.f32 %v5881, %v5882
  %6589 = vadd.xlane.f32.xlu0 %v6588
  %v6590 = vpop.xlane.xlu0 %6589
  %v6591 = vadd.f32 %v5883, %v5884
  %6592 = vadd.xlane.f32.xlu0 %v6591
  %v6593 = vpop.xlane.xlu0 %6592
  %v6594 = vadd.f32 %v5885, %v5886
  %6595 = vadd.xlane.f32.xlu0 %v6594
  %v6596 = vpop.xlane.xlu0 %6595
  %v6597 = vadd.f32 %v5887, %v5888
  %6598 = vadd.xlane.f32.xlu0 %v6597
  %v6599 = vpop.xlane.xlu0 %6598
  %v6600 = vadd.f32 %v5889, %v5890
  %6601 = vadd.xlane.f32.xlu0 %v6600
  %v6602 = vpop.xlane.xlu0 %6601
  %v6603 = vadd.f32 %v5891, %v5892
  %6604 = vadd.xlane.f32.xlu0 %v6603
  %v6605 = vpop.xlane.xlu0 %6604
  %v6606 = vadd.f32 %v5893, %v5894
  %6607 = vadd.xlane.f32.xlu0 %v6606
  %v6608 = vpop.xlane.xlu0 %6607
  %v6609 = vadd.f32 %v5895, %v5896
  %6610 = vadd.xlane.f32.xlu0 %v6609
  %v6611 = vpop.xlane.xlu0 %6610
  %v6612 = vadd.f32 %v5897, %v5898
  %6613 = vadd.xlane.f32.xlu0 %v6612
  %v6614 = vpop.xlane.xlu0 %6613
  %v6615 = vadd.f32 %v5899, %v5900
  %6616 = vadd.xlane.f32.xlu0 %v6615
  %v6617 = vpop.xlane.xlu0 %6616
  %v6618 = vadd.f32 %v5901, %v5902
  %6619 = vadd.xlane.f32.xlu0 %v6618
  %v6620 = vpop.xlane.xlu0 %6619
  %v6621 = vadd.f32 %v5903, %v5904
  %6622 = vadd.xlane.f32.xlu0 %v6621
  %v6623 = vpop.xlane.xlu0 %6622
  %v6624 = vadd.f32 %v5905, %v5906
  %6625 = vadd.xlane.f32.xlu0 %v6624
  %v6626 = vpop.xlane.xlu0 %6625
  %v6627 = vadd.f32 %v5907, %v5908
  %6628 = vadd.xlane.f32.xlu0 %v6627
  %v6629 = vpop.xlane.xlu0 %6628
  %v6630 = vadd.f32 %v5909, %v5910
  %6631 = vadd.xlane.f32.xlu0 %v6630
  %v6632 = vpop.xlane.xlu0 %6631
  %v6633 = vadd.f32 %v5911, %v5912
  %6634 = vadd.xlane.f32.xlu0 %v6633
  %v6635 = vpop.xlane.xlu0 %6634
  %v6636 = vadd.f32 %v5913, %v5914
  %6637 = vadd.xlane.f32.xlu0 %v6636
  %v6638 = vpop.xlane.xlu0 %6637
  %v6639 = vadd.f32 %v5915, %v5916
  %6640 = vadd.xlane.f32.xlu0 %v6639
  %v6641 = vpop.xlane.xlu0 %6640
  %v6642 = vadd.f32 %v5917, %v5918
  %6643 = vadd.xlane.f32.xlu0 %v6642
  %v6644 = vpop.xlane.xlu0 %6643
  %v6645 = vadd.f32 %v5919, %v5920
  %6646 = vadd.xlane.f32.xlu0 %v6645
  %v6647 = vpop.xlane.xlu0 %6646
  %v6648 = vadd.f32 %v5921, %v5922
  %6649 = vadd.xlane.f32.xlu0 %v6648
  %v6650 = vpop.xlane.xlu0 %6649
  %v6651 = vadd.f32 %v5923, %v5924
  %6652 = vadd.xlane.f32.xlu0 %v6651
  %v6653 = vpop.xlane.xlu0 %6652
  %v6654 = vadd.f32 %v5925, %v5926
  %6655 = vadd.xlane.f32.xlu0 %v6654
  %v6656 = vpop.xlane.xlu0 %6655
  %v6657 = vadd.f32 %v5927, %v5928
  %6658 = vadd.xlane.f32.xlu0 %v6657
  %v6659 = vpop.xlane.xlu0 %6658
  %v6660 = vadd.f32 %v5929, %v5930
  %6661 = vadd.xlane.f32.xlu0 %v6660
  %v6662 = vpop.xlane.xlu0 %6661
  %v6663 = vadd.f32 %v5931, %v5932
  %6664 = vadd.xlane.f32.xlu0 %v6663
  %v6665 = vpop.xlane.xlu0 %6664
  %v6666 = vadd.f32 %v5933, %v5934
  %6667 = vadd.xlane.f32.xlu0 %v6666
  %v6668 = vpop.xlane.xlu0 %6667
  %v6669 = vadd.f32 %v5935, %v5936
  %6670 = vadd.xlane.f32.xlu0 %v6669
  %v6671 = vpop.xlane.xlu0 %6670
  %v6672 = vadd.f32 %v5937, %v5938
  %6673 = vadd.xlane.f32.xlu0 %v6672
  %v6674 = vpop.xlane.xlu0 %6673
  %v6675 = vadd.f32 %v5939, %v5940
  %6676 = vadd.xlane.f32.xlu0 %v6675
  %v6677 = vpop.xlane.xlu0 %6676
  %v6678 = vadd.f32 %v5941, %v5942
  %6679 = vadd.xlane.f32.xlu0 %v6678
  %v6680 = vpop.xlane.xlu0 %6679
  %v6681 = vadd.f32 %v5943, %v5944
  %6682 = vadd.xlane.f32.xlu0 %v6681
  %v6683 = vpop.xlane.xlu0 %6682
  %v6684 = vadd.f32 %v5945, %v5946
  %6685 = vadd.xlane.f32.xlu0 %v6684
  %v6686 = vpop.xlane.xlu0 %6685
  %v6687 = vadd.f32 %v5947, %v5948
  %6688 = vadd.xlane.f32.xlu0 %v6687
  %v6689 = vpop.xlane.xlu0 %6688
  %v6690 = vadd.f32 %v5949, %v5950
  %6691 = vadd.xlane.f32.xlu0 %v6690
  %v6692 = vpop.xlane.xlu0 %6691
  %v6693 = vadd.f32 %v5951, %v5952
  %6694 = vadd.xlane.f32.xlu0 %v6693
  %v6695 = vpop.xlane.xlu0 %6694
  %v6696 = vadd.f32 %v5953, %v5954
  %6697 = vadd.xlane.f32.xlu0 %v6696
  %v6698 = vpop.xlane.xlu0 %6697
  %v6699 = vadd.f32 %v5955, %v5956
  %6700 = vadd.xlane.f32.xlu0 %v6699
  %v6701 = vpop.xlane.xlu0 %6700
  %v6702 = vadd.f32 %v5957, %v5958
  %6703 = vadd.xlane.f32.xlu0 %v6702
  %v6704 = vpop.xlane.xlu0 %6703
  %v6705 = vadd.f32 %v5959, %v5960
  %6706 = vadd.xlane.f32.xlu0 %v6705
  %v6707 = vpop.xlane.xlu0 %6706
  %v6708 = vadd.f32 %v5961, %v5962
  %6709 = vadd.xlane.f32.xlu0 %v6708
  %v6710 = vpop.xlane.xlu0 %6709
  %v6711 = vadd.f32 %v5963, %v5964
  %6712 = vadd.xlane.f32.xlu0 %v6711
  %v6713 = vpop.xlane.xlu0 %6712
  %v6714 = vadd.f32 %v5965, %v5966
  %6715 = vadd.xlane.f32.xlu0 %v6714
  %v6716 = vpop.xlane.xlu0 %6715
  %v6717 = vadd.f32 %v5967, %v5968
  %6718 = vadd.xlane.f32.xlu0 %v6717
  %v6719 = vpop.xlane.xlu0 %6718
  %v6720 = vadd.f32 %v5969, %v5970
  %6721 = vadd.xlane.f32.xlu0 %v6720
  %v6722 = vpop.xlane.xlu0 %6721
  %v6723 = vadd.f32 %v5971, %v5972
  %6724 = vadd.xlane.f32.xlu0 %v6723
  %v6725 = vpop.xlane.xlu0 %6724
  %v6726 = vadd.f32 %v5973, %v5974
  %6727 = vadd.xlane.f32.xlu0 %v6726
  %v6728 = vpop.xlane.xlu0 %6727
  %v6729 = vadd.f32 %v5975, %v5976
  %6730 = vadd.xlane.f32.xlu0 %v6729
  %v6731 = vpop.xlane.xlu0 %6730
  %v6732 = vadd.f32 %v5977, %v5978
  %6733 = vadd.xlane.f32.xlu0 %v6732
  %v6734 = vpop.xlane.xlu0 %6733
  %v6735 = vadd.f32 %v5979, %v5980
  %6736 = vadd.xlane.f32.xlu0 %v6735
  %v6737 = vpop.xlane.xlu0 %6736
  %v6738 = vadd.f32 %v5981, %v5982
  %6739 = vadd.xlane.f32.xlu0 %v6738
  %v6740 = vpop.xlane.xlu0 %6739
  %v6741 = vadd.f32 %v5983, %v5984
  %6742 = vadd.xlane.f32.xlu0 %v6741
  %v6743 = vpop.xlane.xlu0 %6742
  %v6744 = vadd.f32 %v5985, %v5986
  %6745 = vadd.xlane.f32.xlu0 %v6744
  %v6746 = vpop.xlane.xlu0 %6745
  %v6747 = vadd.f32 %v5987, %v5988
  %6748 = vadd.xlane.f32.xlu0 %v6747
  %v6749 = vpop.xlane.xlu0 %6748
  %v6750 = vadd.f32 %v5989, %v5990
  %6751 = vadd.xlane.f32.xlu0 %v6750
  %v6752 = vpop.xlane.xlu0 %6751
  %v6753 = vadd.f32 %v5991, %v5992
  %6754 = vadd.xlane.f32.xlu0 %v6753
  %v6755 = vpop.xlane.xlu0 %6754
  %v6756 = vadd.f32 %v5993, %v5994
  %6757 = vadd.xlane.f32.xlu0 %v6756
  %v6758 = vpop.xlane.xlu0 %6757
  %v6759 = vadd.f32 %v5995, %v5996
  %6760 = vadd.xlane.f32.xlu0 %v6759
  %v6761 = vpop.xlane.xlu0 %6760
  %v6762 = vadd.f32 %v5997, %v5998
  %6763 = vadd.xlane.f32.xlu0 %v6762
  %v6764 = vpop.xlane.xlu0 %6763
  %v6765 = vadd.f32 %v5999, %v6000
  %6766 = vadd.xlane.f32.xlu0 %v6765
  %v6767 = vpop.xlane.xlu0 %6766
  %v6768 = vadd.f32 %v6001, %v6002
  %6769 = vadd.xlane.f32.xlu0 %v6768
  %v6770 = vpop.xlane.xlu0 %6769
  %v6771 = vadd.f32 %v6003, %v6004
  %6772 = vadd.xlane.f32.xlu0 %v6771
  %v6773 = vpop.xlane.xlu0 %6772
  %v6774 = vadd.f32 %v6005, %v6006
  %6775 = vadd.xlane.f32.xlu0 %v6774
  %v6776 = vpop.xlane.xlu0 %6775
  %v7033 = vlaneseq
  %v7034 = vand.u32 %v7033, 127
  %v7035 = vlaneseq
  %v7036 = vshrl.u32 %v7035, 7
  %v7037 = vsub.s32 %v7034, %v7036
  %v7038 = vrot.slane %v6011, %v7037
  %v7039 = vadd.s32 %v7034, 4294967288
  %v7040 = vlaneseq
  %v7041 = vshrl.u32 %v7040, 7
  %v7042 = vsub.s32 %v7039, %v7041
  %v7043 = vrot.slane %v6014, %v7042
  %vm7044 = vcmask 130112
  %v7045 = vsel %vm7044, %v7043, %v7038
  %v7046 = vadd.s32 %v7034, 4294967280
  %v7047 = vlaneseq
  %v7048 = vshrl.u32 %v7047, 7
  %v7049 = vsub.s32 %v7046, %v7048
  %v7050 = vrot.slane %v6017, %v7049
  %vm7051 = vcmask 195712
  %v7052 = vsel %vm7051, %v7050, %v7045
  %v7053 = vadd.s32 %v7034, 4294967272
  %v7054 = vlaneseq
  %v7055 = vshrl.u32 %v7054, 7
  %v7056 = vsub.s32 %v7053, %v7055
  %v7057 = vrot.slane %v6020, %v7056
  %vm7058 = vcmask 261312
  %v7059 = vsel %vm7058, %v7057, %v7052
  %v7060 = vadd.s32 %v7034, 4294967264
  %v7061 = vlaneseq
  %v7062 = vshrl.u32 %v7061, 7
  %v7063 = vsub.s32 %v7060, %v7062
  %v7064 = vrot.slane %v6023, %v7063
  %vm7065 = vcmask 326912
  %v7066 = vsel %vm7065, %v7064, %v7059
  %v7067 = vadd.s32 %v7034, 4294967256
  %v7068 = vlaneseq
  %v7069 = vshrl.u32 %v7068, 7
  %v7070 = vsub.s32 %v7067, %v7069
  %v7071 = vrot.slane %v6026, %v7070
  %vm7072 = vcmask 392512
  %v7073 = vsel %vm7072, %v7071, %v7066
  %v7074 = vadd.s32 %v7034, 4294967248
  %v7075 = vlaneseq
  %v7076 = vshrl.u32 %v7075, 7
  %v7077 = vsub.s32 %v7074, %v7076
  %v7078 = vrot.slane %v6029, %v7077
  %vm7079 = vcmask 458112
  %v7080 = vsel %vm7079, %v7078, %v7073
  %v7081 = vadd.s32 %v7034, 4294967240
  %v7082 = vlaneseq
  %v7083 = vshrl.u32 %v7082, 7
  %v7084 = vsub.s32 %v7081, %v7083
  %v7085 = vrot.slane %v6032, %v7084
  %vm7086 = vcmask 523712
  %v7087 = vsel %vm7086, %v7085, %v7080
  %v7088 = vadd.s32 %v7034, 4294967232
  %v7089 = vlaneseq
  %v7090 = vshrl.u32 %v7089, 7
  %v7091 = vsub.s32 %v7088, %v7090
  %v7092 = vrot.slane %v6035, %v7091
  %vm7093 = vcmask 589312
  %v7094 = vsel %vm7093, %v7092, %v7087
  %v7095 = vadd.s32 %v7034, 4294967224
  %v7096 = vlaneseq
  %v7097 = vshrl.u32 %v7096, 7
  %v7098 = vsub.s32 %v7095, %v7097
  %v7099 = vrot.slane %v6038, %v7098
  %vm7100 = vcmask 654912
  %v7101 = vsel %vm7100, %v7099, %v7094
  %v7102 = vadd.s32 %v7034, 4294967216
  %v7103 = vlaneseq
  %v7104 = vshrl.u32 %v7103, 7
  %v7105 = vsub.s32 %v7102, %v7104
  %v7106 = vrot.slane %v6041, %v7105
  %vm7107 = vcmask 720512
  %v7108 = vsel %vm7107, %v7106, %v7101
  %v7109 = vadd.s32 %v7034, 4294967208
  %v7110 = vlaneseq
  %v7111 = vshrl.u32 %v7110, 7
  %v7112 = vsub.s32 %v7109, %v7111
  %v7113 = vrot.slane %v6044, %v7112
  %vm7114 = vcmask 786112
  %v7115 = vsel %vm7114, %v7113, %v7108
  %v7116 = vadd.s32 %v7034, 4294967200
  %v7117 = vlaneseq
  %v7118 = vshrl.u32 %v7117, 7
  %v7119 = vsub.s32 %v7116, %v7118
  %v7120 = vrot.slane %v6047, %v7119
  %vm7121 = vcmask 851712
  %v7122 = vsel %vm7121, %v7120, %v7115
  %v7123 = vadd.s32 %v7034, 4294967192
  %v7124 = vlaneseq
  %v7125 = vshrl.u32 %v7124, 7
  %v7126 = vsub.s32 %v7123, %v7125
  %v7127 = vrot.slane %v6050, %v7126
  %vm7128 = vcmask 917312
  %v7129 = vsel %vm7128, %v7127, %v7122
  %v7130 = vadd.s32 %v7034, 4294967184
  %v7131 = vlaneseq
  %v7132 = vshrl.u32 %v7131, 7
  %v7133 = vsub.s32 %v7130, %v7132
  %v7134 = vrot.slane %v6053, %v7133
  %vm7135 = vcmask 982912
  %v7136 = vsel %vm7135, %v7134, %v7129
  %v7137 = vadd.s32 %v7034, 4294967176
  %v7138 = vlaneseq
  %v7139 = vshrl.u32 %v7138, 7
  %v7140 = vsub.s32 %v7137, %v7139
  %v7141 = vrot.slane %v6056, %v7140
  %vm7142 = vcmask 1048512
  %v7143 = vsel %vm7142, %v7141, %v7136
  %v7144 = vlaneseq
  %v7145 = vshrl.u32 %v7144, 7
  %v7146 = vsub.s32 %v7034, %v7145
  %v7147 = vrot.slane %v6059, %v7146
  %v7148 = vlaneseq
  %v7149 = vshrl.u32 %v7148, 7
  %v7150 = vsub.s32 %v7039, %v7149
  %v7151 = vrot.slane %v6062, %v7150
  %v7152 = vsel %vm7044, %v7151, %v7147
  %v7153 = vlaneseq
  %v7154 = vshrl.u32 %v7153, 7
  %v7155 = vsub.s32 %v7046, %v7154
  %v7156 = vrot.slane %v6065, %v7155
  %v7157 = vsel %vm7051, %v7156, %v7152
  %v7158 = vlaneseq
  %v7159 = vshrl.u32 %v7158, 7
  %v7160 = vsub.s32 %v7053, %v7159
  %v7161 = vrot.slane %v6068, %v7160
  %v7162 = vsel %vm7058, %v7161, %v7157
  %v7163 = vlaneseq
  %v7164 = vshrl.u32 %v7163, 7
  %v7165 = vsub.s32 %v7060, %v7164
  %v7166 = vrot.slane %v6071, %v7165
  %v7167 = vsel %vm7065, %v7166, %v7162
  %v7168 = vlaneseq
  %v7169 = vshrl.u32 %v7168, 7
  %v7170 = vsub.s32 %v7067, %v7169
  %v7171 = vrot.slane %v6074, %v7170
  %v7172 = vsel %vm7072, %v7171, %v7167
  %v7173 = vlaneseq
  %v7174 = vshrl.u32 %v7173, 7
  %v7175 = vsub.s32 %v7074, %v7174
  %v7176 = vrot.slane %v6077, %v7175
  %v7177 = vsel %vm7079, %v7176, %v7172
  %v7178 = vlaneseq
  %v7179 = vshrl.u32 %v7178, 7
  %v7180 = vsub.s32 %v7081, %v7179
  %v7181 = vrot.slane %v6080, %v7180
  %v7182 = vsel %vm7086, %v7181, %v7177
  %v7183 = vlaneseq
  %v7184 = vshrl.u32 %v7183, 7
  %v7185 = vsub.s32 %v7088, %v7184
  %v7186 = vrot.slane %v6083, %v7185
  %v7187 = vsel %vm7093, %v7186, %v7182
  %v7188 = vlaneseq
  %v7189 = vshrl.u32 %v7188, 7
  %v7190 = vsub.s32 %v7095, %v7189
  %v7191 = vrot.slane %v6086, %v7190
  %v7192 = vsel %vm7100, %v7191, %v7187
  %v7193 = vlaneseq
  %v7194 = vshrl.u32 %v7193, 7
  %v7195 = vsub.s32 %v7102, %v7194
  %v7196 = vrot.slane %v6089, %v7195
  %v7197 = vsel %vm7107, %v7196, %v7192
  %v7198 = vlaneseq
  %v7199 = vshrl.u32 %v7198, 7
  %v7200 = vsub.s32 %v7109, %v7199
  %v7201 = vrot.slane %v6092, %v7200
  %v7202 = vsel %vm7114, %v7201, %v7197
  %v7203 = vlaneseq
  %v7204 = vshrl.u32 %v7203, 7
  %v7205 = vsub.s32 %v7116, %v7204
  %v7206 = vrot.slane %v6095, %v7205
  %v7207 = vsel %vm7121, %v7206, %v7202
  %v7208 = vlaneseq
  %v7209 = vshrl.u32 %v7208, 7
  %v7210 = vsub.s32 %v7123, %v7209
  %v7211 = vrot.slane %v6098, %v7210
  %v7212 = vsel %vm7128, %v7211, %v7207
  %v7213 = vlaneseq
  %v7214 = vshrl.u32 %v7213, 7
  %v7215 = vsub.s32 %v7130, %v7214
  %v7216 = vrot.slane %v6101, %v7215
  %v7217 = vsel %vm7135, %v7216, %v7212
  %v7218 = vlaneseq
  %v7219 = vshrl.u32 %v7218, 7
  %v7220 = vsub.s32 %v7137, %v7219
  %v7221 = vrot.slane %v6104, %v7220
  %v7222 = vsel %vm7142, %v7221, %v7217
  %v7223 = vlaneseq
  %v7224 = vshrl.u32 %v7223, 7
  %v7225 = vsub.s32 %v7034, %v7224
  %v7226 = vrot.slane %v6107, %v7225
  %v7227 = vlaneseq
  %v7228 = vshrl.u32 %v7227, 7
  %v7229 = vsub.s32 %v7039, %v7228
  %v7230 = vrot.slane %v6110, %v7229
  %v7231 = vsel %vm7044, %v7230, %v7226
  %v7232 = vlaneseq
  %v7233 = vshrl.u32 %v7232, 7
  %v7234 = vsub.s32 %v7046, %v7233
  %v7235 = vrot.slane %v6113, %v7234
  %v7236 = vsel %vm7051, %v7235, %v7231
  %v7237 = vlaneseq
  %v7238 = vshrl.u32 %v7237, 7
  %v7239 = vsub.s32 %v7053, %v7238
  %v7240 = vrot.slane %v6116, %v7239
  %v7241 = vsel %vm7058, %v7240, %v7236
  %v7242 = vlaneseq
  %v7243 = vshrl.u32 %v7242, 7
  %v7244 = vsub.s32 %v7060, %v7243
  %v7245 = vrot.slane %v6119, %v7244
  %v7246 = vsel %vm7065, %v7245, %v7241
  %v7247 = vlaneseq
  %v7248 = vshrl.u32 %v7247, 7
  %v7249 = vsub.s32 %v7067, %v7248
  %v7250 = vrot.slane %v6122, %v7249
  %v7251 = vsel %vm7072, %v7250, %v7246
  %v7252 = vlaneseq
  %v7253 = vshrl.u32 %v7252, 7
  %v7254 = vsub.s32 %v7074, %v7253
  %v7255 = vrot.slane %v6125, %v7254
  %v7256 = vsel %vm7079, %v7255, %v7251
  %v7257 = vlaneseq
  %v7258 = vshrl.u32 %v7257, 7
  %v7259 = vsub.s32 %v7081, %v7258
  %v7260 = vrot.slane %v6128, %v7259
  %v7261 = vsel %vm7086, %v7260, %v7256
  %v7262 = vlaneseq
  %v7263 = vshrl.u32 %v7262, 7
  %v7264 = vsub.s32 %v7088, %v7263
  %v7265 = vrot.slane %v6131, %v7264
  %v7266 = vsel %vm7093, %v7265, %v7261
  %v7267 = vlaneseq
  %v7268 = vshrl.u32 %v7267, 7
  %v7269 = vsub.s32 %v7095, %v7268
  %v7270 = vrot.slane %v6134, %v7269
  %v7271 = vsel %vm7100, %v7270, %v7266
  %v7272 = vlaneseq
  %v7273 = vshrl.u32 %v7272, 7
  %v7274 = vsub.s32 %v7102, %v7273
  %v7275 = vrot.slane %v6137, %v7274
  %v7276 = vsel %vm7107, %v7275, %v7271
  %v7277 = vlaneseq
  %v7278 = vshrl.u32 %v7277, 7
  %v7279 = vsub.s32 %v7109, %v7278
  %v7280 = vrot.slane %v6140, %v7279
  %v7281 = vsel %vm7114, %v7280, %v7276
  %v7282 = vlaneseq
  %v7283 = vshrl.u32 %v7282, 7
  %v7284 = vsub.s32 %v7116, %v7283
  %v7285 = vrot.slane %v6143, %v7284
  %v7286 = vsel %vm7121, %v7285, %v7281
  %v7287 = vlaneseq
  %v7288 = vshrl.u32 %v7287, 7
  %v7289 = vsub.s32 %v7123, %v7288
  %v7290 = vrot.slane %v6146, %v7289
  %v7291 = vsel %vm7128, %v7290, %v7286
  %v7292 = vlaneseq
  %v7293 = vshrl.u32 %v7292, 7
  %v7294 = vsub.s32 %v7130, %v7293
  %v7295 = vrot.slane %v6149, %v7294
  %v7296 = vsel %vm7135, %v7295, %v7291
  %v7297 = vlaneseq
  %v7298 = vshrl.u32 %v7297, 7
  %v7299 = vsub.s32 %v7137, %v7298
  %v7300 = vrot.slane %v6152, %v7299
  %v7301 = vsel %vm7142, %v7300, %v7296
  %v7302 = vlaneseq
  %v7303 = vshrl.u32 %v7302, 7
  %v7304 = vsub.s32 %v7034, %v7303
  %v7305 = vrot.slane %v6155, %v7304
  %v7306 = vlaneseq
  %v7307 = vshrl.u32 %v7306, 7
  %v7308 = vsub.s32 %v7039, %v7307
  %v7309 = vrot.slane %v6158, %v7308
  %v7310 = vsel %vm7044, %v7309, %v7305
  %v7311 = vlaneseq
  %v7312 = vshrl.u32 %v7311, 7
  %v7313 = vsub.s32 %v7046, %v7312
  %v7314 = vrot.slane %v6161, %v7313
  %v7315 = vsel %vm7051, %v7314, %v7310
  %v7316 = vlaneseq
  %v7317 = vshrl.u32 %v7316, 7
  %v7318 = vsub.s32 %v7053, %v7317
  %v7319 = vrot.slane %v6164, %v7318
  %v7320 = vsel %vm7058, %v7319, %v7315
  %v7321 = vlaneseq
  %v7322 = vshrl.u32 %v7321, 7
  %v7323 = vsub.s32 %v7060, %v7322
  %v7324 = vrot.slane %v6167, %v7323
  %v7325 = vsel %vm7065, %v7324, %v7320
  %v7326 = vlaneseq
  %v7327 = vshrl.u32 %v7326, 7
  %v7328 = vsub.s32 %v7067, %v7327
  %v7329 = vrot.slane %v6170, %v7328
  %v7330 = vsel %vm7072, %v7329, %v7325
  %v7331 = vlaneseq
  %v7332 = vshrl.u32 %v7331, 7
  %v7333 = vsub.s32 %v7074, %v7332
  %v7334 = vrot.slane %v6173, %v7333
  %v7335 = vsel %vm7079, %v7334, %v7330
  %v7336 = vlaneseq
  %v7337 = vshrl.u32 %v7336, 7
  %v7338 = vsub.s32 %v7081, %v7337
  %v7339 = vrot.slane %v6176, %v7338
  %v7340 = vsel %vm7086, %v7339, %v7335
  %v7341 = vlaneseq
  %v7342 = vshrl.u32 %v7341, 7
  %v7343 = vsub.s32 %v7088, %v7342
  %v7344 = vrot.slane %v6179, %v7343
  %v7345 = vsel %vm7093, %v7344, %v7340
  %v7346 = vlaneseq
  %v7347 = vshrl.u32 %v7346, 7
  %v7348 = vsub.s32 %v7095, %v7347
  %v7349 = vrot.slane %v6182, %v7348
  %v7350 = vsel %vm7100, %v7349, %v7345
  %v7351 = vlaneseq
  %v7352 = vshrl.u32 %v7351, 7
  %v7353 = vsub.s32 %v7102, %v7352
  %v7354 = vrot.slane %v6185, %v7353
  %v7355 = vsel %vm7107, %v7354, %v7350
  %v7356 = vlaneseq
  %v7357 = vshrl.u32 %v7356, 7
  %v7358 = vsub.s32 %v7109, %v7357
  %v7359 = vrot.slane %v6188, %v7358
  %v7360 = vsel %vm7114, %v7359, %v7355
  %v7361 = vlaneseq
  %v7362 = vshrl.u32 %v7361, 7
  %v7363 = vsub.s32 %v7116, %v7362
  %v7364 = vrot.slane %v6191, %v7363
  %v7365 = vsel %vm7121, %v7364, %v7360
  %v7366 = vlaneseq
  %v7367 = vshrl.u32 %v7366, 7
  %v7368 = vsub.s32 %v7123, %v7367
  %v7369 = vrot.slane %v6194, %v7368
  %v7370 = vsel %vm7128, %v7369, %v7365
  %v7371 = vlaneseq
  %v7372 = vshrl.u32 %v7371, 7
  %v7373 = vsub.s32 %v7130, %v7372
  %v7374 = vrot.slane %v6197, %v7373
  %v7375 = vsel %vm7135, %v7374, %v7370
  %v7376 = vlaneseq
  %v7377 = vshrl.u32 %v7376, 7
  %v7378 = vsub.s32 %v7137, %v7377
  %v7379 = vrot.slane %v6200, %v7378
  %v7380 = vsel %vm7142, %v7379, %v7375
  %v7381 = vlaneseq
  %v7382 = vshrl.u32 %v7381, 7
  %v7383 = vsub.s32 %v7034, %v7382
  %v7384 = vrot.slane %v6203, %v7383
  %v7385 = vlaneseq
  %v7386 = vshrl.u32 %v7385, 7
  %v7387 = vsub.s32 %v7039, %v7386
  %v7388 = vrot.slane %v6206, %v7387
  %v7389 = vsel %vm7044, %v7388, %v7384
  %v7390 = vlaneseq
  %v7391 = vshrl.u32 %v7390, 7
  %v7392 = vsub.s32 %v7046, %v7391
  %v7393 = vrot.slane %v6209, %v7392
  %v7394 = vsel %vm7051, %v7393, %v7389
  %v7395 = vlaneseq
  %v7396 = vshrl.u32 %v7395, 7
  %v7397 = vsub.s32 %v7053, %v7396
  %v7398 = vrot.slane %v6212, %v7397
  %v7399 = vsel %vm7058, %v7398, %v7394
  %v7400 = vlaneseq
  %v7401 = vshrl.u32 %v7400, 7
  %v7402 = vsub.s32 %v7060, %v7401
  %v7403 = vrot.slane %v6215, %v7402
  %v7404 = vsel %vm7065, %v7403, %v7399
  %v7405 = vlaneseq
  %v7406 = vshrl.u32 %v7405, 7
  %v7407 = vsub.s32 %v7067, %v7406
  %v7408 = vrot.slane %v6218, %v7407
  %v7409 = vsel %vm7072, %v7408, %v7404
  %v7410 = vlaneseq
  %v7411 = vshrl.u32 %v7410, 7
  %v7412 = vsub.s32 %v7074, %v7411
  %v7413 = vrot.slane %v6221, %v7412
  %v7414 = vsel %vm7079, %v7413, %v7409
  %v7415 = vlaneseq
  %v7416 = vshrl.u32 %v7415, 7
  %v7417 = vsub.s32 %v7081, %v7416
  %v7418 = vrot.slane %v6224, %v7417
  %v7419 = vsel %vm7086, %v7418, %v7414
  %v7420 = vlaneseq
  %v7421 = vshrl.u32 %v7420, 7
  %v7422 = vsub.s32 %v7088, %v7421
  %v7423 = vrot.slane %v6227, %v7422
  %v7424 = vsel %vm7093, %v7423, %v7419
  %v7425 = vlaneseq
  %v7426 = vshrl.u32 %v7425, 7
  %v7427 = vsub.s32 %v7095, %v7426
  %v7428 = vrot.slane %v6230, %v7427
  %v7429 = vsel %vm7100, %v7428, %v7424
  %v7430 = vlaneseq
  %v7431 = vshrl.u32 %v7430, 7
  %v7432 = vsub.s32 %v7102, %v7431
  %v7433 = vrot.slane %v6233, %v7432
  %v7434 = vsel %vm7107, %v7433, %v7429
  %v7435 = vlaneseq
  %v7436 = vshrl.u32 %v7435, 7
  %v7437 = vsub.s32 %v7109, %v7436
  %v7438 = vrot.slane %v6236, %v7437
  %v7439 = vsel %vm7114, %v7438, %v7434
  %v7440 = vlaneseq
  %v7441 = vshrl.u32 %v7440, 7
  %v7442 = vsub.s32 %v7116, %v7441
  %v7443 = vrot.slane %v6239, %v7442
  %v7444 = vsel %vm7121, %v7443, %v7439
  %v7445 = vlaneseq
  %v7446 = vshrl.u32 %v7445, 7
  %v7447 = vsub.s32 %v7123, %v7446
  %v7448 = vrot.slane %v6242, %v7447
  %v7449 = vsel %vm7128, %v7448, %v7444
  %v7450 = vlaneseq
  %v7451 = vshrl.u32 %v7450, 7
  %v7452 = vsub.s32 %v7130, %v7451
  %v7453 = vrot.slane %v6245, %v7452
  %v7454 = vsel %vm7135, %v7453, %v7449
  %v7455 = vlaneseq
  %v7456 = vshrl.u32 %v7455, 7
  %v7457 = vsub.s32 %v7137, %v7456
  %v7458 = vrot.slane %v6248, %v7457
  %v7459 = vsel %vm7142, %v7458, %v7454
  %v7460 = vlaneseq
  %v7461 = vshrl.u32 %v7460, 7
  %v7462 = vsub.s32 %v7034, %v7461
  %v7463 = vrot.slane %v6251, %v7462
  %v7464 = vlaneseq
  %v7465 = vshrl.u32 %v7464, 7
  %v7466 = vsub.s32 %v7039, %v7465
  %v7467 = vrot.slane %v6254, %v7466
  %v7468 = vsel %vm7044, %v7467, %v7463
  %v7469 = vlaneseq
  %v7470 = vshrl.u32 %v7469, 7
  %v7471 = vsub.s32 %v7046, %v7470
  %v7472 = vrot.slane %v6257, %v7471
  %v7473 = vsel %vm7051, %v7472, %v7468
  %v7474 = vlaneseq
  %v7475 = vshrl.u32 %v7474, 7
  %v7476 = vsub.s32 %v7053, %v7475
  %v7477 = vrot.slane %v6260, %v7476
  %v7478 = vsel %vm7058, %v7477, %v7473
  %v7479 = vlaneseq
  %v7480 = vshrl.u32 %v7479, 7
  %v7481 = vsub.s32 %v7060, %v7480
  %v7482 = vrot.slane %v6263, %v7481
  %v7483 = vsel %vm7065, %v7482, %v7478
  %v7484 = vlaneseq
  %v7485 = vshrl.u32 %v7484, 7
  %v7486 = vsub.s32 %v7067, %v7485
  %v7487 = vrot.slane %v6266, %v7486
  %v7488 = vsel %vm7072, %v7487, %v7483
  %v7489 = vlaneseq
  %v7490 = vshrl.u32 %v7489, 7
  %v7491 = vsub.s32 %v7074, %v7490
  %v7492 = vrot.slane %v6269, %v7491
  %v7493 = vsel %vm7079, %v7492, %v7488
  %v7494 = vlaneseq
  %v7495 = vshrl.u32 %v7494, 7
  %v7496 = vsub.s32 %v7081, %v7495
  %v7497 = vrot.slane %v6272, %v7496
  %v7498 = vsel %vm7086, %v7497, %v7493
  %v7499 = vlaneseq
  %v7500 = vshrl.u32 %v7499, 7
  %v7501 = vsub.s32 %v7088, %v7500
  %v7502 = vrot.slane %v6275, %v7501
  %v7503 = vsel %vm7093, %v7502, %v7498
  %v7504 = vlaneseq
  %v7505 = vshrl.u32 %v7504, 7
  %v7506 = vsub.s32 %v7095, %v7505
  %v7507 = vrot.slane %v6278, %v7506
  %v7508 = vsel %vm7100, %v7507, %v7503
  %v7509 = vlaneseq
  %v7510 = vshrl.u32 %v7509, 7
  %v7511 = vsub.s32 %v7102, %v7510
  %v7512 = vrot.slane %v6281, %v7511
  %v7513 = vsel %vm7107, %v7512, %v7508
  %v7514 = vlaneseq
  %v7515 = vshrl.u32 %v7514, 7
  %v7516 = vsub.s32 %v7109, %v7515
  %v7517 = vrot.slane %v6284, %v7516
  %v7518 = vsel %vm7114, %v7517, %v7513
  %v7519 = vlaneseq
  %v7520 = vshrl.u32 %v7519, 7
  %v7521 = vsub.s32 %v7116, %v7520
  %v7522 = vrot.slane %v6287, %v7521
  %v7523 = vsel %vm7121, %v7522, %v7518
  %v7524 = vlaneseq
  %v7525 = vshrl.u32 %v7524, 7
  %v7526 = vsub.s32 %v7123, %v7525
  %v7527 = vrot.slane %v6290, %v7526
  %v7528 = vsel %vm7128, %v7527, %v7523
  %v7529 = vlaneseq
  %v7530 = vshrl.u32 %v7529, 7
  %v7531 = vsub.s32 %v7130, %v7530
  %v7532 = vrot.slane %v6293, %v7531
  %v7533 = vsel %vm7135, %v7532, %v7528
  %v7534 = vlaneseq
  %v7535 = vshrl.u32 %v7534, 7
  %v7536 = vsub.s32 %v7137, %v7535
  %v7537 = vrot.slane %v6296, %v7536
  %v7538 = vsel %vm7142, %v7537, %v7533
  %v7539 = vlaneseq
  %v7540 = vshrl.u32 %v7539, 7
  %v7541 = vsub.s32 %v7034, %v7540
  %v7542 = vrot.slane %v6299, %v7541
  %v7543 = vlaneseq
  %v7544 = vshrl.u32 %v7543, 7
  %v7545 = vsub.s32 %v7039, %v7544
  %v7546 = vrot.slane %v6302, %v7545
  %v7547 = vsel %vm7044, %v7546, %v7542
  %v7548 = vlaneseq
  %v7549 = vshrl.u32 %v7548, 7
  %v7550 = vsub.s32 %v7046, %v7549
  %v7551 = vrot.slane %v6305, %v7550
  %v7552 = vsel %vm7051, %v7551, %v7547
  %v7553 = vlaneseq
  %v7554 = vshrl.u32 %v7553, 7
  %v7555 = vsub.s32 %v7053, %v7554
  %v7556 = vrot.slane %v6308, %v7555
  %v7557 = vsel %vm7058, %v7556, %v7552
  %v7558 = vlaneseq
  %v7559 = vshrl.u32 %v7558, 7
  %v7560 = vsub.s32 %v7060, %v7559
  %v7561 = vrot.slane %v6311, %v7560
  %v7562 = vsel %vm7065, %v7561, %v7557
  %v7563 = vlaneseq
  %v7564 = vshrl.u32 %v7563, 7
  %v7565 = vsub.s32 %v7067, %v7564
  %v7566 = vrot.slane %v6314, %v7565
  %v7567 = vsel %vm7072, %v7566, %v7562
  %v7568 = vlaneseq
  %v7569 = vshrl.u32 %v7568, 7
  %v7570 = vsub.s32 %v7074, %v7569
  %v7571 = vrot.slane %v6317, %v7570
  %v7572 = vsel %vm7079, %v7571, %v7567
  %v7573 = vlaneseq
  %v7574 = vshrl.u32 %v7573, 7
  %v7575 = vsub.s32 %v7081, %v7574
  %v7576 = vrot.slane %v6320, %v7575
  %v7577 = vsel %vm7086, %v7576, %v7572
  %v7578 = vlaneseq
  %v7579 = vshrl.u32 %v7578, 7
  %v7580 = vsub.s32 %v7088, %v7579
  %v7581 = vrot.slane %v6323, %v7580
  %v7582 = vsel %vm7093, %v7581, %v7577
  %v7583 = vlaneseq
  %v7584 = vshrl.u32 %v7583, 7
  %v7585 = vsub.s32 %v7095, %v7584
  %v7586 = vrot.slane %v6326, %v7585
  %v7587 = vsel %vm7100, %v7586, %v7582
  %v7588 = vlaneseq
  %v7589 = vshrl.u32 %v7588, 7
  %v7590 = vsub.s32 %v7102, %v7589
  %v7591 = vrot.slane %v6329, %v7590
  %v7592 = vsel %vm7107, %v7591, %v7587
  %v7593 = vlaneseq
  %v7594 = vshrl.u32 %v7593, 7
  %v7595 = vsub.s32 %v7109, %v7594
  %v7596 = vrot.slane %v6332, %v7595
  %v7597 = vsel %vm7114, %v7596, %v7592
  %v7598 = vlaneseq
  %v7599 = vshrl.u32 %v7598, 7
  %v7600 = vsub.s32 %v7116, %v7599
  %v7601 = vrot.slane %v6335, %v7600
  %v7602 = vsel %vm7121, %v7601, %v7597
  %v7603 = vlaneseq
  %v7604 = vshrl.u32 %v7603, 7
  %v7605 = vsub.s32 %v7123, %v7604
  %v7606 = vrot.slane %v6338, %v7605
  %v7607 = vsel %vm7128, %v7606, %v7602
  %v7608 = vlaneseq
  %v7609 = vshrl.u32 %v7608, 7
  %v7610 = vsub.s32 %v7130, %v7609
  %v7611 = vrot.slane %v6341, %v7610
  %v7612 = vsel %vm7135, %v7611, %v7607
  %v7613 = vlaneseq
  %v7614 = vshrl.u32 %v7613, 7
  %v7615 = vsub.s32 %v7137, %v7614
  %v7616 = vrot.slane %v6344, %v7615
  %v7617 = vsel %vm7142, %v7616, %v7612
  %v7618 = vlaneseq
  %v7619 = vshrl.u32 %v7618, 7
  %v7620 = vsub.s32 %v7034, %v7619
  %v7621 = vrot.slane %v6347, %v7620
  %v7622 = vlaneseq
  %v7623 = vshrl.u32 %v7622, 7
  %v7624 = vsub.s32 %v7039, %v7623
  %v7625 = vrot.slane %v6350, %v7624
  %v7626 = vsel %vm7044, %v7625, %v7621
  %v7627 = vlaneseq
  %v7628 = vshrl.u32 %v7627, 7
  %v7629 = vsub.s32 %v7046, %v7628
  %v7630 = vrot.slane %v6353, %v7629
  %v7631 = vsel %vm7051, %v7630, %v7626
  %v7632 = vlaneseq
  %v7633 = vshrl.u32 %v7632, 7
  %v7634 = vsub.s32 %v7053, %v7633
  %v7635 = vrot.slane %v6356, %v7634
  %v7636 = vsel %vm7058, %v7635, %v7631
  %v7637 = vlaneseq
  %v7638 = vshrl.u32 %v7637, 7
  %v7639 = vsub.s32 %v7060, %v7638
  %v7640 = vrot.slane %v6359, %v7639
  %v7641 = vsel %vm7065, %v7640, %v7636
  %v7642 = vlaneseq
  %v7643 = vshrl.u32 %v7642, 7
  %v7644 = vsub.s32 %v7067, %v7643
  %v7645 = vrot.slane %v6362, %v7644
  %v7646 = vsel %vm7072, %v7645, %v7641
  %v7647 = vlaneseq
  %v7648 = vshrl.u32 %v7647, 7
  %v7649 = vsub.s32 %v7074, %v7648
  %v7650 = vrot.slane %v6365, %v7649
  %v7651 = vsel %vm7079, %v7650, %v7646
  %v7652 = vlaneseq
  %v7653 = vshrl.u32 %v7652, 7
  %v7654 = vsub.s32 %v7081, %v7653
  %v7655 = vrot.slane %v6368, %v7654
  %v7656 = vsel %vm7086, %v7655, %v7651
  %v7657 = vlaneseq
  %v7658 = vshrl.u32 %v7657, 7
  %v7659 = vsub.s32 %v7088, %v7658
  %v7660 = vrot.slane %v6371, %v7659
  %v7661 = vsel %vm7093, %v7660, %v7656
  %v7662 = vlaneseq
  %v7663 = vshrl.u32 %v7662, 7
  %v7664 = vsub.s32 %v7095, %v7663
  %v7665 = vrot.slane %v6374, %v7664
  %v7666 = vsel %vm7100, %v7665, %v7661
  %v7667 = vlaneseq
  %v7668 = vshrl.u32 %v7667, 7
  %v7669 = vsub.s32 %v7102, %v7668
  %v7670 = vrot.slane %v6377, %v7669
  %v7671 = vsel %vm7107, %v7670, %v7666
  %v7672 = vlaneseq
  %v7673 = vshrl.u32 %v7672, 7
  %v7674 = vsub.s32 %v7109, %v7673
  %v7675 = vrot.slane %v6380, %v7674
  %v7676 = vsel %vm7114, %v7675, %v7671
  %v7677 = vlaneseq
  %v7678 = vshrl.u32 %v7677, 7
  %v7679 = vsub.s32 %v7116, %v7678
  %v7680 = vrot.slane %v6383, %v7679
  %v7681 = vsel %vm7121, %v7680, %v7676
  %v7682 = vlaneseq
  %v7683 = vshrl.u32 %v7682, 7
  %v7684 = vsub.s32 %v7123, %v7683
  %v7685 = vrot.slane %v6386, %v7684
  %v7686 = vsel %vm7128, %v7685, %v7681
  %v7687 = vlaneseq
  %v7688 = vshrl.u32 %v7687, 7
  %v7689 = vsub.s32 %v7130, %v7688
  %v7690 = vrot.slane %v6389, %v7689
  %v7691 = vsel %vm7135, %v7690, %v7686
  %v7692 = vlaneseq
  %v7693 = vshrl.u32 %v7692, 7
  %v7694 = vsub.s32 %v7137, %v7693
  %v7695 = vrot.slane %v6392, %v7694
  %v7696 = vsel %vm7142, %v7695, %v7691
  %v7697 = vlaneseq
  %v7698 = vshrl.u32 %v7697, 7
  %v7699 = vsub.s32 %v7034, %v7698
  %v7700 = vrot.slane %v6395, %v7699
  %v7701 = vlaneseq
  %v7702 = vshrl.u32 %v7701, 7
  %v7703 = vsub.s32 %v7039, %v7702
  %v7704 = vrot.slane %v6398, %v7703
  %v7705 = vsel %vm7044, %v7704, %v7700
  %v7706 = vlaneseq
  %v7707 = vshrl.u32 %v7706, 7
  %v7708 = vsub.s32 %v7046, %v7707
  %v7709 = vrot.slane %v6401, %v7708
  %v7710 = vsel %vm7051, %v7709, %v7705
  %v7711 = vlaneseq
  %v7712 = vshrl.u32 %v7711, 7
  %v7713 = vsub.s32 %v7053, %v7712
  %v7714 = vrot.slane %v6404, %v7713
  %v7715 = vsel %vm7058, %v7714, %v7710
  %v7716 = vlaneseq
  %v7717 = vshrl.u32 %v7716, 7
  %v7718 = vsub.s32 %v7060, %v7717
  %v7719 = vrot.slane %v6407, %v7718
  %v7720 = vsel %vm7065, %v7719, %v7715
  %v7721 = vlaneseq
  %v7722 = vshrl.u32 %v7721, 7
  %v7723 = vsub.s32 %v7067, %v7722
  %v7724 = vrot.slane %v6410, %v7723
  %v7725 = vsel %vm7072, %v7724, %v7720
  %v7726 = vlaneseq
  %v7727 = vshrl.u32 %v7726, 7
  %v7728 = vsub.s32 %v7074, %v7727
  %v7729 = vrot.slane %v6413, %v7728
  %v7730 = vsel %vm7079, %v7729, %v7725
  %v7731 = vlaneseq
  %v7732 = vshrl.u32 %v7731, 7
  %v7733 = vsub.s32 %v7081, %v7732
  %v7734 = vrot.slane %v6416, %v7733
  %v7735 = vsel %vm7086, %v7734, %v7730
  %v7736 = vlaneseq
  %v7737 = vshrl.u32 %v7736, 7
  %v7738 = vsub.s32 %v7088, %v7737
  %v7739 = vrot.slane %v6419, %v7738
  %v7740 = vsel %vm7093, %v7739, %v7735
  %v7741 = vlaneseq
  %v7742 = vshrl.u32 %v7741, 7
  %v7743 = vsub.s32 %v7095, %v7742
  %v7744 = vrot.slane %v6422, %v7743
  %v7745 = vsel %vm7100, %v7744, %v7740
  %v7746 = vlaneseq
  %v7747 = vshrl.u32 %v7746, 7
  %v7748 = vsub.s32 %v7102, %v7747
  %v7749 = vrot.slane %v6425, %v7748
  %v7750 = vsel %vm7107, %v7749, %v7745
  %v7751 = vlaneseq
  %v7752 = vshrl.u32 %v7751, 7
  %v7753 = vsub.s32 %v7109, %v7752
  %v7754 = vrot.slane %v6428, %v7753
  %v7755 = vsel %vm7114, %v7754, %v7750
  %v7756 = vlaneseq
  %v7757 = vshrl.u32 %v7756, 7
  %v7758 = vsub.s32 %v7116, %v7757
  %v7759 = vrot.slane %v6431, %v7758
  %v7760 = vsel %vm7121, %v7759, %v7755
  %v7761 = vlaneseq
  %v7762 = vshrl.u32 %v7761, 7
  %v7763 = vsub.s32 %v7123, %v7762
  %v7764 = vrot.slane %v6434, %v7763
  %v7765 = vsel %vm7128, %v7764, %v7760
  %v7766 = vlaneseq
  %v7767 = vshrl.u32 %v7766, 7
  %v7768 = vsub.s32 %v7130, %v7767
  %v7769 = vrot.slane %v6437, %v7768
  %v7770 = vsel %vm7135, %v7769, %v7765
  %v7771 = vlaneseq
  %v7772 = vshrl.u32 %v7771, 7
  %v7773 = vsub.s32 %v7137, %v7772
  %v7774 = vrot.slane %v6440, %v7773
  %v7775 = vsel %vm7142, %v7774, %v7770
  %v7776 = vlaneseq
  %v7777 = vshrl.u32 %v7776, 7
  %v7778 = vsub.s32 %v7034, %v7777
  %v7779 = vrot.slane %v6443, %v7778
  %v7780 = vlaneseq
  %v7781 = vshrl.u32 %v7780, 7
  %v7782 = vsub.s32 %v7039, %v7781
  %v7783 = vrot.slane %v6446, %v7782
  %v7784 = vsel %vm7044, %v7783, %v7779
  %v7785 = vlaneseq
  %v7786 = vshrl.u32 %v7785, 7
  %v7787 = vsub.s32 %v7046, %v7786
  %v7788 = vrot.slane %v6449, %v7787
  %v7789 = vsel %vm7051, %v7788, %v7784
  %v7790 = vlaneseq
  %v7791 = vshrl.u32 %v7790, 7
  %v7792 = vsub.s32 %v7053, %v7791
  %v7793 = vrot.slane %v6452, %v7792
  %v7794 = vsel %vm7058, %v7793, %v7789
  %v7795 = vlaneseq
  %v7796 = vshrl.u32 %v7795, 7
  %v7797 = vsub.s32 %v7060, %v7796
  %v7798 = vrot.slane %v6455, %v7797
  %v7799 = vsel %vm7065, %v7798, %v7794
  %v7800 = vlaneseq
  %v7801 = vshrl.u32 %v7800, 7
  %v7802 = vsub.s32 %v7067, %v7801
  %v7803 = vrot.slane %v6458, %v7802
  %v7804 = vsel %vm7072, %v7803, %v7799
  %v7805 = vlaneseq
  %v7806 = vshrl.u32 %v7805, 7
  %v7807 = vsub.s32 %v7074, %v7806
  %v7808 = vrot.slane %v6461, %v7807
  %v7809 = vsel %vm7079, %v7808, %v7804
  %v7810 = vlaneseq
  %v7811 = vshrl.u32 %v7810, 7
  %v7812 = vsub.s32 %v7081, %v7811
  %v7813 = vrot.slane %v6464, %v7812
  %v7814 = vsel %vm7086, %v7813, %v7809
  %v7815 = vlaneseq
  %v7816 = vshrl.u32 %v7815, 7
  %v7817 = vsub.s32 %v7088, %v7816
  %v7818 = vrot.slane %v6467, %v7817
  %v7819 = vsel %vm7093, %v7818, %v7814
  %v7820 = vlaneseq
  %v7821 = vshrl.u32 %v7820, 7
  %v7822 = vsub.s32 %v7095, %v7821
  %v7823 = vrot.slane %v6470, %v7822
  %v7824 = vsel %vm7100, %v7823, %v7819
  %v7825 = vlaneseq
  %v7826 = vshrl.u32 %v7825, 7
  %v7827 = vsub.s32 %v7102, %v7826
  %v7828 = vrot.slane %v6473, %v7827
  %v7829 = vsel %vm7107, %v7828, %v7824
  %v7830 = vlaneseq
  %v7831 = vshrl.u32 %v7830, 7
  %v7832 = vsub.s32 %v7109, %v7831
  %v7833 = vrot.slane %v6476, %v7832
  %v7834 = vsel %vm7114, %v7833, %v7829
  %v7835 = vlaneseq
  %v7836 = vshrl.u32 %v7835, 7
  %v7837 = vsub.s32 %v7116, %v7836
  %v7838 = vrot.slane %v6479, %v7837
  %v7839 = vsel %vm7121, %v7838, %v7834
  %v7840 = vlaneseq
  %v7841 = vshrl.u32 %v7840, 7
  %v7842 = vsub.s32 %v7123, %v7841
  %v7843 = vrot.slane %v6482, %v7842
  %v7844 = vsel %vm7128, %v7843, %v7839
  %v7845 = vlaneseq
  %v7846 = vshrl.u32 %v7845, 7
  %v7847 = vsub.s32 %v7130, %v7846
  %v7848 = vrot.slane %v6485, %v7847
  %v7849 = vsel %vm7135, %v7848, %v7844
  %v7850 = vlaneseq
  %v7851 = vshrl.u32 %v7850, 7
  %v7852 = vsub.s32 %v7137, %v7851
  %v7853 = vrot.slane %v6488, %v7852
  %v7854 = vsel %vm7142, %v7853, %v7849
  %v7855 = vlaneseq
  %v7856 = vshrl.u32 %v7855, 7
  %v7857 = vsub.s32 %v7034, %v7856
  %v7858 = vrot.slane %v6491, %v7857
  %v7859 = vlaneseq
  %v7860 = vshrl.u32 %v7859, 7
  %v7861 = vsub.s32 %v7039, %v7860
  %v7862 = vrot.slane %v6494, %v7861
  %v7863 = vsel %vm7044, %v7862, %v7858
  %v7864 = vlaneseq
  %v7865 = vshrl.u32 %v7864, 7
  %v7866 = vsub.s32 %v7046, %v7865
  %v7867 = vrot.slane %v6497, %v7866
  %v7868 = vsel %vm7051, %v7867, %v7863
  %v7869 = vlaneseq
  %v7870 = vshrl.u32 %v7869, 7
  %v7871 = vsub.s32 %v7053, %v7870
  %v7872 = vrot.slane %v6500, %v7871
  %v7873 = vsel %vm7058, %v7872, %v7868
  %v7874 = vlaneseq
  %v7875 = vshrl.u32 %v7874, 7
  %v7876 = vsub.s32 %v7060, %v7875
  %v7877 = vrot.slane %v6503, %v7876
  %v7878 = vsel %vm7065, %v7877, %v7873
  %v7879 = vlaneseq
  %v7880 = vshrl.u32 %v7879, 7
  %v7881 = vsub.s32 %v7067, %v7880
  %v7882 = vrot.slane %v6506, %v7881
  %v7883 = vsel %vm7072, %v7882, %v7878
  %v7884 = vlaneseq
  %v7885 = vshrl.u32 %v7884, 7
  %v7886 = vsub.s32 %v7074, %v7885
  %v7887 = vrot.slane %v6509, %v7886
  %v7888 = vsel %vm7079, %v7887, %v7883
  %v7889 = vlaneseq
  %v7890 = vshrl.u32 %v7889, 7
  %v7891 = vsub.s32 %v7081, %v7890
  %v7892 = vrot.slane %v6512, %v7891
  %v7893 = vsel %vm7086, %v7892, %v7888
  %v7894 = vlaneseq
  %v7895 = vshrl.u32 %v7894, 7
  %v7896 = vsub.s32 %v7088, %v7895
  %v7897 = vrot.slane %v6515, %v7896
  %v7898 = vsel %vm7093, %v7897, %v7893
  %v7899 = vlaneseq
  %v7900 = vshrl.u32 %v7899, 7
  %v7901 = vsub.s32 %v7095, %v7900
  %v7902 = vrot.slane %v6518, %v7901
  %v7903 = vsel %vm7100, %v7902, %v7898
  %v7904 = vlaneseq
  %v7905 = vshrl.u32 %v7904, 7
  %v7906 = vsub.s32 %v7102, %v7905
  %v7907 = vrot.slane %v6521, %v7906
  %v7908 = vsel %vm7107, %v7907, %v7903
  %v7909 = vlaneseq
  %v7910 = vshrl.u32 %v7909, 7
  %v7911 = vsub.s32 %v7109, %v7910
  %v7912 = vrot.slane %v6524, %v7911
  %v7913 = vsel %vm7114, %v7912, %v7908
  %v7914 = vlaneseq
  %v7915 = vshrl.u32 %v7914, 7
  %v7916 = vsub.s32 %v7116, %v7915
  %v7917 = vrot.slane %v6527, %v7916
  %v7918 = vsel %vm7121, %v7917, %v7913
  %v7919 = vlaneseq
  %v7920 = vshrl.u32 %v7919, 7
  %v7921 = vsub.s32 %v7123, %v7920
  %v7922 = vrot.slane %v6530, %v7921
  %v7923 = vsel %vm7128, %v7922, %v7918
  %v7924 = vlaneseq
  %v7925 = vshrl.u32 %v7924, 7
  %v7926 = vsub.s32 %v7130, %v7925
  %v7927 = vrot.slane %v6533, %v7926
  %v7928 = vsel %vm7135, %v7927, %v7923
  %v7929 = vlaneseq
  %v7930 = vshrl.u32 %v7929, 7
  %v7931 = vsub.s32 %v7137, %v7930
  %v7932 = vrot.slane %v6536, %v7931
  %v7933 = vsel %vm7142, %v7932, %v7928
  %v7934 = vlaneseq
  %v7935 = vshrl.u32 %v7934, 7
  %v7936 = vsub.s32 %v7034, %v7935
  %v7937 = vrot.slane %v6539, %v7936
  %v7938 = vlaneseq
  %v7939 = vshrl.u32 %v7938, 7
  %v7940 = vsub.s32 %v7039, %v7939
  %v7941 = vrot.slane %v6542, %v7940
  %v7942 = vsel %vm7044, %v7941, %v7937
  %v7943 = vlaneseq
  %v7944 = vshrl.u32 %v7943, 7
  %v7945 = vsub.s32 %v7046, %v7944
  %v7946 = vrot.slane %v6545, %v7945
  %v7947 = vsel %vm7051, %v7946, %v7942
  %v7948 = vlaneseq
  %v7949 = vshrl.u32 %v7948, 7
  %v7950 = vsub.s32 %v7053, %v7949
  %v7951 = vrot.slane %v6548, %v7950
  %v7952 = vsel %vm7058, %v7951, %v7947
  %v7953 = vlaneseq
  %v7954 = vshrl.u32 %v7953, 7
  %v7955 = vsub.s32 %v7060, %v7954
  %v7956 = vrot.slane %v6551, %v7955
  %v7957 = vsel %vm7065, %v7956, %v7952
  %v7958 = vlaneseq
  %v7959 = vshrl.u32 %v7958, 7
  %v7960 = vsub.s32 %v7067, %v7959
  %v7961 = vrot.slane %v6554, %v7960
  %v7962 = vsel %vm7072, %v7961, %v7957
  %v7963 = vlaneseq
  %v7964 = vshrl.u32 %v7963, 7
  %v7965 = vsub.s32 %v7074, %v7964
  %v7966 = vrot.slane %v6557, %v7965
  %v7967 = vsel %vm7079, %v7966, %v7962
  %v7968 = vlaneseq
  %v7969 = vshrl.u32 %v7968, 7
  %v7970 = vsub.s32 %v7081, %v7969
  %v7971 = vrot.slane %v6560, %v7970
  %v7972 = vsel %vm7086, %v7971, %v7967
  %v7973 = vlaneseq
  %v7974 = vshrl.u32 %v7973, 7
  %v7975 = vsub.s32 %v7088, %v7974
  %v7976 = vrot.slane %v6563, %v7975
  %v7977 = vsel %vm7093, %v7976, %v7972
  %v7978 = vlaneseq
  %v7979 = vshrl.u32 %v7978, 7
  %v7980 = vsub.s32 %v7095, %v7979
  %v7981 = vrot.slane %v6566, %v7980
  %v7982 = vsel %vm7100, %v7981, %v7977
  %v7983 = vlaneseq
  %v7984 = vshrl.u32 %v7983, 7
  %v7985 = vsub.s32 %v7102, %v7984
  %v7986 = vrot.slane %v6569, %v7985
  %v7987 = vsel %vm7107, %v7986, %v7982
  %v7988 = vlaneseq
  %v7989 = vshrl.u32 %v7988, 7
  %v7990 = vsub.s32 %v7109, %v7989
  %v7991 = vrot.slane %v6572, %v7990
  %v7992 = vsel %vm7114, %v7991, %v7987
  %v7993 = vlaneseq
  %v7994 = vshrl.u32 %v7993, 7
  %v7995 = vsub.s32 %v7116, %v7994
  %v7996 = vrot.slane %v6575, %v7995
  %v7997 = vsel %vm7121, %v7996, %v7992
  %v7998 = vlaneseq
  %v7999 = vshrl.u32 %v7998, 7
  %v8000 = vsub.s32 %v7123, %v7999
  %v8001 = vrot.slane %v6578, %v8000
  %v8002 = vsel %vm7128, %v8001, %v7997
  %v8003 = vlaneseq
  %v8004 = vshrl.u32 %v8003, 7
  %v8005 = vsub.s32 %v7130, %v8004
  %v8006 = vrot.slane %v6581, %v8005
  %v8007 = vsel %vm7135, %v8006, %v8002
  %v8008 = vlaneseq
  %v8009 = vshrl.u32 %v8008, 7
  %v8010 = vsub.s32 %v7137, %v8009
  %v8011 = vrot.slane %v6584, %v8010
  %v8012 = vsel %vm7142, %v8011, %v8007
  %v8013 = vlaneseq
  %v8014 = vshrl.u32 %v8013, 7
  %v8015 = vsub.s32 %v7034, %v8014
  %v8016 = vrot.slane %v6587, %v8015
  %v8017 = vlaneseq
  %v8018 = vshrl.u32 %v8017, 7
  %v8019 = vsub.s32 %v7039, %v8018
  %v8020 = vrot.slane %v6590, %v8019
  %v8021 = vsel %vm7044, %v8020, %v8016
  %v8022 = vlaneseq
  %v8023 = vshrl.u32 %v8022, 7
  %v8024 = vsub.s32 %v7046, %v8023
  %v8025 = vrot.slane %v6593, %v8024
  %v8026 = vsel %vm7051, %v8025, %v8021
  %v8027 = vlaneseq
  %v8028 = vshrl.u32 %v8027, 7
  %v8029 = vsub.s32 %v7053, %v8028
  %v8030 = vrot.slane %v6596, %v8029
  %v8031 = vsel %vm7058, %v8030, %v8026
  %v8032 = vlaneseq
  %v8033 = vshrl.u32 %v8032, 7
  %v8034 = vsub.s32 %v7060, %v8033
  %v8035 = vrot.slane %v6599, %v8034
  %v8036 = vsel %vm7065, %v8035, %v8031
  %v8037 = vlaneseq
  %v8038 = vshrl.u32 %v8037, 7
  %v8039 = vsub.s32 %v7067, %v8038
  %v8040 = vrot.slane %v6602, %v8039
  %v8041 = vsel %vm7072, %v8040, %v8036
  %v8042 = vlaneseq
  %v8043 = vshrl.u32 %v8042, 7
  %v8044 = vsub.s32 %v7074, %v8043
  %v8045 = vrot.slane %v6605, %v8044
  %v8046 = vsel %vm7079, %v8045, %v8041
  %v8047 = vlaneseq
  %v8048 = vshrl.u32 %v8047, 7
  %v8049 = vsub.s32 %v7081, %v8048
  %v8050 = vrot.slane %v6608, %v8049
  %v8051 = vsel %vm7086, %v8050, %v8046
  %v8052 = vlaneseq
  %v8053 = vshrl.u32 %v8052, 7
  %v8054 = vsub.s32 %v7088, %v8053
  %v8055 = vrot.slane %v6611, %v8054
  %v8056 = vsel %vm7093, %v8055, %v8051
  %v8057 = vlaneseq
  %v8058 = vshrl.u32 %v8057, 7
  %v8059 = vsub.s32 %v7095, %v8058
  %v8060 = vrot.slane %v6614, %v8059
  %v8061 = vsel %vm7100, %v8060, %v8056
  %v8062 = vlaneseq
  %v8063 = vshrl.u32 %v8062, 7
  %v8064 = vsub.s32 %v7102, %v8063
  %v8065 = vrot.slane %v6617, %v8064
  %v8066 = vsel %vm7107, %v8065, %v8061
  %v8067 = vlaneseq
  %v8068 = vshrl.u32 %v8067, 7
  %v8069 = vsub.s32 %v7109, %v8068
  %v8070 = vrot.slane %v6620, %v8069
  %v8071 = vsel %vm7114, %v8070, %v8066
  %v8072 = vlaneseq
  %v8073 = vshrl.u32 %v8072, 7
  %v8074 = vsub.s32 %v7116, %v8073
  %v8075 = vrot.slane %v6623, %v8074
  %v8076 = vsel %vm7121, %v8075, %v8071
  %v8077 = vlaneseq
  %v8078 = vshrl.u32 %v8077, 7
  %v8079 = vsub.s32 %v7123, %v8078
  %v8080 = vrot.slane %v6626, %v8079
  %v8081 = vsel %vm7128, %v8080, %v8076
  %v8082 = vlaneseq
  %v8083 = vshrl.u32 %v8082, 7
  %v8084 = vsub.s32 %v7130, %v8083
  %v8085 = vrot.slane %v6629, %v8084
  %v8086 = vsel %vm7135, %v8085, %v8081
  %v8087 = vlaneseq
  %v8088 = vshrl.u32 %v8087, 7
  %v8089 = vsub.s32 %v7137, %v8088
  %v8090 = vrot.slane %v6632, %v8089
  %v8091 = vsel %vm7142, %v8090, %v8086
  %v8092 = vlaneseq
  %v8093 = vshrl.u32 %v8092, 7
  %v8094 = vsub.s32 %v7034, %v8093
  %v8095 = vrot.slane %v6635, %v8094
  %v8096 = vlaneseq
  %v8097 = vshrl.u32 %v8096, 7
  %v8098 = vsub.s32 %v7039, %v8097
  %v8099 = vrot.slane %v6638, %v8098
  %v8100 = vsel %vm7044, %v8099, %v8095
  %v8101 = vlaneseq
  %v8102 = vshrl.u32 %v8101, 7
  %v8103 = vsub.s32 %v7046, %v8102
  %v8104 = vrot.slane %v6641, %v8103
  %v8105 = vsel %vm7051, %v8104, %v8100
  %v8106 = vlaneseq
  %v8107 = vshrl.u32 %v8106, 7
  %v8108 = vsub.s32 %v7053, %v8107
  %v8109 = vrot.slane %v6644, %v8108
  %v8110 = vsel %vm7058, %v8109, %v8105
  %v8111 = vlaneseq
  %v8112 = vshrl.u32 %v8111, 7
  %v8113 = vsub.s32 %v7060, %v8112
  %v8114 = vrot.slane %v6647, %v8113
  %v8115 = vsel %vm7065, %v8114, %v8110
  %v8116 = vlaneseq
  %v8117 = vshrl.u32 %v8116, 7
  %v8118 = vsub.s32 %v7067, %v8117
  %v8119 = vrot.slane %v6650, %v8118
  %v8120 = vsel %vm7072, %v8119, %v8115
  %v8121 = vlaneseq
  %v8122 = vshrl.u32 %v8121, 7
  %v8123 = vsub.s32 %v7074, %v8122
  %v8124 = vrot.slane %v6653, %v8123
  %v8125 = vsel %vm7079, %v8124, %v8120
  %v8126 = vlaneseq
  %v8127 = vshrl.u32 %v8126, 7
  %v8128 = vsub.s32 %v7081, %v8127
  %v8129 = vrot.slane %v6656, %v8128
  %v8130 = vsel %vm7086, %v8129, %v8125
  %v8131 = vlaneseq
  %v8132 = vshrl.u32 %v8131, 7
  %v8133 = vsub.s32 %v7088, %v8132
  %v8134 = vrot.slane %v6659, %v8133
  %v8135 = vsel %vm7093, %v8134, %v8130
  %v8136 = vlaneseq
  %v8137 = vshrl.u32 %v8136, 7
  %v8138 = vsub.s32 %v7095, %v8137
  %v8139 = vrot.slane %v6662, %v8138
  %v8140 = vsel %vm7100, %v8139, %v8135
  %v8141 = vlaneseq
  %v8142 = vshrl.u32 %v8141, 7
  %v8143 = vsub.s32 %v7102, %v8142
  %v8144 = vrot.slane %v6665, %v8143
  %v8145 = vsel %vm7107, %v8144, %v8140
  %v8146 = vlaneseq
  %v8147 = vshrl.u32 %v8146, 7
  %v8148 = vsub.s32 %v7109, %v8147
  %v8149 = vrot.slane %v6668, %v8148
  %v8150 = vsel %vm7114, %v8149, %v8145
  %v8151 = vlaneseq
  %v8152 = vshrl.u32 %v8151, 7
  %v8153 = vsub.s32 %v7116, %v8152
  %v8154 = vrot.slane %v6671, %v8153
  %v8155 = vsel %vm7121, %v8154, %v8150
  %v8156 = vlaneseq
  %v8157 = vshrl.u32 %v8156, 7
  %v8158 = vsub.s32 %v7123, %v8157
  %v8159 = vrot.slane %v6674, %v8158
  %v8160 = vsel %vm7128, %v8159, %v8155
  %v8161 = vlaneseq
  %v8162 = vshrl.u32 %v8161, 7
  %v8163 = vsub.s32 %v7130, %v8162
  %v8164 = vrot.slane %v6677, %v8163
  %v8165 = vsel %vm7135, %v8164, %v8160
  %v8166 = vlaneseq
  %v8167 = vshrl.u32 %v8166, 7
  %v8168 = vsub.s32 %v7137, %v8167
  %v8169 = vrot.slane %v6680, %v8168
  %v8170 = vsel %vm7142, %v8169, %v8165
  %v8171 = vlaneseq
  %v8172 = vshrl.u32 %v8171, 7
  %v8173 = vsub.s32 %v7034, %v8172
  %v8174 = vrot.slane %v6683, %v8173
  %v8175 = vlaneseq
  %v8176 = vshrl.u32 %v8175, 7
  %v8177 = vsub.s32 %v7039, %v8176
  %v8178 = vrot.slane %v6686, %v8177
  %v8179 = vsel %vm7044, %v8178, %v8174
  %v8180 = vlaneseq
  %v8181 = vshrl.u32 %v8180, 7
  %v8182 = vsub.s32 %v7046, %v8181
  %v8183 = vrot.slane %v6689, %v8182
  %v8184 = vsel %vm7051, %v8183, %v8179
  %v8185 = vlaneseq
  %v8186 = vshrl.u32 %v8185, 7
  %v8187 = vsub.s32 %v7053, %v8186
  %v8188 = vrot.slane %v6692, %v8187
  %v8189 = vsel %vm7058, %v8188, %v8184
  %v8190 = vlaneseq
  %v8191 = vshrl.u32 %v8190, 7
  %v8192 = vsub.s32 %v7060, %v8191
  %v8193 = vrot.slane %v6695, %v8192
  %v8194 = vsel %vm7065, %v8193, %v8189
  %v8195 = vlaneseq
  %v8196 = vshrl.u32 %v8195, 7
  %v8197 = vsub.s32 %v7067, %v8196
  %v8198 = vrot.slane %v6698, %v8197
  %v8199 = vsel %vm7072, %v8198, %v8194
  %v8200 = vlaneseq
  %v8201 = vshrl.u32 %v8200, 7
  %v8202 = vsub.s32 %v7074, %v8201
  %v8203 = vrot.slane %v6701, %v8202
  %v8204 = vsel %vm7079, %v8203, %v8199
  %v8205 = vlaneseq
  %v8206 = vshrl.u32 %v8205, 7
  %v8207 = vsub.s32 %v7081, %v8206
  %v8208 = vrot.slane %v6704, %v8207
  %v8209 = vsel %vm7086, %v8208, %v8204
  %v8210 = vlaneseq
  %v8211 = vshrl.u32 %v8210, 7
  %v8212 = vsub.s32 %v7088, %v8211
  %v8213 = vrot.slane %v6707, %v8212
  %v8214 = vsel %vm7093, %v8213, %v8209
  %v8215 = vlaneseq
  %v8216 = vshrl.u32 %v8215, 7
  %v8217 = vsub.s32 %v7095, %v8216
  %v8218 = vrot.slane %v6710, %v8217
  %v8219 = vsel %vm7100, %v8218, %v8214
  %v8220 = vlaneseq
  %v8221 = vshrl.u32 %v8220, 7
  %v8222 = vsub.s32 %v7102, %v8221
  %v8223 = vrot.slane %v6713, %v8222
  %v8224 = vsel %vm7107, %v8223, %v8219
  %v8225 = vlaneseq
  %v8226 = vshrl.u32 %v8225, 7
  %v8227 = vsub.s32 %v7109, %v8226
  %v8228 = vrot.slane %v6716, %v8227
  %v8229 = vsel %vm7114, %v8228, %v8224
  %v8230 = vlaneseq
  %v8231 = vshrl.u32 %v8230, 7
  %v8232 = vsub.s32 %v7116, %v8231
  %v8233 = vrot.slane %v6719, %v8232
  %v8234 = vsel %vm7121, %v8233, %v8229
  %v8235 = vlaneseq
  %v8236 = vshrl.u32 %v8235, 7
  %v8237 = vsub.s32 %v7123, %v8236
  %v8238 = vrot.slane %v6722, %v8237
  %v8239 = vsel %vm7128, %v8238, %v8234
  %v8240 = vlaneseq
  %v8241 = vshrl.u32 %v8240, 7
  %v8242 = vsub.s32 %v7130, %v8241
  %v8243 = vrot.slane %v6725, %v8242
  %v8244 = vsel %vm7135, %v8243, %v8239
  %v8245 = vlaneseq
  %v8246 = vshrl.u32 %v8245, 7
  %v8247 = vsub.s32 %v7137, %v8246
  %v8248 = vrot.slane %v6728, %v8247
  %v8249 = vsel %vm7142, %v8248, %v8244
  %v8250 = vlaneseq
  %v8251 = vshrl.u32 %v8250, 7
  %v8252 = vsub.s32 %v7034, %v8251
  %v8253 = vrot.slane %v6731, %v8252
  %v8254 = vlaneseq
  %v8255 = vshrl.u32 %v8254, 7
  %v8256 = vsub.s32 %v7039, %v8255
  %v8257 = vrot.slane %v6734, %v8256
  %v8258 = vsel %vm7044, %v8257, %v8253
  %v8259 = vlaneseq
  %v8260 = vshrl.u32 %v8259, 7
  %v8261 = vsub.s32 %v7046, %v8260
  %v8262 = vrot.slane %v6737, %v8261
  %v8263 = vsel %vm7051, %v8262, %v8258
  %v8264 = vlaneseq
  %v8265 = vshrl.u32 %v8264, 7
  %v8266 = vsub.s32 %v7053, %v8265
  %v8267 = vrot.slane %v6740, %v8266
  %v8268 = vsel %vm7058, %v8267, %v8263
  %v8269 = vlaneseq
  %v8270 = vshrl.u32 %v8269, 7
  %v8271 = vsub.s32 %v7060, %v8270
  %v8272 = vrot.slane %v6743, %v8271
  %v8273 = vsel %vm7065, %v8272, %v8268
  %v8274 = vlaneseq
  %v8275 = vshrl.u32 %v8274, 7
  %v8276 = vsub.s32 %v7067, %v8275
  %v8277 = vrot.slane %v6746, %v8276
  %v8278 = vsel %vm7072, %v8277, %v8273
  %v8279 = vlaneseq
  %v8280 = vshrl.u32 %v8279, 7
  %v8281 = vsub.s32 %v7074, %v8280
  %v8282 = vrot.slane %v6749, %v8281
  %v8283 = vsel %vm7079, %v8282, %v8278
  %v8284 = vlaneseq
  %v8285 = vshrl.u32 %v8284, 7
  %v8286 = vsub.s32 %v7081, %v8285
  %v8287 = vrot.slane %v6752, %v8286
  %v8288 = vsel %vm7086, %v8287, %v8283
  %v8289 = vlaneseq
  %v8290 = vshrl.u32 %v8289, 7
  %v8291 = vsub.s32 %v7088, %v8290
  %v8292 = vrot.slane %v6755, %v8291
  %v8293 = vsel %vm7093, %v8292, %v8288
  %v8294 = vlaneseq
  %v8295 = vshrl.u32 %v8294, 7
  %v8296 = vsub.s32 %v7095, %v8295
  %v8297 = vrot.slane %v6758, %v8296
  %v8298 = vsel %vm7100, %v8297, %v8293
  %v8299 = vlaneseq
  %v8300 = vshrl.u32 %v8299, 7
  %v8301 = vsub.s32 %v7102, %v8300
  %v8302 = vrot.slane %v6761, %v8301
  %v8303 = vsel %vm7107, %v8302, %v8298
  %v8304 = vlaneseq
  %v8305 = vshrl.u32 %v8304, 7
  %v8306 = vsub.s32 %v7109, %v8305
  %v8307 = vrot.slane %v6764, %v8306
  %v8308 = vsel %vm7114, %v8307, %v8303
  %v8309 = vlaneseq
  %v8310 = vshrl.u32 %v8309, 7
  %v8311 = vsub.s32 %v7116, %v8310
  %v8312 = vrot.slane %v6767, %v8311
  %v8313 = vsel %vm7121, %v8312, %v8308
  %v8314 = vlaneseq
  %v8315 = vshrl.u32 %v8314, 7
  %v8316 = vsub.s32 %v7123, %v8315
  %v8317 = vrot.slane %v6770, %v8316
  %v8318 = vsel %vm7128, %v8317, %v8313
  %v8319 = vlaneseq
  %v8320 = vshrl.u32 %v8319, 7
  %v8321 = vsub.s32 %v7130, %v8320
  %v8322 = vrot.slane %v6773, %v8321
  %v8323 = vsel %vm7135, %v8322, %v8318
  %v8324 = vlaneseq
  %v8325 = vshrl.u32 %v8324, 7
  %v8326 = vsub.s32 %v7137, %v8325
  %v8327 = vrot.slane %v6776, %v8326
  %v8328 = vsel %vm7142, %v8327, %v8323
  %vm8329 = vcmask 1041409
  %v8330 = vsel %vm8329, %v7301, %v7143
  %vm8331 = vcmask 1042434
  %v8332 = vsel %vm8331, %v7459, %v8330
  %vm8333 = vcmask 1043459
  %v8334 = vsel %vm8333, %v7617, %v8332
  %vm8335 = vcmask 1044484
  %v8336 = vsel %vm8335, %v7775, %v8334
  %vm8337 = vcmask 1045509
  %v8338 = vsel %vm8337, %v7933, %v8336
  %vm8339 = vcmask 1046534
  %v8340 = vsel %vm8339, %v8091, %v8338
  %vm8341 = vcmask 1047559
  %v8342 = vsel %vm8341, %v8249, %v8340
  %v8343 = vsel %vm8329, %v7380, %v7222
  %v8344 = vsel %vm8331, %v7538, %v8343
  %v8345 = vsel %vm8333, %v7696, %v8344
  %v8346 = vsel %vm8335, %v7854, %v8345
  %v8347 = vsel %vm8337, %v8012, %v8346
  %v8348 = vsel %vm8339, %v8170, %v8347
  %v8349 = vsel %vm8341, %v8328, %v8348
  %v8352 = vadd.f32 %v6007, %v8342
  %v8353 = vadd.f32 %v6008, %v8349
  %8354 = vst [vmem:[#allocation2] sm:$0xff] %v8352
  %8355 = vst [vmem:[#allocation2 + $0x8] sm:$0xff] %v8353
  // Predicated region
  $region42: #{asn_correct_forward.1} parent=0 // pred_check
    %p8356 = pneg %p33
  $region43: #{asn_correct_forward.1} parent=0 // pred_check_branch
    %8358 = sbr.rel (%p8356) target = $region45
  $region44: #{asn_correct_forward.1} parent=0 // pred_region
    %v8359 = vld [vmem:[#allocation2] sm:$0xff]
    %v8360 = vld [vmem:[#allocation2 + $0x8] sm:$0xff]
    %v8361 = vmul.f32 %v8359, 0.00390625
    %v8362 = vmul.f32 %v8360, 0.00390625
    %v8363 = vld [vmem:[%s3] sm:$0xff]
    %v8364 = vld [vmem:[%s3 + $0x8] sm:$0xff]
    %v8365 = vld [vmem:[%s5] sm:$0xff]
    %v8366 = vld [vmem:[%s5 + $0x8] sm:$0xff]
    %v8367 = vld [vmem:[%s5 + $0x10] sm:$0xff]
    %v8368 = vld [vmem:[%s5 + $0x18] sm:$0xff]
    %v8369 = vld [vmem:[%s7] sm:$0xff]
    %v8370 = vld [vmem:[%s7 + $0x8] sm:$0xff]
    %v8371 = vld [vmem:[%s7 + $0x10] sm:$0x3]
    %v8372 = vld [vmem:[%s7 + $0x18] sm:$0x3]
    %v8373 = vld [vmem:[%s4] sm:$0x1]
    %v8374 = vpack.c.bf16 %v8361, %v8361
    %v8375 = vpack.c.bf16 %v8362, %v8362
    %v8376 = vpack.c.bf16 %v8363, %v8363
    %v8377 = vpack.c.bf16 %v8364, %v8364
    %v8379 = vlaneseq
    %v8380 = vshrl.u32 %v8379, 7
    %v8381 = vsub.s32 0, %v8380
    %v8382 = vrot.slane %v8373, %v8381
    %8384 = vmatprep.subr.bf16.mxu0 %v8377
    %8385 = vmatpush1.bf16.xpose.msra.mxu0 %v8376
    %8386 = vmatprep.subr.bf16.mxu0 0
    %8387 = vmatpush1.bf16.xpose.msra.mxu0 0
    %8388 = vmatprep.subr.bf16.mxu0 0
    %8389 = vmatpush1.bf16.xpose.msra.mxu0 0
    %8390 = vmatprep.subr.bf16.mxu0 0
    %8391 = vmatpush1.bf16.xpose.msra.mxu0 0
    %8392 = vmatprep.subr.bf16.mxu0 0
    %8393 = vmatpush1.bf16.xpose.msra.mxu0 0
    %8394 = vmatprep.subr.bf16.mxu0 0
    %8395 = vmatpush1.bf16.xpose.msra.mxu0 0
    %8396 = vmatprep.subr.bf16.mxu0 0
    %8397 = vmatpush1.bf16.xpose.msra.mxu0 0
    %8398 = vmatprep.subr.bf16.mxu0 0
    %8399 = vmatpush1.bf16.xpose.msra.mxu0 0
    %8400 = vmatprep.subr.bf16.mxu0 0
    %8401 = vmatpush1.bf16.xpose.msra.mxu0 0
    %8402 = vmatprep.subr.bf16.mxu0 0
    %8403 = vmatpush1.bf16.xpose.msra.mxu0 0
    %8404 = vmatprep.subr.bf16.mxu0 0
    %8405 = vmatpush1.bf16.xpose.msra.mxu0 0
    %8406 = vmatprep.subr.bf16.mxu0 0
    %8407 = vmatpush1.bf16.xpose.msra.mxu0 0
    %8408 = vmatprep.subr.bf16.mxu0 0
    %8409 = vmatpush1.bf16.xpose.msra.mxu0 0
    %8410 = vmatprep.subr.bf16.mxu0 0
    %8411 = vmatpush1.bf16.xpose.msra.mxu0 0
    %8412 = vmatprep.subr.bf16.mxu0 0
    %8413 = vmatpush1.bf16.xpose.msra.mxu0 0
    %8414 = vmatprep.subr.bf16.mxu0 0
    %8415 = vmatpush1.bf16.xpose.msra.mxu0 0
    %8416 = vmatprep.mubr.bf16.mxu0 %v8375
    %8417 = vmatmul.mubr.bf16.gmra.mrb[0].mxu0 %v8374
    %v8418 = vpop.f32.mrb[0].mxu0
    %v8419 = vadd.f32 %v8382, %v8418
    %v8420 = vpop.f32.mrb[0].mxu0
    %v8421 = vpop.f32.mrb[0].mxu0
    %v8422 = vpop.f32.mrb[0].mxu0
    %8423 = vdwg.mxu0
    %vm8424 = vcmask 64512
    %v8425 = vsel %vm8424, %v8419, -inf
    %8426 = vmax.xlane.f32.xlu0 %v8425
    %v8427 = vpop.xlane.xlu0 %8426
    %v8428 = vsub.f32 %v8419, %v8427
    %v8429 = vmul.f32 %v8428, 1.442695
    %v8430 = vpow.pop %v8429
    %v8431 = vsel %vm8424, %v8430, 0.0
    %8432 = vadd.xlane.f32.xlu0 %v8431
    %v8433 = vpop.xlane.xlu0 %8432
    %v8434 = vrcp.pop %v8433
    %v8435 = vmul.f32 %v8430, %v8434
    %8437 = vset.pattern.permute.xlu0 0
    %8438 = vperm.xlu0 %8437, %v8435
    %v8439 = vpop.permute.xlu0 %8438
    %v8441 = vlaneseq
    %v8442 = vshrl.u32 %v8441, 7
    %v8443 = vsub.s32 0, %v8442
    %v8444 = vrot.slane %v8363, %v8443
    %v8445 = vlaneseq
    %v8446 = vshrl.u32 %v8445, 7
    %v8447 = vsub.s32 0, %v8446
    %v8448 = vrot.slane %v8364, %v8447
    %v8449 = vmul.f32 %v8439, %v8444
    %v8450 = vmul.f32 %v8439, %v8448
    %8451 = vset.pattern.permute.xlu0 1
    %8452 = vperm.xlu0 %8451, %v8435
    %v8453 = vpop.permute.xlu0 %8452
    %v8455 = vlaneseq
    %v8456 = vshrl.u32 %v8455, 7
    %v8457 = vsub.s32 1, %v8456
    %v8458 = vrot.slane %v8363, %v8457
    %v8459 = vlaneseq
    %v8460 = vshrl.u32 %v8459, 7
    %v8461 = vsub.s32 1, %v8460
    %v8462 = vrot.slane %v8364, %v8461
    %v8463 = vmul.f32 %v8453, %v8458
    %v8464 = vmul.f32 %v8453, %v8462
    %v8465 = vadd.f32 %v8449, %v8463
    %v8466 = vadd.f32 %v8450, %v8464
    %8467 = vset.pattern.permute.xlu0 2
    %8468 = vperm.xlu0 %8467, %v8435
    %v8469 = vpop.permute.xlu0 %8468
    %v8471 = vlaneseq
    %v8472 = vshrl.u32 %v8471, 7
    %v8473 = vsub.s32 2, %v8472
    %v8474 = vrot.slane %v8363, %v8473
    %v8475 = vlaneseq
    %v8476 = vshrl.u32 %v8475, 7
    %v8477 = vsub.s32 2, %v8476
    %v8478 = vrot.slane %v8364, %v8477
    %v8479 = vmul.f32 %v8469, %v8474
    %v8480 = vmul.f32 %v8469, %v8478
    %v8481 = vadd.f32 %v8465, %v8479
    %v8482 = vadd.f32 %v8466, %v8480
    %8483 = vset.pattern.permute.xlu0 3
    %8484 = vperm.xlu0 %8483, %v8435
    %v8485 = vpop.permute.xlu0 %8484
    %v8487 = vlaneseq
    %v8488 = vshrl.u32 %v8487, 7
    %v8489 = vsub.s32 3, %v8488
    %v8490 = vrot.slane %v8363, %v8489
    %v8491 = vlaneseq
    %v8492 = vshrl.u32 %v8491, 7
    %v8493 = vsub.s32 3, %v8492
    %v8494 = vrot.slane %v8364, %v8493
    %v8495 = vmul.f32 %v8485, %v8490
    %v8496 = vmul.f32 %v8485, %v8494
    %v8497 = vadd.f32 %v8481, %v8495
    %v8498 = vadd.f32 %v8482, %v8496
    %8499 = vset.pattern.permute.xlu0 4
    %8500 = vperm.xlu0 %8499, %v8435
    %v8501 = vpop.permute.xlu0 %8500
    %v8503 = vlaneseq
    %v8504 = vshrl.u32 %v8503, 7
    %v8505 = vsub.s32 4, %v8504
    %v8506 = vrot.slane %v8363, %v8505
    %v8507 = vlaneseq
    %v8508 = vshrl.u32 %v8507, 7
    %v8509 = vsub.s32 4, %v8508
    %v8510 = vrot.slane %v8364, %v8509
    %v8511 = vmul.f32 %v8501, %v8506
    %v8512 = vmul.f32 %v8501, %v8510
    %v8513 = vadd.f32 %v8497, %v8511
    %v8514 = vadd.f32 %v8498, %v8512
    %8515 = vset.pattern.permute.xlu0 5
    %8516 = vperm.xlu0 %8515, %v8435
    %v8517 = vpop.permute.xlu0 %8516
    %v8519 = vlaneseq
    %v8520 = vshrl.u32 %v8519, 7
    %v8521 = vsub.s32 5, %v8520
    %v8522 = vrot.slane %v8363, %v8521
    %v8523 = vlaneseq
    %v8524 = vshrl.u32 %v8523, 7
    %v8525 = vsub.s32 5, %v8524
    %v8526 = vrot.slane %v8364, %v8525
    %v8527 = vmul.f32 %v8517, %v8522
    %v8528 = vmul.f32 %v8517, %v8526
    %v8529 = vadd.f32 %v8513, %v8527
    %v8530 = vadd.f32 %v8514, %v8528
    %8531 = vset.pattern.permute.xlu0 6
    %8532 = vperm.xlu0 %8531, %v8435
    %v8533 = vpop.permute.xlu0 %8532
    %v8535 = vlaneseq
    %v8536 = vshrl.u32 %v8535, 7
    %v8537 = vsub.s32 6, %v8536
    %v8538 = vrot.slane %v8363, %v8537
    %v8539 = vlaneseq
    %v8540 = vshrl.u32 %v8539, 7
    %v8541 = vsub.s32 6, %v8540
    %v8542 = vrot.slane %v8364, %v8541
    %v8543 = vmul.f32 %v8533, %v8538
    %v8544 = vmul.f32 %v8533, %v8542
    %v8545 = vadd.f32 %v8529, %v8543
    %v8546 = vadd.f32 %v8530, %v8544
    %8547 = vset.pattern.permute.xlu0 7
    %8548 = vperm.xlu0 %8547, %v8435
    %v8549 = vpop.permute.xlu0 %8548
    %v8551 = vlaneseq
    %v8552 = vshrl.u32 %v8551, 7
    %v8553 = vsub.s32 7, %v8552
    %v8554 = vrot.slane %v8363, %v8553
    %v8555 = vlaneseq
    %v8556 = vshrl.u32 %v8555, 7
    %v8557 = vsub.s32 7, %v8556
    %v8558 = vrot.slane %v8364, %v8557
    %v8559 = vmul.f32 %v8549, %v8554
    %v8560 = vmul.f32 %v8549, %v8558
    %v8561 = vadd.f32 %v8545, %v8559
    %v8562 = vadd.f32 %v8546, %v8560
    %v8563 = vmul.f32 %v8361, %v8561
    %v8564 = vmul.f32 %v8362, %v8562
    %v8565 = vld [vmem:[%s6] sm:$0x1]
    %v8566 = vpack.c.bf16 %v8563, %v8563
    %v8567 = vpack.c.bf16 %v8564, %v8564
    %v8568 = vpack.c.bf16 %v8367, %v8365
    %v8569 = vpack.c.bf16 %v8368, %v8366
    %v8571 = vlaneseq
    %v8572 = vshrl.u32 %v8571, 7
    %v8573 = vsub.s32 0, %v8572
    %v8574 = vrot.slane %v8565, %v8573
    %8576 = vmatprep.subr.bf16.mxu0 %v8569
    %8577 = vmatpush1.bf16.xpose.msra.mxu0 %v8568
    %8578 = vmatprep.subr.bf16.mxu0 0
    %8579 = vmatpush1.bf16.xpose.msra.mxu0 0
    %8580 = vmatprep.subr.bf16.mxu0 0
    %8581 = vmatpush1.bf16.xpose.msra.mxu0 0
    %8582 = vmatprep.subr.bf16.mxu0 0
    %8583 = vmatpush1.bf16.xpose.msra.mxu0 0
    %8584 = vmatprep.subr.bf16.mxu0 0
    %8585 = vmatpush1.bf16.xpose.msra.mxu0 0
    %8586 = vmatprep.subr.bf16.mxu0 0
    %8587 = vmatpush1.bf16.xpose.msra.mxu0 0
    %8588 = vmatprep.subr.bf16.mxu0 0
    %8589 = vmatpush1.bf16.xpose.msra.mxu0 0
    %8590 = vmatprep.subr.bf16.mxu0 0
    %8591 = vmatpush1.bf16.xpose.msra.mxu0 0
    %8592 = vmatprep.subr.bf16.mxu0 0
    %8593 = vmatpush1.bf16.xpose.msra.mxu0 0
    %8594 = vmatprep.subr.bf16.mxu0 0
    %8595 = vmatpush1.bf16.xpose.msra.mxu0 0
    %8596 = vmatprep.subr.bf16.mxu0 0
    %8597 = vmatpush1.bf16.xpose.msra.mxu0 0
    %8598 = vmatprep.subr.bf16.mxu0 0
    %8599 = vmatpush1.bf16.xpose.msra.mxu0 0
    %8600 = vmatprep.subr.bf16.mxu0 0
    %8601 = vmatpush1.bf16.xpose.msra.mxu0 0
    %8602 = vmatprep.subr.bf16.mxu0 0
    %8603 = vmatpush1.bf16.xpose.msra.mxu0 0
    %8604 = vmatprep.subr.bf16.mxu0 0
    %8605 = vmatpush1.bf16.xpose.msra.mxu0 0
    %8606 = vmatprep.subr.bf16.mxu0 0
    %8607 = vmatpush1.bf16.xpose.msra.mxu0 0
    %8608 = vmatprep.mubr.bf16.mxu0 %v8567
    %8609 = vmatmul.mubr.bf16.gmra.mrb[0].mxu0 %v8566
    %v8610 = vpop.f32.mrb[0].mxu0
    %v8611 = vadd.f32 %v8574, %v8610
    %v8612 = vpop.f32.mrb[0].mxu0
    %v8613 = vpop.f32.mrb[0].mxu0
    %v8614 = vpop.f32.mrb[0].mxu0
    %8615 = vdwg.mxu0
    %vm8616 = vcmask 130048
    %v8617 = vsel %vm8616, %v8611, -inf
    %8618 = vmax.xlane.f32.xlu0 %v8617
    %v8619 = vpop.xlane.xlu0 %8618
    %v8620 = vsub.f32 %v8611, %v8619
    %v8621 = vmul.f32 %v8620, 1.442695
    %v8622 = vpow.pop %v8621
    %v8623 = vsel %vm8616, %v8622, 0.0
    %8624 = vadd.xlane.f32.xlu0 %v8623
    %v8625 = vpop.xlane.xlu0 %8624
    %v8626 = vrcp.pop %v8625
    %v8627 = vmul.f32 %v8622, %v8626
    %8629 = vset.pattern.permute.xlu0 0
    %8630 = vperm.xlu0 %8629, %v8627
    %v8631 = vpop.permute.xlu0 %8630
    %v8633 = vlaneseq
    %v8634 = vshrl.u32 %v8633, 7
    %v8635 = vsub.s32 0, %v8634
    %v8636 = vrot.slane %v8365, %v8635
    %v8637 = vlaneseq
    %v8638 = vshrl.u32 %v8637, 7
    %v8639 = vsub.s32 0, %v8638
    %v8640 = vrot.slane %v8366, %v8639
    %v8641 = vmul.f32 %v8631, %v8636
    %v8642 = vmul.f32 %v8631, %v8640
    %8643 = vset.pattern.permute.xlu0 1
    %8644 = vperm.xlu0 %8643, %v8627
    %v8645 = vpop.permute.xlu0 %8644
    %v8647 = vlaneseq
    %v8648 = vshrl.u32 %v8647, 7
    %v8649 = vsub.s32 1, %v8648
    %v8650 = vrot.slane %v8365, %v8649
    %v8651 = vlaneseq
    %v8652 = vshrl.u32 %v8651, 7
    %v8653 = vsub.s32 1, %v8652
    %v8654 = vrot.slane %v8366, %v8653
    %v8655 = vmul.f32 %v8645, %v8650
    %v8656 = vmul.f32 %v8645, %v8654
    %v8657 = vadd.f32 %v8641, %v8655
    %v8658 = vadd.f32 %v8642, %v8656
    %8659 = vset.pattern.permute.xlu0 2
    %8660 = vperm.xlu0 %8659, %v8627
    %v8661 = vpop.permute.xlu0 %8660
    %v8663 = vlaneseq
    %v8664 = vshrl.u32 %v8663, 7
    %v8665 = vsub.s32 2, %v8664
    %v8666 = vrot.slane %v8365, %v8665
    %v8667 = vlaneseq
    %v8668 = vshrl.u32 %v8667, 7
    %v8669 = vsub.s32 2, %v8668
    %v8670 = vrot.slane %v8366, %v8669
    %v8671 = vmul.f32 %v8661, %v8666
    %v8672 = vmul.f32 %v8661, %v8670
    %v8673 = vadd.f32 %v8657, %v8671
    %v8674 = vadd.f32 %v8658, %v8672
    %8675 = vset.pattern.permute.xlu0 3
    %8676 = vperm.xlu0 %8675, %v8627
    %v8677 = vpop.permute.xlu0 %8676
    %v8679 = vlaneseq
    %v8680 = vshrl.u32 %v8679, 7
    %v8681 = vsub.s32 3, %v8680
    %v8682 = vrot.slane %v8365, %v8681
    %v8683 = vlaneseq
    %v8684 = vshrl.u32 %v8683, 7
    %v8685 = vsub.s32 3, %v8684
    %v8686 = vrot.slane %v8366, %v8685
    %v8687 = vmul.f32 %v8677, %v8682
    %v8688 = vmul.f32 %v8677, %v8686
    %v8689 = vadd.f32 %v8673, %v8687
    %v8690 = vadd.f32 %v8674, %v8688
    %8691 = vset.pattern.permute.xlu0 4
    %8692 = vperm.xlu0 %8691, %v8627
    %v8693 = vpop.permute.xlu0 %8692
    %v8695 = vlaneseq
    %v8696 = vshrl.u32 %v8695, 7
    %v8697 = vsub.s32 4, %v8696
    %v8698 = vrot.slane %v8365, %v8697
    %v8699 = vlaneseq
    %v8700 = vshrl.u32 %v8699, 7
    %v8701 = vsub.s32 4, %v8700
    %v8702 = vrot.slane %v8366, %v8701
    %v8703 = vmul.f32 %v8693, %v8698
    %v8704 = vmul.f32 %v8693, %v8702
    %v8705 = vadd.f32 %v8689, %v8703
    %v8706 = vadd.f32 %v8690, %v8704
    %8707 = vset.pattern.permute.xlu0 5
    %8708 = vperm.xlu0 %8707, %v8627
    %v8709 = vpop.permute.xlu0 %8708
    %v8711 = vlaneseq
    %v8712 = vshrl.u32 %v8711, 7
    %v8713 = vsub.s32 5, %v8712
    %v8714 = vrot.slane %v8365, %v8713
    %v8715 = vlaneseq
    %v8716 = vshrl.u32 %v8715, 7
    %v8717 = vsub.s32 5, %v8716
    %v8718 = vrot.slane %v8366, %v8717
    %v8719 = vmul.f32 %v8709, %v8714
    %v8720 = vmul.f32 %v8709, %v8718
    %v8721 = vadd.f32 %v8705, %v8719
    %v8722 = vadd.f32 %v8706, %v8720
    %8723 = vset.pattern.permute.xlu0 6
    %8724 = vperm.xlu0 %8723, %v8627
    %v8725 = vpop.permute.xlu0 %8724
    %v8727 = vlaneseq
    %v8728 = vshrl.u32 %v8727, 7
    %v8729 = vsub.s32 6, %v8728
    %v8730 = vrot.slane %v8365, %v8729
    %v8731 = vlaneseq
    %v8732 = vshrl.u32 %v8731, 7
    %v8733 = vsub.s32 6, %v8732
    %v8734 = vrot.slane %v8366, %v8733
    %v8735 = vmul.f32 %v8725, %v8730
    %v8736 = vmul.f32 %v8725, %v8734
    %v8737 = vadd.f32 %v8721, %v8735
    %v8738 = vadd.f32 %v8722, %v8736
    %8739 = vset.pattern.permute.xlu0 7
    %8740 = vperm.xlu0 %8739, %v8627
    %v8741 = vpop.permute.xlu0 %8740
    %v8743 = vlaneseq
    %v8744 = vshrl.u32 %v8743, 7
    %v8745 = vsub.s32 7, %v8744
    %v8746 = vrot.slane %v8365, %v8745
    %v8747 = vlaneseq
    %v8748 = vshrl.u32 %v8747, 7
    %v8749 = vsub.s32 7, %v8748
    %v8750 = vrot.slane %v8366, %v8749
    %v8751 = vmul.f32 %v8741, %v8746
    %v8752 = vmul.f32 %v8741, %v8750
    %v8753 = vadd.f32 %v8737, %v8751
    %v8754 = vadd.f32 %v8738, %v8752
    %8755 = vset.pattern.permute.xlu0 8
    %8756 = vperm.xlu0 %8755, %v8627
    %v8757 = vpop.permute.xlu0 %8756
    %v8759 = vlaneseq
    %v8760 = vshrl.u32 %v8759, 7
    %v8761 = vsub.s32 0, %v8760
    %v8762 = vrot.slane %v8367, %v8761
    %v8763 = vlaneseq
    %v8764 = vshrl.u32 %v8763, 7
    %v8765 = vsub.s32 0, %v8764
    %v8766 = vrot.slane %v8368, %v8765
    %v8767 = vmul.f32 %v8757, %v8762
    %v8768 = vmul.f32 %v8757, %v8766
    %v8769 = vadd.f32 %v8753, %v8767
    %v8770 = vadd.f32 %v8754, %v8768
    %8771 = vset.pattern.permute.xlu0 9
    %8772 = vperm.xlu0 %8771, %v8627
    %v8773 = vpop.permute.xlu0 %8772
    %v8775 = vlaneseq
    %v8776 = vshrl.u32 %v8775, 7
    %v8777 = vsub.s32 1, %v8776
    %v8778 = vrot.slane %v8367, %v8777
    %v8779 = vlaneseq
    %v8780 = vshrl.u32 %v8779, 7
    %v8781 = vsub.s32 1, %v8780
    %v8782 = vrot.slane %v8368, %v8781
    %v8783 = vmul.f32 %v8773, %v8778
    %v8784 = vmul.f32 %v8773, %v8782
    %v8785 = vadd.f32 %v8769, %v8783
    %v8786 = vadd.f32 %v8770, %v8784
    %8787 = vset.pattern.permute.xlu0 10
    %8788 = vperm.xlu0 %8787, %v8627
    %v8789 = vpop.permute.xlu0 %8788
    %v8791 = vlaneseq
    %v8792 = vshrl.u32 %v8791, 7
    %v8793 = vsub.s32 2, %v8792
    %v8794 = vrot.slane %v8367, %v8793
    %v8795 = vlaneseq
    %v8796 = vshrl.u32 %v8795, 7
    %v8797 = vsub.s32 2, %v8796
    %v8798 = vrot.slane %v8368, %v8797
    %v8799 = vmul.f32 %v8789, %v8794
    %v8800 = vmul.f32 %v8789, %v8798
    %v8801 = vadd.f32 %v8785, %v8799
    %v8802 = vadd.f32 %v8786, %v8800
    %8803 = vset.pattern.permute.xlu0 11
    %8804 = vperm.xlu0 %8803, %v8627
    %v8805 = vpop.permute.xlu0 %8804
    %v8807 = vlaneseq
    %v8808 = vshrl.u32 %v8807, 7
    %v8809 = vsub.s32 3, %v8808
    %v8810 = vrot.slane %v8367, %v8809
    %v8811 = vlaneseq
    %v8812 = vshrl.u32 %v8811, 7
    %v8813 = vsub.s32 3, %v8812
    %v8814 = vrot.slane %v8368, %v8813
    %v8815 = vmul.f32 %v8805, %v8810
    %v8816 = vmul.f32 %v8805, %v8814
    %v8817 = vadd.f32 %v8801, %v8815
    %v8818 = vadd.f32 %v8802, %v8816
    %8819 = vset.pattern.permute.xlu0 12
    %8820 = vperm.xlu0 %8819, %v8627
    %v8821 = vpop.permute.xlu0 %8820
    %v8823 = vlaneseq
    %v8824 = vshrl.u32 %v8823, 7
    %v8825 = vsub.s32 4, %v8824
    %v8826 = vrot.slane %v8367, %v8825
    %v8827 = vlaneseq
    %v8828 = vshrl.u32 %v8827, 7
    %v8829 = vsub.s32 4, %v8828
    %v8830 = vrot.slane %v8368, %v8829
    %v8831 = vmul.f32 %v8821, %v8826
    %v8832 = vmul.f32 %v8821, %v8830
    %v8833 = vadd.f32 %v8817, %v8831
    %v8834 = vadd.f32 %v8818, %v8832
    %8835 = vset.pattern.permute.xlu0 13
    %8836 = vperm.xlu0 %8835, %v8627
    %v8837 = vpop.permute.xlu0 %8836
    %v8839 = vlaneseq
    %v8840 = vshrl.u32 %v8839, 7
    %v8841 = vsub.s32 5, %v8840
    %v8842 = vrot.slane %v8367, %v8841
    %v8843 = vlaneseq
    %v8844 = vshrl.u32 %v8843, 7
    %v8845 = vsub.s32 5, %v8844
    %v8846 = vrot.slane %v8368, %v8845
    %v8847 = vmul.f32 %v8837, %v8842
    %v8848 = vmul.f32 %v8837, %v8846
    %v8849 = vadd.f32 %v8833, %v8847
    %v8850 = vadd.f32 %v8834, %v8848
    %8851 = vset.pattern.permute.xlu0 14
    %8852 = vperm.xlu0 %8851, %v8627
    %v8853 = vpop.permute.xlu0 %8852
    %v8855 = vlaneseq
    %v8856 = vshrl.u32 %v8855, 7
    %v8857 = vsub.s32 6, %v8856
    %v8858 = vrot.slane %v8367, %v8857
    %v8859 = vlaneseq
    %v8860 = vshrl.u32 %v8859, 7
    %v8861 = vsub.s32 6, %v8860
    %v8862 = vrot.slane %v8368, %v8861
    %v8863 = vmul.f32 %v8853, %v8858
    %v8864 = vmul.f32 %v8853, %v8862
    %v8865 = vadd.f32 %v8849, %v8863
    %v8866 = vadd.f32 %v8850, %v8864
    %8867 = vset.pattern.permute.xlu0 15
    %8868 = vperm.xlu0 %8867, %v8627
    %v8869 = vpop.permute.xlu0 %8868
    %v8871 = vlaneseq
    %v8872 = vshrl.u32 %v8871, 7
    %v8873 = vsub.s32 7, %v8872
    %v8874 = vrot.slane %v8367, %v8873
    %v8875 = vlaneseq
    %v8876 = vshrl.u32 %v8875, 7
    %v8877 = vsub.s32 7, %v8876
    %v8878 = vrot.slane %v8368, %v8877
    %v8879 = vmul.f32 %v8869, %v8874
    %v8880 = vmul.f32 %v8869, %v8878
    %v8881 = vadd.f32 %v8865, %v8879
    %v8882 = vadd.f32 %v8866, %v8880
    %v8883 = vmul.f32 %v8361, %v8881
    %v8884 = vmul.f32 %v8362, %v8882
    %v8885 = vld [vmem:[%s8] sm:$0x1]
    %v8886 = vpack.c.bf16 %v8883, %v8883
    %v8887 = vpack.c.bf16 %v8884, %v8884
    %v8888 = vpack.c.bf16 %v8371, %v8369
    %v8889 = vpack.c.bf16 %v8372, %v8370
    %v8891 = vlaneseq
    %v8892 = vshrl.u32 %v8891, 7
    %v8893 = vsub.s32 0, %v8892
    %v8894 = vrot.slane %v8885, %v8893
    %8896 = vmatprep.subr.bf16.mxu0 %v8889
    %8897 = vmatpush1.bf16.xpose.msra.mxu0 %v8888
    %8898 = vmatprep.subr.bf16.mxu0 0
    %8899 = vmatpush1.bf16.xpose.msra.mxu0 0
    %8900 = vmatprep.subr.bf16.mxu0 0
    %8901 = vmatpush1.bf16.xpose.msra.mxu0 0
    %8902 = vmatprep.subr.bf16.mxu0 0
    %8903 = vmatpush1.bf16.xpose.msra.mxu0 0
    %8904 = vmatprep.subr.bf16.mxu0 0
    %8905 = vmatpush1.bf16.xpose.msra.mxu0 0
    %8906 = vmatprep.subr.bf16.mxu0 0
    %8907 = vmatpush1.bf16.xpose.msra.mxu0 0
    %8908 = vmatprep.subr.bf16.mxu0 0
    %8909 = vmatpush1.bf16.xpose.msra.mxu0 0
    %8910 = vmatprep.subr.bf16.mxu0 0
    %8911 = vmatpush1.bf16.xpose.msra.mxu0 0
    %8912 = vmatprep.subr.bf16.mxu0 0
    %8913 = vmatpush1.bf16.xpose.msra.mxu0 0
    %8914 = vmatprep.subr.bf16.mxu0 0
    %8915 = vmatpush1.bf16.xpose.msra.mxu0 0
    %8916 = vmatprep.subr.bf16.mxu0 0
    %8917 = vmatpush1.bf16.xpose.msra.mxu0 0
    %8918 = vmatprep.subr.bf16.mxu0 0
    %8919 = vmatpush1.bf16.xpose.msra.mxu0 0
    %8920 = vmatprep.subr.bf16.mxu0 0
    %8921 = vmatpush1.bf16.xpose.msra.mxu0 0
    %8922 = vmatprep.subr.bf16.mxu0 0
    %8923 = vmatpush1.bf16.xpose.msra.mxu0 0
    %8924 = vmatprep.subr.bf16.mxu0 0
    %8925 = vmatpush1.bf16.xpose.msra.mxu0 0
    %8926 = vmatprep.subr.bf16.mxu0 0
    %8927 = vmatpush1.bf16.xpose.msra.mxu0 0
    %8928 = vmatprep.mubr.bf16.mxu0 %v8887
    %8929 = vmatmul.mubr.bf16.gmra.mrb[0].mxu0 %v8886
    %v8930 = vpop.f32.mrb[0].mxu0
    %v8931 = vadd.f32 %v8894, %v8930
    %v8932 = vpop.f32.mrb[0].mxu0
    %v8933 = vpop.f32.mrb[0].mxu0
    %v8934 = vpop.f32.mrb[0].mxu0
    %8935 = vdwg.mxu0
    %8937 = vrot.lane.b32.xlu0 %v8611, 10
    %v8938 = vpop.permute.xlu0 %8937
    %8941 = vrot.lane.b32.xlu0 %v8419, 26
    %v8942 = vpop.permute.xlu0 %8941
    %vm8944 = vcmask 80896
    %v8945 = vsel %vm8944, %v8931, %v8938
    %vm8946 = vcmask 211968
    %v8947 = vsel %vm8946, %v8945, %v8942
    %vm8948 = vcmask 277504
    %v8949 = vsel %vm8948, %v8947, 0.0
    %8950 = vst [vmem:[%s9] sm:$0xff] %v8949
  $region45: #{asn_correct_forward.1} parent=0 // pred_fallthru
    _
  // Predicated region
  $region46: #{asn_correct_forward.1} parent=0 // pred_check
    _
  $region47: #{asn_correct_forward.1} parent=0 // pred_check_branch
    %8952 = sbr.rel (0) target = $region49
  $region48: #{asn_correct_forward.1} parent=0 // pred_region
    _
  $region49: #{asn_correct_forward.1} parent=0 // pred_fallthru
    _
  // Predicated region
  $region50: #{asn_correct_forward.1} parent=0 // pred_check
    _
  $region51: #{asn_correct_forward.1} parent=0 // pred_check_branch
    %8954 = sbr.rel (0) target = $region53
  $region52: #{asn_correct_forward.1} parent=0 // pred_region
    _
  $region53: #{asn_correct_forward.1} parent=0 // pred_fallthru
    _

</llo_original>
